<compile_context>
chip_gen: v7x
topology: tpu7x:2x2x1
jax: 0.10.0
libtpu: 0.0.40
codegen_flags: <defaults>
</compile_context>

<pallas_src>
import numpy as np
import jax
import jax.numpy as jnp
from jax.experimental import pallas as pl
from jax.experimental.pallas import tpu as pltpu


# ------------------------------ small helpers ------------------------------ #

def _round_up(x, m):
    return ((x + m - 1) // m) * m


def _pool_select(n, h, w):
    """(n*h2*w2, n*h*w) 0/1 matrix selecting the top-left row of each 2x2 window."""
    h2, w2 = h // 2, w // 2
    p = np.zeros((n * h2 * w2, n * h * w), np.float32)
    for nn in range(n):
        for a in range(h2):
            for b in range(w2):
                p[(nn * h2 + a) * w2 + b, (nn * h + 2 * a) * w + 2 * b] = 1.0
    return p


def _gap_matrix(n, s):
    """(n, n*s): per-image mean over s spatial positions."""
    g = np.zeros((n, n * s), np.float32)
    for nn in range(n):
        g[nn, nn * s:(nn + 1) * s] = 1.0 / s
    return g


def _diff_select(b):
    """(B, 2B): rows of e[:B] minus rows of e[B:]."""
    return np.concatenate([np.eye(b, dtype=np.float32),
                           -np.eye(b, dtype=np.float32)], axis=1)


# ------------------------------ fused kernel ------------------------------- #

def _make_kernel(cfg):
    ns, hs, ws_, pads, offs, cs = cfg   # rows, heights, widths, halo pads, tap offsets, chans

    def kernel(x_ref, w1_ref, b1_ref,
               w2_ref, b2_ref, w3_ref, b3_ref, w4_ref, b4_ref,
               p2_ref, p3_ref,
               g_ref, fcw_ref, fcb_ref, lng_ref, lnb_ref, dsel_ref,
               o_ref,
               s2, q2, s3, q3, s4):
        f32 = jnp.float32

        def tap_masks(n_rows, h, w):
            # per-tap validity masks generated in-kernel (few VPU ops) instead of DMA'ing
            # (9, rows, 1) f32 constants from HBM.  h, w are powers of two (asserted).
            r = jax.lax.broadcasted_iota(jnp.int32, (n_rows, 1), 0)
            j = jnp.bitwise_and(r, w - 1)
            i = jnp.bitwise_and(jnp.right_shift(r, int(np.log2(w))), h - 1)
            ms = []
            for kh in (-1, 0, 1):
                for kw in (-1, 0, 1):
                    conds = []
                    if kh < 0:
                        conds.append(i >= 1)
                    if kh > 0:
                        conds.append(i <= h - 2)
                    if kw < 0:
                        conds.append(j >= 1)
                    if kw > 0:
                        conds.append(j <= w - 2)
                    if not conds:
                        ms.append(None)               # centre tap: always valid
                    else:
                        ok = conds[0]
                        for c in conds[1:]:
                            ok = jnp.logical_and(ok, c)
                        ms.append(ok.astype(f32))
            return ms

        def conv(s_ref, w_ref, b_ref, masks, taps, n_rows, pad, cout):
            acc = jnp.zeros((n_rows, cout), f32)
            for t, off in enumerate(taps):
                xt = s_ref[pl.ds(pad + off, n_rows), :]
                if masks[t] is not None:
                    xt = xt * masks[t]
                acc = acc + jnp.dot(xt, w_ref[t], preferred_element_type=f32)
            return jnp.maximum(acc + b_ref[...], 0.0)

        def stage(val, s_ref, n_rows, pad, cin):
            # zero only the halo rows, then place the activation in the middle
            s_ref[pl.ds(0, pad), :] = jnp.zeros((pad, cin), f32)
            s_ref[pl.ds(pad, n_rows), :] = val
            s_ref[pl.ds(pad + n_rows, pad), :] = jnp.zeros((pad, cin), f32)

        def pool_compact(a, q_ref, sel_ref, n_rows, width, tail, cout):
            q_ref[pl.ds(0, n_rows), :] = a
            q_ref[pl.ds(n_rows, tail), :] = jnp.zeros((tail, cout), f32)   # zero only tail
            m01 = jnp.maximum(q_ref[pl.ds(0, n_rows), :], q_ref[pl.ds(1, n_rows), :])
            m23 = jnp.maximum(q_ref[pl.ds(width, n_rows), :],
                              q_ref[pl.ds(width + 1, n_rows), :])
            pooled = jnp.maximum(m01, m23)                 # 2x2 max at every position
            # tiny stride-2 compaction as a 0/1 selection matmul (layers 2/3 only)
            return jnp.dot(sel_ref[...], pooled, preferred_element_type=f32)

        # ---- layer 1: conv(cin->32) as one im2col dot per pool block; MaxPool(2) is the
        #      elementwise max of the 4 blocks (no masks, no selection matmul, no spills) ----
        w1 = w1_ref[...]
        nblk = ns[1]
        c1 = None
        for q in range(4):
            blk = jnp.dot(x_ref[pl.ds(q * nblk, nblk), :], w1, preferred_element_type=f32)
            c1 = blk if c1 is None else jnp.maximum(c1, blk)
        c1 = jnp.maximum(c1 + b1_ref[...], 0.0)            # bias/ReLU commute with max

        # ---- layer 2: conv(32->64)+ReLU, pool ----
        stage(c1, s2, ns[1], pads[1], cs[1])
        a2 = conv(s2, w2_ref, b2_ref, tap_masks(ns[1], hs[1], ws_[1]),
                  offs[1], ns[1], pads[1], cs[2])
        c2 = pool_compact(a2, q2, p2_ref, ns[1], ws_[1], pads[1], cs[2])

        # ---- layer 3: conv(64->128)+ReLU, pool ----
        stage(c2, s3, ns[2], pads[2], cs[2])
        a3 = conv(s3, w3_ref, b3_ref, tap_masks(ns[2], hs[2], ws_[2]),
                  offs[2], ns[2], pads[2], cs[3])
        c3 = pool_compact(a3, q3, p3_ref, ns[2], ws_[2], pads[2], cs[3])

        # ---- layer 4: conv(128->256)+ReLU ----
        stage(c3, s4, ns[3], pads[3], cs[3])
        a4 = conv(s4, w4_ref, b4_ref, tap_masks(ns[3], hs[3], ws_[3]),
                  offs[3], ns[3], pads[3], cs[4])

        # ---- GAP -> FC -> LayerNorm (both branches in one dot) ----
        gap = jnp.dot(g_ref[...], a4, preferred_element_type=f32)            # (2B, 256)
        e = jnp.dot(gap, fcw_ref[...], preferred_element_type=f32) + fcb_ref[...]
        mu = jnp.mean(e, axis=-1, keepdims=True)
        var = jnp.mean(jnp.square(e - mu), axis=-1, keepdims=True)
        e = (e - mu) * jax.lax.rsqrt(var + 1e-5) * lng_ref[...] + lnb_ref[...]

        # ---- per-pair Euclidean distance ----
        diff = jnp.dot(dsel_ref[...], e, preferred_element_type=f32)         # (B, E)
        d = jnp.sqrt(jnp.sum(diff * diff, axis=-1, keepdims=True))           # (B, 1)
        o_ref[...] = jnp.broadcast_to(d, o_ref.shape)                        # lane-dense slab

    return kernel


# ------------------------------ model / params ----------------------------- #

def init_params(key, input_channels=1, embedding_dim=128):
    chans = [input_channels, 32, 64, 128, 256]
    keys = jax.random.split(key, 10)
    ki = 0
    convs = []
    for i in range(4):
        cin, cout = chans[i], chans[i + 1]
        bound = 1.0 / np.sqrt(cin * 9)
        w = jax.random.uniform(keys[ki], (3, 3, cin, cout), jnp.float32, -bound, bound); ki += 1
        b = jax.random.uniform(keys[ki], (cout,), jnp.float32, -bound, bound); ki += 1
        convs.append((w, b))
    bound = 1.0 / np.sqrt(256)
    fc_w = jax.random.uniform(keys[ki], (256, embedding_dim), jnp.float32, -bound, bound); ki += 1
    fc_b = jax.random.uniform(keys[ki], (embedding_dim,), jnp.float32, -bound, bound); ki += 1
    ln_g = jnp.ones((embedding_dim,), jnp.float32)
    ln_b = jnp.zeros((embedding_dim,), jnp.float32)
    return convs, (fc_w, fc_b, ln_g, ln_b)


@jax.jit
def siamese_forward(params, x1_nchw, x2_nchw):
    """Equivalent of SiameseNetwork.forward; inputs are NCHW like PyTorch."""
    convs, (fc_w, fc_b, ln_g, ln_b) = params
    B, cin, H, W = x1_nchw.shape
    n = 2 * B
    E = fc_w.shape[1]
    chans = [cin] + [w.shape[-1] for (w, _) in convs]          # [cin, 32, 64, 128, 256]

    assert H % 8 == 0 and W % 8 == 0, "three 2x2 pools need H, W divisible by 8"
    assert (H & (H - 1)) == 0 and (W & (W - 1)) == 0, "in-kernel masks use bitwise index math"

    hs = [H, H // 2, H // 4, H // 8]
    ws_ = [W, W // 2, W // 4, W // 8]
    ns = [n * hs[l] * ws_[l] for l in range(4)]
    pads = [_round_up(ws_[l] + 1, 8) for l in range(4)]
    offs = [tuple(kh * ws_[l] + kw for kh in (-1, 0, 1) for kw in (-1, 0, 1))
            for l in range(4)]
    for l in (1, 2, 3):
        assert pads[l] >= ws_[l] + 1    # halo/tail must cover the furthest tap & pool shift

    # --- conv1 im2col (SAME padding baked in as zeros), rows in pool-block order so that
    #     MaxPool(2) becomes an elementwise max over 4 contiguous row blocks in the kernel ---
    f32 = jnp.float32
    x = jnp.concatenate([x1_nchw, x2_nchw], axis=0).astype(f32)
    x = jnp.transpose(x, (0, 2, 3, 1))                                   # (n, H, W, cin)
    xp = jnp.pad(x, ((0, 0), (1, 1), (1, 1), (0, 0)))
    pats = jnp.concatenate([xp[:, dh:dh + H, dw:dw + W, :]
                            for dh in range(3) for dw in range(3)], axis=-1)  # (n,H,W,9*cin)
    k1 = 9 * cin
    k1p = max(k1, 16)
    pats = pats.reshape(n, H // 2, 2, W // 2, 2, k1)
    pats = jnp.transpose(pats, (2, 4, 0, 1, 3, 5)).reshape(4 * ns[1], k1)
    x_im2col = jnp.pad(pats, ((0, 0), (0, k1p - k1)))                    # (4*n*(H/2)*(W/2), k1p)

    w1 = jnp.pad(convs[0][0].reshape(k1, chans[1]), ((0, k1p - k1), (0, 0)))
    b1 = convs[0][1].reshape(1, -1)
    wr = [convs[l][0].reshape(9, chans[l], chans[l + 1]) for l in (1, 2, 3)]
    br = [convs[l][1].reshape(1, -1) for l in (1, 2, 3)]

    # tiny constants (layer-1 selection matrix and all masks were removed entirely)
    psel2 = jnp.asarray(_pool_select(n, hs[1], ws_[1]))
    psel3 = jnp.asarray(_pool_select(n, hs[2], ws_[2]))
    gmat = jnp.asarray(_gap_matrix(n, hs[3] * ws_[3]))
    dsel = jnp.asarray(_diff_select(B))

    inputs = [x_im2col, w1, b1,
              wr[0], br[0], wr[1], br[1], wr[2], br[2],
              psel2, psel3,
              gmat, fc_w, fc_b.reshape(1, E), ln_g.reshape(1, E), ln_b.reshape(1, E),
              dsel]

    def _vspec(shape):
        return pl.BlockSpec(shape, lambda i, _s=shape: (0,) * len(_s))

    scratch = [
        pltpu.VMEM((ns[1] + 2 * pads[1], chans[1]), f32),   # s2: conv2 staged input (+halo)
        pltpu.VMEM((ns[1] + pads[1], chans[2]), f32),       # q2: conv2 out (+tail) for pool
        pltpu.VMEM((ns[2] + 2 * pads[2], chans[2]), f32),   # s3
        pltpu.VMEM((ns[2] + pads[2], chans[3]), f32),       # q3
        pltpu.VMEM((ns[3] + 2 * pads[3], chans[3]), f32),   # s4
    ]

    kernel = _make_kernel((ns, hs, ws_, pads, offs, chans))

    out = pl.pallas_call(
        kernel,
        out_shape=jax.ShapeDtypeStruct((B, 128), f32),
        grid=(1,),
        in_specs=[_vspec(tuple(a.shape)) for a in inputs],
        out_specs=_vspec((B, 128)),
        scratch_shapes=scratch,
        compiler_params=pltpu.CompilerParams(
            dimension_semantics=("arbitrary",),
            vmem_limit_bytes=32 * 1024 * 1024),
    )(*inputs)
    return out[:, 0]


# ------------------------------- pure-JAX ref ------------------------------ #

def reference_forward(params, x1_nchw, x2_nchw):
    convs, (fc_w, fc_b, ln_g, ln_b) = params

    def enc(xn):
        x = jnp.transpose(xn, (0, 2, 3, 1)).astype(jnp.float32)
        for i, (w, b) in enumerate(convs):
            x = jax.lax.conv_general_dilated(
                x, w, (1, 1), 'SAME',
                dimension_numbers=('NHWC', 'HWIO', 'NHWC')) + b
            x = jnp.maximum(x, 0.0)
            if i < 3:
                Bb, Hh, Ww, Cc = x.shape
                x = x.reshape(Bb, Hh // 2, 2, Ww // 2, 2, Cc).max(axis=(2, 4))
        p = x.mean(axis=(1, 2))
        e = p @ fc_w + fc_b
        mu = e.mean(-1, keepdims=True)
        var = ((e - mu) ** 2).mean(-1, keepdims=True)
        return (e - mu) / jnp.sqrt(var + 1e-5) * ln_g + ln_b

    e1, e2 = enc(x1_nchw), enc(x2_nchw)
    return jnp.sqrt(((e1 - e2) ** 2).sum(axis=1))


# ----------------------------------- main ----------------------------------- #

if __name__ == "__main__":
    key = jax.random.PRNGKey(0)
    k_params, k_x1, k_x2 = jax.random.split(key, 3)

    params = init_params(k_params, input_channels=1, embedding_dim=128)

    B, C, H, W = 2, 1, 16, 16               # NCHW, matches Encoder(input_channels=1)
    x1 = jax.random.normal(k_x1, (B, C, H, W), jnp.float32)
    x2 = jax.random.normal(k_x2, (B, C, H, W), jnp.float32)

    dist = jax.block_until_ready(siamese_forward(params, x1, x2))
    ref = jax.block_until_ready(reference_forward(params, x1, x2))

    assert dist.shape == (B,)
    assert np.all(np.isfinite(np.asarray(dist)))
    np.testing.assert_allclose(np.asarray(dist), np.asarray(ref), rtol=1e-3, atol=1e-3)

    print("KERNEL_OK")
</pallas_src>

<mosaic_0001>
module attributes {stable_mosaic.version = 11 : i64} {
  func.func @kernel(%arg0: i32, %arg1: memref<1024x16xf32, #tpu.memory_space<vmem>>, %arg2: memref<16x32xf32, #tpu.memory_space<vmem>>, %arg3: memref<1x32xf32, #tpu.memory_space<vmem>>, %arg4: memref<9x32x64xf32, #tpu.memory_space<vmem>>, %arg5: memref<1x64xf32, #tpu.memory_space<vmem>>, %arg6: memref<9x64x128xf32, #tpu.memory_space<vmem>>, %arg7: memref<1x128xf32, #tpu.memory_space<vmem>>, %arg8: memref<9x128x256xf32, #tpu.memory_space<vmem>>, %arg9: memref<1x256xf32, #tpu.memory_space<vmem>>, %arg10: memref<64x256xf32, #tpu.memory_space<vmem>>, %arg11: memref<16x64xf32, #tpu.memory_space<vmem>>, %arg12: memref<4x16xf32, #tpu.memory_space<vmem>>, %arg13: memref<256x128xf32, #tpu.memory_space<vmem>>, %arg14: memref<1x128xf32, #tpu.memory_space<vmem>>, %arg15: memref<1x128xf32, #tpu.memory_space<vmem>>, %arg16: memref<1x128xf32, #tpu.memory_space<vmem>>, %arg17: memref<2x4xf32, #tpu.memory_space<vmem>>, %arg18: memref<2x128xf32, #tpu.memory_space<vmem>>, %arg19: memref<288x32xf32, #tpu.memory_space<vmem>>, %arg20: memref<272x64xf32, #tpu.memory_space<vmem>>, %arg21: memref<80x64xf32, #tpu.memory_space<vmem>>, %arg22: memref<72x128xf32, #tpu.memory_space<vmem>>, %arg23: memref<32x128xf32, #tpu.memory_space<vmem>>) attributes {dimension_semantics = [#tpu.dimension_semantics<arbitrary>], iteration_bounds = array<i64: 1>, scalar_prefetch = 0 : i64, scratch_operands = 5 : i64, tpu.core_type = #tpu.core_type<tc>, window_params = [{pipeline_mode = #tpu.pipeline_mode<synchronous>, transform_indices = @transform_0, window_bounds = array<i64: 1024, 16>}, {pipeline_mode = #tpu.pipeline_mode<synchronous>, transform_indices = @transform_1, window_bounds = array<i64: 16, 32>}, {pipeline_mode = #tpu.pipeline_mode<synchronous>, transform_indices = @transform_2, window_bounds = array<i64: 1, 32>}, {pipeline_mode = #tpu.pipeline_mode<synchronous>, transform_indices = @transform_3, window_bounds = array<i64: 9, 32, 64>}, {pipeline_mode = #tpu.pipeline_mode<synchronous>, transform_indices = @transform_4, window_bounds = array<i64: 1, 64>}, {pipeline_mode = #tpu.pipeline_mode<synchronous>, transform_indices = @transform_5, window_bounds = array<i64: 9, 64, 128>}, {pipeline_mode = #tpu.pipeline_mode<synchronous>, transform_indices = @transform_6, window_bounds = array<i64: 1, 128>}, {pipeline_mode = #tpu.pipeline_mode<synchronous>, transform_indices = @transform_7, window_bounds = array<i64: 9, 128, 256>}, {pipeline_mode = #tpu.pipeline_mode<synchronous>, transform_indices = @transform_8, window_bounds = array<i64: 1, 256>}, {pipeline_mode = #tpu.pipeline_mode<synchronous>, transform_indices = @transform_9, window_bounds = array<i64: 64, 256>}, {pipeline_mode = #tpu.pipeline_mode<synchronous>, transform_indices = @transform_10, window_bounds = array<i64: 16, 64>}, {pipeline_mode = #tpu.pipeline_mode<synchronous>, transform_indices = @transform_11, window_bounds = array<i64: 4, 16>}, {pipeline_mode = #tpu.pipeline_mode<synchronous>, transform_indices = @transform_12, window_bounds = array<i64: 256, 128>}, {pipeline_mode = #tpu.pipeline_mode<synchronous>, transform_indices = @transform_13, window_bounds = array<i64: 1, 128>}, {pipeline_mode = #tpu.pipeline_mode<synchronous>, transform_indices = @transform_14, window_bounds = array<i64: 1, 128>}, {pipeline_mode = #tpu.pipeline_mode<synchronous>, transform_indices = @transform_15, window_bounds = array<i64: 1, 128>}, {pipeline_mode = #tpu.pipeline_mode<synchronous>, transform_indices = @transform_16, window_bounds = array<i64: 2, 4>}, {pipeline_mode = #tpu.pipeline_mode<synchronous>, transform_indices = @transform_17, window_bounds = array<i64: 2, 128>}]} {
    %c0 = arith.constant 0 : index
    %c0_0 = arith.constant 0 : index
    %0 = vector.load %arg2[%c0, %c0_0] : memref<16x32xf32, #tpu.memory_space<vmem>>, vector<16x32xf32>
    %c0_1 = arith.constant 0 : index
    %c0_2 = arith.constant 0 : index
    %1 = vector.load %arg1[%c0_1, %c0_2] : memref<1024x16xf32, #tpu.memory_space<vmem>>, vector<256x16xf32>
    %cst = arith.constant dense<0.000000e+00> : vector<256x32xf32>
    %2 = tpu.matmul %1, %0, %cst {dimension_numbers = #tpu.dot_dimension_numbers<[1], [0], [0], [1], [0, 0, 1, 1], [], []>} : vector<256x16xf32>, vector<16x32xf32>, vector<256x32xf32> -> vector<256x32xf32>
    %c256 = arith.constant 256 : index
    %c0_3 = arith.constant 0 : index
    %3 = vector.load %arg1[%c256, %c0_3] : memref<1024x16xf32, #tpu.memory_space<vmem>>, vector<256x16xf32>
    %cst_4 = arith.constant dense<0.000000e+00> : vector<256x32xf32>
    %4 = tpu.matmul %3, %0, %cst_4 {dimension_numbers = #tpu.dot_dimension_numbers<[1], [0], [0], [1], [0, 0, 1, 1], [], []>} : vector<256x16xf32>, vector<16x32xf32>, vector<256x32xf32> -> vector<256x32xf32>
    %5 = arith.maximumf %2, %4 : vector<256x32xf32>
    %c512 = arith.constant 512 : index
    %c0_5 = arith.constant 0 : index
    %6 = vector.load %arg1[%c512, %c0_5] : memref<1024x16xf32, #tpu.memory_space<vmem>>, vector<256x16xf32>
    %cst_6 = arith.constant dense<0.000000e+00> : vector<256x32xf32>
    %7 = tpu.matmul %6, %0, %cst_6 {dimension_numbers = #tpu.dot_dimension_numbers<[1], [0], [0], [1], [0, 0, 1, 1], [], []>} : vector<256x16xf32>, vector<16x32xf32>, vector<256x32xf32> -> vector<256x32xf32>
    %8 = arith.maximumf %5, %7 : vector<256x32xf32>
    %c768 = arith.constant 768 : index
    %c0_7 = arith.constant 0 : index
    %9 = vector.load %arg1[%c768, %c0_7] : memref<1024x16xf32, #tpu.memory_space<vmem>>, vector<256x16xf32>
    %cst_8 = arith.constant dense<0.000000e+00> : vector<256x32xf32>
    %10 = tpu.matmul %9, %0, %cst_8 {dimension_numbers = #tpu.dot_dimension_numbers<[1], [0], [0], [1], [0, 0, 1, 1], [], []>} : vector<256x16xf32>, vector<16x32xf32>, vector<256x32xf32> -> vector<256x32xf32>
    %11 = arith.maximumf %8, %10 : vector<256x32xf32>
    %c0_9 = arith.constant 0 : index
    %c0_10 = arith.constant 0 : index
    %12 = vector.load %arg3[%c0_9, %c0_10] : memref<1x32xf32, #tpu.memory_space<vmem>>, vector<1x32xf32>
    %13 = vector.broadcast %12 : vector<1x32xf32> to vector<256x32xf32>
    %14 = arith.addf %11, %13 : vector<256x32xf32>
    %cst_11 = arith.constant 0.000000e+00 : f32
    %15 = vector.broadcast %cst_11 : f32 to vector<256x32xf32>
    %16 = arith.maximumf %14, %15 : vector<256x32xf32>
    %cst_12 = arith.constant 0.000000e+00 : f32
    %17 = vector.broadcast %cst_12 : f32 to vector<16x32xf32>
    %c0_13 = arith.constant 0 : index
    %c0_14 = arith.constant 0 : index
    %18 = vector.load %arg19[%c0_13, %c0_14] : memref<288x32xf32, #tpu.memory_space<vmem>>, vector<16x32xf32>
    tpu.vector_store %arg19[%c0_13, %c0_14], %17 {strides = array<i32>} : memref<288x32xf32, #tpu.memory_space<vmem>>, vector<16x32xf32>,
    %c16 = arith.constant 16 : index
    %c0_15 = arith.constant 0 : index
    %19 = vector.load %arg19[%c16, %c0_15] : memref<288x32xf32, #tpu.memory_space<vmem>>, vector<256x32xf32>
    tpu.vector_store %arg19[%c16, %c0_15], %16 {strides = array<i32>} : memref<288x32xf32, #tpu.memory_space<vmem>>, vector<256x32xf32>,
    %cst_16 = arith.constant 0.000000e+00 : f32
    %20 = vector.broadcast %cst_16 : f32 to vector<16x32xf32>
    %c272 = arith.constant 272 : index
    %c0_17 = arith.constant 0 : index
    %21 = vector.load %arg19[%c272, %c0_17] : memref<288x32xf32, #tpu.memory_space<vmem>>, vector<16x32xf32>
    tpu.vector_store %arg19[%c272, %c0_17], %20 {strides = array<i32>} : memref<288x32xf32, #tpu.memory_space<vmem>>, vector<16x32xf32>,
    %22 = tpu.iota {dimensions = array<i32: 0>} : vector<256x1xi32>
    %c7_i32 = arith.constant 7 : i32
    %23 = vector.broadcast %c7_i32 : i32 to vector<256x1xi32>
    %24 = arith.andi %22, %23 : vector<256x1xi32>
    %c3_i32 = arith.constant 3 : i32
    %25 = vector.broadcast %c3_i32 : i32 to vector<256x1xi32>
    %26 = arith.shrsi %22, %25 : vector<256x1xi32>
    %c7_i32_18 = arith.constant 7 : i32
    %27 = vector.broadcast %c7_i32_18 : i32 to vector<256x1xi32>
    %28 = arith.andi %26, %27 : vector<256x1xi32>
    %c1_i32 = arith.constant 1 : i32
    %29 = vector.broadcast %c1_i32 : i32 to vector<256x1xi32>
    %30 = arith.cmpi sge, %28, %29 : vector<256x1xi32>
    %c1_i32_19 = arith.constant 1 : i32
    %31 = vector.broadcast %c1_i32_19 : i32 to vector<256x1xi32>
    %32 = arith.cmpi sge, %24, %31 : vector<256x1xi32>
    %33 = arith.andi %30, %32 : vector<256x1xi1>
    %34 = arith.extui %33 : vector<256x1xi1> to vector<256x1xi32>
    %35 = arith.sitofp %34 : vector<256x1xi32> to vector<256x1xf32>
    %c1_i32_20 = arith.constant 1 : i32
    %36 = vector.broadcast %c1_i32_20 : i32 to vector<256x1xi32>
    %37 = arith.cmpi sge, %28, %36 : vector<256x1xi32>
    %38 = arith.extui %37 : vector<256x1xi1> to vector<256x1xi32>
    %39 = arith.sitofp %38 : vector<256x1xi32> to vector<256x1xf32>
    %c1_i32_21 = arith.constant 1 : i32
    %40 = vector.broadcast %c1_i32_21 : i32 to vector<256x1xi32>
    %41 = arith.cmpi sge, %28, %40 : vector<256x1xi32>
    %c6_i32 = arith.constant 6 : i32
    %42 = vector.broadcast %c6_i32 : i32 to vector<256x1xi32>
    %43 = arith.cmpi sle, %24, %42 : vector<256x1xi32>
    %44 = arith.andi %41, %43 : vector<256x1xi1>
    %45 = arith.extui %44 : vector<256x1xi1> to vector<256x1xi32>
    %46 = arith.sitofp %45 : vector<256x1xi32> to vector<256x1xf32>
    %c1_i32_22 = arith.constant 1 : i32
    %47 = vector.broadcast %c1_i32_22 : i32 to vector<256x1xi32>
    %48 = arith.cmpi sge, %24, %47 : vector<256x1xi32>
    %49 = arith.extui %48 : vector<256x1xi1> to vector<256x1xi32>
    %50 = arith.sitofp %49 : vector<256x1xi32> to vector<256x1xf32>
    %c6_i32_23 = arith.constant 6 : i32
    %51 = vector.broadcast %c6_i32_23 : i32 to vector<256x1xi32>
    %52 = arith.cmpi sle, %24, %51 : vector<256x1xi32>
    %53 = arith.extui %52 : vector<256x1xi1> to vector<256x1xi32>
    %54 = arith.sitofp %53 : vector<256x1xi32> to vector<256x1xf32>
    %c6_i32_24 = arith.constant 6 : i32
    %55 = vector.broadcast %c6_i32_24 : i32 to vector<256x1xi32>
    %56 = arith.cmpi sle, %28, %55 : vector<256x1xi32>
    %c1_i32_25 = arith.constant 1 : i32
    %57 = vector.broadcast %c1_i32_25 : i32 to vector<256x1xi32>
    %58 = arith.cmpi sge, %24, %57 : vector<256x1xi32>
    %59 = arith.andi %56, %58 : vector<256x1xi1>
    %60 = arith.extui %59 : vector<256x1xi1> to vector<256x1xi32>
    %61 = arith.sitofp %60 : vector<256x1xi32> to vector<256x1xf32>
    %c6_i32_26 = arith.constant 6 : i32
    %62 = vector.broadcast %c6_i32_26 : i32 to vector<256x1xi32>
    %63 = arith.cmpi sle, %28, %62 : vector<256x1xi32>
    %64 = arith.extui %63 : vector<256x1xi1> to vector<256x1xi32>
    %65 = arith.sitofp %64 : vector<256x1xi32> to vector<256x1xf32>
    %c6_i32_27 = arith.constant 6 : i32
    %66 = vector.broadcast %c6_i32_27 : i32 to vector<256x1xi32>
    %67 = arith.cmpi sle, %28, %66 : vector<256x1xi32>
    %c6_i32_28 = arith.constant 6 : i32
    %68 = vector.broadcast %c6_i32_28 : i32 to vector<256x1xi32>
    %69 = arith.cmpi sle, %24, %68 : vector<256x1xi32>
    %70 = arith.andi %67, %69 : vector<256x1xi1>
    %71 = arith.extui %70 : vector<256x1xi1> to vector<256x1xi32>
    %72 = arith.sitofp %71 : vector<256x1xi32> to vector<256x1xf32>
    %cst_29 = arith.constant 0.000000e+00 : f32
    %73 = vector.broadcast %cst_29 : f32 to vector<256x64xf32>
    %c7 = arith.constant 7 : index
    %c0_30 = arith.constant 0 : index
    %74 = vector.load %arg19[%c7, %c0_30] : memref<288x32xf32, #tpu.memory_space<vmem>>, vector<256x32xf32>
    %75 = vector.broadcast %35 : vector<256x1xf32> to vector<256x32xf32>
    %76 = arith.mulf %74, %75 : vector<256x32xf32>
    %c0_31 = arith.constant 0 : index
    %c0_32 = arith.constant 0 : index
    %c0_33 = arith.constant 0 : index
    %77 = vector.load %arg4[%c0_31, %c0_32, %c0_33] : memref<9x32x64xf32, #tpu.memory_space<vmem>>, vector<1x32x64xf32>
    %78 = vector.shape_cast %77 : vector<1x32x64xf32> to vector<32x64xf32>
    %cst_34 = arith.constant dense<0.000000e+00> : vector<256x64xf32>
    %79 = tpu.matmul %76, %78, %cst_34 {dimension_numbers = #tpu.dot_dimension_numbers<[1], [0], [0], [1], [0, 0, 1, 1], [], []>} : vector<256x32xf32>, vector<32x64xf32>, vector<256x64xf32> -> vector<256x64xf32>
    %80 = arith.addf %73, %79 : vector<256x64xf32>
    %c8 = arith.constant 8 : index
    %c0_35 = arith.constant 0 : index
    %81 = vector.load %arg19[%c8, %c0_35] : memref<288x32xf32, #tpu.memory_space<vmem>>, vector<256x32xf32>
    %82 = vector.broadcast %39 : vector<256x1xf32> to vector<256x32xf32>
    %83 = arith.mulf %81, %82 : vector<256x32xf32>
    %c1 = arith.constant 1 : index
    %c0_36 = arith.constant 0 : index
    %c0_37 = arith.constant 0 : index
    %84 = vector.load %arg4[%c1, %c0_36, %c0_37] : memref<9x32x64xf32, #tpu.memory_space<vmem>>, vector<1x32x64xf32>
    %85 = vector.shape_cast %84 : vector<1x32x64xf32> to vector<32x64xf32>
    %cst_38 = arith.constant dense<0.000000e+00> : vector<256x64xf32>
    %86 = tpu.matmul %83, %85, %cst_38 {dimension_numbers = #tpu.dot_dimension_numbers<[1], [0], [0], [1], [0, 0, 1, 1], [], []>} : vector<256x32xf32>, vector<32x64xf32>, vector<256x64xf32> -> vector<256x64xf32>
    %87 = arith.addf %80, %86 : vector<256x64xf32>
    %c9 = arith.constant 9 : index
    %c0_39 = arith.constant 0 : index
    %88 = vector.load %arg19[%c9, %c0_39] : memref<288x32xf32, #tpu.memory_space<vmem>>, vector<256x32xf32>
    %89 = vector.broadcast %46 : vector<256x1xf32> to vector<256x32xf32>
    %90 = arith.mulf %88, %89 : vector<256x32xf32>
    %c2 = arith.constant 2 : index
    %c0_40 = arith.constant 0 : index
    %c0_41 = arith.constant 0 : index
    %91 = vector.load %arg4[%c2, %c0_40, %c0_41] : memref<9x32x64xf32, #tpu.memory_space<vmem>>, vector<1x32x64xf32>
    %92 = vector.shape_cast %91 : vector<1x32x64xf32> to vector<32x64xf32>
    %cst_42 = arith.constant dense<0.000000e+00> : vector<256x64xf32>
    %93 = tpu.matmul %90, %92, %cst_42 {dimension_numbers = #tpu.dot_dimension_numbers<[1], [0], [0], [1], [0, 0, 1, 1], [], []>} : vector<256x32xf32>, vector<32x64xf32>, vector<256x64xf32> -> vector<256x64xf32>
    %94 = arith.addf %87, %93 : vector<256x64xf32>
    %c15 = arith.constant 15 : index
    %c0_43 = arith.constant 0 : index
    %95 = vector.load %arg19[%c15, %c0_43] : memref<288x32xf32, #tpu.memory_space<vmem>>, vector<256x32xf32>
    %96 = vector.broadcast %50 : vector<256x1xf32> to vector<256x32xf32>
    %97 = arith.mulf %95, %96 : vector<256x32xf32>
    %c3 = arith.constant 3 : index
    %c0_44 = arith.constant 0 : index
    %c0_45 = arith.constant 0 : index
    %98 = vector.load %arg4[%c3, %c0_44, %c0_45] : memref<9x32x64xf32, #tpu.memory_space<vmem>>, vector<1x32x64xf32>
    %99 = vector.shape_cast %98 : vector<1x32x64xf32> to vector<32x64xf32>
    %cst_46 = arith.constant dense<0.000000e+00> : vector<256x64xf32>
    %100 = tpu.matmul %97, %99, %cst_46 {dimension_numbers = #tpu.dot_dimension_numbers<[1], [0], [0], [1], [0, 0, 1, 1], [], []>} : vector<256x32xf32>, vector<32x64xf32>, vector<256x64xf32> -> vector<256x64xf32>
    %101 = arith.addf %94, %100 : vector<256x64xf32>
    %c16_47 = arith.constant 16 : index
    %c0_48 = arith.constant 0 : index
    %102 = vector.load %arg19[%c16_47, %c0_48] : memref<288x32xf32, #tpu.memory_space<vmem>>, vector<256x32xf32>
    %c4 = arith.constant 4 : index
    %c0_49 = arith.constant 0 : index
    %c0_50 = arith.constant 0 : index
    %103 = vector.load %arg4[%c4, %c0_49, %c0_50] : memref<9x32x64xf32, #tpu.memory_space<vmem>>, vector<1x32x64xf32>
    %104 = vector.shape_cast %103 : vector<1x32x64xf32> to vector<32x64xf32>
    %cst_51 = arith.constant dense<0.000000e+00> : vector<256x64xf32>
    %105 = tpu.matmul %102, %104, %cst_51 {dimension_numbers = #tpu.dot_dimension_numbers<[1], [0], [0], [1], [0, 0, 1, 1], [], []>} : vector<256x32xf32>, vector<32x64xf32>, vector<256x64xf32> -> vector<256x64xf32>
    %106 = arith.addf %101, %105 : vector<256x64xf32>
    %c17 = arith.constant 17 : index
    %c0_52 = arith.constant 0 : index
    %107 = vector.load %arg19[%c17, %c0_52] : memref<288x32xf32, #tpu.memory_space<vmem>>, vector<256x32xf32>
    %108 = vector.broadcast %54 : vector<256x1xf32> to vector<256x32xf32>
    %109 = arith.mulf %107, %108 : vector<256x32xf32>
    %c5 = arith.constant 5 : index
    %c0_53 = arith.constant 0 : index
    %c0_54 = arith.constant 0 : index
    %110 = vector.load %arg4[%c5, %c0_53, %c0_54] : memref<9x32x64xf32, #tpu.memory_space<vmem>>, vector<1x32x64xf32>
    %111 = vector.shape_cast %110 : vector<1x32x64xf32> to vector<32x64xf32>
    %cst_55 = arith.constant dense<0.000000e+00> : vector<256x64xf32>
    %112 = tpu.matmul %109, %111, %cst_55 {dimension_numbers = #tpu.dot_dimension_numbers<[1], [0], [0], [1], [0, 0, 1, 1], [], []>} : vector<256x32xf32>, vector<32x64xf32>, vector<256x64xf32> -> vector<256x64xf32>
    %113 = arith.addf %106, %112 : vector<256x64xf32>
    %c23 = arith.constant 23 : index
    %c0_56 = arith.constant 0 : index
    %114 = vector.load %arg19[%c23, %c0_56] : memref<288x32xf32, #tpu.memory_space<vmem>>, vector<256x32xf32>
    %115 = vector.broadcast %61 : vector<256x1xf32> to vector<256x32xf32>
    %116 = arith.mulf %114, %115 : vector<256x32xf32>
    %c6 = arith.constant 6 : index
    %c0_57 = arith.constant 0 : index
    %c0_58 = arith.constant 0 : index
    %117 = vector.load %arg4[%c6, %c0_57, %c0_58] : memref<9x32x64xf32, #tpu.memory_space<vmem>>, vector<1x32x64xf32>
    %118 = vector.shape_cast %117 : vector<1x32x64xf32> to vector<32x64xf32>
    %cst_59 = arith.constant dense<0.000000e+00> : vector<256x64xf32>
    %119 = tpu.matmul %116, %118, %cst_59 {dimension_numbers = #tpu.dot_dimension_numbers<[1], [0], [0], [1], [0, 0, 1, 1], [], []>} : vector<256x32xf32>, vector<32x64xf32>, vector<256x64xf32> -> vector<256x64xf32>
    %120 = arith.addf %113, %119 : vector<256x64xf32>
    %c24 = arith.constant 24 : index
    %c0_60 = arith.constant 0 : index
    %121 = vector.load %arg19[%c24, %c0_60] : memref<288x32xf32, #tpu.memory_space<vmem>>, vector<256x32xf32>
    %122 = vector.broadcast %65 : vector<256x1xf32> to vector<256x32xf32>
    %123 = arith.mulf %121, %122 : vector<256x32xf32>
    %c7_61 = arith.constant 7 : index
    %c0_62 = arith.constant 0 : index
    %c0_63 = arith.constant 0 : index
    %124 = vector.load %arg4[%c7_61, %c0_62, %c0_63] : memref<9x32x64xf32, #tpu.memory_space<vmem>>, vector<1x32x64xf32>
    %125 = vector.shape_cast %124 : vector<1x32x64xf32> to vector<32x64xf32>
    %cst_64 = arith.constant dense<0.000000e+00> : vector<256x64xf32>
    %126 = tpu.matmul %123, %125, %cst_64 {dimension_numbers = #tpu.dot_dimension_numbers<[1], [0], [0], [1], [0, 0, 1, 1], [], []>} : vector<256x32xf32>, vector<32x64xf32>, vector<256x64xf32> -> vector<256x64xf32>
    %127 = arith.addf %120, %126 : vector<256x64xf32>
    %c25 = arith.constant 25 : index
    %c0_65 = arith.constant 0 : index
    %128 = vector.load %arg19[%c25, %c0_65] : memref<288x32xf32, #tpu.memory_space<vmem>>, vector<256x32xf32>
    %129 = vector.broadcast %72 : vector<256x1xf32> to vector<256x32xf32>
    %130 = arith.mulf %128, %129 : vector<256x32xf32>
    %c8_66 = arith.constant 8 : index
    %c0_67 = arith.constant 0 : index
    %c0_68 = arith.constant 0 : index
    %131 = vector.load %arg4[%c8_66, %c0_67, %c0_68] : memref<9x32x64xf32, #tpu.memory_space<vmem>>, vector<1x32x64xf32>
    %132 = vector.shape_cast %131 : vector<1x32x64xf32> to vector<32x64xf32>
    %cst_69 = arith.constant dense<0.000000e+00> : vector<256x64xf32>
    %133 = tpu.matmul %130, %132, %cst_69 {dimension_numbers = #tpu.dot_dimension_numbers<[1], [0], [0], [1], [0, 0, 1, 1], [], []>} : vector<256x32xf32>, vector<32x64xf32>, vector<256x64xf32> -> vector<256x64xf32>
    %134 = arith.addf %127, %133 : vector<256x64xf32>
    %c0_70 = arith.constant 0 : index
    %c0_71 = arith.constant 0 : index
    %135 = vector.load %arg5[%c0_70, %c0_71] : memref<1x64xf32, #tpu.memory_space<vmem>>, vector<1x64xf32>
    %136 = vector.broadcast %135 : vector<1x64xf32> to vector<256x64xf32>
    %137 = arith.addf %134, %136 : vector<256x64xf32>
    %cst_72 = arith.constant 0.000000e+00 : f32
    %138 = vector.broadcast %cst_72 : f32 to vector<256x64xf32>
    %139 = arith.maximumf %137, %138 : vector<256x64xf32>
    %c0_73 = arith.constant 0 : index
    %c0_74 = arith.constant 0 : index
    %140 = vector.load %arg20[%c0_73, %c0_74] : memref<272x64xf32, #tpu.memory_space<vmem>>, vector<256x64xf32>
    tpu.vector_store %arg20[%c0_73, %c0_74], %139 {strides = array<i32>} : memref<272x64xf32, #tpu.memory_space<vmem>>, vector<256x64xf32>,
    %cst_75 = arith.constant 0.000000e+00 : f32
    %141 = vector.broadcast %cst_75 : f32 to vector<16x64xf32>
    %c256_76 = arith.constant 256 : index
    %c0_77 = arith.constant 0 : index
    %142 = vector.load %arg20[%c256_76, %c0_77] : memref<272x64xf32, #tpu.memory_space<vmem>>, vector<16x64xf32>
    tpu.vector_store %arg20[%c256_76, %c0_77], %141 {strides = array<i32>} : memref<272x64xf32, #tpu.memory_space<vmem>>, vector<16x64xf32>,
    %c0_78 = arith.constant 0 : index
    %c0_79 = arith.constant 0 : index
    %143 = vector.load %arg20[%c0_78, %c0_79] : memref<272x64xf32, #tpu.memory_space<vmem>>, vector<256x64xf32>
    %c1_80 = arith.constant 1 : index
    %c0_81 = arith.constant 0 : index
    %144 = vector.load %arg20[%c1_80, %c0_81] : memref<272x64xf32, #tpu.memory_space<vmem>>, vector<256x64xf32>
    %145 = arith.maximumf %143, %144 : vector<256x64xf32>
    %c8_82 = arith.constant 8 : index
    %c0_83 = arith.constant 0 : index
    %146 = vector.load %arg20[%c8_82, %c0_83] : memref<272x64xf32, #tpu.memory_space<vmem>>, vector<256x64xf32>
    %c9_84 = arith.constant 9 : index
    %c0_85 = arith.constant 0 : index
    %147 = vector.load %arg20[%c9_84, %c0_85] : memref<272x64xf32, #tpu.memory_space<vmem>>, vector<256x64xf32>
    %148 = arith.maximumf %146, %147 : vector<256x64xf32>
    %149 = arith.maximumf %145, %148 : vector<256x64xf32>
    %c0_86 = arith.constant 0 : index
    %c0_87 = arith.constant 0 : index
    %150 = vector.load %arg10[%c0_86, %c0_87] : memref<64x256xf32, #tpu.memory_space<vmem>>, vector<64x256xf32>
    %cst_88 = arith.constant dense<0.000000e+00> : vector<64x64xf32>
    %151 = tpu.matmul %150, %149, %cst_88 {dimension_numbers = #tpu.dot_dimension_numbers<[1], [0], [0], [1], [0, 0, 1, 1], [], []>} : vector<64x256xf32>, vector<256x64xf32>, vector<64x64xf32> -> vector<64x64xf32>
    %cst_89 = arith.constant 0.000000e+00 : f32
    %152 = vector.broadcast %cst_89 : f32 to vector<8x64xf32>
    %c0_90 = arith.constant 0 : index
    %c0_91 = arith.constant 0 : index
    %153 = vector.load %arg21[%c0_90, %c0_91] : memref<80x64xf32, #tpu.memory_space<vmem>>, vector<8x64xf32>
    tpu.vector_store %arg21[%c0_90, %c0_91], %152 {strides = array<i32>} : memref<80x64xf32, #tpu.memory_space<vmem>>, vector<8x64xf32>,
    %c8_92 = arith.constant 8 : index
    %c0_93 = arith.constant 0 : index
    %154 = vector.load %arg21[%c8_92, %c0_93] : memref<80x64xf32, #tpu.memory_space<vmem>>, vector<64x64xf32>
    tpu.vector_store %arg21[%c8_92, %c0_93], %151 {strides = array<i32>} : memref<80x64xf32, #tpu.memory_space<vmem>>, vector<64x64xf32>,
    %cst_94 = arith.constant 0.000000e+00 : f32
    %155 = vector.broadcast %cst_94 : f32 to vector<8x64xf32>
    %c72 = arith.constant 72 : index
    %c0_95 = arith.constant 0 : index
    %156 = vector.load %arg21[%c72, %c0_95] : memref<80x64xf32, #tpu.memory_space<vmem>>, vector<8x64xf32>
    tpu.vector_store %arg21[%c72, %c0_95], %155 {strides = array<i32>} : memref<80x64xf32, #tpu.memory_space<vmem>>, vector<8x64xf32>,
    %157 = tpu.iota {dimensions = array<i32: 0>} : vector<64x1xi32>
    %c3_i32_96 = arith.constant 3 : i32
    %158 = vector.broadcast %c3_i32_96 : i32 to vector<64x1xi32>
    %159 = arith.andi %157, %158 : vector<64x1xi32>
    %c2_i32 = arith.constant 2 : i32
    %160 = vector.broadcast %c2_i32 : i32 to vector<64x1xi32>
    %161 = arith.shrsi %157, %160 : vector<64x1xi32>
    %c3_i32_97 = arith.constant 3 : i32
    %162 = vector.broadcast %c3_i32_97 : i32 to vector<64x1xi32>
    %163 = arith.andi %161, %162 : vector<64x1xi32>
    %c1_i32_98 = arith.constant 1 : i32
    %164 = vector.broadcast %c1_i32_98 : i32 to vector<64x1xi32>
    %165 = arith.cmpi sge, %163, %164 : vector<64x1xi32>
    %c1_i32_99 = arith.constant 1 : i32
    %166 = vector.broadcast %c1_i32_99 : i32 to vector<64x1xi32>
    %167 = arith.cmpi sge, %159, %166 : vector<64x1xi32>
    %168 = arith.andi %165, %167 : vector<64x1xi1>
    %169 = arith.extui %168 : vector<64x1xi1> to vector<64x1xi32>
    %170 = arith.sitofp %169 : vector<64x1xi32> to vector<64x1xf32>
    %c1_i32_100 = arith.constant 1 : i32
    %171 = vector.broadcast %c1_i32_100 : i32 to vector<64x1xi32>
    %172 = arith.cmpi sge, %163, %171 : vector<64x1xi32>
    %173 = arith.extui %172 : vector<64x1xi1> to vector<64x1xi32>
    %174 = arith.sitofp %173 : vector<64x1xi32> to vector<64x1xf32>
    %c1_i32_101 = arith.constant 1 : i32
    %175 = vector.broadcast %c1_i32_101 : i32 to vector<64x1xi32>
    %176 = arith.cmpi sge, %163, %175 : vector<64x1xi32>
    %c2_i32_102 = arith.constant 2 : i32
    %177 = vector.broadcast %c2_i32_102 : i32 to vector<64x1xi32>
    %178 = arith.cmpi sle, %159, %177 : vector<64x1xi32>
    %179 = arith.andi %176, %178 : vector<64x1xi1>
    %180 = arith.extui %179 : vector<64x1xi1> to vector<64x1xi32>
    %181 = arith.sitofp %180 : vector<64x1xi32> to vector<64x1xf32>
    %c1_i32_103 = arith.constant 1 : i32
    %182 = vector.broadcast %c1_i32_103 : i32 to vector<64x1xi32>
    %183 = arith.cmpi sge, %159, %182 : vector<64x1xi32>
    %184 = arith.extui %183 : vector<64x1xi1> to vector<64x1xi32>
    %185 = arith.sitofp %184 : vector<64x1xi32> to vector<64x1xf32>
    %c2_i32_104 = arith.constant 2 : i32
    %186 = vector.broadcast %c2_i32_104 : i32 to vector<64x1xi32>
    %187 = arith.cmpi sle, %159, %186 : vector<64x1xi32>
    %188 = arith.extui %187 : vector<64x1xi1> to vector<64x1xi32>
    %189 = arith.sitofp %188 : vector<64x1xi32> to vector<64x1xf32>
    %c2_i32_105 = arith.constant 2 : i32
    %190 = vector.broadcast %c2_i32_105 : i32 to vector<64x1xi32>
    %191 = arith.cmpi sle, %163, %190 : vector<64x1xi32>
    %c1_i32_106 = arith.constant 1 : i32
    %192 = vector.broadcast %c1_i32_106 : i32 to vector<64x1xi32>
    %193 = arith.cmpi sge, %159, %192 : vector<64x1xi32>
    %194 = arith.andi %191, %193 : vector<64x1xi1>
    %195 = arith.extui %194 : vector<64x1xi1> to vector<64x1xi32>
    %196 = arith.sitofp %195 : vector<64x1xi32> to vector<64x1xf32>
    %c2_i32_107 = arith.constant 2 : i32
    %197 = vector.broadcast %c2_i32_107 : i32 to vector<64x1xi32>
    %198 = arith.cmpi sle, %163, %197 : vector<64x1xi32>
    %199 = arith.extui %198 : vector<64x1xi1> to vector<64x1xi32>
    %200 = arith.sitofp %199 : vector<64x1xi32> to vector<64x1xf32>
    %c2_i32_108 = arith.constant 2 : i32
    %201 = vector.broadcast %c2_i32_108 : i32 to vector<64x1xi32>
    %202 = arith.cmpi sle, %163, %201 : vector<64x1xi32>
    %c2_i32_109 = arith.constant 2 : i32
    %203 = vector.broadcast %c2_i32_109 : i32 to vector<64x1xi32>
    %204 = arith.cmpi sle, %159, %203 : vector<64x1xi32>
    %205 = arith.andi %202, %204 : vector<64x1xi1>
    %206 = arith.extui %205 : vector<64x1xi1> to vector<64x1xi32>
    %207 = arith.sitofp %206 : vector<64x1xi32> to vector<64x1xf32>
    %cst_110 = arith.constant 0.000000e+00 : f32
    %208 = vector.broadcast %cst_110 : f32 to vector<64x128xf32>
    %c3_111 = arith.constant 3 : index
    %c0_112 = arith.constant 0 : index
    %209 = vector.load %arg21[%c3_111, %c0_112] : memref<80x64xf32, #tpu.memory_space<vmem>>, vector<64x64xf32>
    %210 = vector.broadcast %170 : vector<64x1xf32> to vector<64x64xf32>
    %211 = arith.mulf %209, %210 : vector<64x64xf32>
    %c0_113 = arith.constant 0 : index
    %c0_114 = arith.constant 0 : index
    %c0_115 = arith.constant 0 : index
    %212 = vector.load %arg6[%c0_113, %c0_114, %c0_115] : memref<9x64x128xf32, #tpu.memory_space<vmem>>, vector<1x64x128xf32>
    %213 = vector.shape_cast %212 : vector<1x64x128xf32> to vector<64x128xf32>
    %cst_116 = arith.constant dense<0.000000e+00> : vector<64x128xf32>
    %214 = tpu.matmul %211, %213, %cst_116 {dimension_numbers = #tpu.dot_dimension_numbers<[1], [0], [0], [1], [0, 0, 1, 1], [], []>} : vector<64x64xf32>, vector<64x128xf32>, vector<64x128xf32> -> vector<64x128xf32>
    %215 = arith.addf %208, %214 : vector<64x128xf32>
    %c4_117 = arith.constant 4 : index
    %c0_118 = arith.constant 0 : index
    %216 = vector.load %arg21[%c4_117, %c0_118] : memref<80x64xf32, #tpu.memory_space<vmem>>, vector<64x64xf32>
    %217 = vector.broadcast %174 : vector<64x1xf32> to vector<64x64xf32>
    %218 = arith.mulf %216, %217 : vector<64x64xf32>
    %c1_119 = arith.constant 1 : index
    %c0_120 = arith.constant 0 : index
    %c0_121 = arith.constant 0 : index
    %219 = vector.load %arg6[%c1_119, %c0_120, %c0_121] : memref<9x64x128xf32, #tpu.memory_space<vmem>>, vector<1x64x128xf32>
    %220 = vector.shape_cast %219 : vector<1x64x128xf32> to vector<64x128xf32>
    %cst_122 = arith.constant dense<0.000000e+00> : vector<64x128xf32>
    %221 = tpu.matmul %218, %220, %cst_122 {dimension_numbers = #tpu.dot_dimension_numbers<[1], [0], [0], [1], [0, 0, 1, 1], [], []>} : vector<64x64xf32>, vector<64x128xf32>, vector<64x128xf32> -> vector<64x128xf32>
    %222 = arith.addf %215, %221 : vector<64x128xf32>
    %c5_123 = arith.constant 5 : index
    %c0_124 = arith.constant 0 : index
    %223 = vector.load %arg21[%c5_123, %c0_124] : memref<80x64xf32, #tpu.memory_space<vmem>>, vector<64x64xf32>
    %224 = vector.broadcast %181 : vector<64x1xf32> to vector<64x64xf32>
    %225 = arith.mulf %223, %224 : vector<64x64xf32>
    %c2_125 = arith.constant 2 : index
    %c0_126 = arith.constant 0 : index
    %c0_127 = arith.constant 0 : index
    %226 = vector.load %arg6[%c2_125, %c0_126, %c0_127] : memref<9x64x128xf32, #tpu.memory_space<vmem>>, vector<1x64x128xf32>
    %227 = vector.shape_cast %226 : vector<1x64x128xf32> to vector<64x128xf32>
    %cst_128 = arith.constant dense<0.000000e+00> : vector<64x128xf32>
    %228 = tpu.matmul %225, %227, %cst_128 {dimension_numbers = #tpu.dot_dimension_numbers<[1], [0], [0], [1], [0, 0, 1, 1], [], []>} : vector<64x64xf32>, vector<64x128xf32>, vector<64x128xf32> -> vector<64x128xf32>
    %229 = arith.addf %222, %228 : vector<64x128xf32>
    %c7_129 = arith.constant 7 : index
    %c0_130 = arith.constant 0 : index
    %230 = vector.load %arg21[%c7_129, %c0_130] : memref<80x64xf32, #tpu.memory_space<vmem>>, vector<64x64xf32>
    %231 = vector.broadcast %185 : vector<64x1xf32> to vector<64x64xf32>
    %232 = arith.mulf %230, %231 : vector<64x64xf32>
    %c3_131 = arith.constant 3 : index
    %c0_132 = arith.constant 0 : index
    %c0_133 = arith.constant 0 : index
    %233 = vector.load %arg6[%c3_131, %c0_132, %c0_133] : memref<9x64x128xf32, #tpu.memory_space<vmem>>, vector<1x64x128xf32>
    %234 = vector.shape_cast %233 : vector<1x64x128xf32> to vector<64x128xf32>
    %cst_134 = arith.constant dense<0.000000e+00> : vector<64x128xf32>
    %235 = tpu.matmul %232, %234, %cst_134 {dimension_numbers = #tpu.dot_dimension_numbers<[1], [0], [0], [1], [0, 0, 1, 1], [], []>} : vector<64x64xf32>, vector<64x128xf32>, vector<64x128xf32> -> vector<64x128xf32>
    %236 = arith.addf %229, %235 : vector<64x128xf32>
    %c8_135 = arith.constant 8 : index
    %c0_136 = arith.constant 0 : index
    %237 = vector.load %arg21[%c8_135, %c0_136] : memref<80x64xf32, #tpu.memory_space<vmem>>, vector<64x64xf32>
    %c4_137 = arith.constant 4 : index
    %c0_138 = arith.constant 0 : index
    %c0_139 = arith.constant 0 : index
    %238 = vector.load %arg6[%c4_137, %c0_138, %c0_139] : memref<9x64x128xf32, #tpu.memory_space<vmem>>, vector<1x64x128xf32>
    %239 = vector.shape_cast %238 : vector<1x64x128xf32> to vector<64x128xf32>
    %cst_140 = arith.constant dense<0.000000e+00> : vector<64x128xf32>
    %240 = tpu.matmul %237, %239, %cst_140 {dimension_numbers = #tpu.dot_dimension_numbers<[1], [0], [0], [1], [0, 0, 1, 1], [], []>} : vector<64x64xf32>, vector<64x128xf32>, vector<64x128xf32> -> vector<64x128xf32>
    %241 = arith.addf %236, %240 : vector<64x128xf32>
    %c9_141 = arith.constant 9 : index
    %c0_142 = arith.constant 0 : index
    %242 = vector.load %arg21[%c9_141, %c0_142] : memref<80x64xf32, #tpu.memory_space<vmem>>, vector<64x64xf32>
    %243 = vector.broadcast %189 : vector<64x1xf32> to vector<64x64xf32>
    %244 = arith.mulf %242, %243 : vector<64x64xf32>
    %c5_143 = arith.constant 5 : index
    %c0_144 = arith.constant 0 : index
    %c0_145 = arith.constant 0 : index
    %245 = vector.load %arg6[%c5_143, %c0_144, %c0_145] : memref<9x64x128xf32, #tpu.memory_space<vmem>>, vector<1x64x128xf32>
    %246 = vector.shape_cast %245 : vector<1x64x128xf32> to vector<64x128xf32>
    %cst_146 = arith.constant dense<0.000000e+00> : vector<64x128xf32>
    %247 = tpu.matmul %244, %246, %cst_146 {dimension_numbers = #tpu.dot_dimension_numbers<[1], [0], [0], [1], [0, 0, 1, 1], [], []>} : vector<64x64xf32>, vector<64x128xf32>, vector<64x128xf32> -> vector<64x128xf32>
    %248 = arith.addf %241, %247 : vector<64x128xf32>
    %c11 = arith.constant 11 : index
    %c0_147 = arith.constant 0 : index
    %249 = vector.load %arg21[%c11, %c0_147] : memref<80x64xf32, #tpu.memory_space<vmem>>, vector<64x64xf32>
    %250 = vector.broadcast %196 : vector<64x1xf32> to vector<64x64xf32>
    %251 = arith.mulf %249, %250 : vector<64x64xf32>
    %c6_148 = arith.constant 6 : index
    %c0_149 = arith.constant 0 : index
    %c0_150 = arith.constant 0 : index
    %252 = vector.load %arg6[%c6_148, %c0_149, %c0_150] : memref<9x64x128xf32, #tpu.memory_space<vmem>>, vector<1x64x128xf32>
    %253 = vector.shape_cast %252 : vector<1x64x128xf32> to vector<64x128xf32>
    %cst_151 = arith.constant dense<0.000000e+00> : vector<64x128xf32>
    %254 = tpu.matmul %251, %253, %cst_151 {dimension_numbers = #tpu.dot_dimension_numbers<[1], [0], [0], [1], [0, 0, 1, 1], [], []>} : vector<64x64xf32>, vector<64x128xf32>, vector<64x128xf32> -> vector<64x128xf32>
    %255 = arith.addf %248, %254 : vector<64x128xf32>
    %c12 = arith.constant 12 : index
    %c0_152 = arith.constant 0 : index
    %256 = vector.load %arg21[%c12, %c0_152] : memref<80x64xf32, #tpu.memory_space<vmem>>, vector<64x64xf32>
    %257 = vector.broadcast %200 : vector<64x1xf32> to vector<64x64xf32>
    %258 = arith.mulf %256, %257 : vector<64x64xf32>
    %c7_153 = arith.constant 7 : index
    %c0_154 = arith.constant 0 : index
    %c0_155 = arith.constant 0 : index
    %259 = vector.load %arg6[%c7_153, %c0_154, %c0_155] : memref<9x64x128xf32, #tpu.memory_space<vmem>>, vector<1x64x128xf32>
    %260 = vector.shape_cast %259 : vector<1x64x128xf32> to vector<64x128xf32>
    %cst_156 = arith.constant dense<0.000000e+00> : vector<64x128xf32>
    %261 = tpu.matmul %258, %260, %cst_156 {dimension_numbers = #tpu.dot_dimension_numbers<[1], [0], [0], [1], [0, 0, 1, 1], [], []>} : vector<64x64xf32>, vector<64x128xf32>, vector<64x128xf32> -> vector<64x128xf32>
    %262 = arith.addf %255, %261 : vector<64x128xf32>
    %c13 = arith.constant 13 : index
    %c0_157 = arith.constant 0 : index
    %263 = vector.load %arg21[%c13, %c0_157] : memref<80x64xf32, #tpu.memory_space<vmem>>, vector<64x64xf32>
    %264 = vector.broadcast %207 : vector<64x1xf32> to vector<64x64xf32>
    %265 = arith.mulf %263, %264 : vector<64x64xf32>
    %c8_158 = arith.constant 8 : index
    %c0_159 = arith.constant 0 : index
    %c0_160 = arith.constant 0 : index
    %266 = vector.load %arg6[%c8_158, %c0_159, %c0_160] : memref<9x64x128xf32, #tpu.memory_space<vmem>>, vector<1x64x128xf32>
    %267 = vector.shape_cast %266 : vector<1x64x128xf32> to vector<64x128xf32>
    %cst_161 = arith.constant dense<0.000000e+00> : vector<64x128xf32>
    %268 = tpu.matmul %265, %267, %cst_161 {dimension_numbers = #tpu.dot_dimension_numbers<[1], [0], [0], [1], [0, 0, 1, 1], [], []>} : vector<64x64xf32>, vector<64x128xf32>, vector<64x128xf32> -> vector<64x128xf32>
    %269 = arith.addf %262, %268 : vector<64x128xf32>
    %c0_162 = arith.constant 0 : index
    %c0_163 = arith.constant 0 : index
    %270 = vector.load %arg7[%c0_162, %c0_163] : memref<1x128xf32, #tpu.memory_space<vmem>>, vector<1x128xf32>
    %271 = vector.broadcast %270 : vector<1x128xf32> to vector<64x128xf32>
    %272 = arith.addf %269, %271 : vector<64x128xf32>
    %cst_164 = arith.constant 0.000000e+00 : f32
    %273 = vector.broadcast %cst_164 : f32 to vector<64x128xf32>
    %274 = arith.maximumf %272, %273 : vector<64x128xf32>
    %c0_165 = arith.constant 0 : index
    %c0_166 = arith.constant 0 : index
    %275 = vector.load %arg22[%c0_165, %c0_166] : memref<72x128xf32, #tpu.memory_space<vmem>>, vector<64x128xf32>
    tpu.vector_store %arg22[%c0_165, %c0_166], %274 {strides = array<i32>} : memref<72x128xf32, #tpu.memory_space<vmem>>, vector<64x128xf32>,
    %cst_167 = arith.constant 0.000000e+00 : f32
    %276 = vector.broadcast %cst_167 : f32 to vector<8x128xf32>
    %c64 = arith.constant 64 : index
    %c0_168 = arith.constant 0 : index
    %277 = vector.load %arg22[%c64, %c0_168] : memref<72x128xf32, #tpu.memory_space<vmem>>, vector<8x128xf32>
    tpu.vector_store %arg22[%c64, %c0_168], %276 {strides = array<i32>} : memref<72x128xf32, #tpu.memory_space<vmem>>, vector<8x128xf32>,
    %c0_169 = arith.constant 0 : index
    %c0_170 = arith.constant 0 : index
    %278 = vector.load %arg22[%c0_169, %c0_170] : memref<72x128xf32, #tpu.memory_space<vmem>>, vector<64x128xf32>
    %c1_171 = arith.constant 1 : index
    %c0_172 = arith.constant 0 : index
    %279 = vector.load %arg22[%c1_171, %c0_172] : memref<72x128xf32, #tpu.memory_space<vmem>>, vector<64x128xf32>
    %280 = arith.maximumf %278, %279 : vector<64x128xf32>
    %c4_173 = arith.constant 4 : index
    %c0_174 = arith.constant 0 : index
    %281 = vector.load %arg22[%c4_173, %c0_174] : memref<72x128xf32, #tpu.memory_space<vmem>>, vector<64x128xf32>
    %c5_175 = arith.constant 5 : index
    %c0_176 = arith.constant 0 : index
    %282 = vector.load %arg22[%c5_175, %c0_176] : memref<72x128xf32, #tpu.memory_space<vmem>>, vector<64x128xf32>
    %283 = arith.maximumf %281, %282 : vector<64x128xf32>
    %284 = arith.maximumf %280, %283 : vector<64x128xf32>
    %c0_177 = arith.constant 0 : index
    %c0_178 = arith.constant 0 : index
    %285 = vector.load %arg11[%c0_177, %c0_178] : memref<16x64xf32, #tpu.memory_space<vmem>>, vector<16x64xf32>
    %cst_179 = arith.constant dense<0.000000e+00> : vector<16x128xf32>
    %286 = tpu.matmul %285, %284, %cst_179 {dimension_numbers = #tpu.dot_dimension_numbers<[1], [0], [0], [1], [0, 0, 1, 1], [], []>} : vector<16x64xf32>, vector<64x128xf32>, vector<16x128xf32> -> vector<16x128xf32>
    %cst_180 = arith.constant 0.000000e+00 : f32
    %287 = vector.broadcast %cst_180 : f32 to vector<8x128xf32>
    %c0_181 = arith.constant 0 : index
    %c0_182 = arith.constant 0 : index
    %288 = vector.load %arg23[%c0_181, %c0_182] : memref<32x128xf32, #tpu.memory_space<vmem>>, vector<8x128xf32>
    tpu.vector_store %arg23[%c0_181, %c0_182], %287 {strides = array<i32>} : memref<32x128xf32, #tpu.memory_space<vmem>>, vector<8x128xf32>,
    %c8_183 = arith.constant 8 : index
    %c0_184 = arith.constant 0 : index
    %289 = vector.load %arg23[%c8_183, %c0_184] : memref<32x128xf32, #tpu.memory_space<vmem>>, vector<16x128xf32>
    tpu.vector_store %arg23[%c8_183, %c0_184], %286 {strides = array<i32>} : memref<32x128xf32, #tpu.memory_space<vmem>>, vector<16x128xf32>,
    %cst_185 = arith.constant 0.000000e+00 : f32
    %290 = vector.broadcast %cst_185 : f32 to vector<8x128xf32>
    %c24_186 = arith.constant 24 : index
    %c0_187 = arith.constant 0 : index
    %291 = vector.load %arg23[%c24_186, %c0_187] : memref<32x128xf32, #tpu.memory_space<vmem>>, vector<8x128xf32>
    tpu.vector_store %arg23[%c24_186, %c0_187], %290 {strides = array<i32>} : memref<32x128xf32, #tpu.memory_space<vmem>>, vector<8x128xf32>,
    %292 = tpu.iota {dimensions = array<i32: 0>} : vector<16x1xi32>
    %c1_i32_188 = arith.constant 1 : i32
    %293 = vector.broadcast %c1_i32_188 : i32 to vector<16x1xi32>
    %294 = arith.andi %292, %293 : vector<16x1xi32>
    %c1_i32_189 = arith.constant 1 : i32
    %295 = vector.broadcast %c1_i32_189 : i32 to vector<16x1xi32>
    %296 = arith.shrsi %292, %295 : vector<16x1xi32>
    %c1_i32_190 = arith.constant 1 : i32
    %297 = vector.broadcast %c1_i32_190 : i32 to vector<16x1xi32>
    %298 = arith.andi %296, %297 : vector<16x1xi32>
    %c1_i32_191 = arith.constant 1 : i32
    %299 = vector.broadcast %c1_i32_191 : i32 to vector<16x1xi32>
    %300 = arith.cmpi sge, %298, %299 : vector<16x1xi32>
    %c1_i32_192 = arith.constant 1 : i32
    %301 = vector.broadcast %c1_i32_192 : i32 to vector<16x1xi32>
    %302 = arith.cmpi sge, %294, %301 : vector<16x1xi32>
    %303 = arith.andi %300, %302 : vector<16x1xi1>
    %304 = arith.extui %303 : vector<16x1xi1> to vector<16x1xi32>
    %305 = arith.sitofp %304 : vector<16x1xi32> to vector<16x1xf32>
    %c1_i32_193 = arith.constant 1 : i32
    %306 = vector.broadcast %c1_i32_193 : i32 to vector<16x1xi32>
    %307 = arith.cmpi sge, %298, %306 : vector<16x1xi32>
    %308 = arith.extui %307 : vector<16x1xi1> to vector<16x1xi32>
    %309 = arith.sitofp %308 : vector<16x1xi32> to vector<16x1xf32>
    %c1_i32_194 = arith.constant 1 : i32
    %310 = vector.broadcast %c1_i32_194 : i32 to vector<16x1xi32>
    %311 = arith.cmpi sge, %298, %310 : vector<16x1xi32>
    %c0_i32 = arith.constant 0 : i32
    %312 = vector.broadcast %c0_i32 : i32 to vector<16x1xi32>
    %313 = arith.cmpi sle, %294, %312 : vector<16x1xi32>
    %314 = arith.andi %311, %313 : vector<16x1xi1>
    %315 = arith.extui %314 : vector<16x1xi1> to vector<16x1xi32>
    %316 = arith.sitofp %315 : vector<16x1xi32> to vector<16x1xf32>
    %c1_i32_195 = arith.constant 1 : i32
    %317 = vector.broadcast %c1_i32_195 : i32 to vector<16x1xi32>
    %318 = arith.cmpi sge, %294, %317 : vector<16x1xi32>
    %319 = arith.extui %318 : vector<16x1xi1> to vector<16x1xi32>
    %320 = arith.sitofp %319 : vector<16x1xi32> to vector<16x1xf32>
    %c0_i32_196 = arith.constant 0 : i32
    %321 = vector.broadcast %c0_i32_196 : i32 to vector<16x1xi32>
    %322 = arith.cmpi sle, %294, %321 : vector<16x1xi32>
    %323 = arith.extui %322 : vector<16x1xi1> to vector<16x1xi32>
    %324 = arith.sitofp %323 : vector<16x1xi32> to vector<16x1xf32>
    %c0_i32_197 = arith.constant 0 : i32
    %325 = vector.broadcast %c0_i32_197 : i32 to vector<16x1xi32>
    %326 = arith.cmpi sle, %298, %325 : vector<16x1xi32>
    %c1_i32_198 = arith.constant 1 : i32
    %327 = vector.broadcast %c1_i32_198 : i32 to vector<16x1xi32>
    %328 = arith.cmpi sge, %294, %327 : vector<16x1xi32>
    %329 = arith.andi %326, %328 : vector<16x1xi1>
    %330 = arith.extui %329 : vector<16x1xi1> to vector<16x1xi32>
    %331 = arith.sitofp %330 : vector<16x1xi32> to vector<16x1xf32>
    %c0_i32_199 = arith.constant 0 : i32
    %332 = vector.broadcast %c0_i32_199 : i32 to vector<16x1xi32>
    %333 = arith.cmpi sle, %298, %332 : vector<16x1xi32>
    %334 = arith.extui %333 : vector<16x1xi1> to vector<16x1xi32>
    %335 = arith.sitofp %334 : vector<16x1xi32> to vector<16x1xf32>
    %c0_i32_200 = arith.constant 0 : i32
    %336 = vector.broadcast %c0_i32_200 : i32 to vector<16x1xi32>
    %337 = arith.cmpi sle, %298, %336 : vector<16x1xi32>
    %c0_i32_201 = arith.constant 0 : i32
    %338 = vector.broadcast %c0_i32_201 : i32 to vector<16x1xi32>
    %339 = arith.cmpi sle, %294, %338 : vector<16x1xi32>
    %340 = arith.andi %337, %339 : vector<16x1xi1>
    %341 = arith.extui %340 : vector<16x1xi1> to vector<16x1xi32>
    %342 = arith.sitofp %341 : vector<16x1xi32> to vector<16x1xf32>
    %cst_202 = arith.constant 0.000000e+00 : f32
    %343 = vector.broadcast %cst_202 : f32 to vector<16x256xf32>
    %c5_203 = arith.constant 5 : index
    %c0_204 = arith.constant 0 : index
    %344 = vector.load %arg23[%c5_203, %c0_204] : memref<32x128xf32, #tpu.memory_space<vmem>>, vector<16x128xf32>
    %345 = vector.broadcast %305 : vector<16x1xf32> to vector<16x128xf32>
    %346 = arith.mulf %344, %345 : vector<16x128xf32>
    %c0_205 = arith.constant 0 : index
    %c0_206 = arith.constant 0 : index
    %c0_207 = arith.constant 0 : index
    %347 = vector.load %arg8[%c0_205, %c0_206, %c0_207] : memref<9x128x256xf32, #tpu.memory_space<vmem>>, vector<1x128x256xf32>
    %348 = vector.shape_cast %347 : vector<1x128x256xf32> to vector<128x256xf32>
    %cst_208 = arith.constant dense<0.000000e+00> : vector<16x256xf32>
    %349 = tpu.matmul %346, %348, %cst_208 {dimension_numbers = #tpu.dot_dimension_numbers<[1], [0], [0], [1], [0, 0, 1, 1], [], []>} : vector<16x128xf32>, vector<128x256xf32>, vector<16x256xf32> -> vector<16x256xf32>
    %350 = arith.addf %343, %349 : vector<16x256xf32>
    %c6_209 = arith.constant 6 : index
    %c0_210 = arith.constant 0 : index
    %351 = vector.load %arg23[%c6_209, %c0_210] : memref<32x128xf32, #tpu.memory_space<vmem>>, vector<16x128xf32>
    %352 = vector.broadcast %309 : vector<16x1xf32> to vector<16x128xf32>
    %353 = arith.mulf %351, %352 : vector<16x128xf32>
    %c1_211 = arith.constant 1 : index
    %c0_212 = arith.constant 0 : index
    %c0_213 = arith.constant 0 : index
    %354 = vector.load %arg8[%c1_211, %c0_212, %c0_213] : memref<9x128x256xf32, #tpu.memory_space<vmem>>, vector<1x128x256xf32>
    %355 = vector.shape_cast %354 : vector<1x128x256xf32> to vector<128x256xf32>
    %cst_214 = arith.constant dense<0.000000e+00> : vector<16x256xf32>
    %356 = tpu.matmul %353, %355, %cst_214 {dimension_numbers = #tpu.dot_dimension_numbers<[1], [0], [0], [1], [0, 0, 1, 1], [], []>} : vector<16x128xf32>, vector<128x256xf32>, vector<16x256xf32> -> vector<16x256xf32>
    %357 = arith.addf %350, %356 : vector<16x256xf32>
    %c7_215 = arith.constant 7 : index
    %c0_216 = arith.constant 0 : index
    %358 = vector.load %arg23[%c7_215, %c0_216] : memref<32x128xf32, #tpu.memory_space<vmem>>, vector<16x128xf32>
    %359 = vector.broadcast %316 : vector<16x1xf32> to vector<16x128xf32>
    %360 = arith.mulf %358, %359 : vector<16x128xf32>
    %c2_217 = arith.constant 2 : index
    %c0_218 = arith.constant 0 : index
    %c0_219 = arith.constant 0 : index
    %361 = vector.load %arg8[%c2_217, %c0_218, %c0_219] : memref<9x128x256xf32, #tpu.memory_space<vmem>>, vector<1x128x256xf32>
    %362 = vector.shape_cast %361 : vector<1x128x256xf32> to vector<128x256xf32>
    %cst_220 = arith.constant dense<0.000000e+00> : vector<16x256xf32>
    %363 = tpu.matmul %360, %362, %cst_220 {dimension_numbers = #tpu.dot_dimension_numbers<[1], [0], [0], [1], [0, 0, 1, 1], [], []>} : vector<16x128xf32>, vector<128x256xf32>, vector<16x256xf32> -> vector<16x256xf32>
    %364 = arith.addf %357, %363 : vector<16x256xf32>
    %c7_221 = arith.constant 7 : index
    %c0_222 = arith.constant 0 : index
    %365 = vector.load %arg23[%c7_221, %c0_222] : memref<32x128xf32, #tpu.memory_space<vmem>>, vector<16x128xf32>
    %366 = vector.broadcast %320 : vector<16x1xf32> to vector<16x128xf32>
    %367 = arith.mulf %365, %366 : vector<16x128xf32>
    %c3_223 = arith.constant 3 : index
    %c0_224 = arith.constant 0 : index
    %c0_225 = arith.constant 0 : index
    %368 = vector.load %arg8[%c3_223, %c0_224, %c0_225] : memref<9x128x256xf32, #tpu.memory_space<vmem>>, vector<1x128x256xf32>
    %369 = vector.shape_cast %368 : vector<1x128x256xf32> to vector<128x256xf32>
    %cst_226 = arith.constant dense<0.000000e+00> : vector<16x256xf32>
    %370 = tpu.matmul %367, %369, %cst_226 {dimension_numbers = #tpu.dot_dimension_numbers<[1], [0], [0], [1], [0, 0, 1, 1], [], []>} : vector<16x128xf32>, vector<128x256xf32>, vector<16x256xf32> -> vector<16x256xf32>
    %371 = arith.addf %364, %370 : vector<16x256xf32>
    %c8_227 = arith.constant 8 : index
    %c0_228 = arith.constant 0 : index
    %372 = vector.load %arg23[%c8_227, %c0_228] : memref<32x128xf32, #tpu.memory_space<vmem>>, vector<16x128xf32>
    %c4_229 = arith.constant 4 : index
    %c0_230 = arith.constant 0 : index
    %c0_231 = arith.constant 0 : index
    %373 = vector.load %arg8[%c4_229, %c0_230, %c0_231] : memref<9x128x256xf32, #tpu.memory_space<vmem>>, vector<1x128x256xf32>
    %374 = vector.shape_cast %373 : vector<1x128x256xf32> to vector<128x256xf32>
    %cst_232 = arith.constant dense<0.000000e+00> : vector<16x256xf32>
    %375 = tpu.matmul %372, %374, %cst_232 {dimension_numbers = #tpu.dot_dimension_numbers<[1], [0], [0], [1], [0, 0, 1, 1], [], []>} : vector<16x128xf32>, vector<128x256xf32>, vector<16x256xf32> -> vector<16x256xf32>
    %376 = arith.addf %371, %375 : vector<16x256xf32>
    %c9_233 = arith.constant 9 : index
    %c0_234 = arith.constant 0 : index
    %377 = vector.load %arg23[%c9_233, %c0_234] : memref<32x128xf32, #tpu.memory_space<vmem>>, vector<16x128xf32>
    %378 = vector.broadcast %324 : vector<16x1xf32> to vector<16x128xf32>
    %379 = arith.mulf %377, %378 : vector<16x128xf32>
    %c5_235 = arith.constant 5 : index
    %c0_236 = arith.constant 0 : index
    %c0_237 = arith.constant 0 : index
    %380 = vector.load %arg8[%c5_235, %c0_236, %c0_237] : memref<9x128x256xf32, #tpu.memory_space<vmem>>, vector<1x128x256xf32>
    %381 = vector.shape_cast %380 : vector<1x128x256xf32> to vector<128x256xf32>
    %cst_238 = arith.constant dense<0.000000e+00> : vector<16x256xf32>
    %382 = tpu.matmul %379, %381, %cst_238 {dimension_numbers = #tpu.dot_dimension_numbers<[1], [0], [0], [1], [0, 0, 1, 1], [], []>} : vector<16x128xf32>, vector<128x256xf32>, vector<16x256xf32> -> vector<16x256xf32>
    %383 = arith.addf %376, %382 : vector<16x256xf32>
    %c9_239 = arith.constant 9 : index
    %c0_240 = arith.constant 0 : index
    %384 = vector.load %arg23[%c9_239, %c0_240] : memref<32x128xf32, #tpu.memory_space<vmem>>, vector<16x128xf32>
    %385 = vector.broadcast %331 : vector<16x1xf32> to vector<16x128xf32>
    %386 = arith.mulf %384, %385 : vector<16x128xf32>
    %c6_241 = arith.constant 6 : index
    %c0_242 = arith.constant 0 : index
    %c0_243 = arith.constant 0 : index
    %387 = vector.load %arg8[%c6_241, %c0_242, %c0_243] : memref<9x128x256xf32, #tpu.memory_space<vmem>>, vector<1x128x256xf32>
    %388 = vector.shape_cast %387 : vector<1x128x256xf32> to vector<128x256xf32>
    %cst_244 = arith.constant dense<0.000000e+00> : vector<16x256xf32>
    %389 = tpu.matmul %386, %388, %cst_244 {dimension_numbers = #tpu.dot_dimension_numbers<[1], [0], [0], [1], [0, 0, 1, 1], [], []>} : vector<16x128xf32>, vector<128x256xf32>, vector<16x256xf32> -> vector<16x256xf32>
    %390 = arith.addf %383, %389 : vector<16x256xf32>
    %c10 = arith.constant 10 : index
    %c0_245 = arith.constant 0 : index
    %391 = vector.load %arg23[%c10, %c0_245] : memref<32x128xf32, #tpu.memory_space<vmem>>, vector<16x128xf32>
    %392 = vector.broadcast %335 : vector<16x1xf32> to vector<16x128xf32>
    %393 = arith.mulf %391, %392 : vector<16x128xf32>
    %c7_246 = arith.constant 7 : index
    %c0_247 = arith.constant 0 : index
    %c0_248 = arith.constant 0 : index
    %394 = vector.load %arg8[%c7_246, %c0_247, %c0_248] : memref<9x128x256xf32, #tpu.memory_space<vmem>>, vector<1x128x256xf32>
    %395 = vector.shape_cast %394 : vector<1x128x256xf32> to vector<128x256xf32>
    %cst_249 = arith.constant dense<0.000000e+00> : vector<16x256xf32>
    %396 = tpu.matmul %393, %395, %cst_249 {dimension_numbers = #tpu.dot_dimension_numbers<[1], [0], [0], [1], [0, 0, 1, 1], [], []>} : vector<16x128xf32>, vector<128x256xf32>, vector<16x256xf32> -> vector<16x256xf32>
    %397 = arith.addf %390, %396 : vector<16x256xf32>
    %c11_250 = arith.constant 11 : index
    %c0_251 = arith.constant 0 : index
    %398 = vector.load %arg23[%c11_250, %c0_251] : memref<32x128xf32, #tpu.memory_space<vmem>>, vector<16x128xf32>
    %399 = vector.broadcast %342 : vector<16x1xf32> to vector<16x128xf32>
    %400 = arith.mulf %398, %399 : vector<16x128xf32>
    %c8_252 = arith.constant 8 : index
    %c0_253 = arith.constant 0 : index
    %c0_254 = arith.constant 0 : index
    %401 = vector.load %arg8[%c8_252, %c0_253, %c0_254] : memref<9x128x256xf32, #tpu.memory_space<vmem>>, vector<1x128x256xf32>
    %402 = vector.shape_cast %401 : vector<1x128x256xf32> to vector<128x256xf32>
    %cst_255 = arith.constant dense<0.000000e+00> : vector<16x256xf32>
    %403 = tpu.matmul %400, %402, %cst_255 {dimension_numbers = #tpu.dot_dimension_numbers<[1], [0], [0], [1], [0, 0, 1, 1], [], []>} : vector<16x128xf32>, vector<128x256xf32>, vector<16x256xf32> -> vector<16x256xf32>
    %404 = arith.addf %397, %403 : vector<16x256xf32>
    %c0_256 = arith.constant 0 : index
    %c0_257 = arith.constant 0 : index
    %405 = vector.load %arg9[%c0_256, %c0_257] : memref<1x256xf32, #tpu.memory_space<vmem>>, vector<1x256xf32>
    %406 = vector.broadcast %405 : vector<1x256xf32> to vector<16x256xf32>
    %407 = arith.addf %404, %406 : vector<16x256xf32>
    %cst_258 = arith.constant 0.000000e+00 : f32
    %408 = vector.broadcast %cst_258 : f32 to vector<16x256xf32>
    %409 = arith.maximumf %407, %408 : vector<16x256xf32>
    %c0_259 = arith.constant 0 : index
    %c0_260 = arith.constant 0 : index
    %410 = vector.load %arg12[%c0_259, %c0_260] : memref<4x16xf32, #tpu.memory_space<vmem>>, vector<4x16xf32>
    %cst_261 = arith.constant dense<0.000000e+00> : vector<4x256xf32>
    %411 = tpu.matmul %410, %409, %cst_261 {dimension_numbers = #tpu.dot_dimension_numbers<[1], [0], [0], [1], [0, 0, 1, 1], [], []>} : vector<4x16xf32>, vector<16x256xf32>, vector<4x256xf32> -> vector<4x256xf32>
    %c0_262 = arith.constant 0 : index
    %c0_263 = arith.constant 0 : index
    %412 = vector.load %arg13[%c0_262, %c0_263] : memref<256x128xf32, #tpu.memory_space<vmem>>, vector<256x128xf32>
    %cst_264 = arith.constant dense<0.000000e+00> : vector<4x128xf32>
    %413 = tpu.matmul %411, %412, %cst_264 {dimension_numbers = #tpu.dot_dimension_numbers<[1], [0], [0], [1], [0, 0, 1, 1], [], []>} : vector<4x256xf32>, vector<256x128xf32>, vector<4x128xf32> -> vector<4x128xf32>
    %c0_265 = arith.constant 0 : index
    %c0_266 = arith.constant 0 : index
    %414 = vector.load %arg14[%c0_265, %c0_266] : memref<1x128xf32, #tpu.memory_space<vmem>>, vector<1x128xf32>
    %415 = vector.broadcast %414 : vector<1x128xf32> to vector<4x128xf32>
    %416 = arith.addf %413, %415 : vector<4x128xf32>
    %cst_267 = arith.constant dense<0.000000e+00> : vector<4xf32>
    %417 = vector.multi_reduction <add>, %416, %cst_267 [1] : vector<4x128xf32> to vector<4xf32>
    %418 = vector.shape_cast %417 : vector<4xf32> to vector<4x1xf32>
    %cst_268 = arith.constant 1.280000e+02 : f32
    %419 = vector.broadcast %cst_268 : f32 to vector<4x1xf32>
    %420 = arith.divf %418, %419 : vector<4x1xf32>
    %421 = vector.broadcast %420 : vector<4x1xf32> to vector<4x128xf32>
    %422 = arith.subf %416, %421 : vector<4x128xf32>
    %423 = arith.mulf %422, %422 : vector<4x128xf32>
    %cst_269 = arith.constant dense<0.000000e+00> : vector<4xf32>
    %424 = vector.multi_reduction <add>, %423, %cst_269 [1] : vector<4x128xf32> to vector<4xf32>
    %425 = vector.shape_cast %424 : vector<4xf32> to vector<4x1xf32>
    %cst_270 = arith.constant 1.280000e+02 : f32
    %426 = vector.broadcast %cst_270 : f32 to vector<4x1xf32>
    %427 = arith.divf %425, %426 : vector<4x1xf32>
    %428 = vector.broadcast %420 : vector<4x1xf32> to vector<4x128xf32>
    %429 = arith.subf %416, %428 : vector<4x128xf32>
    %cst_271 = arith.constant 9.99999974E-6 : f32
    %430 = vector.broadcast %cst_271 : f32 to vector<4x1xf32>
    %431 = arith.addf %427, %430 : vector<4x1xf32>
    %432 = math.rsqrt %431 : vector<4x1xf32>
    %433 = vector.broadcast %432 : vector<4x1xf32> to vector<4x128xf32>
    %434 = arith.mulf %429, %433 : vector<4x128xf32>
    %c0_272 = arith.constant 0 : index
    %c0_273 = arith.constant 0 : index
    %435 = vector.load %arg15[%c0_272, %c0_273] : memref<1x128xf32, #tpu.memory_space<vmem>>, vector<1x128xf32>
    %436 = vector.broadcast %435 : vector<1x128xf32> to vector<4x128xf32>
    %437 = arith.mulf %434, %436 : vector<4x128xf32>
    %c0_274 = arith.constant 0 : index
    %c0_275 = arith.constant 0 : index
    %438 = vector.load %arg16[%c0_274, %c0_275] : memref<1x128xf32, #tpu.memory_space<vmem>>, vector<1x128xf32>
    %439 = vector.broadcast %438 : vector<1x128xf32> to vector<4x128xf32>
    %440 = arith.addf %437, %439 : vector<4x128xf32>
    %c0_276 = arith.constant 0 : index
    %c0_277 = arith.constant 0 : index
    %441 = vector.load %arg17[%c0_276, %c0_277] : memref<2x4xf32, #tpu.memory_space<vmem>>, vector<2x4xf32>
    %cst_278 = arith.constant dense<0.000000e+00> : vector<2x128xf32>
    %442 = tpu.matmul %441, %440, %cst_278 {dimension_numbers = #tpu.dot_dimension_numbers<[1], [0], [0], [1], [0, 0, 1, 1], [], []>} : vector<2x4xf32>, vector<4x128xf32>, vector<2x128xf32> -> vector<2x128xf32>
    %443 = arith.mulf %442, %442 : vector<2x128xf32>
    %cst_279 = arith.constant dense<0.000000e+00> : vector<2xf32>
    %444 = vector.multi_reduction <add>, %443, %cst_279 [1] : vector<2x128xf32> to vector<2xf32>
    %445 = vector.shape_cast %444 : vector<2xf32> to vector<2x1xf32>
    %446 = math.sqrt %445 : vector<2x1xf32>
    %447 = vector.shape_cast %446 : vector<2x1xf32> to vector<2x1xf32>
    %448 = vector.broadcast %447 : vector<2x1xf32> to vector<2x128xf32>
    %c0_280 = arith.constant 0 : index
    %c0_281 = arith.constant 0 : index
    %449 = vector.load %arg18[%c0_280, %c0_281] : memref<2x128xf32, #tpu.memory_space<vmem>>, vector<2x128xf32>
    tpu.vector_store %arg18[%c0_280, %c0_281], %448 {strides = array<i32>} : memref<2x128xf32, #tpu.memory_space<vmem>>, vector<2x128xf32>,
    return
  }
  func.func @transform_0(%arg0: i32) -> (i32, i32) {
    %c0_i32 = arith.constant 0 : i32
    %c0_i32_0 = arith.constant 0 : i32
    %c0_i32_1 = arith.constant 0 : i32
    return %c0_i32, %c0_i32_0 : i32, i32
  }
  func.func @transform_1(%arg0: i32) -> (i32, i32) {
    %c0_i32 = arith.constant 0 : i32
    %c0_i32_0 = arith.constant 0 : i32
    %c0_i32_1 = arith.constant 0 : i32
    return %c0_i32, %c0_i32_0 : i32, i32
  }
  func.func @transform_2(%arg0: i32) -> (i32, i32) {
    %c0_i32 = arith.constant 0 : i32
    %c0_i32_0 = arith.constant 0 : i32
    %c0_i32_1 = arith.constant 0 : i32
    return %c0_i32, %c0_i32_0 : i32, i32
  }
  func.func @transform_3(%arg0: i32) -> (i32, i32, i32) {
    %c0_i32 = arith.constant 0 : i32
    %c0_i32_0 = arith.constant 0 : i32
    %c0_i32_1 = arith.constant 0 : i32
    %c0_i32_2 = arith.constant 0 : i32
    return %c0_i32, %c0_i32_0, %c0_i32_1 : i32, i32, i32
  }
  func.func @transform_4(%arg0: i32) -> (i32, i32) {
    %c0_i32 = arith.constant 0 : i32
    %c0_i32_0 = arith.constant 0 : i32
    %c0_i32_1 = arith.constant 0 : i32
    return %c0_i32, %c0_i32_0 : i32, i32
  }
  func.func @transform_5(%arg0: i32) -> (i32, i32, i32) {
    %c0_i32 = arith.constant 0 : i32
    %c0_i32_0 = arith.constant 0 : i32
    %c0_i32_1 = arith.constant 0 : i32
    %c0_i32_2 = arith.constant 0 : i32
    return %c0_i32, %c0_i32_0, %c0_i32_1 : i32, i32, i32
  }
  func.func @transform_6(%arg0: i32) -> (i32, i32) {
    %c0_i32 = arith.constant 0 : i32
    %c0_i32_0 = arith.constant 0 : i32
    %c0_i32_1 = arith.constant 0 : i32
    return %c0_i32, %c0_i32_0 : i32, i32
  }
  func.func @transform_7(%arg0: i32) -> (i32, i32, i32) {
    %c0_i32 = arith.constant 0 : i32
    %c0_i32_0 = arith.constant 0 : i32
    %c0_i32_1 = arith.constant 0 : i32
    %c0_i32_2 = arith.constant 0 : i32
    return %c0_i32, %c0_i32_0, %c0_i32_1 : i32, i32, i32
  }
  func.func @transform_8(%arg0: i32) -> (i32, i32) {
    %c0_i32 = arith.constant 0 : i32
    %c0_i32_0 = arith.constant 0 : i32
    %c0_i32_1 = arith.constant 0 : i32
    return %c0_i32, %c0_i32_0 : i32, i32
  }
  func.func @transform_9(%arg0: i32) -> (i32, i32) {
    %c0_i32 = arith.constant 0 : i32
    %c0_i32_0 = arith.constant 0 : i32
    %c0_i32_1 = arith.constant 0 : i32
    return %c0_i32, %c0_i32_0 : i32, i32
  }
  func.func @transform_10(%arg0: i32) -> (i32, i32) {
    %c0_i32 = arith.constant 0 : i32
    %c0_i32_0 = arith.constant 0 : i32
    %c0_i32_1 = arith.constant 0 : i32
    return %c0_i32, %c0_i32_0 : i32, i32
  }
  func.func @transform_11(%arg0: i32) -> (i32, i32) {
    %c0_i32 = arith.constant 0 : i32
    %c0_i32_0 = arith.constant 0 : i32
    %c0_i32_1 = arith.constant 0 : i32
    return %c0_i32, %c0_i32_0 : i32, i32
  }
  func.func @transform_12(%arg0: i32) -> (i32, i32) {
    %c0_i32 = arith.constant 0 : i32
    %c0_i32_0 = arith.constant 0 : i32
    %c0_i32_1 = arith.constant 0 : i32
    return %c0_i32, %c0_i32_0 : i32, i32
  }
  func.func @transform_13(%arg0: i32) -> (i32, i32) {
    %c0_i32 = arith.constant 0 : i32
    %c0_i32_0 = arith.constant 0 : i32
    %c0_i32_1 = arith.constant 0 : i32
    return %c0_i32, %c0_i32_0 : i32, i32
  }
  func.func @transform_14(%arg0: i32) -> (i32, i32) {
    %c0_i32 = arith.constant 0 : i32
    %c0_i32_0 = arith.constant 0 : i32
    %c0_i32_1 = arith.constant 0 : i32
    return %c0_i32, %c0_i32_0 : i32, i32
  }
  func.func @transform_15(%arg0: i32) -> (i32, i32) {
    %c0_i32 = arith.constant 0 : i32
    %c0_i32_0 = arith.constant 0 : i32
    %c0_i32_1 = arith.constant 0 : i32
    return %c0_i32, %c0_i32_0 : i32, i32
  }
  func.func @transform_16(%arg0: i32) -> (i32, i32) {
    %c0_i32 = arith.constant 0 : i32
    %c0_i32_0 = arith.constant 0 : i32
    %c0_i32_1 = arith.constant 0 : i32
    return %c0_i32, %c0_i32_0 : i32, i32
  }
  func.func @transform_17(%arg0: i32) -> (i32, i32) {
    %c0_i32 = arith.constant 0 : i32
    %c0_i32_0 = arith.constant 0 : i32
    %c0_i32_1 = arith.constant 0 : i32
    return %c0_i32, %c0_i32_0 : i32, i32
  }
}

</mosaic_0001>

<llo_original>
// kernel: siamese_forward.1
$region0: #{siamese_forward.1}
  #allocation0 [shape = 'u32[]', space=smem, size = 0x4, offset = 0x4, fixed_abs, tag = 'smem constant byte address 0x4 - core index']
  #allocation1 [shape = 'u32[144,128]{1,0:T(1,128)}', space=vmem, size = 0x12000, scoped, tag = 'internal scratch']
  #allocation2 [shape = 'f32[288,32]{1,0:T(8,128)}', space=vmem, size = 0x24000, scoped, tag = 'scratch operand']
  #allocation3 [shape = 'f32[272,64]{1,0:T(8,128)}', space=vmem, size = 0x22000, scoped, tag = 'scratch operand']
  #allocation4 [shape = 'f32[80,64]{1,0:T(8,128)}', space=vmem, size = 0xa000, scoped, tag = 'scratch operand']
  #allocation5 [shape = 'f32[72,128]{1,0:T(8,128)}', space=vmem, size = 0x9000, scoped, tag = 'scratch operand']
  #allocation6 [shape = 'f32[32,128]{1,0:T(8,128)}', space=vmem, size = 0x4000, scoped, tag = 'scratch operand']
  %s0 = inlined_call_operand.vmem [shape: f32[1024,16], index: 0, kind: input, shape index: {}]
  %s1 = inlined_call_operand.vmem [shape: f32[16,32], index: 1, kind: input, shape index: {}]
  %s2 = inlined_call_operand.vmem [shape: f32[1,32], index: 2, kind: input, shape index: {}]
  %s3 = inlined_call_operand.vmem [shape: f32[9,32,64], index: 3, kind: input, shape index: {}]
  %s4 = inlined_call_operand.vmem [shape: f32[1,64], index: 4, kind: input, shape index: {}]
  %s5 = inlined_call_operand.vmem [shape: f32[9,64,128], index: 5, kind: input, shape index: {}]
  %s6 = inlined_call_operand.vmem [shape: f32[1,128], index: 6, kind: input, shape index: {}]
  %s7 = inlined_call_operand.vmem [shape: f32[9,128,256], index: 7, kind: input, shape index: {}]
  %s8 = inlined_call_operand.vmem [shape: f32[1,256], index: 8, kind: input, shape index: {}]
  %s9 = inlined_call_operand.vmem [shape: f32[64,256], index: 9, kind: input, shape index: {}]
  %s10 = inlined_call_operand.vmem [shape: f32[16,64], index: 10, kind: input, shape index: {}]
  %s11 = inlined_call_operand.vmem [shape: f32[4,16], index: 11, kind: input, shape index: {}]
  %s12 = inlined_call_operand.vmem [shape: f32[256,128], index: 12, kind: input, shape index: {}]
  %s13 = inlined_call_operand.vmem [shape: f32[1,128], index: 13, kind: input, shape index: {}]
  %s14 = inlined_call_operand.vmem [shape: f32[1,128], index: 14, kind: input, shape index: {}]
  %s15 = inlined_call_operand.vmem [shape: f32[1,128], index: 15, kind: input, shape index: {}]
  %s16 = inlined_call_operand.vmem [shape: f32[2,4], index: 16, kind: input, shape index: {}]
  %s17 = inlined_call_operand.vmem [shape: f32[2,128], index: 17, kind: output, shape index: {}]
  %s18 = sld [smem:[#allocation0]]
  $region78: #{siamese_forward.1} parent=0
    _
  %s20 = ssub.s32 1, %s18
  %s21 = scalar_select 0, %s20, %s18
  // Predicated region
  $region2: #{siamese_forward.1} parent=0 // pred_check
    _
  $region3: #{siamese_forward.1} parent=0 // pred_check_branch
    %23 = sbr.rel (0) target = $region5
  $region4: #{siamese_forward.1} parent=0 // pred_region
    _
  $region5: #{siamese_forward.1} parent=0 // pred_fallthru
    _
  // Predicated region
  $region6: #{siamese_forward.1} parent=0 // pred_check
    _
  $region7: #{siamese_forward.1} parent=0 // pred_check_branch
    %25 = sbr.rel (0) target = $region9
  $region8: #{siamese_forward.1} parent=0 // pred_region
    _
  $region9: #{siamese_forward.1} parent=0 // pred_fallthru
    _
  // Predicated region
  $region10: #{siamese_forward.1} parent=0 // pred_check
    _
  $region11: #{siamese_forward.1} parent=0 // pred_check_branch
    %27 = sbr.rel (0) target = $region13
  $region12: #{siamese_forward.1} parent=0 // pred_region
    _
  $region13: #{siamese_forward.1} parent=0 // pred_fallthru
    _
  // Predicated region
  $region14: #{siamese_forward.1} parent=0 // pred_check
    _
  $region15: #{siamese_forward.1} parent=0 // pred_check_branch
    %29 = sbr.rel (0) target = $region17
  $region16: #{siamese_forward.1} parent=0 // pred_region
    _
  $region17: #{siamese_forward.1} parent=0 // pred_fallthru
    _
  // Predicated region
  $region18: #{siamese_forward.1} parent=0 // pred_check
    _
  $region19: #{siamese_forward.1} parent=0 // pred_check_branch
    %31 = sbr.rel (0) target = $region21
  $region20: #{siamese_forward.1} parent=0 // pred_region
    _
  $region21: #{siamese_forward.1} parent=0 // pred_fallthru
    _
  // Predicated region
  $region22: #{siamese_forward.1} parent=0 // pred_check
    _
  $region23: #{siamese_forward.1} parent=0 // pred_check_branch
    %33 = sbr.rel (0) target = $region25
  $region24: #{siamese_forward.1} parent=0 // pred_region
    _
  $region25: #{siamese_forward.1} parent=0 // pred_fallthru
    _
  // Predicated region
  $region26: #{siamese_forward.1} parent=0 // pred_check
    _
  $region27: #{siamese_forward.1} parent=0 // pred_check_branch
    %35 = sbr.rel (0) target = $region29
  $region28: #{siamese_forward.1} parent=0 // pred_region
    _
  $region29: #{siamese_forward.1} parent=0 // pred_fallthru
    _
  // Predicated region
  $region30: #{siamese_forward.1} parent=0 // pred_check
    _
  $region31: #{siamese_forward.1} parent=0 // pred_check_branch
    %37 = sbr.rel (0) target = $region33
  $region32: #{siamese_forward.1} parent=0 // pred_region
    _
  $region33: #{siamese_forward.1} parent=0 // pred_fallthru
    _
  // Predicated region
  $region34: #{siamese_forward.1} parent=0 // pred_check
    _
  $region35: #{siamese_forward.1} parent=0 // pred_check_branch
    %39 = sbr.rel (0) target = $region37
  $region36: #{siamese_forward.1} parent=0 // pred_region
    _
  $region37: #{siamese_forward.1} parent=0 // pred_fallthru
    _
  // Predicated region
  $region38: #{siamese_forward.1} parent=0 // pred_check
    _
  $region39: #{siamese_forward.1} parent=0 // pred_check_branch
    %41 = sbr.rel (0) target = $region41
  $region40: #{siamese_forward.1} parent=0 // pred_region
    _
  $region41: #{siamese_forward.1} parent=0 // pred_fallthru
    _
  // Predicated region
  $region42: #{siamese_forward.1} parent=0 // pred_check
    _
  $region43: #{siamese_forward.1} parent=0 // pred_check_branch
    %43 = sbr.rel (0) target = $region45
  $region44: #{siamese_forward.1} parent=0 // pred_region
    _
  $region45: #{siamese_forward.1} parent=0 // pred_fallthru
    _
  // Predicated region
  $region46: #{siamese_forward.1} parent=0 // pred_check
    _
  $region47: #{siamese_forward.1} parent=0 // pred_check_branch
    %45 = sbr.rel (0) target = $region49
  $region48: #{siamese_forward.1} parent=0 // pred_region
    _
  $region49: #{siamese_forward.1} parent=0 // pred_fallthru
    _
  // Predicated region
  $region50: #{siamese_forward.1} parent=0 // pred_check
    _
  $region51: #{siamese_forward.1} parent=0 // pred_check_branch
    %47 = sbr.rel (0) target = $region53
  $region52: #{siamese_forward.1} parent=0 // pred_region
    _
  $region53: #{siamese_forward.1} parent=0 // pred_fallthru
    _
  // Predicated region
  $region54: #{siamese_forward.1} parent=0 // pred_check
    _
  $region55: #{siamese_forward.1} parent=0 // pred_check_branch
    %49 = sbr.rel (0) target = $region57
  $region56: #{siamese_forward.1} parent=0 // pred_region
    _
  $region57: #{siamese_forward.1} parent=0 // pred_fallthru
    _
  // Predicated region
  $region58: #{siamese_forward.1} parent=0 // pred_check
    _
  $region59: #{siamese_forward.1} parent=0 // pred_check_branch
    %51 = sbr.rel (0) target = $region61
  $region60: #{siamese_forward.1} parent=0 // pred_region
    _
  $region61: #{siamese_forward.1} parent=0 // pred_fallthru
    _
  // Predicated region
  $region62: #{siamese_forward.1} parent=0 // pred_check
    _
  $region63: #{siamese_forward.1} parent=0 // pred_check_branch
    %53 = sbr.rel (0) target = $region65
  $region64: #{siamese_forward.1} parent=0 // pred_region
    _
  $region65: #{siamese_forward.1} parent=0 // pred_fallthru
    _
  // Predicated region
  $region66: #{siamese_forward.1} parent=0 // pred_check
    _
  $region67: #{siamese_forward.1} parent=0 // pred_check_branch
    %55 = sbr.rel (0) target = $region69
  $region68: #{siamese_forward.1} parent=0 // pred_region
    _
  $region69: #{siamese_forward.1} parent=0 // pred_fallthru
    _
  %v56 = vld [vmem:[%s1] sm:$0xff]
  %v57 = vld [vmem:[%s1 + $0x8] sm:$0xff]
  %v58 = vld [vmem:[%s0] sm:$0xff]
  %v59 = vld [vmem:[%s0 + $0x8] sm:$0xff]
  %v60 = vld [vmem:[%s0 + $0x10] sm:$0xff]
  %v61 = vld [vmem:[%s0 + $0x18] sm:$0xff]
  %v62 = vld [vmem:[%s0 + $0x20] sm:$0xff]
  %v63 = vld [vmem:[%s0 + $0x28] sm:$0xff]
  %v64 = vld [vmem:[%s0 + $0x30] sm:$0xff]
  %v65 = vld [vmem:[%s0 + $0x38] sm:$0xff]
  %v66 = vld [vmem:[%s0 + $0x40] sm:$0xff]
  %v67 = vld [vmem:[%s0 + $0x48] sm:$0xff]
  %v68 = vld [vmem:[%s0 + $0x50] sm:$0xff]
  %v69 = vld [vmem:[%s0 + $0x58] sm:$0xff]
  %v70 = vld [vmem:[%s0 + $0x60] sm:$0xff]
  %v71 = vld [vmem:[%s0 + $0x68] sm:$0xff]
  %v72 = vld [vmem:[%s0 + $0x70] sm:$0xff]
  %v73 = vld [vmem:[%s0 + $0x78] sm:$0xff]
  %v74 = vld [vmem:[%s0 + $0x80] sm:$0xff]
  %v75 = vld [vmem:[%s0 + $0x88] sm:$0xff]
  %v76 = vld [vmem:[%s0 + $0x90] sm:$0xff]
  %v77 = vld [vmem:[%s0 + $0x98] sm:$0xff]
  %v78 = vld [vmem:[%s0 + $0xa0] sm:$0xff]
  %v79 = vld [vmem:[%s0 + $0xa8] sm:$0xff]
  %v80 = vld [vmem:[%s0 + $0xb0] sm:$0xff]
  %v81 = vld [vmem:[%s0 + $0xb8] sm:$0xff]
  %v82 = vld [vmem:[%s0 + $0xc0] sm:$0xff]
  %v83 = vld [vmem:[%s0 + $0xc8] sm:$0xff]
  %v84 = vld [vmem:[%s0 + $0xd0] sm:$0xff]
  %v85 = vld [vmem:[%s0 + $0xd8] sm:$0xff]
  %v86 = vld [vmem:[%s0 + $0xe0] sm:$0xff]
  %v87 = vld [vmem:[%s0 + $0xe8] sm:$0xff]
  %v88 = vld [vmem:[%s0 + $0xf0] sm:$0xff]
  %v89 = vld [vmem:[%s0 + $0xf8] sm:$0xff]
  %vm90 = vcmask 130048
  %v92 = vsel %vm90, %v58, 0
  %v95 = vsel %vm90, %v59, 0
  %v98 = vsel %vm90, %v60, 0
  %v101 = vsel %vm90, %v61, 0
  %v104 = vsel %vm90, %v62, 0
  %v107 = vsel %vm90, %v63, 0
  %v110 = vsel %vm90, %v64, 0
  %v113 = vsel %vm90, %v65, 0
  %v116 = vsel %vm90, %v66, 0
  %v119 = vsel %vm90, %v67, 0
  %v122 = vsel %vm90, %v68, 0
  %v125 = vsel %vm90, %v69, 0
  %v128 = vsel %vm90, %v70, 0
  %v131 = vsel %vm90, %v71, 0
  %v134 = vsel %vm90, %v72, 0
  %v137 = vsel %vm90, %v73, 0
  %v140 = vsel %vm90, %v74, 0
  %v143 = vsel %vm90, %v75, 0
  %v146 = vsel %vm90, %v76, 0
  %v149 = vsel %vm90, %v77, 0
  %v152 = vsel %vm90, %v78, 0
  %v155 = vsel %vm90, %v79, 0
  %v158 = vsel %vm90, %v80, 0
  %v161 = vsel %vm90, %v81, 0
  %v164 = vsel %vm90, %v82, 0
  %v167 = vsel %vm90, %v83, 0
  %v170 = vsel %vm90, %v84, 0
  %v173 = vsel %vm90, %v85, 0
  %v176 = vsel %vm90, %v86, 0
  %v179 = vsel %vm90, %v87, 0
  %v182 = vsel %vm90, %v88, 0
  %v185 = vsel %vm90, %v89, 0
  %187 = vmatprep.subr.mxu0 0.0
  %188 = vmatpush1.msra.mxu0 %v56
  %189 = vmatprep.subr.mxu0 0.0
  %190 = vmatpush1.msra.mxu0 %v57
  %191 = vmatprep.subr.mxu0 0.0
  %192 = vmatpush1.msra.mxu0 0.0
  %193 = vmatprep.subr.mxu0 0.0
  %194 = vmatpush1.msra.mxu0 0.0
  %195 = vmatprep.subr.mxu0 0.0
  %196 = vmatpush1.msra.mxu0 0.0
  %197 = vmatprep.subr.mxu0 0.0
  %198 = vmatpush1.msra.mxu0 0.0
  %199 = vmatprep.subr.mxu0 0.0
  %200 = vmatpush1.msra.mxu0 0.0
  %201 = vmatprep.subr.mxu0 0.0
  %202 = vmatpush1.msra.mxu0 0.0
  %203 = vmatprep.subr.mxu0 0.0
  %204 = vmatpush1.msra.mxu0 0.0
  %205 = vmatprep.subr.mxu0 0.0
  %206 = vmatpush1.msra.mxu0 0.0
  %207 = vmatprep.subr.mxu0 0.0
  %208 = vmatpush1.msra.mxu0 0.0
  %209 = vmatprep.subr.mxu0 0.0
  %210 = vmatpush1.msra.mxu0 0.0
  %211 = vmatprep.subr.mxu0 0.0
  %212 = vmatpush1.msra.mxu0 0.0
  %213 = vmatprep.subr.mxu0 0.0
  %214 = vmatpush1.msra.mxu0 0.0
  %215 = vmatprep.subr.mxu0 0.0
  %216 = vmatpush1.msra.mxu0 0.0
  %217 = vmatprep.subr.mxu0 0.0
  %218 = vmatpush1.msra.mxu0 0.0
  %219 = vmatprep.subr.mxu0 0.0
  %220 = vmatpush1.msra.mxu0 0.0
  %221 = vmatprep.subr.mxu0 0.0
  %222 = vmatpush1.msra.mxu0 0.0
  %223 = vmatprep.subr.mxu0 0.0
  %224 = vmatpush1.msra.mxu0 0.0
  %225 = vmatprep.subr.mxu0 0.0
  %226 = vmatpush1.msra.mxu0 0.0
  %227 = vmatprep.subr.mxu0 0.0
  %228 = vmatpush1.msra.mxu0 0.0
  %229 = vmatprep.subr.mxu0 0.0
  %230 = vmatpush1.msra.mxu0 0.0
  %231 = vmatprep.subr.mxu0 0.0
  %232 = vmatpush1.msra.mxu0 0.0
  %233 = vmatprep.subr.mxu0 0.0
  %234 = vmatpush1.msra.mxu0 0.0
  %235 = vmatprep.subr.mxu0 0.0
  %236 = vmatpush1.msra.mxu0 0.0
  %237 = vmatprep.subr.mxu0 0.0
  %238 = vmatpush1.msra.mxu0 0.0
  %239 = vmatprep.subr.mxu0 0.0
  %240 = vmatpush1.msra.mxu0 0.0
  %241 = vmatprep.subr.mxu0 0.0
  %242 = vmatpush1.msra.mxu0 0.0
  %243 = vmatprep.subr.mxu0 0.0
  %244 = vmatpush1.msra.mxu0 0.0
  %245 = vmatprep.subr.mxu0 0.0
  %246 = vmatpush1.msra.mxu0 0.0
  %247 = vmatprep.subr.mxu0 0.0
  %248 = vmatpush1.msra.mxu0 0.0
  %249 = vmatprep.subr.mxu0 0.0
  %250 = vmatpush1.msra.mxu0 0.0
  %251 = vmatprep.mubr.f32.mxu0 0.0
  %252 = vmatmul.mubr.f32.gmra.mrb[0].mxu0 %v92
  %v253 = vpop.f32.mrb[0].mxu0
  %v254 = vadd.f32 0.0, %v253
  %v255 = vpop.f32.mrb[0].mxu0
  %256 = vmatprep.mubr.f32.mxu0 0.0
  %257 = vmatmul.mubr.f32.gmra.mrb[0].mxu0 %v95
  %v258 = vpop.f32.mrb[0].mxu0
  %v259 = vadd.f32 0.0, %v258
  %v260 = vpop.f32.mrb[0].mxu0
  %261 = vmatprep.mubr.f32.mxu0 0.0
  %262 = vmatmul.mubr.f32.gmra.mrb[0].mxu0 %v98
  %v263 = vpop.f32.mrb[0].mxu0
  %v264 = vadd.f32 0.0, %v263
  %v265 = vpop.f32.mrb[0].mxu0
  %266 = vmatprep.mubr.f32.mxu0 0.0
  %267 = vmatmul.mubr.f32.gmra.mrb[0].mxu0 %v101
  %v268 = vpop.f32.mrb[0].mxu0
  %v269 = vadd.f32 0.0, %v268
  %v270 = vpop.f32.mrb[0].mxu0
  %271 = vmatprep.mubr.f32.mxu0 0.0
  %272 = vmatmul.mubr.f32.gmra.mrb[0].mxu0 %v104
  %v273 = vpop.f32.mrb[0].mxu0
  %v274 = vadd.f32 0.0, %v273
  %v275 = vpop.f32.mrb[0].mxu0
  %276 = vmatprep.mubr.f32.mxu0 0.0
  %277 = vmatmul.mubr.f32.gmra.mrb[0].mxu0 %v107
  %v278 = vpop.f32.mrb[0].mxu0
  %v279 = vadd.f32 0.0, %v278
  %v280 = vpop.f32.mrb[0].mxu0
  %281 = vmatprep.mubr.f32.mxu0 0.0
  %282 = vmatmul.mubr.f32.gmra.mrb[0].mxu0 %v110
  %v283 = vpop.f32.mrb[0].mxu0
  %v284 = vadd.f32 0.0, %v283
  %v285 = vpop.f32.mrb[0].mxu0
  %286 = vmatprep.mubr.f32.mxu0 0.0
  %287 = vmatmul.mubr.f32.gmra.mrb[0].mxu0 %v113
  %v288 = vpop.f32.mrb[0].mxu0
  %v289 = vadd.f32 0.0, %v288
  %v290 = vpop.f32.mrb[0].mxu0
  %291 = vmatprep.mubr.f32.mxu0 0.0
  %292 = vmatmul.mubr.f32.gmra.mrb[0].mxu0 %v116
  %v293 = vpop.f32.mrb[0].mxu0
  %v294 = vadd.f32 0.0, %v293
  %v295 = vpop.f32.mrb[0].mxu0
  %296 = vmatprep.mubr.f32.mxu0 0.0
  %297 = vmatmul.mubr.f32.gmra.mrb[0].mxu0 %v119
  %v298 = vpop.f32.mrb[0].mxu0
  %v299 = vadd.f32 0.0, %v298
  %v300 = vpop.f32.mrb[0].mxu0
  %301 = vmatprep.mubr.f32.mxu0 0.0
  %302 = vmatmul.mubr.f32.gmra.mrb[0].mxu0 %v122
  %v303 = vpop.f32.mrb[0].mxu0
  %v304 = vadd.f32 0.0, %v303
  %v305 = vpop.f32.mrb[0].mxu0
  %306 = vmatprep.mubr.f32.mxu0 0.0
  %307 = vmatmul.mubr.f32.gmra.mrb[0].mxu0 %v125
  %v308 = vpop.f32.mrb[0].mxu0
  %v309 = vadd.f32 0.0, %v308
  %v310 = vpop.f32.mrb[0].mxu0
  %311 = vmatprep.mubr.f32.mxu0 0.0
  %312 = vmatmul.mubr.f32.gmra.mrb[0].mxu0 %v128
  %v313 = vpop.f32.mrb[0].mxu0
  %v314 = vadd.f32 0.0, %v313
  %v315 = vpop.f32.mrb[0].mxu0
  %316 = vmatprep.mubr.f32.mxu0 0.0
  %317 = vmatmul.mubr.f32.gmra.mrb[0].mxu0 %v131
  %v318 = vpop.f32.mrb[0].mxu0
  %v319 = vadd.f32 0.0, %v318
  %v320 = vpop.f32.mrb[0].mxu0
  %321 = vmatprep.mubr.f32.mxu0 0.0
  %322 = vmatmul.mubr.f32.gmra.mrb[0].mxu0 %v134
  %v323 = vpop.f32.mrb[0].mxu0
  %v324 = vadd.f32 0.0, %v323
  %v325 = vpop.f32.mrb[0].mxu0
  %326 = vmatprep.mubr.f32.mxu0 0.0
  %327 = vmatmul.mubr.f32.gmra.mrb[0].mxu0 %v137
  %v328 = vpop.f32.mrb[0].mxu0
  %v329 = vadd.f32 0.0, %v328
  %v330 = vpop.f32.mrb[0].mxu0
  %331 = vmatprep.mubr.f32.mxu0 0.0
  %332 = vmatmul.mubr.f32.gmra.mrb[0].mxu0 %v140
  %v333 = vpop.f32.mrb[0].mxu0
  %v334 = vadd.f32 0.0, %v333
  %v335 = vpop.f32.mrb[0].mxu0
  %336 = vmatprep.mubr.f32.mxu0 0.0
  %337 = vmatmul.mubr.f32.gmra.mrb[0].mxu0 %v143
  %v338 = vpop.f32.mrb[0].mxu0
  %v339 = vadd.f32 0.0, %v338
  %v340 = vpop.f32.mrb[0].mxu0
  %341 = vmatprep.mubr.f32.mxu0 0.0
  %342 = vmatmul.mubr.f32.gmra.mrb[0].mxu0 %v146
  %v343 = vpop.f32.mrb[0].mxu0
  %v344 = vadd.f32 0.0, %v343
  %v345 = vpop.f32.mrb[0].mxu0
  %346 = vmatprep.mubr.f32.mxu0 0.0
  %347 = vmatmul.mubr.f32.gmra.mrb[0].mxu0 %v149
  %v348 = vpop.f32.mrb[0].mxu0
  %v349 = vadd.f32 0.0, %v348
  %v350 = vpop.f32.mrb[0].mxu0
  %351 = vmatprep.mubr.f32.mxu0 0.0
  %352 = vmatmul.mubr.f32.gmra.mrb[0].mxu0 %v152
  %v353 = vpop.f32.mrb[0].mxu0
  %v354 = vadd.f32 0.0, %v353
  %v355 = vpop.f32.mrb[0].mxu0
  %356 = vmatprep.mubr.f32.mxu0 0.0
  %357 = vmatmul.mubr.f32.gmra.mrb[0].mxu0 %v155
  %v358 = vpop.f32.mrb[0].mxu0
  %v359 = vadd.f32 0.0, %v358
  %v360 = vpop.f32.mrb[0].mxu0
  %361 = vmatprep.mubr.f32.mxu0 0.0
  %362 = vmatmul.mubr.f32.gmra.mrb[0].mxu0 %v158
  %v363 = vpop.f32.mrb[0].mxu0
  %v364 = vadd.f32 0.0, %v363
  %v365 = vpop.f32.mrb[0].mxu0
  %366 = vmatprep.mubr.f32.mxu0 0.0
  %367 = vmatmul.mubr.f32.gmra.mrb[0].mxu0 %v161
  %v368 = vpop.f32.mrb[0].mxu0
  %v369 = vadd.f32 0.0, %v368
  %v370 = vpop.f32.mrb[0].mxu0
  %371 = vmatprep.mubr.f32.mxu0 0.0
  %372 = vmatmul.mubr.f32.gmra.mrb[0].mxu0 %v164
  %v373 = vpop.f32.mrb[0].mxu0
  %v374 = vadd.f32 0.0, %v373
  %v375 = vpop.f32.mrb[0].mxu0
  %376 = vmatprep.mubr.f32.mxu0 0.0
  %377 = vmatmul.mubr.f32.gmra.mrb[0].mxu0 %v167
  %v378 = vpop.f32.mrb[0].mxu0
  %v379 = vadd.f32 0.0, %v378
  %v380 = vpop.f32.mrb[0].mxu0
  %381 = vmatprep.mubr.f32.mxu0 0.0
  %382 = vmatmul.mubr.f32.gmra.mrb[0].mxu0 %v170
  %v383 = vpop.f32.mrb[0].mxu0
  %v384 = vadd.f32 0.0, %v383
  %v385 = vpop.f32.mrb[0].mxu0
  %386 = vmatprep.mubr.f32.mxu0 0.0
  %387 = vmatmul.mubr.f32.gmra.mrb[0].mxu0 %v173
  %v388 = vpop.f32.mrb[0].mxu0
  %v389 = vadd.f32 0.0, %v388
  %v390 = vpop.f32.mrb[0].mxu0
  %391 = vmatprep.mubr.f32.mxu0 0.0
  %392 = vmatmul.mubr.f32.gmra.mrb[0].mxu0 %v176
  %v393 = vpop.f32.mrb[0].mxu0
  %v394 = vadd.f32 0.0, %v393
  %v395 = vpop.f32.mrb[0].mxu0
  %396 = vmatprep.mubr.f32.mxu0 0.0
  %397 = vmatmul.mubr.f32.gmra.mrb[0].mxu0 %v179
  %v398 = vpop.f32.mrb[0].mxu0
  %v399 = vadd.f32 0.0, %v398
  %v400 = vpop.f32.mrb[0].mxu0
  %401 = vmatprep.mubr.f32.mxu0 0.0
  %402 = vmatmul.mubr.f32.gmra.mrb[0].mxu0 %v182
  %v403 = vpop.f32.mrb[0].mxu0
  %v404 = vadd.f32 0.0, %v403
  %v405 = vpop.f32.mrb[0].mxu0
  %406 = vmatprep.mubr.f32.mxu0 0.0
  %407 = vmatmul.mubr.f32.gmra.mrb[0].mxu0 %v185
  %v408 = vpop.f32.mrb[0].mxu0
  %v409 = vadd.f32 0.0, %v408
  %v410 = vpop.f32.mrb[0].mxu0
  %411 = vdwg.mxu0
  %v412 = vld [vmem:[%s0 + $0x100] sm:$0xff]
  %v413 = vld [vmem:[%s0 + $0x108] sm:$0xff]
  %v414 = vld [vmem:[%s0 + $0x110] sm:$0xff]
  %v415 = vld [vmem:[%s0 + $0x118] sm:$0xff]
  %v416 = vld [vmem:[%s0 + $0x120] sm:$0xff]
  %v417 = vld [vmem:[%s0 + $0x128] sm:$0xff]
  %v418 = vld [vmem:[%s0 + $0x130] sm:$0xff]
  %v419 = vld [vmem:[%s0 + $0x138] sm:$0xff]
  %v420 = vld [vmem:[%s0 + $0x140] sm:$0xff]
  %v421 = vld [vmem:[%s0 + $0x148] sm:$0xff]
  %v422 = vld [vmem:[%s0 + $0x150] sm:$0xff]
  %v423 = vld [vmem:[%s0 + $0x158] sm:$0xff]
  %v424 = vld [vmem:[%s0 + $0x160] sm:$0xff]
  %v425 = vld [vmem:[%s0 + $0x168] sm:$0xff]
  %v426 = vld [vmem:[%s0 + $0x170] sm:$0xff]
  %v427 = vld [vmem:[%s0 + $0x178] sm:$0xff]
  %v428 = vld [vmem:[%s0 + $0x180] sm:$0xff]
  %v429 = vld [vmem:[%s0 + $0x188] sm:$0xff]
  %v430 = vld [vmem:[%s0 + $0x190] sm:$0xff]
  %v431 = vld [vmem:[%s0 + $0x198] sm:$0xff]
  %v432 = vld [vmem:[%s0 + $0x1a0] sm:$0xff]
  %v433 = vld [vmem:[%s0 + $0x1a8] sm:$0xff]
  %v434 = vld [vmem:[%s0 + $0x1b0] sm:$0xff]
  %v435 = vld [vmem:[%s0 + $0x1b8] sm:$0xff]
  %v436 = vld [vmem:[%s0 + $0x1c0] sm:$0xff]
  %v437 = vld [vmem:[%s0 + $0x1c8] sm:$0xff]
  %v438 = vld [vmem:[%s0 + $0x1d0] sm:$0xff]
  %v439 = vld [vmem:[%s0 + $0x1d8] sm:$0xff]
  %v440 = vld [vmem:[%s0 + $0x1e0] sm:$0xff]
  %v441 = vld [vmem:[%s0 + $0x1e8] sm:$0xff]
  %v442 = vld [vmem:[%s0 + $0x1f0] sm:$0xff]
  %v443 = vld [vmem:[%s0 + $0x1f8] sm:$0xff]
  %v445 = vsel %vm90, %v412, 0
  %v448 = vsel %vm90, %v413, 0
  %v451 = vsel %vm90, %v414, 0
  %v454 = vsel %vm90, %v415, 0
  %v457 = vsel %vm90, %v416, 0
  %v460 = vsel %vm90, %v417, 0
  %v463 = vsel %vm90, %v418, 0
  %v466 = vsel %vm90, %v419, 0
  %v469 = vsel %vm90, %v420, 0
  %v472 = vsel %vm90, %v421, 0
  %v475 = vsel %vm90, %v422, 0
  %v478 = vsel %vm90, %v423, 0
  %v481 = vsel %vm90, %v424, 0
  %v484 = vsel %vm90, %v425, 0
  %v487 = vsel %vm90, %v426, 0
  %v490 = vsel %vm90, %v427, 0
  %v493 = vsel %vm90, %v428, 0
  %v496 = vsel %vm90, %v429, 0
  %v499 = vsel %vm90, %v430, 0
  %v502 = vsel %vm90, %v431, 0
  %v505 = vsel %vm90, %v432, 0
  %v508 = vsel %vm90, %v433, 0
  %v511 = vsel %vm90, %v434, 0
  %v514 = vsel %vm90, %v435, 0
  %v517 = vsel %vm90, %v436, 0
  %v520 = vsel %vm90, %v437, 0
  %v523 = vsel %vm90, %v438, 0
  %v526 = vsel %vm90, %v439, 0
  %v529 = vsel %vm90, %v440, 0
  %v532 = vsel %vm90, %v441, 0
  %v535 = vsel %vm90, %v442, 0
  %v538 = vsel %vm90, %v443, 0
  %540 = vmatprep.subr.mxu0 0.0
  %541 = vmatpush1.msra.mxu0 %v56
  %542 = vmatprep.subr.mxu0 0.0
  %543 = vmatpush1.msra.mxu0 %v57
  %544 = vmatprep.subr.mxu0 0.0
  %545 = vmatpush1.msra.mxu0 0.0
  %546 = vmatprep.subr.mxu0 0.0
  %547 = vmatpush1.msra.mxu0 0.0
  %548 = vmatprep.subr.mxu0 0.0
  %549 = vmatpush1.msra.mxu0 0.0
  %550 = vmatprep.subr.mxu0 0.0
  %551 = vmatpush1.msra.mxu0 0.0
  %552 = vmatprep.subr.mxu0 0.0
  %553 = vmatpush1.msra.mxu0 0.0
  %554 = vmatprep.subr.mxu0 0.0
  %555 = vmatpush1.msra.mxu0 0.0
  %556 = vmatprep.subr.mxu0 0.0
  %557 = vmatpush1.msra.mxu0 0.0
  %558 = vmatprep.subr.mxu0 0.0
  %559 = vmatpush1.msra.mxu0 0.0
  %560 = vmatprep.subr.mxu0 0.0
  %561 = vmatpush1.msra.mxu0 0.0
  %562 = vmatprep.subr.mxu0 0.0
  %563 = vmatpush1.msra.mxu0 0.0
  %564 = vmatprep.subr.mxu0 0.0
  %565 = vmatpush1.msra.mxu0 0.0
  %566 = vmatprep.subr.mxu0 0.0
  %567 = vmatpush1.msra.mxu0 0.0
  %568 = vmatprep.subr.mxu0 0.0
  %569 = vmatpush1.msra.mxu0 0.0
  %570 = vmatprep.subr.mxu0 0.0
  %571 = vmatpush1.msra.mxu0 0.0
  %572 = vmatprep.subr.mxu0 0.0
  %573 = vmatpush1.msra.mxu0 0.0
  %574 = vmatprep.subr.mxu0 0.0
  %575 = vmatpush1.msra.mxu0 0.0
  %576 = vmatprep.subr.mxu0 0.0
  %577 = vmatpush1.msra.mxu0 0.0
  %578 = vmatprep.subr.mxu0 0.0
  %579 = vmatpush1.msra.mxu0 0.0
  %580 = vmatprep.subr.mxu0 0.0
  %581 = vmatpush1.msra.mxu0 0.0
  %582 = vmatprep.subr.mxu0 0.0
  %583 = vmatpush1.msra.mxu0 0.0
  %584 = vmatprep.subr.mxu0 0.0
  %585 = vmatpush1.msra.mxu0 0.0
  %586 = vmatprep.subr.mxu0 0.0
  %587 = vmatpush1.msra.mxu0 0.0
  %588 = vmatprep.subr.mxu0 0.0
  %589 = vmatpush1.msra.mxu0 0.0
  %590 = vmatprep.subr.mxu0 0.0
  %591 = vmatpush1.msra.mxu0 0.0
  %592 = vmatprep.subr.mxu0 0.0
  %593 = vmatpush1.msra.mxu0 0.0
  %594 = vmatprep.subr.mxu0 0.0
  %595 = vmatpush1.msra.mxu0 0.0
  %596 = vmatprep.subr.mxu0 0.0
  %597 = vmatpush1.msra.mxu0 0.0
  %598 = vmatprep.subr.mxu0 0.0
  %599 = vmatpush1.msra.mxu0 0.0
  %600 = vmatprep.subr.mxu0 0.0
  %601 = vmatpush1.msra.mxu0 0.0
  %602 = vmatprep.subr.mxu0 0.0
  %603 = vmatpush1.msra.mxu0 0.0
  %604 = vmatprep.mubr.f32.mxu0 0.0
  %605 = vmatmul.mubr.f32.gmra.mrb[0].mxu0 %v445
  %v606 = vpop.f32.mrb[0].mxu0
  %v607 = vadd.f32 0.0, %v606
  %v608 = vpop.f32.mrb[0].mxu0
  %609 = vmatprep.mubr.f32.mxu0 0.0
  %610 = vmatmul.mubr.f32.gmra.mrb[0].mxu0 %v448
  %v611 = vpop.f32.mrb[0].mxu0
  %v612 = vadd.f32 0.0, %v611
  %v613 = vpop.f32.mrb[0].mxu0
  %614 = vmatprep.mubr.f32.mxu0 0.0
  %615 = vmatmul.mubr.f32.gmra.mrb[0].mxu0 %v451
  %v616 = vpop.f32.mrb[0].mxu0
  %v617 = vadd.f32 0.0, %v616
  %v618 = vpop.f32.mrb[0].mxu0
  %619 = vmatprep.mubr.f32.mxu0 0.0
  %620 = vmatmul.mubr.f32.gmra.mrb[0].mxu0 %v454
  %v621 = vpop.f32.mrb[0].mxu0
  %v622 = vadd.f32 0.0, %v621
  %v623 = vpop.f32.mrb[0].mxu0
  %624 = vmatprep.mubr.f32.mxu0 0.0
  %625 = vmatmul.mubr.f32.gmra.mrb[0].mxu0 %v457
  %v626 = vpop.f32.mrb[0].mxu0
  %v627 = vadd.f32 0.0, %v626
  %v628 = vpop.f32.mrb[0].mxu0
  %629 = vmatprep.mubr.f32.mxu0 0.0
  %630 = vmatmul.mubr.f32.gmra.mrb[0].mxu0 %v460
  %v631 = vpop.f32.mrb[0].mxu0
  %v632 = vadd.f32 0.0, %v631
  %v633 = vpop.f32.mrb[0].mxu0
  %634 = vmatprep.mubr.f32.mxu0 0.0
  %635 = vmatmul.mubr.f32.gmra.mrb[0].mxu0 %v463
  %v636 = vpop.f32.mrb[0].mxu0
  %v637 = vadd.f32 0.0, %v636
  %v638 = vpop.f32.mrb[0].mxu0
  %639 = vmatprep.mubr.f32.mxu0 0.0
  %640 = vmatmul.mubr.f32.gmra.mrb[0].mxu0 %v466
  %v641 = vpop.f32.mrb[0].mxu0
  %v642 = vadd.f32 0.0, %v641
  %v643 = vpop.f32.mrb[0].mxu0
  %644 = vmatprep.mubr.f32.mxu0 0.0
  %645 = vmatmul.mubr.f32.gmra.mrb[0].mxu0 %v469
  %v646 = vpop.f32.mrb[0].mxu0
  %v647 = vadd.f32 0.0, %v646
  %v648 = vpop.f32.mrb[0].mxu0
  %649 = vmatprep.mubr.f32.mxu0 0.0
  %650 = vmatmul.mubr.f32.gmra.mrb[0].mxu0 %v472
  %v651 = vpop.f32.mrb[0].mxu0
  %v652 = vadd.f32 0.0, %v651
  %v653 = vpop.f32.mrb[0].mxu0
  %654 = vmatprep.mubr.f32.mxu0 0.0
  %655 = vmatmul.mubr.f32.gmra.mrb[0].mxu0 %v475
  %v656 = vpop.f32.mrb[0].mxu0
  %v657 = vadd.f32 0.0, %v656
  %v658 = vpop.f32.mrb[0].mxu0
  %659 = vmatprep.mubr.f32.mxu0 0.0
  %660 = vmatmul.mubr.f32.gmra.mrb[0].mxu0 %v478
  %v661 = vpop.f32.mrb[0].mxu0
  %v662 = vadd.f32 0.0, %v661
  %v663 = vpop.f32.mrb[0].mxu0
  %664 = vmatprep.mubr.f32.mxu0 0.0
  %665 = vmatmul.mubr.f32.gmra.mrb[0].mxu0 %v481
  %v666 = vpop.f32.mrb[0].mxu0
  %v667 = vadd.f32 0.0, %v666
  %v668 = vpop.f32.mrb[0].mxu0
  %669 = vmatprep.mubr.f32.mxu0 0.0
  %670 = vmatmul.mubr.f32.gmra.mrb[0].mxu0 %v484
  %v671 = vpop.f32.mrb[0].mxu0
  %v672 = vadd.f32 0.0, %v671
  %v673 = vpop.f32.mrb[0].mxu0
  %674 = vmatprep.mubr.f32.mxu0 0.0
  %675 = vmatmul.mubr.f32.gmra.mrb[0].mxu0 %v487
  %v676 = vpop.f32.mrb[0].mxu0
  %v677 = vadd.f32 0.0, %v676
  %v678 = vpop.f32.mrb[0].mxu0
  %679 = vmatprep.mubr.f32.mxu0 0.0
  %680 = vmatmul.mubr.f32.gmra.mrb[0].mxu0 %v490
  %v681 = vpop.f32.mrb[0].mxu0
  %v682 = vadd.f32 0.0, %v681
  %v683 = vpop.f32.mrb[0].mxu0
  %684 = vmatprep.mubr.f32.mxu0 0.0
  %685 = vmatmul.mubr.f32.gmra.mrb[0].mxu0 %v493
  %v686 = vpop.f32.mrb[0].mxu0
  %v687 = vadd.f32 0.0, %v686
  %v688 = vpop.f32.mrb[0].mxu0
  %689 = vmatprep.mubr.f32.mxu0 0.0
  %690 = vmatmul.mubr.f32.gmra.mrb[0].mxu0 %v496
  %v691 = vpop.f32.mrb[0].mxu0
  %v692 = vadd.f32 0.0, %v691
  %v693 = vpop.f32.mrb[0].mxu0
  %694 = vmatprep.mubr.f32.mxu0 0.0
  %695 = vmatmul.mubr.f32.gmra.mrb[0].mxu0 %v499
  %v696 = vpop.f32.mrb[0].mxu0
  %v697 = vadd.f32 0.0, %v696
  %v698 = vpop.f32.mrb[0].mxu0
  %699 = vmatprep.mubr.f32.mxu0 0.0
  %700 = vmatmul.mubr.f32.gmra.mrb[0].mxu0 %v502
  %v701 = vpop.f32.mrb[0].mxu0
  %v702 = vadd.f32 0.0, %v701
  %v703 = vpop.f32.mrb[0].mxu0
  %704 = vmatprep.mubr.f32.mxu0 0.0
  %705 = vmatmul.mubr.f32.gmra.mrb[0].mxu0 %v505
  %v706 = vpop.f32.mrb[0].mxu0
  %v707 = vadd.f32 0.0, %v706
  %v708 = vpop.f32.mrb[0].mxu0
  %709 = vmatprep.mubr.f32.mxu0 0.0
  %710 = vmatmul.mubr.f32.gmra.mrb[0].mxu0 %v508
  %v711 = vpop.f32.mrb[0].mxu0
  %v712 = vadd.f32 0.0, %v711
  %v713 = vpop.f32.mrb[0].mxu0
  %714 = vmatprep.mubr.f32.mxu0 0.0
  %715 = vmatmul.mubr.f32.gmra.mrb[0].mxu0 %v511
  %v716 = vpop.f32.mrb[0].mxu0
  %v717 = vadd.f32 0.0, %v716
  %v718 = vpop.f32.mrb[0].mxu0
  %719 = vmatprep.mubr.f32.mxu0 0.0
  %720 = vmatmul.mubr.f32.gmra.mrb[0].mxu0 %v514
  %v721 = vpop.f32.mrb[0].mxu0
  %v722 = vadd.f32 0.0, %v721
  %v723 = vpop.f32.mrb[0].mxu0
  %724 = vmatprep.mubr.f32.mxu0 0.0
  %725 = vmatmul.mubr.f32.gmra.mrb[0].mxu0 %v517
  %v726 = vpop.f32.mrb[0].mxu0
  %v727 = vadd.f32 0.0, %v726
  %v728 = vpop.f32.mrb[0].mxu0
  %729 = vmatprep.mubr.f32.mxu0 0.0
  %730 = vmatmul.mubr.f32.gmra.mrb[0].mxu0 %v520
  %v731 = vpop.f32.mrb[0].mxu0
  %v732 = vadd.f32 0.0, %v731
  %v733 = vpop.f32.mrb[0].mxu0
  %734 = vmatprep.mubr.f32.mxu0 0.0
  %735 = vmatmul.mubr.f32.gmra.mrb[0].mxu0 %v523
  %v736 = vpop.f32.mrb[0].mxu0
  %v737 = vadd.f32 0.0, %v736
  %v738 = vpop.f32.mrb[0].mxu0
  %739 = vmatprep.mubr.f32.mxu0 0.0
  %740 = vmatmul.mubr.f32.gmra.mrb[0].mxu0 %v526
  %v741 = vpop.f32.mrb[0].mxu0
  %v742 = vadd.f32 0.0, %v741
  %v743 = vpop.f32.mrb[0].mxu0
  %744 = vmatprep.mubr.f32.mxu0 0.0
  %745 = vmatmul.mubr.f32.gmra.mrb[0].mxu0 %v529
  %v746 = vpop.f32.mrb[0].mxu0
  %v747 = vadd.f32 0.0, %v746
  %v748 = vpop.f32.mrb[0].mxu0
  %749 = vmatprep.mubr.f32.mxu0 0.0
  %750 = vmatmul.mubr.f32.gmra.mrb[0].mxu0 %v532
  %v751 = vpop.f32.mrb[0].mxu0
  %v752 = vadd.f32 0.0, %v751
  %v753 = vpop.f32.mrb[0].mxu0
  %754 = vmatprep.mubr.f32.mxu0 0.0
  %755 = vmatmul.mubr.f32.gmra.mrb[0].mxu0 %v535
  %v756 = vpop.f32.mrb[0].mxu0
  %v757 = vadd.f32 0.0, %v756
  %v758 = vpop.f32.mrb[0].mxu0
  %759 = vmatprep.mubr.f32.mxu0 0.0
  %760 = vmatmul.mubr.f32.gmra.mrb[0].mxu0 %v538
  %v761 = vpop.f32.mrb[0].mxu0
  %v762 = vadd.f32 0.0, %v761
  %v763 = vpop.f32.mrb[0].mxu0
  %764 = vdwg.mxu0
  %v765 = vmax.f32 %v254, %v607
  %v766 = vmax.f32 %v259, %v612
  %v767 = vmax.f32 %v264, %v617
  %v768 = vmax.f32 %v269, %v622
  %v769 = vmax.f32 %v274, %v627
  %v770 = vmax.f32 %v279, %v632
  %v771 = vmax.f32 %v284, %v637
  %v772 = vmax.f32 %v289, %v642
  %v773 = vmax.f32 %v294, %v647
  %v774 = vmax.f32 %v299, %v652
  %v775 = vmax.f32 %v304, %v657
  %v776 = vmax.f32 %v309, %v662
  %v777 = vmax.f32 %v314, %v667
  %v778 = vmax.f32 %v319, %v672
  %v779 = vmax.f32 %v324, %v677
  %v780 = vmax.f32 %v329, %v682
  %v781 = vmax.f32 %v334, %v687
  %v782 = vmax.f32 %v339, %v692
  %v783 = vmax.f32 %v344, %v697
  %v784 = vmax.f32 %v349, %v702
  %v785 = vmax.f32 %v354, %v707
  %v786 = vmax.f32 %v359, %v712
  %v787 = vmax.f32 %v364, %v717
  %v788 = vmax.f32 %v369, %v722
  %v789 = vmax.f32 %v374, %v727
  %v790 = vmax.f32 %v379, %v732
  %v791 = vmax.f32 %v384, %v737
  %v792 = vmax.f32 %v389, %v742
  %v793 = vmax.f32 %v394, %v747
  %v794 = vmax.f32 %v399, %v752
  %v795 = vmax.f32 %v404, %v757
  %v796 = vmax.f32 %v409, %v762
  %v797 = vld [vmem:[%s0 + $0x200] sm:$0xff]
  %v798 = vld [vmem:[%s0 + $0x208] sm:$0xff]
  %v799 = vld [vmem:[%s0 + $0x210] sm:$0xff]
  %v800 = vld [vmem:[%s0 + $0x218] sm:$0xff]
  %v801 = vld [vmem:[%s0 + $0x220] sm:$0xff]
  %v802 = vld [vmem:[%s0 + $0x228] sm:$0xff]
  %v803 = vld [vmem:[%s0 + $0x230] sm:$0xff]
  %v804 = vld [vmem:[%s0 + $0x238] sm:$0xff]
  %v805 = vld [vmem:[%s0 + $0x240] sm:$0xff]
  %v806 = vld [vmem:[%s0 + $0x248] sm:$0xff]
  %v807 = vld [vmem:[%s0 + $0x250] sm:$0xff]
  %v808 = vld [vmem:[%s0 + $0x258] sm:$0xff]
  %v809 = vld [vmem:[%s0 + $0x260] sm:$0xff]
  %v810 = vld [vmem:[%s0 + $0x268] sm:$0xff]
  %v811 = vld [vmem:[%s0 + $0x270] sm:$0xff]
  %v812 = vld [vmem:[%s0 + $0x278] sm:$0xff]
  %v813 = vld [vmem:[%s0 + $0x280] sm:$0xff]
  %v814 = vld [vmem:[%s0 + $0x288] sm:$0xff]
  %v815 = vld [vmem:[%s0 + $0x290] sm:$0xff]
  %v816 = vld [vmem:[%s0 + $0x298] sm:$0xff]
  %v817 = vld [vmem:[%s0 + $0x2a0] sm:$0xff]
  %v818 = vld [vmem:[%s0 + $0x2a8] sm:$0xff]
  %v819 = vld [vmem:[%s0 + $0x2b0] sm:$0xff]
  %v820 = vld [vmem:[%s0 + $0x2b8] sm:$0xff]
  %v821 = vld [vmem:[%s0 + $0x2c0] sm:$0xff]
  %v822 = vld [vmem:[%s0 + $0x2c8] sm:$0xff]
  %v823 = vld [vmem:[%s0 + $0x2d0] sm:$0xff]
  %v824 = vld [vmem:[%s0 + $0x2d8] sm:$0xff]
  %v825 = vld [vmem:[%s0 + $0x2e0] sm:$0xff]
  %v826 = vld [vmem:[%s0 + $0x2e8] sm:$0xff]
  %v827 = vld [vmem:[%s0 + $0x2f0] sm:$0xff]
  %v828 = vld [vmem:[%s0 + $0x2f8] sm:$0xff]
  %v830 = vsel %vm90, %v797, 0
  %v833 = vsel %vm90, %v798, 0
  %v836 = vsel %vm90, %v799, 0
  %v839 = vsel %vm90, %v800, 0
  %v842 = vsel %vm90, %v801, 0
  %v845 = vsel %vm90, %v802, 0
  %v848 = vsel %vm90, %v803, 0
  %v851 = vsel %vm90, %v804, 0
  %v854 = vsel %vm90, %v805, 0
  %v857 = vsel %vm90, %v806, 0
  %v860 = vsel %vm90, %v807, 0
  %v863 = vsel %vm90, %v808, 0
  %v866 = vsel %vm90, %v809, 0
  %v869 = vsel %vm90, %v810, 0
  %v872 = vsel %vm90, %v811, 0
  %v875 = vsel %vm90, %v812, 0
  %v878 = vsel %vm90, %v813, 0
  %v881 = vsel %vm90, %v814, 0
  %v884 = vsel %vm90, %v815, 0
  %v887 = vsel %vm90, %v816, 0
  %v890 = vsel %vm90, %v817, 0
  %v893 = vsel %vm90, %v818, 0
  %v896 = vsel %vm90, %v819, 0
  %v899 = vsel %vm90, %v820, 0
  %v902 = vsel %vm90, %v821, 0
  %v905 = vsel %vm90, %v822, 0
  %v908 = vsel %vm90, %v823, 0
  %v911 = vsel %vm90, %v824, 0
  %v914 = vsel %vm90, %v825, 0
  %v917 = vsel %vm90, %v826, 0
  %v920 = vsel %vm90, %v827, 0
  %v923 = vsel %vm90, %v828, 0
  %925 = vmatprep.subr.mxu0 0.0
  %926 = vmatpush1.msra.mxu0 %v56
  %927 = vmatprep.subr.mxu0 0.0
  %928 = vmatpush1.msra.mxu0 %v57
  %929 = vmatprep.subr.mxu0 0.0
  %930 = vmatpush1.msra.mxu0 0.0
  %931 = vmatprep.subr.mxu0 0.0
  %932 = vmatpush1.msra.mxu0 0.0
  %933 = vmatprep.subr.mxu0 0.0
  %934 = vmatpush1.msra.mxu0 0.0
  %935 = vmatprep.subr.mxu0 0.0
  %936 = vmatpush1.msra.mxu0 0.0
  %937 = vmatprep.subr.mxu0 0.0
  %938 = vmatpush1.msra.mxu0 0.0
  %939 = vmatprep.subr.mxu0 0.0
  %940 = vmatpush1.msra.mxu0 0.0
  %941 = vmatprep.subr.mxu0 0.0
  %942 = vmatpush1.msra.mxu0 0.0
  %943 = vmatprep.subr.mxu0 0.0
  %944 = vmatpush1.msra.mxu0 0.0
  %945 = vmatprep.subr.mxu0 0.0
  %946 = vmatpush1.msra.mxu0 0.0
  %947 = vmatprep.subr.mxu0 0.0
  %948 = vmatpush1.msra.mxu0 0.0
  %949 = vmatprep.subr.mxu0 0.0
  %950 = vmatpush1.msra.mxu0 0.0
  %951 = vmatprep.subr.mxu0 0.0
  %952 = vmatpush1.msra.mxu0 0.0
  %953 = vmatprep.subr.mxu0 0.0
  %954 = vmatpush1.msra.mxu0 0.0
  %955 = vmatprep.subr.mxu0 0.0
  %956 = vmatpush1.msra.mxu0 0.0
  %957 = vmatprep.subr.mxu0 0.0
  %958 = vmatpush1.msra.mxu0 0.0
  %959 = vmatprep.subr.mxu0 0.0
  %960 = vmatpush1.msra.mxu0 0.0
  %961 = vmatprep.subr.mxu0 0.0
  %962 = vmatpush1.msra.mxu0 0.0
  %963 = vmatprep.subr.mxu0 0.0
  %964 = vmatpush1.msra.mxu0 0.0
  %965 = vmatprep.subr.mxu0 0.0
  %966 = vmatpush1.msra.mxu0 0.0
  %967 = vmatprep.subr.mxu0 0.0
  %968 = vmatpush1.msra.mxu0 0.0
  %969 = vmatprep.subr.mxu0 0.0
  %970 = vmatpush1.msra.mxu0 0.0
  %971 = vmatprep.subr.mxu0 0.0
  %972 = vmatpush1.msra.mxu0 0.0
  %973 = vmatprep.subr.mxu0 0.0
  %974 = vmatpush1.msra.mxu0 0.0
  %975 = vmatprep.subr.mxu0 0.0
  %976 = vmatpush1.msra.mxu0 0.0
  %977 = vmatprep.subr.mxu0 0.0
  %978 = vmatpush1.msra.mxu0 0.0
  %979 = vmatprep.subr.mxu0 0.0
  %980 = vmatpush1.msra.mxu0 0.0
  %981 = vmatprep.subr.mxu0 0.0
  %982 = vmatpush1.msra.mxu0 0.0
  %983 = vmatprep.subr.mxu0 0.0
  %984 = vmatpush1.msra.mxu0 0.0
  %985 = vmatprep.subr.mxu0 0.0
  %986 = vmatpush1.msra.mxu0 0.0
  %987 = vmatprep.subr.mxu0 0.0
  %988 = vmatpush1.msra.mxu0 0.0
  %989 = vmatprep.mubr.f32.mxu0 0.0
  %990 = vmatmul.mubr.f32.gmra.mrb[0].mxu0 %v830
  %v991 = vpop.f32.mrb[0].mxu0
  %v992 = vadd.f32 0.0, %v991
  %v993 = vpop.f32.mrb[0].mxu0
  %994 = vmatprep.mubr.f32.mxu0 0.0
  %995 = vmatmul.mubr.f32.gmra.mrb[0].mxu0 %v833
  %v996 = vpop.f32.mrb[0].mxu0
  %v997 = vadd.f32 0.0, %v996
  %v998 = vpop.f32.mrb[0].mxu0
  %999 = vmatprep.mubr.f32.mxu0 0.0
  %1000 = vmatmul.mubr.f32.gmra.mrb[0].mxu0 %v836
  %v1001 = vpop.f32.mrb[0].mxu0
  %v1002 = vadd.f32 0.0, %v1001
  %v1003 = vpop.f32.mrb[0].mxu0
  %1004 = vmatprep.mubr.f32.mxu0 0.0
  %1005 = vmatmul.mubr.f32.gmra.mrb[0].mxu0 %v839
  %v1006 = vpop.f32.mrb[0].mxu0
  %v1007 = vadd.f32 0.0, %v1006
  %v1008 = vpop.f32.mrb[0].mxu0
  %1009 = vmatprep.mubr.f32.mxu0 0.0
  %1010 = vmatmul.mubr.f32.gmra.mrb[0].mxu0 %v842
  %v1011 = vpop.f32.mrb[0].mxu0
  %v1012 = vadd.f32 0.0, %v1011
  %v1013 = vpop.f32.mrb[0].mxu0
  %1014 = vmatprep.mubr.f32.mxu0 0.0
  %1015 = vmatmul.mubr.f32.gmra.mrb[0].mxu0 %v845
  %v1016 = vpop.f32.mrb[0].mxu0
  %v1017 = vadd.f32 0.0, %v1016
  %v1018 = vpop.f32.mrb[0].mxu0
  %1019 = vmatprep.mubr.f32.mxu0 0.0
  %1020 = vmatmul.mubr.f32.gmra.mrb[0].mxu0 %v848
  %v1021 = vpop.f32.mrb[0].mxu0
  %v1022 = vadd.f32 0.0, %v1021
  %v1023 = vpop.f32.mrb[0].mxu0
  %1024 = vmatprep.mubr.f32.mxu0 0.0
  %1025 = vmatmul.mubr.f32.gmra.mrb[0].mxu0 %v851
  %v1026 = vpop.f32.mrb[0].mxu0
  %v1027 = vadd.f32 0.0, %v1026
  %v1028 = vpop.f32.mrb[0].mxu0
  %1029 = vmatprep.mubr.f32.mxu0 0.0
  %1030 = vmatmul.mubr.f32.gmra.mrb[0].mxu0 %v854
  %v1031 = vpop.f32.mrb[0].mxu0
  %v1032 = vadd.f32 0.0, %v1031
  %v1033 = vpop.f32.mrb[0].mxu0
  %1034 = vmatprep.mubr.f32.mxu0 0.0
  %1035 = vmatmul.mubr.f32.gmra.mrb[0].mxu0 %v857
  %v1036 = vpop.f32.mrb[0].mxu0
  %v1037 = vadd.f32 0.0, %v1036
  %v1038 = vpop.f32.mrb[0].mxu0
  %1039 = vmatprep.mubr.f32.mxu0 0.0
  %1040 = vmatmul.mubr.f32.gmra.mrb[0].mxu0 %v860
  %v1041 = vpop.f32.mrb[0].mxu0
  %v1042 = vadd.f32 0.0, %v1041
  %v1043 = vpop.f32.mrb[0].mxu0
  %1044 = vmatprep.mubr.f32.mxu0 0.0
  %1045 = vmatmul.mubr.f32.gmra.mrb[0].mxu0 %v863
  %v1046 = vpop.f32.mrb[0].mxu0
  %v1047 = vadd.f32 0.0, %v1046
  %v1048 = vpop.f32.mrb[0].mxu0
  %1049 = vmatprep.mubr.f32.mxu0 0.0
  %1050 = vmatmul.mubr.f32.gmra.mrb[0].mxu0 %v866
  %v1051 = vpop.f32.mrb[0].mxu0
  %v1052 = vadd.f32 0.0, %v1051
  %v1053 = vpop.f32.mrb[0].mxu0
  %1054 = vmatprep.mubr.f32.mxu0 0.0
  %1055 = vmatmul.mubr.f32.gmra.mrb[0].mxu0 %v869
  %v1056 = vpop.f32.mrb[0].mxu0
  %v1057 = vadd.f32 0.0, %v1056
  %v1058 = vpop.f32.mrb[0].mxu0
  %1059 = vmatprep.mubr.f32.mxu0 0.0
  %1060 = vmatmul.mubr.f32.gmra.mrb[0].mxu0 %v872
  %v1061 = vpop.f32.mrb[0].mxu0
  %v1062 = vadd.f32 0.0, %v1061
  %v1063 = vpop.f32.mrb[0].mxu0
  %1064 = vmatprep.mubr.f32.mxu0 0.0
  %1065 = vmatmul.mubr.f32.gmra.mrb[0].mxu0 %v875
  %v1066 = vpop.f32.mrb[0].mxu0
  %v1067 = vadd.f32 0.0, %v1066
  %v1068 = vpop.f32.mrb[0].mxu0
  %1069 = vmatprep.mubr.f32.mxu0 0.0
  %1070 = vmatmul.mubr.f32.gmra.mrb[0].mxu0 %v878
  %v1071 = vpop.f32.mrb[0].mxu0
  %v1072 = vadd.f32 0.0, %v1071
  %v1073 = vpop.f32.mrb[0].mxu0
  %1074 = vmatprep.mubr.f32.mxu0 0.0
  %1075 = vmatmul.mubr.f32.gmra.mrb[0].mxu0 %v881
  %v1076 = vpop.f32.mrb[0].mxu0
  %v1077 = vadd.f32 0.0, %v1076
  %v1078 = vpop.f32.mrb[0].mxu0
  %1079 = vmatprep.mubr.f32.mxu0 0.0
  %1080 = vmatmul.mubr.f32.gmra.mrb[0].mxu0 %v884
  %v1081 = vpop.f32.mrb[0].mxu0
  %v1082 = vadd.f32 0.0, %v1081
  %v1083 = vpop.f32.mrb[0].mxu0
  %1084 = vmatprep.mubr.f32.mxu0 0.0
  %1085 = vmatmul.mubr.f32.gmra.mrb[0].mxu0 %v887
  %v1086 = vpop.f32.mrb[0].mxu0
  %v1087 = vadd.f32 0.0, %v1086
  %v1088 = vpop.f32.mrb[0].mxu0
  %1089 = vmatprep.mubr.f32.mxu0 0.0
  %1090 = vmatmul.mubr.f32.gmra.mrb[0].mxu0 %v890
  %v1091 = vpop.f32.mrb[0].mxu0
  %v1092 = vadd.f32 0.0, %v1091
  %v1093 = vpop.f32.mrb[0].mxu0
  %1094 = vmatprep.mubr.f32.mxu0 0.0
  %1095 = vmatmul.mubr.f32.gmra.mrb[0].mxu0 %v893
  %v1096 = vpop.f32.mrb[0].mxu0
  %v1097 = vadd.f32 0.0, %v1096
  %v1098 = vpop.f32.mrb[0].mxu0
  %1099 = vmatprep.mubr.f32.mxu0 0.0
  %1100 = vmatmul.mubr.f32.gmra.mrb[0].mxu0 %v896
  %v1101 = vpop.f32.mrb[0].mxu0
  %v1102 = vadd.f32 0.0, %v1101
  %v1103 = vpop.f32.mrb[0].mxu0
  %1104 = vmatprep.mubr.f32.mxu0 0.0
  %1105 = vmatmul.mubr.f32.gmra.mrb[0].mxu0 %v899
  %v1106 = vpop.f32.mrb[0].mxu0
  %v1107 = vadd.f32 0.0, %v1106
  %v1108 = vpop.f32.mrb[0].mxu0
  %1109 = vmatprep.mubr.f32.mxu0 0.0
  %1110 = vmatmul.mubr.f32.gmra.mrb[0].mxu0 %v902
  %v1111 = vpop.f32.mrb[0].mxu0
  %v1112 = vadd.f32 0.0, %v1111
  %v1113 = vpop.f32.mrb[0].mxu0
  %1114 = vmatprep.mubr.f32.mxu0 0.0
  %1115 = vmatmul.mubr.f32.gmra.mrb[0].mxu0 %v905
  %v1116 = vpop.f32.mrb[0].mxu0
  %v1117 = vadd.f32 0.0, %v1116
  %v1118 = vpop.f32.mrb[0].mxu0
  %1119 = vmatprep.mubr.f32.mxu0 0.0
  %1120 = vmatmul.mubr.f32.gmra.mrb[0].mxu0 %v908
  %v1121 = vpop.f32.mrb[0].mxu0
  %v1122 = vadd.f32 0.0, %v1121
  %v1123 = vpop.f32.mrb[0].mxu0
  %1124 = vmatprep.mubr.f32.mxu0 0.0
  %1125 = vmatmul.mubr.f32.gmra.mrb[0].mxu0 %v911
  %v1126 = vpop.f32.mrb[0].mxu0
  %v1127 = vadd.f32 0.0, %v1126
  %v1128 = vpop.f32.mrb[0].mxu0
  %1129 = vmatprep.mubr.f32.mxu0 0.0
  %1130 = vmatmul.mubr.f32.gmra.mrb[0].mxu0 %v914
  %v1131 = vpop.f32.mrb[0].mxu0
  %v1132 = vadd.f32 0.0, %v1131
  %v1133 = vpop.f32.mrb[0].mxu0
  %1134 = vmatprep.mubr.f32.mxu0 0.0
  %1135 = vmatmul.mubr.f32.gmra.mrb[0].mxu0 %v917
  %v1136 = vpop.f32.mrb[0].mxu0
  %v1137 = vadd.f32 0.0, %v1136
  %v1138 = vpop.f32.mrb[0].mxu0
  %1139 = vmatprep.mubr.f32.mxu0 0.0
  %1140 = vmatmul.mubr.f32.gmra.mrb[0].mxu0 %v920
  %v1141 = vpop.f32.mrb[0].mxu0
  %v1142 = vadd.f32 0.0, %v1141
  %v1143 = vpop.f32.mrb[0].mxu0
  %1144 = vmatprep.mubr.f32.mxu0 0.0
  %1145 = vmatmul.mubr.f32.gmra.mrb[0].mxu0 %v923
  %v1146 = vpop.f32.mrb[0].mxu0
  %v1147 = vadd.f32 0.0, %v1146
  %v1148 = vpop.f32.mrb[0].mxu0
  %1149 = vdwg.mxu0
  %v1150 = vmax.f32 %v765, %v992
  %v1151 = vmax.f32 %v766, %v997
  %v1152 = vmax.f32 %v767, %v1002
  %v1153 = vmax.f32 %v768, %v1007
  %v1154 = vmax.f32 %v769, %v1012
  %v1155 = vmax.f32 %v770, %v1017
  %v1156 = vmax.f32 %v771, %v1022
  %v1157 = vmax.f32 %v772, %v1027
  %v1158 = vmax.f32 %v773, %v1032
  %v1159 = vmax.f32 %v774, %v1037
  %v1160 = vmax.f32 %v775, %v1042
  %v1161 = vmax.f32 %v776, %v1047
  %v1162 = vmax.f32 %v777, %v1052
  %v1163 = vmax.f32 %v778, %v1057
  %v1164 = vmax.f32 %v779, %v1062
  %v1165 = vmax.f32 %v780, %v1067
  %v1166 = vmax.f32 %v781, %v1072
  %v1167 = vmax.f32 %v782, %v1077
  %v1168 = vmax.f32 %v783, %v1082
  %v1169 = vmax.f32 %v784, %v1087
  %v1170 = vmax.f32 %v785, %v1092
  %v1171 = vmax.f32 %v786, %v1097
  %v1172 = vmax.f32 %v787, %v1102
  %v1173 = vmax.f32 %v788, %v1107
  %v1174 = vmax.f32 %v789, %v1112
  %v1175 = vmax.f32 %v790, %v1117
  %v1176 = vmax.f32 %v791, %v1122
  %v1177 = vmax.f32 %v792, %v1127
  %v1178 = vmax.f32 %v793, %v1132
  %v1179 = vmax.f32 %v794, %v1137
  %v1180 = vmax.f32 %v795, %v1142
  %v1181 = vmax.f32 %v796, %v1147
  %v1182 = vld [vmem:[%s0 + $0x300] sm:$0xff]
  %v1183 = vld [vmem:[%s0 + $0x308] sm:$0xff]
  %v1184 = vld [vmem:[%s0 + $0x310] sm:$0xff]
  %v1185 = vld [vmem:[%s0 + $0x318] sm:$0xff]
  %v1186 = vld [vmem:[%s0 + $0x320] sm:$0xff]
  %v1187 = vld [vmem:[%s0 + $0x328] sm:$0xff]
  %v1188 = vld [vmem:[%s0 + $0x330] sm:$0xff]
  %v1189 = vld [vmem:[%s0 + $0x338] sm:$0xff]
  %v1190 = vld [vmem:[%s0 + $0x340] sm:$0xff]
  %v1191 = vld [vmem:[%s0 + $0x348] sm:$0xff]
  %v1192 = vld [vmem:[%s0 + $0x350] sm:$0xff]
  %v1193 = vld [vmem:[%s0 + $0x358] sm:$0xff]
  %v1194 = vld [vmem:[%s0 + $0x360] sm:$0xff]
  %v1195 = vld [vmem:[%s0 + $0x368] sm:$0xff]
  %v1196 = vld [vmem:[%s0 + $0x370] sm:$0xff]
  %v1197 = vld [vmem:[%s0 + $0x378] sm:$0xff]
  %v1198 = vld [vmem:[%s0 + $0x380] sm:$0xff]
  %v1199 = vld [vmem:[%s0 + $0x388] sm:$0xff]
  %v1200 = vld [vmem:[%s0 + $0x390] sm:$0xff]
  %v1201 = vld [vmem:[%s0 + $0x398] sm:$0xff]
  %v1202 = vld [vmem:[%s0 + $0x3a0] sm:$0xff]
  %v1203 = vld [vmem:[%s0 + $0x3a8] sm:$0xff]
  %v1204 = vld [vmem:[%s0 + $0x3b0] sm:$0xff]
  %v1205 = vld [vmem:[%s0 + $0x3b8] sm:$0xff]
  %v1206 = vld [vmem:[%s0 + $0x3c0] sm:$0xff]
  %v1207 = vld [vmem:[%s0 + $0x3c8] sm:$0xff]
  %v1208 = vld [vmem:[%s0 + $0x3d0] sm:$0xff]
  %v1209 = vld [vmem:[%s0 + $0x3d8] sm:$0xff]
  %v1210 = vld [vmem:[%s0 + $0x3e0] sm:$0xff]
  %v1211 = vld [vmem:[%s0 + $0x3e8] sm:$0xff]
  %v1212 = vld [vmem:[%s0 + $0x3f0] sm:$0xff]
  %v1213 = vld [vmem:[%s0 + $0x3f8] sm:$0xff]
  %v1215 = vsel %vm90, %v1182, 0
  %v1218 = vsel %vm90, %v1183, 0
  %v1221 = vsel %vm90, %v1184, 0
  %v1224 = vsel %vm90, %v1185, 0
  %v1227 = vsel %vm90, %v1186, 0
  %v1230 = vsel %vm90, %v1187, 0
  %v1233 = vsel %vm90, %v1188, 0
  %v1236 = vsel %vm90, %v1189, 0
  %v1239 = vsel %vm90, %v1190, 0
  %v1242 = vsel %vm90, %v1191, 0
  %v1245 = vsel %vm90, %v1192, 0
  %v1248 = vsel %vm90, %v1193, 0
  %v1251 = vsel %vm90, %v1194, 0
  %v1254 = vsel %vm90, %v1195, 0
  %v1257 = vsel %vm90, %v1196, 0
  %v1260 = vsel %vm90, %v1197, 0
  %v1263 = vsel %vm90, %v1198, 0
  %v1266 = vsel %vm90, %v1199, 0
  %v1269 = vsel %vm90, %v1200, 0
  %v1272 = vsel %vm90, %v1201, 0
  %v1275 = vsel %vm90, %v1202, 0
  %v1278 = vsel %vm90, %v1203, 0
  %v1281 = vsel %vm90, %v1204, 0
  %v1284 = vsel %vm90, %v1205, 0
  %v1287 = vsel %vm90, %v1206, 0
  %v1290 = vsel %vm90, %v1207, 0
  %v1293 = vsel %vm90, %v1208, 0
  %v1296 = vsel %vm90, %v1209, 0
  %v1299 = vsel %vm90, %v1210, 0
  %v1302 = vsel %vm90, %v1211, 0
  %v1305 = vsel %vm90, %v1212, 0
  %v1308 = vsel %vm90, %v1213, 0
  %1310 = vmatprep.subr.mxu0 0.0
  %1311 = vmatpush1.msra.mxu0 %v56
  %1312 = vmatprep.subr.mxu0 0.0
  %1313 = vmatpush1.msra.mxu0 %v57
  %1314 = vmatprep.subr.mxu0 0.0
  %1315 = vmatpush1.msra.mxu0 0.0
  %1316 = vmatprep.subr.mxu0 0.0
  %1317 = vmatpush1.msra.mxu0 0.0
  %1318 = vmatprep.subr.mxu0 0.0
  %1319 = vmatpush1.msra.mxu0 0.0
  %1320 = vmatprep.subr.mxu0 0.0
  %1321 = vmatpush1.msra.mxu0 0.0
  %1322 = vmatprep.subr.mxu0 0.0
  %1323 = vmatpush1.msra.mxu0 0.0
  %1324 = vmatprep.subr.mxu0 0.0
  %1325 = vmatpush1.msra.mxu0 0.0
  %1326 = vmatprep.subr.mxu0 0.0
  %1327 = vmatpush1.msra.mxu0 0.0
  %1328 = vmatprep.subr.mxu0 0.0
  %1329 = vmatpush1.msra.mxu0 0.0
  %1330 = vmatprep.subr.mxu0 0.0
  %1331 = vmatpush1.msra.mxu0 0.0
  %1332 = vmatprep.subr.mxu0 0.0
  %1333 = vmatpush1.msra.mxu0 0.0
  %1334 = vmatprep.subr.mxu0 0.0
  %1335 = vmatpush1.msra.mxu0 0.0
  %1336 = vmatprep.subr.mxu0 0.0
  %1337 = vmatpush1.msra.mxu0 0.0
  %1338 = vmatprep.subr.mxu0 0.0
  %1339 = vmatpush1.msra.mxu0 0.0
  %1340 = vmatprep.subr.mxu0 0.0
  %1341 = vmatpush1.msra.mxu0 0.0
  %1342 = vmatprep.subr.mxu0 0.0
  %1343 = vmatpush1.msra.mxu0 0.0
  %1344 = vmatprep.subr.mxu0 0.0
  %1345 = vmatpush1.msra.mxu0 0.0
  %1346 = vmatprep.subr.mxu0 0.0
  %1347 = vmatpush1.msra.mxu0 0.0
  %1348 = vmatprep.subr.mxu0 0.0
  %1349 = vmatpush1.msra.mxu0 0.0
  %1350 = vmatprep.subr.mxu0 0.0
  %1351 = vmatpush1.msra.mxu0 0.0
  %1352 = vmatprep.subr.mxu0 0.0
  %1353 = vmatpush1.msra.mxu0 0.0
  %1354 = vmatprep.subr.mxu0 0.0
  %1355 = vmatpush1.msra.mxu0 0.0
  %1356 = vmatprep.subr.mxu0 0.0
  %1357 = vmatpush1.msra.mxu0 0.0
  %1358 = vmatprep.subr.mxu0 0.0
  %1359 = vmatpush1.msra.mxu0 0.0
  %1360 = vmatprep.subr.mxu0 0.0
  %1361 = vmatpush1.msra.mxu0 0.0
  %1362 = vmatprep.subr.mxu0 0.0
  %1363 = vmatpush1.msra.mxu0 0.0
  %1364 = vmatprep.subr.mxu0 0.0
  %1365 = vmatpush1.msra.mxu0 0.0
  %1366 = vmatprep.subr.mxu0 0.0
  %1367 = vmatpush1.msra.mxu0 0.0
  %1368 = vmatprep.subr.mxu0 0.0
  %1369 = vmatpush1.msra.mxu0 0.0
  %1370 = vmatprep.subr.mxu0 0.0
  %1371 = vmatpush1.msra.mxu0 0.0
  %1372 = vmatprep.subr.mxu0 0.0
  %1373 = vmatpush1.msra.mxu0 0.0
  %1374 = vmatprep.mubr.f32.mxu0 0.0
  %1375 = vmatmul.mubr.f32.gmra.mrb[0].mxu0 %v1215
  %v1376 = vpop.f32.mrb[0].mxu0
  %v1377 = vadd.f32 0.0, %v1376
  %v1378 = vpop.f32.mrb[0].mxu0
  %1379 = vmatprep.mubr.f32.mxu0 0.0
  %1380 = vmatmul.mubr.f32.gmra.mrb[0].mxu0 %v1218
  %v1381 = vpop.f32.mrb[0].mxu0
  %v1382 = vadd.f32 0.0, %v1381
  %v1383 = vpop.f32.mrb[0].mxu0
  %1384 = vmatprep.mubr.f32.mxu0 0.0
  %1385 = vmatmul.mubr.f32.gmra.mrb[0].mxu0 %v1221
  %v1386 = vpop.f32.mrb[0].mxu0
  %v1387 = vadd.f32 0.0, %v1386
  %v1388 = vpop.f32.mrb[0].mxu0
  %1389 = vmatprep.mubr.f32.mxu0 0.0
  %1390 = vmatmul.mubr.f32.gmra.mrb[0].mxu0 %v1224
  %v1391 = vpop.f32.mrb[0].mxu0
  %v1392 = vadd.f32 0.0, %v1391
  %v1393 = vpop.f32.mrb[0].mxu0
  %1394 = vmatprep.mubr.f32.mxu0 0.0
  %1395 = vmatmul.mubr.f32.gmra.mrb[0].mxu0 %v1227
  %v1396 = vpop.f32.mrb[0].mxu0
  %v1397 = vadd.f32 0.0, %v1396
  %v1398 = vpop.f32.mrb[0].mxu0
  %1399 = vmatprep.mubr.f32.mxu0 0.0
  %1400 = vmatmul.mubr.f32.gmra.mrb[0].mxu0 %v1230
  %v1401 = vpop.f32.mrb[0].mxu0
  %v1402 = vadd.f32 0.0, %v1401
  %v1403 = vpop.f32.mrb[0].mxu0
  %1404 = vmatprep.mubr.f32.mxu0 0.0
  %1405 = vmatmul.mubr.f32.gmra.mrb[0].mxu0 %v1233
  %v1406 = vpop.f32.mrb[0].mxu0
  %v1407 = vadd.f32 0.0, %v1406
  %v1408 = vpop.f32.mrb[0].mxu0
  %1409 = vmatprep.mubr.f32.mxu0 0.0
  %1410 = vmatmul.mubr.f32.gmra.mrb[0].mxu0 %v1236
  %v1411 = vpop.f32.mrb[0].mxu0
  %v1412 = vadd.f32 0.0, %v1411
  %v1413 = vpop.f32.mrb[0].mxu0
  %1414 = vmatprep.mubr.f32.mxu0 0.0
  %1415 = vmatmul.mubr.f32.gmra.mrb[0].mxu0 %v1239
  %v1416 = vpop.f32.mrb[0].mxu0
  %v1417 = vadd.f32 0.0, %v1416
  %v1418 = vpop.f32.mrb[0].mxu0
  %1419 = vmatprep.mubr.f32.mxu0 0.0
  %1420 = vmatmul.mubr.f32.gmra.mrb[0].mxu0 %v1242
  %v1421 = vpop.f32.mrb[0].mxu0
  %v1422 = vadd.f32 0.0, %v1421
  %v1423 = vpop.f32.mrb[0].mxu0
  %1424 = vmatprep.mubr.f32.mxu0 0.0
  %1425 = vmatmul.mubr.f32.gmra.mrb[0].mxu0 %v1245
  %v1426 = vpop.f32.mrb[0].mxu0
  %v1427 = vadd.f32 0.0, %v1426
  %v1428 = vpop.f32.mrb[0].mxu0
  %1429 = vmatprep.mubr.f32.mxu0 0.0
  %1430 = vmatmul.mubr.f32.gmra.mrb[0].mxu0 %v1248
  %v1431 = vpop.f32.mrb[0].mxu0
  %v1432 = vadd.f32 0.0, %v1431
  %v1433 = vpop.f32.mrb[0].mxu0
  %1434 = vmatprep.mubr.f32.mxu0 0.0
  %1435 = vmatmul.mubr.f32.gmra.mrb[0].mxu0 %v1251
  %v1436 = vpop.f32.mrb[0].mxu0
  %v1437 = vadd.f32 0.0, %v1436
  %v1438 = vpop.f32.mrb[0].mxu0
  %1439 = vmatprep.mubr.f32.mxu0 0.0
  %1440 = vmatmul.mubr.f32.gmra.mrb[0].mxu0 %v1254
  %v1441 = vpop.f32.mrb[0].mxu0
  %v1442 = vadd.f32 0.0, %v1441
  %v1443 = vpop.f32.mrb[0].mxu0
  %1444 = vmatprep.mubr.f32.mxu0 0.0
  %1445 = vmatmul.mubr.f32.gmra.mrb[0].mxu0 %v1257
  %v1446 = vpop.f32.mrb[0].mxu0
  %v1447 = vadd.f32 0.0, %v1446
  %v1448 = vpop.f32.mrb[0].mxu0
  %1449 = vmatprep.mubr.f32.mxu0 0.0
  %1450 = vmatmul.mubr.f32.gmra.mrb[0].mxu0 %v1260
  %v1451 = vpop.f32.mrb[0].mxu0
  %v1452 = vadd.f32 0.0, %v1451
  %v1453 = vpop.f32.mrb[0].mxu0
  %1454 = vmatprep.mubr.f32.mxu0 0.0
  %1455 = vmatmul.mubr.f32.gmra.mrb[0].mxu0 %v1263
  %v1456 = vpop.f32.mrb[0].mxu0
  %v1457 = vadd.f32 0.0, %v1456
  %v1458 = vpop.f32.mrb[0].mxu0
  %1459 = vmatprep.mubr.f32.mxu0 0.0
  %1460 = vmatmul.mubr.f32.gmra.mrb[0].mxu0 %v1266
  %v1461 = vpop.f32.mrb[0].mxu0
  %v1462 = vadd.f32 0.0, %v1461
  %v1463 = vpop.f32.mrb[0].mxu0
  %1464 = vmatprep.mubr.f32.mxu0 0.0
  %1465 = vmatmul.mubr.f32.gmra.mrb[0].mxu0 %v1269
  %v1466 = vpop.f32.mrb[0].mxu0
  %v1467 = vadd.f32 0.0, %v1466
  %v1468 = vpop.f32.mrb[0].mxu0
  %1469 = vmatprep.mubr.f32.mxu0 0.0
  %1470 = vmatmul.mubr.f32.gmra.mrb[0].mxu0 %v1272
  %v1471 = vpop.f32.mrb[0].mxu0
  %v1472 = vadd.f32 0.0, %v1471
  %v1473 = vpop.f32.mrb[0].mxu0
  %1474 = vmatprep.mubr.f32.mxu0 0.0
  %1475 = vmatmul.mubr.f32.gmra.mrb[0].mxu0 %v1275
  %v1476 = vpop.f32.mrb[0].mxu0
  %v1477 = vadd.f32 0.0, %v1476
  %v1478 = vpop.f32.mrb[0].mxu0
  %1479 = vmatprep.mubr.f32.mxu0 0.0
  %1480 = vmatmul.mubr.f32.gmra.mrb[0].mxu0 %v1278
  %v1481 = vpop.f32.mrb[0].mxu0
  %v1482 = vadd.f32 0.0, %v1481
  %v1483 = vpop.f32.mrb[0].mxu0
  %1484 = vmatprep.mubr.f32.mxu0 0.0
  %1485 = vmatmul.mubr.f32.gmra.mrb[0].mxu0 %v1281
  %v1486 = vpop.f32.mrb[0].mxu0
  %v1487 = vadd.f32 0.0, %v1486
  %v1488 = vpop.f32.mrb[0].mxu0
  %1489 = vmatprep.mubr.f32.mxu0 0.0
  %1490 = vmatmul.mubr.f32.gmra.mrb[0].mxu0 %v1284
  %v1491 = vpop.f32.mrb[0].mxu0
  %v1492 = vadd.f32 0.0, %v1491
  %v1493 = vpop.f32.mrb[0].mxu0
  %1494 = vmatprep.mubr.f32.mxu0 0.0
  %1495 = vmatmul.mubr.f32.gmra.mrb[0].mxu0 %v1287
  %v1496 = vpop.f32.mrb[0].mxu0
  %v1497 = vadd.f32 0.0, %v1496
  %v1498 = vpop.f32.mrb[0].mxu0
  %1499 = vmatprep.mubr.f32.mxu0 0.0
  %1500 = vmatmul.mubr.f32.gmra.mrb[0].mxu0 %v1290
  %v1501 = vpop.f32.mrb[0].mxu0
  %v1502 = vadd.f32 0.0, %v1501
  %v1503 = vpop.f32.mrb[0].mxu0
  %1504 = vmatprep.mubr.f32.mxu0 0.0
  %1505 = vmatmul.mubr.f32.gmra.mrb[0].mxu0 %v1293
  %v1506 = vpop.f32.mrb[0].mxu0
  %v1507 = vadd.f32 0.0, %v1506
  %v1508 = vpop.f32.mrb[0].mxu0
  %1509 = vmatprep.mubr.f32.mxu0 0.0
  %1510 = vmatmul.mubr.f32.gmra.mrb[0].mxu0 %v1296
  %v1511 = vpop.f32.mrb[0].mxu0
  %v1512 = vadd.f32 0.0, %v1511
  %v1513 = vpop.f32.mrb[0].mxu0
  %1514 = vmatprep.mubr.f32.mxu0 0.0
  %1515 = vmatmul.mubr.f32.gmra.mrb[0].mxu0 %v1299
  %v1516 = vpop.f32.mrb[0].mxu0
  %v1517 = vadd.f32 0.0, %v1516
  %v1518 = vpop.f32.mrb[0].mxu0
  %1519 = vmatprep.mubr.f32.mxu0 0.0
  %1520 = vmatmul.mubr.f32.gmra.mrb[0].mxu0 %v1302
  %v1521 = vpop.f32.mrb[0].mxu0
  %v1522 = vadd.f32 0.0, %v1521
  %v1523 = vpop.f32.mrb[0].mxu0
  %1524 = vmatprep.mubr.f32.mxu0 0.0
  %1525 = vmatmul.mubr.f32.gmra.mrb[0].mxu0 %v1305
  %v1526 = vpop.f32.mrb[0].mxu0
  %v1527 = vadd.f32 0.0, %v1526
  %v1528 = vpop.f32.mrb[0].mxu0
  %1529 = vmatprep.mubr.f32.mxu0 0.0
  %1530 = vmatmul.mubr.f32.gmra.mrb[0].mxu0 %v1308
  %v1531 = vpop.f32.mrb[0].mxu0
  %v1532 = vadd.f32 0.0, %v1531
  %v1533 = vpop.f32.mrb[0].mxu0
  %1534 = vdwg.mxu0
  %v1535 = vmax.f32 %v1150, %v1377
  %v1536 = vmax.f32 %v1151, %v1382
  %v1537 = vmax.f32 %v1152, %v1387
  %v1538 = vmax.f32 %v1153, %v1392
  %v1539 = vmax.f32 %v1154, %v1397
  %v1540 = vmax.f32 %v1155, %v1402
  %v1541 = vmax.f32 %v1156, %v1407
  %v1542 = vmax.f32 %v1157, %v1412
  %v1543 = vmax.f32 %v1158, %v1417
  %v1544 = vmax.f32 %v1159, %v1422
  %v1545 = vmax.f32 %v1160, %v1427
  %v1546 = vmax.f32 %v1161, %v1432
  %v1547 = vmax.f32 %v1162, %v1437
  %v1548 = vmax.f32 %v1163, %v1442
  %v1549 = vmax.f32 %v1164, %v1447
  %v1550 = vmax.f32 %v1165, %v1452
  %v1551 = vmax.f32 %v1166, %v1457
  %v1552 = vmax.f32 %v1167, %v1462
  %v1553 = vmax.f32 %v1168, %v1467
  %v1554 = vmax.f32 %v1169, %v1472
  %v1555 = vmax.f32 %v1170, %v1477
  %v1556 = vmax.f32 %v1171, %v1482
  %v1557 = vmax.f32 %v1172, %v1487
  %v1558 = vmax.f32 %v1173, %v1492
  %v1559 = vmax.f32 %v1174, %v1497
  %v1560 = vmax.f32 %v1175, %v1502
  %v1561 = vmax.f32 %v1176, %v1507
  %v1562 = vmax.f32 %v1177, %v1512
  %v1563 = vmax.f32 %v1178, %v1517
  %v1564 = vmax.f32 %v1179, %v1522
  %v1565 = vmax.f32 %v1180, %v1527
  %v1566 = vmax.f32 %v1181, %v1532
  %v1567 = vld [vmem:[%s2] sm:$0x1]
  %v1569 = vlaneseq
  %v1570 = vshrl.u32 %v1569, 7
  %v1571 = vsub.s32 0, %v1570
  %v1572 = vrot.slane %v1567, %v1571
  %v1574 = vadd.f32 %v1535, %v1572
  %v1575 = vadd.f32 %v1536, %v1572
  %v1576 = vadd.f32 %v1537, %v1572
  %v1577 = vadd.f32 %v1538, %v1572
  %v1578 = vadd.f32 %v1539, %v1572
  %v1579 = vadd.f32 %v1540, %v1572
  %v1580 = vadd.f32 %v1541, %v1572
  %v1581 = vadd.f32 %v1542, %v1572
  %v1582 = vadd.f32 %v1543, %v1572
  %v1583 = vadd.f32 %v1544, %v1572
  %v1584 = vadd.f32 %v1545, %v1572
  %v1585 = vadd.f32 %v1546, %v1572
  %v1586 = vadd.f32 %v1547, %v1572
  %v1587 = vadd.f32 %v1548, %v1572
  %v1588 = vadd.f32 %v1549, %v1572
  %v1589 = vadd.f32 %v1550, %v1572
  %v1590 = vadd.f32 %v1551, %v1572
  %v1591 = vadd.f32 %v1552, %v1572
  %v1592 = vadd.f32 %v1553, %v1572
  %v1593 = vadd.f32 %v1554, %v1572
  %v1594 = vadd.f32 %v1555, %v1572
  %v1595 = vadd.f32 %v1556, %v1572
  %v1596 = vadd.f32 %v1557, %v1572
  %v1597 = vadd.f32 %v1558, %v1572
  %v1598 = vadd.f32 %v1559, %v1572
  %v1599 = vadd.f32 %v1560, %v1572
  %v1600 = vadd.f32 %v1561, %v1572
  %v1601 = vadd.f32 %v1562, %v1572
  %v1602 = vadd.f32 %v1563, %v1572
  %v1603 = vadd.f32 %v1564, %v1572
  %v1604 = vadd.f32 %v1565, %v1572
  %v1605 = vadd.f32 %v1566, %v1572
  %v1606 = vmax.f32 %v1574, 0.0
  %v1607 = vmax.f32 %v1575, 0.0
  %v1608 = vmax.f32 %v1576, 0.0
  %v1609 = vmax.f32 %v1577, 0.0
  %v1610 = vmax.f32 %v1578, 0.0
  %v1611 = vmax.f32 %v1579, 0.0
  %v1612 = vmax.f32 %v1580, 0.0
  %v1613 = vmax.f32 %v1581, 0.0
  %v1614 = vmax.f32 %v1582, 0.0
  %v1615 = vmax.f32 %v1583, 0.0
  %v1616 = vmax.f32 %v1584, 0.0
  %v1617 = vmax.f32 %v1585, 0.0
  %v1618 = vmax.f32 %v1586, 0.0
  %v1619 = vmax.f32 %v1587, 0.0
  %v1620 = vmax.f32 %v1588, 0.0
  %v1621 = vmax.f32 %v1589, 0.0
  %v1622 = vmax.f32 %v1590, 0.0
  %v1623 = vmax.f32 %v1591, 0.0
  %v1624 = vmax.f32 %v1592, 0.0
  %v1625 = vmax.f32 %v1593, 0.0
  %v1626 = vmax.f32 %v1594, 0.0
  %v1627 = vmax.f32 %v1595, 0.0
  %v1628 = vmax.f32 %v1596, 0.0
  %v1629 = vmax.f32 %v1597, 0.0
  %v1630 = vmax.f32 %v1598, 0.0
  %v1631 = vmax.f32 %v1599, 0.0
  %v1632 = vmax.f32 %v1600, 0.0
  %v1633 = vmax.f32 %v1601, 0.0
  %v1634 = vmax.f32 %v1602, 0.0
  %v1635 = vmax.f32 %v1603, 0.0
  %v1636 = vmax.f32 %v1604, 0.0
  %v1637 = vmax.f32 %v1605, 0.0
  %vm1638 = vcmask 261120
  %1639 = vst.msk [vmem:[#allocation2] sm:$0xff] %vm1638, 0.0
  %1640 = vst.msk [vmem:[#allocation2 + $0x8] sm:$0xff] %vm1638, 0.0
  %1641 = vst.msk [vmem:[#allocation2 + $0x10] sm:$0xff] %vm1638, %v1606
  %1642 = vst.msk [vmem:[#allocation2 + $0x18] sm:$0xff] %vm1638, %v1607
  %1643 = vst.msk [vmem:[#allocation2 + $0x20] sm:$0xff] %vm1638, %v1608
  %1644 = vst.msk [vmem:[#allocation2 + $0x28] sm:$0xff] %vm1638, %v1609
  %1645 = vst.msk [vmem:[#allocation2 + $0x30] sm:$0xff] %vm1638, %v1610
  %1646 = vst.msk [vmem:[#allocation2 + $0x38] sm:$0xff] %vm1638, %v1611
  %1647 = vst.msk [vmem:[#allocation2 + $0x40] sm:$0xff] %vm1638, %v1612
  %1648 = vst.msk [vmem:[#allocation2 + $0x48] sm:$0xff] %vm1638, %v1613
  %1649 = vst.msk [vmem:[#allocation2 + $0x50] sm:$0xff] %vm1638, %v1614
  %1650 = vst.msk [vmem:[#allocation2 + $0x58] sm:$0xff] %vm1638, %v1615
  %1651 = vst.msk [vmem:[#allocation2 + $0x60] sm:$0xff] %vm1638, %v1616
  %1652 = vst.msk [vmem:[#allocation2 + $0x68] sm:$0xff] %vm1638, %v1617
  %1653 = vst.msk [vmem:[#allocation2 + $0x70] sm:$0xff] %vm1638, %v1618
  %1654 = vst.msk [vmem:[#allocation2 + $0x78] sm:$0xff] %vm1638, %v1619
  %1655 = vst.msk [vmem:[#allocation2 + $0x80] sm:$0xff] %vm1638, %v1620
  %1656 = vst.msk [vmem:[#allocation2 + $0x88] sm:$0xff] %vm1638, %v1621
  %1657 = vst.msk [vmem:[#allocation2 + $0x90] sm:$0xff] %vm1638, %v1622
  %1658 = vst.msk [vmem:[#allocation2 + $0x98] sm:$0xff] %vm1638, %v1623
  %1659 = vst.msk [vmem:[#allocation2 + $0xa0] sm:$0xff] %vm1638, %v1624
  %1660 = vst.msk [vmem:[#allocation2 + $0xa8] sm:$0xff] %vm1638, %v1625
  %1661 = vst.msk [vmem:[#allocation2 + $0xb0] sm:$0xff] %vm1638, %v1626
  %1662 = vst.msk [vmem:[#allocation2 + $0xb8] sm:$0xff] %vm1638, %v1627
  %1663 = vst.msk [vmem:[#allocation2 + $0xc0] sm:$0xff] %vm1638, %v1628
  %1664 = vst.msk [vmem:[#allocation2 + $0xc8] sm:$0xff] %vm1638, %v1629
  %1665 = vst.msk [vmem:[#allocation2 + $0xd0] sm:$0xff] %vm1638, %v1630
  %1666 = vst.msk [vmem:[#allocation2 + $0xd8] sm:$0xff] %vm1638, %v1631
  %1667 = vst.msk [vmem:[#allocation2 + $0xe0] sm:$0xff] %vm1638, %v1632
  %1668 = vst.msk [vmem:[#allocation2 + $0xe8] sm:$0xff] %vm1638, %v1633
  %1669 = vst.msk [vmem:[#allocation2 + $0xf0] sm:$0xff] %vm1638, %v1634
  %1670 = vst.msk [vmem:[#allocation2 + $0xf8] sm:$0xff] %vm1638, %v1635
  %1671 = vst.msk [vmem:[#allocation2 + $0x100] sm:$0xff] %vm1638, %v1636
  %1672 = vst.msk [vmem:[#allocation2 + $0x108] sm:$0xff] %vm1638, %v1637
  %1673 = vst.msk [vmem:[#allocation2 + $0x110] sm:$0xff] %vm1638, 0.0
  %1674 = vst.msk [vmem:[#allocation2 + $0x118] sm:$0xff] %vm1638, 0.0
  %v1675 = vlaneseq
  %v1676 = vshrl.u32 %v1675, 7
  %v1677 = vadd.s32 %v1676, 8
  %v1678 = vadd.s32 %v1676, 16
  %v1679 = vadd.s32 %v1676, 24
  %v1680 = vadd.s32 %v1676, 32
  %v1681 = vadd.s32 %v1676, 40
  %v1682 = vadd.s32 %v1676, 48
  %v1683 = vadd.s32 %v1676, 56
  %v1684 = vadd.s32 %v1676, 64
  %v1685 = vadd.s32 %v1676, 72
  %v1686 = vadd.s32 %v1676, 80
  %v1687 = vadd.s32 %v1676, 88
  %v1688 = vadd.s32 %v1676, 96
  %v1689 = vadd.s32 %v1676, 104
  %v1690 = vadd.s32 %v1676, 112
  %v1691 = vadd.s32 %v1676, 120
  %v1692 = vadd.s32 %v1676, 128
  %v1693 = vadd.s32 %v1676, 136
  %v1694 = vadd.s32 %v1676, 144
  %v1695 = vadd.s32 %v1676, 152
  %v1696 = vadd.s32 %v1676, 160
  %v1697 = vadd.s32 %v1676, 168
  %v1698 = vadd.s32 %v1676, 176
  %v1699 = vadd.s32 %v1676, 184
  %v1700 = vadd.s32 %v1676, 192
  %v1701 = vadd.s32 %v1676, 200
  %v1702 = vadd.s32 %v1676, 208
  %v1703 = vadd.s32 %v1676, 216
  %v1704 = vadd.s32 %v1676, 224
  %v1705 = vadd.s32 %v1676, 232
  %v1706 = vadd.s32 %v1676, 240
  %v1707 = vadd.s32 %v1676, 248
  %v1708 = vand.u32 %v1676, 7
  %v1709 = vand.u32 %v1677, 7
  %v1710 = vand.u32 %v1678, 7
  %v1711 = vand.u32 %v1679, 7
  %v1712 = vand.u32 %v1680, 7
  %v1713 = vand.u32 %v1681, 7
  %v1714 = vand.u32 %v1682, 7
  %v1715 = vand.u32 %v1683, 7
  %v1716 = vand.u32 %v1684, 7
  %v1717 = vand.u32 %v1685, 7
  %v1718 = vand.u32 %v1686, 7
  %v1719 = vand.u32 %v1687, 7
  %v1720 = vand.u32 %v1688, 7
  %v1721 = vand.u32 %v1689, 7
  %v1722 = vand.u32 %v1690, 7
  %v1723 = vand.u32 %v1691, 7
  %v1724 = vand.u32 %v1692, 7
  %v1725 = vand.u32 %v1693, 7
  %v1726 = vand.u32 %v1694, 7
  %v1727 = vand.u32 %v1695, 7
  %v1728 = vand.u32 %v1696, 7
  %v1729 = vand.u32 %v1697, 7
  %v1730 = vand.u32 %v1698, 7
  %v1731 = vand.u32 %v1699, 7
  %v1732 = vand.u32 %v1700, 7
  %v1733 = vand.u32 %v1701, 7
  %v1734 = vand.u32 %v1702, 7
  %v1735 = vand.u32 %v1703, 7
  %v1736 = vand.u32 %v1704, 7
  %v1737 = vand.u32 %v1705, 7
  %v1738 = vand.u32 %v1706, 7
  %v1739 = vand.u32 %v1707, 7
  %v1740 = vshra.s32 %v1676, 3
  %v1741 = vshra.s32 %v1677, 3
  %v1742 = vshra.s32 %v1678, 3
  %v1743 = vshra.s32 %v1679, 3
  %v1744 = vshra.s32 %v1680, 3
  %v1745 = vshra.s32 %v1681, 3
  %v1746 = vshra.s32 %v1682, 3
  %v1747 = vshra.s32 %v1683, 3
  %v1748 = vshra.s32 %v1684, 3
  %v1749 = vshra.s32 %v1685, 3
  %v1750 = vshra.s32 %v1686, 3
  %v1751 = vshra.s32 %v1687, 3
  %v1752 = vshra.s32 %v1688, 3
  %v1753 = vshra.s32 %v1689, 3
  %v1754 = vshra.s32 %v1690, 3
  %v1755 = vshra.s32 %v1691, 3
  %v1756 = vshra.s32 %v1692, 3
  %v1757 = vshra.s32 %v1693, 3
  %v1758 = vshra.s32 %v1694, 3
  %v1759 = vshra.s32 %v1695, 3
  %v1760 = vshra.s32 %v1696, 3
  %v1761 = vshra.s32 %v1697, 3
  %v1762 = vshra.s32 %v1698, 3
  %v1763 = vshra.s32 %v1699, 3
  %v1764 = vshra.s32 %v1700, 3
  %v1765 = vshra.s32 %v1701, 3
  %v1766 = vshra.s32 %v1702, 3
  %v1767 = vshra.s32 %v1703, 3
  %v1768 = vshra.s32 %v1704, 3
  %v1769 = vshra.s32 %v1705, 3
  %v1770 = vshra.s32 %v1706, 3
  %v1771 = vshra.s32 %v1707, 3
  %v1772 = vand.u32 %v1740, 7
  %v1773 = vand.u32 %v1741, 7
  %v1774 = vand.u32 %v1742, 7
  %v1775 = vand.u32 %v1743, 7
  %v1776 = vand.u32 %v1744, 7
  %v1777 = vand.u32 %v1745, 7
  %v1778 = vand.u32 %v1746, 7
  %v1779 = vand.u32 %v1747, 7
  %v1780 = vand.u32 %v1748, 7
  %v1781 = vand.u32 %v1749, 7
  %v1782 = vand.u32 %v1750, 7
  %v1783 = vand.u32 %v1751, 7
  %v1784 = vand.u32 %v1752, 7
  %v1785 = vand.u32 %v1753, 7
  %v1786 = vand.u32 %v1754, 7
  %v1787 = vand.u32 %v1755, 7
  %v1788 = vand.u32 %v1756, 7
  %v1789 = vand.u32 %v1757, 7
  %v1790 = vand.u32 %v1758, 7
  %v1791 = vand.u32 %v1759, 7
  %v1792 = vand.u32 %v1760, 7
  %v1793 = vand.u32 %v1761, 7
  %v1794 = vand.u32 %v1762, 7
  %v1795 = vand.u32 %v1763, 7
  %v1796 = vand.u32 %v1764, 7
  %v1797 = vand.u32 %v1765, 7
  %v1798 = vand.u32 %v1766, 7
  %v1799 = vand.u32 %v1767, 7
  %v1800 = vand.u32 %v1768, 7
  %v1801 = vand.u32 %v1769, 7
  %v1802 = vand.u32 %v1770, 7
  %v1803 = vand.u32 %v1771, 7
  %vm1804 = vcmp.ge.s32.totalorder %v1772, 1
  %vm1805 = vcmp.ge.s32.totalorder %v1773, 1
  %vm1806 = vcmp.ge.s32.totalorder %v1774, 1
  %vm1807 = vcmp.ge.s32.totalorder %v1775, 1
  %vm1808 = vcmp.ge.s32.totalorder %v1776, 1
  %vm1809 = vcmp.ge.s32.totalorder %v1777, 1
  %vm1810 = vcmp.ge.s32.totalorder %v1778, 1
  %vm1811 = vcmp.ge.s32.totalorder %v1779, 1
  %vm1812 = vcmp.ge.s32.totalorder %v1780, 1
  %vm1813 = vcmp.ge.s32.totalorder %v1781, 1
  %vm1814 = vcmp.ge.s32.totalorder %v1782, 1
  %vm1815 = vcmp.ge.s32.totalorder %v1783, 1
  %vm1816 = vcmp.ge.s32.totalorder %v1784, 1
  %vm1817 = vcmp.ge.s32.totalorder %v1785, 1
  %vm1818 = vcmp.ge.s32.totalorder %v1786, 1
  %vm1819 = vcmp.ge.s32.totalorder %v1787, 1
  %vm1820 = vcmp.ge.s32.totalorder %v1788, 1
  %vm1821 = vcmp.ge.s32.totalorder %v1789, 1
  %vm1822 = vcmp.ge.s32.totalorder %v1790, 1
  %vm1823 = vcmp.ge.s32.totalorder %v1791, 1
  %vm1824 = vcmp.ge.s32.totalorder %v1792, 1
  %vm1825 = vcmp.ge.s32.totalorder %v1793, 1
  %vm1826 = vcmp.ge.s32.totalorder %v1794, 1
  %vm1827 = vcmp.ge.s32.totalorder %v1795, 1
  %vm1828 = vcmp.ge.s32.totalorder %v1796, 1
  %vm1829 = vcmp.ge.s32.totalorder %v1797, 1
  %vm1830 = vcmp.ge.s32.totalorder %v1798, 1
  %vm1831 = vcmp.ge.s32.totalorder %v1799, 1
  %vm1832 = vcmp.ge.s32.totalorder %v1800, 1
  %vm1833 = vcmp.ge.s32.totalorder %v1801, 1
  %vm1834 = vcmp.ge.s32.totalorder %v1802, 1
  %vm1835 = vcmp.ge.s32.totalorder %v1803, 1
  %vm1836 = vcmp.ge.s32.totalorder %v1708, 1
  %vm1837 = vcmp.ge.s32.totalorder %v1709, 1
  %vm1838 = vcmp.ge.s32.totalorder %v1710, 1
  %vm1839 = vcmp.ge.s32.totalorder %v1711, 1
  %vm1840 = vcmp.ge.s32.totalorder %v1712, 1
  %vm1841 = vcmp.ge.s32.totalorder %v1713, 1
  %vm1842 = vcmp.ge.s32.totalorder %v1714, 1
  %vm1843 = vcmp.ge.s32.totalorder %v1715, 1
  %vm1844 = vcmp.ge.s32.totalorder %v1716, 1
  %vm1845 = vcmp.ge.s32.totalorder %v1717, 1
  %vm1846 = vcmp.ge.s32.totalorder %v1718, 1
  %vm1847 = vcmp.ge.s32.totalorder %v1719, 1
  %vm1848 = vcmp.ge.s32.totalorder %v1720, 1
  %vm1849 = vcmp.ge.s32.totalorder %v1721, 1
  %vm1850 = vcmp.ge.s32.totalorder %v1722, 1
  %vm1851 = vcmp.ge.s32.totalorder %v1723, 1
  %vm1852 = vcmp.ge.s32.totalorder %v1724, 1
  %vm1853 = vcmp.ge.s32.totalorder %v1725, 1
  %vm1854 = vcmp.ge.s32.totalorder %v1726, 1
  %vm1855 = vcmp.ge.s32.totalorder %v1727, 1
  %vm1856 = vcmp.ge.s32.totalorder %v1728, 1
  %vm1857 = vcmp.ge.s32.totalorder %v1729, 1
  %vm1858 = vcmp.ge.s32.totalorder %v1730, 1
  %vm1859 = vcmp.ge.s32.totalorder %v1731, 1
  %vm1860 = vcmp.ge.s32.totalorder %v1732, 1
  %vm1861 = vcmp.ge.s32.totalorder %v1733, 1
  %vm1862 = vcmp.ge.s32.totalorder %v1734, 1
  %vm1863 = vcmp.ge.s32.totalorder %v1735, 1
  %vm1864 = vcmp.ge.s32.totalorder %v1736, 1
  %vm1865 = vcmp.ge.s32.totalorder %v1737, 1
  %vm1866 = vcmp.ge.s32.totalorder %v1738, 1
  %vm1867 = vcmp.ge.s32.totalorder %v1739, 1
  %vm1868 = vmand %vm1804, %vm1836
  %vm1869 = vmand %vm1805, %vm1837
  %vm1870 = vmand %vm1806, %vm1838
  %vm1871 = vmand %vm1807, %vm1839
  %vm1872 = vmand %vm1808, %vm1840
  %vm1873 = vmand %vm1809, %vm1841
  %vm1874 = vmand %vm1810, %vm1842
  %vm1875 = vmand %vm1811, %vm1843
  %vm1876 = vmand %vm1812, %vm1844
  %vm1877 = vmand %vm1813, %vm1845
  %vm1878 = vmand %vm1814, %vm1846
  %vm1879 = vmand %vm1815, %vm1847
  %vm1880 = vmand %vm1816, %vm1848
  %vm1881 = vmand %vm1817, %vm1849
  %vm1882 = vmand %vm1818, %vm1850
  %vm1883 = vmand %vm1819, %vm1851
  %vm1884 = vmand %vm1820, %vm1852
  %vm1885 = vmand %vm1821, %vm1853
  %vm1886 = vmand %vm1822, %vm1854
  %vm1887 = vmand %vm1823, %vm1855
  %vm1888 = vmand %vm1824, %vm1856
  %vm1889 = vmand %vm1825, %vm1857
  %vm1890 = vmand %vm1826, %vm1858
  %vm1891 = vmand %vm1827, %vm1859
  %vm1892 = vmand %vm1828, %vm1860
  %vm1893 = vmand %vm1829, %vm1861
  %vm1894 = vmand %vm1830, %vm1862
  %vm1895 = vmand %vm1831, %vm1863
  %vm1896 = vmand %vm1832, %vm1864
  %vm1897 = vmand %vm1833, %vm1865
  %vm1898 = vmand %vm1834, %vm1866
  %vm1899 = vmand %vm1835, %vm1867
  %v1900 = vsel %vm1868, 1, 0
  %v1901 = vsel %vm1869, 1, 0
  %v1902 = vsel %vm1870, 1, 0
  %v1903 = vsel %vm1871, 1, 0
  %v1904 = vsel %vm1872, 1, 0
  %v1905 = vsel %vm1873, 1, 0
  %v1906 = vsel %vm1874, 1, 0
  %v1907 = vsel %vm1875, 1, 0
  %v1908 = vsel %vm1876, 1, 0
  %v1909 = vsel %vm1877, 1, 0
  %v1910 = vsel %vm1878, 1, 0
  %v1911 = vsel %vm1879, 1, 0
  %v1912 = vsel %vm1880, 1, 0
  %v1913 = vsel %vm1881, 1, 0
  %v1914 = vsel %vm1882, 1, 0
  %v1915 = vsel %vm1883, 1, 0
  %v1916 = vsel %vm1884, 1, 0
  %v1917 = vsel %vm1885, 1, 0
  %v1918 = vsel %vm1886, 1, 0
  %v1919 = vsel %vm1887, 1, 0
  %v1920 = vsel %vm1888, 1, 0
  %v1921 = vsel %vm1889, 1, 0
  %v1922 = vsel %vm1890, 1, 0
  %v1923 = vsel %vm1891, 1, 0
  %v1924 = vsel %vm1892, 1, 0
  %v1925 = vsel %vm1893, 1, 0
  %v1926 = vsel %vm1894, 1, 0
  %v1927 = vsel %vm1895, 1, 0
  %v1928 = vsel %vm1896, 1, 0
  %v1929 = vsel %vm1897, 1, 0
  %v1930 = vsel %vm1898, 1, 0
  %v1931 = vsel %vm1899, 1, 0
  %v1932 = vcvt.s32.f32 %v1900
  %v1933 = vcvt.s32.f32 %v1901
  %v1934 = vcvt.s32.f32 %v1902
  %v1935 = vcvt.s32.f32 %v1903
  %v1936 = vcvt.s32.f32 %v1904
  %v1937 = vcvt.s32.f32 %v1905
  %v1938 = vcvt.s32.f32 %v1906
  %v1939 = vcvt.s32.f32 %v1907
  %v1940 = vcvt.s32.f32 %v1908
  %v1941 = vcvt.s32.f32 %v1909
  %v1942 = vcvt.s32.f32 %v1910
  %v1943 = vcvt.s32.f32 %v1911
  %v1944 = vcvt.s32.f32 %v1912
  %v1945 = vcvt.s32.f32 %v1913
  %v1946 = vcvt.s32.f32 %v1914
  %v1947 = vcvt.s32.f32 %v1915
  %v1948 = vcvt.s32.f32 %v1916
  %v1949 = vcvt.s32.f32 %v1917
  %v1950 = vcvt.s32.f32 %v1918
  %v1951 = vcvt.s32.f32 %v1919
  %v1952 = vcvt.s32.f32 %v1920
  %v1953 = vcvt.s32.f32 %v1921
  %v1954 = vcvt.s32.f32 %v1922
  %v1955 = vcvt.s32.f32 %v1923
  %v1956 = vcvt.s32.f32 %v1924
  %v1957 = vcvt.s32.f32 %v1925
  %v1958 = vcvt.s32.f32 %v1926
  %v1959 = vcvt.s32.f32 %v1927
  %v1960 = vcvt.s32.f32 %v1928
  %v1961 = vcvt.s32.f32 %v1929
  %v1962 = vcvt.s32.f32 %v1930
  %v1963 = vcvt.s32.f32 %v1931
  %v1964 = vsel %vm1804, 1, 0
  %v1965 = vsel %vm1805, 1, 0
  %v1966 = vsel %vm1806, 1, 0
  %v1967 = vsel %vm1807, 1, 0
  %v1968 = vsel %vm1808, 1, 0
  %v1969 = vsel %vm1809, 1, 0
  %v1970 = vsel %vm1810, 1, 0
  %v1971 = vsel %vm1811, 1, 0
  %v1972 = vsel %vm1812, 1, 0
  %v1973 = vsel %vm1813, 1, 0
  %v1974 = vsel %vm1814, 1, 0
  %v1975 = vsel %vm1815, 1, 0
  %v1976 = vsel %vm1816, 1, 0
  %v1977 = vsel %vm1817, 1, 0
  %v1978 = vsel %vm1818, 1, 0
  %v1979 = vsel %vm1819, 1, 0
  %v1980 = vsel %vm1820, 1, 0
  %v1981 = vsel %vm1821, 1, 0
  %v1982 = vsel %vm1822, 1, 0
  %v1983 = vsel %vm1823, 1, 0
  %v1984 = vsel %vm1824, 1, 0
  %v1985 = vsel %vm1825, 1, 0
  %v1986 = vsel %vm1826, 1, 0
  %v1987 = vsel %vm1827, 1, 0
  %v1988 = vsel %vm1828, 1, 0
  %v1989 = vsel %vm1829, 1, 0
  %v1990 = vsel %vm1830, 1, 0
  %v1991 = vsel %vm1831, 1, 0
  %v1992 = vsel %vm1832, 1, 0
  %v1993 = vsel %vm1833, 1, 0
  %v1994 = vsel %vm1834, 1, 0
  %v1995 = vsel %vm1835, 1, 0
  %v1996 = vcvt.s32.f32 %v1964
  %v1997 = vcvt.s32.f32 %v1965
  %v1998 = vcvt.s32.f32 %v1966
  %v1999 = vcvt.s32.f32 %v1967
  %v2000 = vcvt.s32.f32 %v1968
  %v2001 = vcvt.s32.f32 %v1969
  %v2002 = vcvt.s32.f32 %v1970
  %v2003 = vcvt.s32.f32 %v1971
  %v2004 = vcvt.s32.f32 %v1972
  %v2005 = vcvt.s32.f32 %v1973
  %v2006 = vcvt.s32.f32 %v1974
  %v2007 = vcvt.s32.f32 %v1975
  %v2008 = vcvt.s32.f32 %v1976
  %v2009 = vcvt.s32.f32 %v1977
  %v2010 = vcvt.s32.f32 %v1978
  %v2011 = vcvt.s32.f32 %v1979
  %v2012 = vcvt.s32.f32 %v1980
  %v2013 = vcvt.s32.f32 %v1981
  %v2014 = vcvt.s32.f32 %v1982
  %v2015 = vcvt.s32.f32 %v1983
  %v2016 = vcvt.s32.f32 %v1984
  %v2017 = vcvt.s32.f32 %v1985
  %v2018 = vcvt.s32.f32 %v1986
  %v2019 = vcvt.s32.f32 %v1987
  %v2020 = vcvt.s32.f32 %v1988
  %v2021 = vcvt.s32.f32 %v1989
  %v2022 = vcvt.s32.f32 %v1990
  %v2023 = vcvt.s32.f32 %v1991
  %v2024 = vcvt.s32.f32 %v1992
  %v2025 = vcvt.s32.f32 %v1993
  %v2026 = vcvt.s32.f32 %v1994
  %v2027 = vcvt.s32.f32 %v1995
  %vm2028 = vcmp.le.s32.totalorder %v1708, 6
  %vm2029 = vcmp.le.s32.totalorder %v1709, 6
  %vm2030 = vcmp.le.s32.totalorder %v1710, 6
  %vm2031 = vcmp.le.s32.totalorder %v1711, 6
  %vm2032 = vcmp.le.s32.totalorder %v1712, 6
  %vm2033 = vcmp.le.s32.totalorder %v1713, 6
  %vm2034 = vcmp.le.s32.totalorder %v1714, 6
  %vm2035 = vcmp.le.s32.totalorder %v1715, 6
  %vm2036 = vcmp.le.s32.totalorder %v1716, 6
  %vm2037 = vcmp.le.s32.totalorder %v1717, 6
  %vm2038 = vcmp.le.s32.totalorder %v1718, 6
  %vm2039 = vcmp.le.s32.totalorder %v1719, 6
  %vm2040 = vcmp.le.s32.totalorder %v1720, 6
  %vm2041 = vcmp.le.s32.totalorder %v1721, 6
  %vm2042 = vcmp.le.s32.totalorder %v1722, 6
  %vm2043 = vcmp.le.s32.totalorder %v1723, 6
  %vm2044 = vcmp.le.s32.totalorder %v1724, 6
  %vm2045 = vcmp.le.s32.totalorder %v1725, 6
  %vm2046 = vcmp.le.s32.totalorder %v1726, 6
  %vm2047 = vcmp.le.s32.totalorder %v1727, 6
  %vm2048 = vcmp.le.s32.totalorder %v1728, 6
  %vm2049 = vcmp.le.s32.totalorder %v1729, 6
  %vm2050 = vcmp.le.s32.totalorder %v1730, 6
  %vm2051 = vcmp.le.s32.totalorder %v1731, 6
  %vm2052 = vcmp.le.s32.totalorder %v1732, 6
  %vm2053 = vcmp.le.s32.totalorder %v1733, 6
  %vm2054 = vcmp.le.s32.totalorder %v1734, 6
  %vm2055 = vcmp.le.s32.totalorder %v1735, 6
  %vm2056 = vcmp.le.s32.totalorder %v1736, 6
  %vm2057 = vcmp.le.s32.totalorder %v1737, 6
  %vm2058 = vcmp.le.s32.totalorder %v1738, 6
  %vm2059 = vcmp.le.s32.totalorder %v1739, 6
  %vm2060 = vmand %vm1804, %vm2028
  %vm2061 = vmand %vm1805, %vm2029
  %vm2062 = vmand %vm1806, %vm2030
  %vm2063 = vmand %vm1807, %vm2031
  %vm2064 = vmand %vm1808, %vm2032
  %vm2065 = vmand %vm1809, %vm2033
  %vm2066 = vmand %vm1810, %vm2034
  %vm2067 = vmand %vm1811, %vm2035
  %vm2068 = vmand %vm1812, %vm2036
  %vm2069 = vmand %vm1813, %vm2037
  %vm2070 = vmand %vm1814, %vm2038
  %vm2071 = vmand %vm1815, %vm2039
  %vm2072 = vmand %vm1816, %vm2040
  %vm2073 = vmand %vm1817, %vm2041
  %vm2074 = vmand %vm1818, %vm2042
  %vm2075 = vmand %vm1819, %vm2043
  %vm2076 = vmand %vm1820, %vm2044
  %vm2077 = vmand %vm1821, %vm2045
  %vm2078 = vmand %vm1822, %vm2046
  %vm2079 = vmand %vm1823, %vm2047
  %vm2080 = vmand %vm1824, %vm2048
  %vm2081 = vmand %vm1825, %vm2049
  %vm2082 = vmand %vm1826, %vm2050
  %vm2083 = vmand %vm1827, %vm2051
  %vm2084 = vmand %vm1828, %vm2052
  %vm2085 = vmand %vm1829, %vm2053
  %vm2086 = vmand %vm1830, %vm2054
  %vm2087 = vmand %vm1831, %vm2055
  %vm2088 = vmand %vm1832, %vm2056
  %vm2089 = vmand %vm1833, %vm2057
  %vm2090 = vmand %vm1834, %vm2058
  %vm2091 = vmand %vm1835, %vm2059
  %v2092 = vsel %vm2060, 1, 0
  %v2093 = vsel %vm2061, 1, 0
  %v2094 = vsel %vm2062, 1, 0
  %v2095 = vsel %vm2063, 1, 0
  %v2096 = vsel %vm2064, 1, 0
  %v2097 = vsel %vm2065, 1, 0
  %v2098 = vsel %vm2066, 1, 0
  %v2099 = vsel %vm2067, 1, 0
  %v2100 = vsel %vm2068, 1, 0
  %v2101 = vsel %vm2069, 1, 0
  %v2102 = vsel %vm2070, 1, 0
  %v2103 = vsel %vm2071, 1, 0
  %v2104 = vsel %vm2072, 1, 0
  %v2105 = vsel %vm2073, 1, 0
  %v2106 = vsel %vm2074, 1, 0
  %v2107 = vsel %vm2075, 1, 0
  %v2108 = vsel %vm2076, 1, 0
  %v2109 = vsel %vm2077, 1, 0
  %v2110 = vsel %vm2078, 1, 0
  %v2111 = vsel %vm2079, 1, 0
  %v2112 = vsel %vm2080, 1, 0
  %v2113 = vsel %vm2081, 1, 0
  %v2114 = vsel %vm2082, 1, 0
  %v2115 = vsel %vm2083, 1, 0
  %v2116 = vsel %vm2084, 1, 0
  %v2117 = vsel %vm2085, 1, 0
  %v2118 = vsel %vm2086, 1, 0
  %v2119 = vsel %vm2087, 1, 0
  %v2120 = vsel %vm2088, 1, 0
  %v2121 = vsel %vm2089, 1, 0
  %v2122 = vsel %vm2090, 1, 0
  %v2123 = vsel %vm2091, 1, 0
  %v2124 = vcvt.s32.f32 %v2092
  %v2125 = vcvt.s32.f32 %v2093
  %v2126 = vcvt.s32.f32 %v2094
  %v2127 = vcvt.s32.f32 %v2095
  %v2128 = vcvt.s32.f32 %v2096
  %v2129 = vcvt.s32.f32 %v2097
  %v2130 = vcvt.s32.f32 %v2098
  %v2131 = vcvt.s32.f32 %v2099
  %v2132 = vcvt.s32.f32 %v2100
  %v2133 = vcvt.s32.f32 %v2101
  %v2134 = vcvt.s32.f32 %v2102
  %v2135 = vcvt.s32.f32 %v2103
  %v2136 = vcvt.s32.f32 %v2104
  %v2137 = vcvt.s32.f32 %v2105
  %v2138 = vcvt.s32.f32 %v2106
  %v2139 = vcvt.s32.f32 %v2107
  %v2140 = vcvt.s32.f32 %v2108
  %v2141 = vcvt.s32.f32 %v2109
  %v2142 = vcvt.s32.f32 %v2110
  %v2143 = vcvt.s32.f32 %v2111
  %v2144 = vcvt.s32.f32 %v2112
  %v2145 = vcvt.s32.f32 %v2113
  %v2146 = vcvt.s32.f32 %v2114
  %v2147 = vcvt.s32.f32 %v2115
  %v2148 = vcvt.s32.f32 %v2116
  %v2149 = vcvt.s32.f32 %v2117
  %v2150 = vcvt.s32.f32 %v2118
  %v2151 = vcvt.s32.f32 %v2119
  %v2152 = vcvt.s32.f32 %v2120
  %v2153 = vcvt.s32.f32 %v2121
  %v2154 = vcvt.s32.f32 %v2122
  %v2155 = vcvt.s32.f32 %v2123
  %v2156 = vsel %vm1836, 1, 0
  %v2157 = vsel %vm1837, 1, 0
  %v2158 = vsel %vm1838, 1, 0
  %v2159 = vsel %vm1839, 1, 0
  %v2160 = vsel %vm1840, 1, 0
  %v2161 = vsel %vm1841, 1, 0
  %v2162 = vsel %vm1842, 1, 0
  %v2163 = vsel %vm1843, 1, 0
  %v2164 = vsel %vm1844, 1, 0
  %v2165 = vsel %vm1845, 1, 0
  %v2166 = vsel %vm1846, 1, 0
  %v2167 = vsel %vm1847, 1, 0
  %v2168 = vsel %vm1848, 1, 0
  %v2169 = vsel %vm1849, 1, 0
  %v2170 = vsel %vm1850, 1, 0
  %v2171 = vsel %vm1851, 1, 0
  %v2172 = vsel %vm1852, 1, 0
  %v2173 = vsel %vm1853, 1, 0
  %v2174 = vsel %vm1854, 1, 0
  %v2175 = vsel %vm1855, 1, 0
  %v2176 = vsel %vm1856, 1, 0
  %v2177 = vsel %vm1857, 1, 0
  %v2178 = vsel %vm1858, 1, 0
  %v2179 = vsel %vm1859, 1, 0
  %v2180 = vsel %vm1860, 1, 0
  %v2181 = vsel %vm1861, 1, 0
  %v2182 = vsel %vm1862, 1, 0
  %v2183 = vsel %vm1863, 1, 0
  %v2184 = vsel %vm1864, 1, 0
  %v2185 = vsel %vm1865, 1, 0
  %v2186 = vsel %vm1866, 1, 0
  %v2187 = vsel %vm1867, 1, 0
  %v2188 = vcvt.s32.f32 %v2156
  %v2189 = vcvt.s32.f32 %v2157
  %v2190 = vcvt.s32.f32 %v2158
  %v2191 = vcvt.s32.f32 %v2159
  %v2192 = vcvt.s32.f32 %v2160
  %v2193 = vcvt.s32.f32 %v2161
  %v2194 = vcvt.s32.f32 %v2162
  %v2195 = vcvt.s32.f32 %v2163
  %v2196 = vcvt.s32.f32 %v2164
  %v2197 = vcvt.s32.f32 %v2165
  %v2198 = vcvt.s32.f32 %v2166
  %v2199 = vcvt.s32.f32 %v2167
  %v2200 = vcvt.s32.f32 %v2168
  %v2201 = vcvt.s32.f32 %v2169
  %v2202 = vcvt.s32.f32 %v2170
  %v2203 = vcvt.s32.f32 %v2171
  %v2204 = vcvt.s32.f32 %v2172
  %v2205 = vcvt.s32.f32 %v2173
  %v2206 = vcvt.s32.f32 %v2174
  %v2207 = vcvt.s32.f32 %v2175
  %v2208 = vcvt.s32.f32 %v2176
  %v2209 = vcvt.s32.f32 %v2177
  %v2210 = vcvt.s32.f32 %v2178
  %v2211 = vcvt.s32.f32 %v2179
  %v2212 = vcvt.s32.f32 %v2180
  %v2213 = vcvt.s32.f32 %v2181
  %v2214 = vcvt.s32.f32 %v2182
  %v2215 = vcvt.s32.f32 %v2183
  %v2216 = vcvt.s32.f32 %v2184
  %v2217 = vcvt.s32.f32 %v2185
  %v2218 = vcvt.s32.f32 %v2186
  %v2219 = vcvt.s32.f32 %v2187
  %v2220 = vsel %vm2028, 1, 0
  %v2221 = vsel %vm2029, 1, 0
  %v2222 = vsel %vm2030, 1, 0
  %v2223 = vsel %vm2031, 1, 0
  %v2224 = vsel %vm2032, 1, 0
  %v2225 = vsel %vm2033, 1, 0
  %v2226 = vsel %vm2034, 1, 0
  %v2227 = vsel %vm2035, 1, 0
  %v2228 = vsel %vm2036, 1, 0
  %v2229 = vsel %vm2037, 1, 0
  %v2230 = vsel %vm2038, 1, 0
  %v2231 = vsel %vm2039, 1, 0
  %v2232 = vsel %vm2040, 1, 0
  %v2233 = vsel %vm2041, 1, 0
  %v2234 = vsel %vm2042, 1, 0
  %v2235 = vsel %vm2043, 1, 0
  %v2236 = vsel %vm2044, 1, 0
  %v2237 = vsel %vm2045, 1, 0
  %v2238 = vsel %vm2046, 1, 0
  %v2239 = vsel %vm2047, 1, 0
  %v2240 = vsel %vm2048, 1, 0
  %v2241 = vsel %vm2049, 1, 0
  %v2242 = vsel %vm2050, 1, 0
  %v2243 = vsel %vm2051, 1, 0
  %v2244 = vsel %vm2052, 1, 0
  %v2245 = vsel %vm2053, 1, 0
  %v2246 = vsel %vm2054, 1, 0
  %v2247 = vsel %vm2055, 1, 0
  %v2248 = vsel %vm2056, 1, 0
  %v2249 = vsel %vm2057, 1, 0
  %v2250 = vsel %vm2058, 1, 0
  %v2251 = vsel %vm2059, 1, 0
  %v2252 = vcvt.s32.f32 %v2220
  %v2253 = vcvt.s32.f32 %v2221
  %v2254 = vcvt.s32.f32 %v2222
  %v2255 = vcvt.s32.f32 %v2223
  %v2256 = vcvt.s32.f32 %v2224
  %v2257 = vcvt.s32.f32 %v2225
  %v2258 = vcvt.s32.f32 %v2226
  %v2259 = vcvt.s32.f32 %v2227
  %v2260 = vcvt.s32.f32 %v2228
  %v2261 = vcvt.s32.f32 %v2229
  %v2262 = vcvt.s32.f32 %v2230
  %v2263 = vcvt.s32.f32 %v2231
  %v2264 = vcvt.s32.f32 %v2232
  %v2265 = vcvt.s32.f32 %v2233
  %v2266 = vcvt.s32.f32 %v2234
  %v2267 = vcvt.s32.f32 %v2235
  %v2268 = vcvt.s32.f32 %v2236
  %v2269 = vcvt.s32.f32 %v2237
  %v2270 = vcvt.s32.f32 %v2238
  %v2271 = vcvt.s32.f32 %v2239
  %v2272 = vcvt.s32.f32 %v2240
  %v2273 = vcvt.s32.f32 %v2241
  %v2274 = vcvt.s32.f32 %v2242
  %v2275 = vcvt.s32.f32 %v2243
  %v2276 = vcvt.s32.f32 %v2244
  %v2277 = vcvt.s32.f32 %v2245
  %v2278 = vcvt.s32.f32 %v2246
  %v2279 = vcvt.s32.f32 %v2247
  %v2280 = vcvt.s32.f32 %v2248
  %v2281 = vcvt.s32.f32 %v2249
  %v2282 = vcvt.s32.f32 %v2250
  %v2283 = vcvt.s32.f32 %v2251
  %vm2284 = vcmp.le.s32.totalorder %v1772, 6
  %vm2285 = vcmp.le.s32.totalorder %v1773, 6
  %vm2286 = vcmp.le.s32.totalorder %v1774, 6
  %vm2287 = vcmp.le.s32.totalorder %v1775, 6
  %vm2288 = vcmp.le.s32.totalorder %v1776, 6
  %vm2289 = vcmp.le.s32.totalorder %v1777, 6
  %vm2290 = vcmp.le.s32.totalorder %v1778, 6
  %vm2291 = vcmp.le.s32.totalorder %v1779, 6
  %vm2292 = vcmp.le.s32.totalorder %v1780, 6
  %vm2293 = vcmp.le.s32.totalorder %v1781, 6
  %vm2294 = vcmp.le.s32.totalorder %v1782, 6
  %vm2295 = vcmp.le.s32.totalorder %v1783, 6
  %vm2296 = vcmp.le.s32.totalorder %v1784, 6
  %vm2297 = vcmp.le.s32.totalorder %v1785, 6
  %vm2298 = vcmp.le.s32.totalorder %v1786, 6
  %vm2299 = vcmp.le.s32.totalorder %v1787, 6
  %vm2300 = vcmp.le.s32.totalorder %v1788, 6
  %vm2301 = vcmp.le.s32.totalorder %v1789, 6
  %vm2302 = vcmp.le.s32.totalorder %v1790, 6
  %vm2303 = vcmp.le.s32.totalorder %v1791, 6
  %vm2304 = vcmp.le.s32.totalorder %v1792, 6
  %vm2305 = vcmp.le.s32.totalorder %v1793, 6
  %vm2306 = vcmp.le.s32.totalorder %v1794, 6
  %vm2307 = vcmp.le.s32.totalorder %v1795, 6
  %vm2308 = vcmp.le.s32.totalorder %v1796, 6
  %vm2309 = vcmp.le.s32.totalorder %v1797, 6
  %vm2310 = vcmp.le.s32.totalorder %v1798, 6
  %vm2311 = vcmp.le.s32.totalorder %v1799, 6
  %vm2312 = vcmp.le.s32.totalorder %v1800, 6
  %vm2313 = vcmp.le.s32.totalorder %v1801, 6
  %vm2314 = vcmp.le.s32.totalorder %v1802, 6
  %vm2315 = vcmp.le.s32.totalorder %v1803, 6
  %vm2316 = vmand %vm2284, %vm1836
  %vm2317 = vmand %vm2285, %vm1837
  %vm2318 = vmand %vm2286, %vm1838
  %vm2319 = vmand %vm2287, %vm1839
  %vm2320 = vmand %vm2288, %vm1840
  %vm2321 = vmand %vm2289, %vm1841
  %vm2322 = vmand %vm2290, %vm1842
  %vm2323 = vmand %vm2291, %vm1843
  %vm2324 = vmand %vm2292, %vm1844
  %vm2325 = vmand %vm2293, %vm1845
  %vm2326 = vmand %vm2294, %vm1846
  %vm2327 = vmand %vm2295, %vm1847
  %vm2328 = vmand %vm2296, %vm1848
  %vm2329 = vmand %vm2297, %vm1849
  %vm2330 = vmand %vm2298, %vm1850
  %vm2331 = vmand %vm2299, %vm1851
  %vm2332 = vmand %vm2300, %vm1852
  %vm2333 = vmand %vm2301, %vm1853
  %vm2334 = vmand %vm2302, %vm1854
  %vm2335 = vmand %vm2303, %vm1855
  %vm2336 = vmand %vm2304, %vm1856
  %vm2337 = vmand %vm2305, %vm1857
  %vm2338 = vmand %vm2306, %vm1858
  %vm2339 = vmand %vm2307, %vm1859
  %vm2340 = vmand %vm2308, %vm1860
  %vm2341 = vmand %vm2309, %vm1861
  %vm2342 = vmand %vm2310, %vm1862
  %vm2343 = vmand %vm2311, %vm1863
  %vm2344 = vmand %vm2312, %vm1864
  %vm2345 = vmand %vm2313, %vm1865
  %vm2346 = vmand %vm2314, %vm1866
  %vm2347 = vmand %vm2315, %vm1867
  %v2348 = vsel %vm2316, 1, 0
  %v2349 = vsel %vm2317, 1, 0
  %v2350 = vsel %vm2318, 1, 0
  %v2351 = vsel %vm2319, 1, 0
  %v2352 = vsel %vm2320, 1, 0
  %v2353 = vsel %vm2321, 1, 0
  %v2354 = vsel %vm2322, 1, 0
  %v2355 = vsel %vm2323, 1, 0
  %v2356 = vsel %vm2324, 1, 0
  %v2357 = vsel %vm2325, 1, 0
  %v2358 = vsel %vm2326, 1, 0
  %v2359 = vsel %vm2327, 1, 0
  %v2360 = vsel %vm2328, 1, 0
  %v2361 = vsel %vm2329, 1, 0
  %v2362 = vsel %vm2330, 1, 0
  %v2363 = vsel %vm2331, 1, 0
  %v2364 = vsel %vm2332, 1, 0
  %v2365 = vsel %vm2333, 1, 0
  %v2366 = vsel %vm2334, 1, 0
  %v2367 = vsel %vm2335, 1, 0
  %v2368 = vsel %vm2336, 1, 0
  %v2369 = vsel %vm2337, 1, 0
  %v2370 = vsel %vm2338, 1, 0
  %v2371 = vsel %vm2339, 1, 0
  %v2372 = vsel %vm2340, 1, 0
  %v2373 = vsel %vm2341, 1, 0
  %v2374 = vsel %vm2342, 1, 0
  %v2375 = vsel %vm2343, 1, 0
  %v2376 = vsel %vm2344, 1, 0
  %v2377 = vsel %vm2345, 1, 0
  %v2378 = vsel %vm2346, 1, 0
  %v2379 = vsel %vm2347, 1, 0
  %v2380 = vcvt.s32.f32 %v2348
  %v2381 = vcvt.s32.f32 %v2349
  %v2382 = vcvt.s32.f32 %v2350
  %v2383 = vcvt.s32.f32 %v2351
  %v2384 = vcvt.s32.f32 %v2352
  %v2385 = vcvt.s32.f32 %v2353
  %v2386 = vcvt.s32.f32 %v2354
  %v2387 = vcvt.s32.f32 %v2355
  %v2388 = vcvt.s32.f32 %v2356
  %v2389 = vcvt.s32.f32 %v2357
  %v2390 = vcvt.s32.f32 %v2358
  %v2391 = vcvt.s32.f32 %v2359
  %v2392 = vcvt.s32.f32 %v2360
  %v2393 = vcvt.s32.f32 %v2361
  %v2394 = vcvt.s32.f32 %v2362
  %v2395 = vcvt.s32.f32 %v2363
  %v2396 = vcvt.s32.f32 %v2364
  %v2397 = vcvt.s32.f32 %v2365
  %v2398 = vcvt.s32.f32 %v2366
  %v2399 = vcvt.s32.f32 %v2367
  %v2400 = vcvt.s32.f32 %v2368
  %v2401 = vcvt.s32.f32 %v2369
  %v2402 = vcvt.s32.f32 %v2370
  %v2403 = vcvt.s32.f32 %v2371
  %v2404 = vcvt.s32.f32 %v2372
  %v2405 = vcvt.s32.f32 %v2373
  %v2406 = vcvt.s32.f32 %v2374
  %v2407 = vcvt.s32.f32 %v2375
  %v2408 = vcvt.s32.f32 %v2376
  %v2409 = vcvt.s32.f32 %v2377
  %v2410 = vcvt.s32.f32 %v2378
  %v2411 = vcvt.s32.f32 %v2379
  %v2412 = vsel %vm2284, 1, 0
  %v2413 = vsel %vm2285, 1, 0
  %v2414 = vsel %vm2286, 1, 0
  %v2415 = vsel %vm2287, 1, 0
  %v2416 = vsel %vm2288, 1, 0
  %v2417 = vsel %vm2289, 1, 0
  %v2418 = vsel %vm2290, 1, 0
  %v2419 = vsel %vm2291, 1, 0
  %v2420 = vsel %vm2292, 1, 0
  %v2421 = vsel %vm2293, 1, 0
  %v2422 = vsel %vm2294, 1, 0
  %v2423 = vsel %vm2295, 1, 0
  %v2424 = vsel %vm2296, 1, 0
  %v2425 = vsel %vm2297, 1, 0
  %v2426 = vsel %vm2298, 1, 0
  %v2427 = vsel %vm2299, 1, 0
  %v2428 = vsel %vm2300, 1, 0
  %v2429 = vsel %vm2301, 1, 0
  %v2430 = vsel %vm2302, 1, 0
  %v2431 = vsel %vm2303, 1, 0
  %v2432 = vsel %vm2304, 1, 0
  %v2433 = vsel %vm2305, 1, 0
  %v2434 = vsel %vm2306, 1, 0
  %v2435 = vsel %vm2307, 1, 0
  %v2436 = vsel %vm2308, 1, 0
  %v2437 = vsel %vm2309, 1, 0
  %v2438 = vsel %vm2310, 1, 0
  %v2439 = vsel %vm2311, 1, 0
  %v2440 = vsel %vm2312, 1, 0
  %v2441 = vsel %vm2313, 1, 0
  %v2442 = vsel %vm2314, 1, 0
  %v2443 = vsel %vm2315, 1, 0
  %v2444 = vcvt.s32.f32 %v2412
  %v2445 = vcvt.s32.f32 %v2413
  %v2446 = vcvt.s32.f32 %v2414
  %v2447 = vcvt.s32.f32 %v2415
  %v2448 = vcvt.s32.f32 %v2416
  %v2449 = vcvt.s32.f32 %v2417
  %v2450 = vcvt.s32.f32 %v2418
  %v2451 = vcvt.s32.f32 %v2419
  %v2452 = vcvt.s32.f32 %v2420
  %v2453 = vcvt.s32.f32 %v2421
  %v2454 = vcvt.s32.f32 %v2422
  %v2455 = vcvt.s32.f32 %v2423
  %v2456 = vcvt.s32.f32 %v2424
  %v2457 = vcvt.s32.f32 %v2425
  %v2458 = vcvt.s32.f32 %v2426
  %v2459 = vcvt.s32.f32 %v2427
  %v2460 = vcvt.s32.f32 %v2428
  %v2461 = vcvt.s32.f32 %v2429
  %v2462 = vcvt.s32.f32 %v2430
  %v2463 = vcvt.s32.f32 %v2431
  %v2464 = vcvt.s32.f32 %v2432
  %v2465 = vcvt.s32.f32 %v2433
  %v2466 = vcvt.s32.f32 %v2434
  %v2467 = vcvt.s32.f32 %v2435
  %v2468 = vcvt.s32.f32 %v2436
  %v2469 = vcvt.s32.f32 %v2437
  %v2470 = vcvt.s32.f32 %v2438
  %v2471 = vcvt.s32.f32 %v2439
  %v2472 = vcvt.s32.f32 %v2440
  %v2473 = vcvt.s32.f32 %v2441
  %v2474 = vcvt.s32.f32 %v2442
  %v2475 = vcvt.s32.f32 %v2443
  %vm2476 = vmand %vm2284, %vm2028
  %vm2477 = vmand %vm2285, %vm2029
  %vm2478 = vmand %vm2286, %vm2030
  %vm2479 = vmand %vm2287, %vm2031
  %vm2480 = vmand %vm2288, %vm2032
  %vm2481 = vmand %vm2289, %vm2033
  %vm2482 = vmand %vm2290, %vm2034
  %vm2483 = vmand %vm2291, %vm2035
  %vm2484 = vmand %vm2292, %vm2036
  %vm2485 = vmand %vm2293, %vm2037
  %vm2486 = vmand %vm2294, %vm2038
  %vm2487 = vmand %vm2295, %vm2039
  %vm2488 = vmand %vm2296, %vm2040
  %vm2489 = vmand %vm2297, %vm2041
  %vm2490 = vmand %vm2298, %vm2042
  %vm2491 = vmand %vm2299, %vm2043
  %vm2492 = vmand %vm2300, %vm2044
  %vm2493 = vmand %vm2301, %vm2045
  %vm2494 = vmand %vm2302, %vm2046
  %vm2495 = vmand %vm2303, %vm2047
  %vm2496 = vmand %vm2304, %vm2048
  %vm2497 = vmand %vm2305, %vm2049
  %vm2498 = vmand %vm2306, %vm2050
  %vm2499 = vmand %vm2307, %vm2051
  %vm2500 = vmand %vm2308, %vm2052
  %vm2501 = vmand %vm2309, %vm2053
  %vm2502 = vmand %vm2310, %vm2054
  %vm2503 = vmand %vm2311, %vm2055
  %vm2504 = vmand %vm2312, %vm2056
  %vm2505 = vmand %vm2313, %vm2057
  %vm2506 = vmand %vm2314, %vm2058
  %vm2507 = vmand %vm2315, %vm2059
  %v2508 = vsel %vm2476, 1, 0
  %v2509 = vsel %vm2477, 1, 0
  %v2510 = vsel %vm2478, 1, 0
  %v2511 = vsel %vm2479, 1, 0
  %v2512 = vsel %vm2480, 1, 0
  %v2513 = vsel %vm2481, 1, 0
  %v2514 = vsel %vm2482, 1, 0
  %v2515 = vsel %vm2483, 1, 0
  %v2516 = vsel %vm2484, 1, 0
  %v2517 = vsel %vm2485, 1, 0
  %v2518 = vsel %vm2486, 1, 0
  %v2519 = vsel %vm2487, 1, 0
  %v2520 = vsel %vm2488, 1, 0
  %v2521 = vsel %vm2489, 1, 0
  %v2522 = vsel %vm2490, 1, 0
  %v2523 = vsel %vm2491, 1, 0
  %v2524 = vsel %vm2492, 1, 0
  %v2525 = vsel %vm2493, 1, 0
  %v2526 = vsel %vm2494, 1, 0
  %v2527 = vsel %vm2495, 1, 0
  %v2528 = vsel %vm2496, 1, 0
  %v2529 = vsel %vm2497, 1, 0
  %v2530 = vsel %vm2498, 1, 0
  %v2531 = vsel %vm2499, 1, 0
  %v2532 = vsel %vm2500, 1, 0
  %v2533 = vsel %vm2501, 1, 0
  %v2534 = vsel %vm2502, 1, 0
  %v2535 = vsel %vm2503, 1, 0
  %v2536 = vsel %vm2504, 1, 0
  %v2537 = vsel %vm2505, 1, 0
  %v2538 = vsel %vm2506, 1, 0
  %v2539 = vsel %vm2507, 1, 0
  %v2540 = vcvt.s32.f32 %v2508
  %v2541 = vcvt.s32.f32 %v2509
  %v2542 = vcvt.s32.f32 %v2510
  %v2543 = vcvt.s32.f32 %v2511
  %v2544 = vcvt.s32.f32 %v2512
  %v2545 = vcvt.s32.f32 %v2513
  %v2546 = vcvt.s32.f32 %v2514
  %v2547 = vcvt.s32.f32 %v2515
  %v2548 = vcvt.s32.f32 %v2516
  %v2549 = vcvt.s32.f32 %v2517
  %v2550 = vcvt.s32.f32 %v2518
  %v2551 = vcvt.s32.f32 %v2519
  %v2552 = vcvt.s32.f32 %v2520
  %v2553 = vcvt.s32.f32 %v2521
  %v2554 = vcvt.s32.f32 %v2522
  %v2555 = vcvt.s32.f32 %v2523
  %v2556 = vcvt.s32.f32 %v2524
  %v2557 = vcvt.s32.f32 %v2525
  %v2558 = vcvt.s32.f32 %v2526
  %v2559 = vcvt.s32.f32 %v2527
  %v2560 = vcvt.s32.f32 %v2528
  %v2561 = vcvt.s32.f32 %v2529
  %v2562 = vcvt.s32.f32 %v2530
  %v2563 = vcvt.s32.f32 %v2531
  %v2564 = vcvt.s32.f32 %v2532
  %v2565 = vcvt.s32.f32 %v2533
  %v2566 = vcvt.s32.f32 %v2534
  %v2567 = vcvt.s32.f32 %v2535
  %v2568 = vcvt.s32.f32 %v2536
  %v2569 = vcvt.s32.f32 %v2537
  %v2570 = vcvt.s32.f32 %v2538
  %v2571 = vcvt.s32.f32 %v2539
  %v2572 = vld [vmem:[#allocation2 + $0x7] sm:$0xff]
  %v2573 = vld [vmem:[#allocation2 + $0xf] sm:$0xff]
  %v2574 = vld [vmem:[#allocation2 + $0x17] sm:$0xff]
  %v2575 = vld [vmem:[#allocation2 + $0x1f] sm:$0xff]
  %v2576 = vld [vmem:[#allocation2 + $0x27] sm:$0xff]
  %v2577 = vld [vmem:[#allocation2 + $0x2f] sm:$0xff]
  %v2578 = vld [vmem:[#allocation2 + $0x37] sm:$0xff]
  %v2579 = vld [vmem:[#allocation2 + $0x3f] sm:$0xff]
  %v2580 = vld [vmem:[#allocation2 + $0x47] sm:$0xff]
  %v2581 = vld [vmem:[#allocation2 + $0x4f] sm:$0xff]
  %v2582 = vld [vmem:[#allocation2 + $0x57] sm:$0xff]
  %v2583 = vld [vmem:[#allocation2 + $0x5f] sm:$0xff]
  %v2584 = vld [vmem:[#allocation2 + $0x67] sm:$0xff]
  %v2585 = vld [vmem:[#allocation2 + $0x6f] sm:$0xff]
  %v2586 = vld [vmem:[#allocation2 + $0x77] sm:$0xff]
  %v2587 = vld [vmem:[#allocation2 + $0x7f] sm:$0xff]
  %v2588 = vld [vmem:[#allocation2 + $0x87] sm:$0xff]
  %v2589 = vld [vmem:[#allocation2 + $0x8f] sm:$0xff]
  %v2590 = vld [vmem:[#allocation2 + $0x97] sm:$0xff]
  %v2591 = vld [vmem:[#allocation2 + $0x9f] sm:$0xff]
  %v2592 = vld [vmem:[#allocation2 + $0xa7] sm:$0xff]
  %v2593 = vld [vmem:[#allocation2 + $0xaf] sm:$0xff]
  %v2594 = vld [vmem:[#allocation2 + $0xb7] sm:$0xff]
  %v2595 = vld [vmem:[#allocation2 + $0xbf] sm:$0xff]
  %v2596 = vld [vmem:[#allocation2 + $0xc7] sm:$0xff]
  %v2597 = vld [vmem:[#allocation2 + $0xcf] sm:$0xff]
  %v2598 = vld [vmem:[#allocation2 + $0xd7] sm:$0xff]
  %v2599 = vld [vmem:[#allocation2 + $0xdf] sm:$0xff]
  %v2600 = vld [vmem:[#allocation2 + $0xe7] sm:$0xff]
  %v2601 = vld [vmem:[#allocation2 + $0xef] sm:$0xff]
  %v2602 = vld [vmem:[#allocation2 + $0xf7] sm:$0xff]
  %v2603 = vld [vmem:[#allocation2 + $0xff] sm:$0xff]
  %v2604 = vmul.f32 %v2572, %v1932
  %v2605 = vmul.f32 %v2573, %v1933
  %v2606 = vmul.f32 %v2574, %v1934
  %v2607 = vmul.f32 %v2575, %v1935
  %v2608 = vmul.f32 %v2576, %v1936
  %v2609 = vmul.f32 %v2577, %v1937
  %v2610 = vmul.f32 %v2578, %v1938
  %v2611 = vmul.f32 %v2579, %v1939
  %v2612 = vmul.f32 %v2580, %v1940
  %v2613 = vmul.f32 %v2581, %v1941
  %v2614 = vmul.f32 %v2582, %v1942
  %v2615 = vmul.f32 %v2583, %v1943
  %v2616 = vmul.f32 %v2584, %v1944
  %v2617 = vmul.f32 %v2585, %v1945
  %v2618 = vmul.f32 %v2586, %v1946
  %v2619 = vmul.f32 %v2587, %v1947
  %v2620 = vmul.f32 %v2588, %v1948
  %v2621 = vmul.f32 %v2589, %v1949
  %v2622 = vmul.f32 %v2590, %v1950
  %v2623 = vmul.f32 %v2591, %v1951
  %v2624 = vmul.f32 %v2592, %v1952
  %v2625 = vmul.f32 %v2593, %v1953
  %v2626 = vmul.f32 %v2594, %v1954
  %v2627 = vmul.f32 %v2595, %v1955
  %v2628 = vmul.f32 %v2596, %v1956
  %v2629 = vmul.f32 %v2597, %v1957
  %v2630 = vmul.f32 %v2598, %v1958
  %v2631 = vmul.f32 %v2599, %v1959
  %v2632 = vmul.f32 %v2600, %v1960
  %v2633 = vmul.f32 %v2601, %v1961
  %v2634 = vmul.f32 %v2602, %v1962
  %v2635 = vmul.f32 %v2603, %v1963
  %v2636 = vld [vmem:[%s3] sm:$0xff]
  %v2637 = vld [vmem:[%s3 + $0x8] sm:$0xff]
  %v2638 = vld [vmem:[%s3 + $0x10] sm:$0xff]
  %v2639 = vld [vmem:[%s3 + $0x18] sm:$0xff]
  %v2640 = vld [vmem:[#allocation2 + $0x8] sm:$0xff]
  %v2641 = vld [vmem:[#allocation2 + $0x10] sm:$0xff]
  %v2642 = vld [vmem:[#allocation2 + $0x18] sm:$0xff]
  %v2643 = vld [vmem:[#allocation2 + $0x20] sm:$0xff]
  %v2644 = vld [vmem:[#allocation2 + $0x28] sm:$0xff]
  %v2645 = vld [vmem:[#allocation2 + $0x30] sm:$0xff]
  %v2646 = vld [vmem:[#allocation2 + $0x38] sm:$0xff]
  %v2647 = vld [vmem:[#allocation2 + $0x40] sm:$0xff]
  %v2648 = vld [vmem:[#allocation2 + $0x48] sm:$0xff]
  %v2649 = vld [vmem:[#allocation2 + $0x50] sm:$0xff]
  %v2650 = vld [vmem:[#allocation2 + $0x58] sm:$0xff]
  %v2651 = vld [vmem:[#allocation2 + $0x60] sm:$0xff]
  %v2652 = vld [vmem:[#allocation2 + $0x68] sm:$0xff]
  %v2653 = vld [vmem:[#allocation2 + $0x70] sm:$0xff]
  %v2654 = vld [vmem:[#allocation2 + $0x78] sm:$0xff]
  %v2655 = vld [vmem:[#allocation2 + $0x80] sm:$0xff]
  %v2656 = vld [vmem:[#allocation2 + $0x88] sm:$0xff]
  %v2657 = vld [vmem:[#allocation2 + $0x90] sm:$0xff]
  %v2658 = vld [vmem:[#allocation2 + $0x98] sm:$0xff]
  %v2659 = vld [vmem:[#allocation2 + $0xa0] sm:$0xff]
  %v2660 = vld [vmem:[#allocation2 + $0xa8] sm:$0xff]
  %v2661 = vld [vmem:[#allocation2 + $0xb0] sm:$0xff]
  %v2662 = vld [vmem:[#allocation2 + $0xb8] sm:$0xff]
  %v2663 = vld [vmem:[#allocation2 + $0xc0] sm:$0xff]
  %v2664 = vld [vmem:[#allocation2 + $0xc8] sm:$0xff]
  %v2665 = vld [vmem:[#allocation2 + $0xd0] sm:$0xff]
  %v2666 = vld [vmem:[#allocation2 + $0xd8] sm:$0xff]
  %v2667 = vld [vmem:[#allocation2 + $0xe0] sm:$0xff]
  %v2668 = vld [vmem:[#allocation2 + $0xe8] sm:$0xff]
  %v2669 = vld [vmem:[#allocation2 + $0xf0] sm:$0xff]
  %v2670 = vld [vmem:[#allocation2 + $0xf8] sm:$0xff]
  %v2671 = vld [vmem:[#allocation2 + $0x100] sm:$0xff]
  %v2672 = vmul.f32 %v2640, %v1996
  %v2673 = vmul.f32 %v2641, %v1997
  %v2674 = vmul.f32 %v2642, %v1998
  %v2675 = vmul.f32 %v2643, %v1999
  %v2676 = vmul.f32 %v2644, %v2000
  %v2677 = vmul.f32 %v2645, %v2001
  %v2678 = vmul.f32 %v2646, %v2002
  %v2679 = vmul.f32 %v2647, %v2003
  %v2680 = vmul.f32 %v2648, %v2004
  %v2681 = vmul.f32 %v2649, %v2005
  %v2682 = vmul.f32 %v2650, %v2006
  %v2683 = vmul.f32 %v2651, %v2007
  %v2684 = vmul.f32 %v2652, %v2008
  %v2685 = vmul.f32 %v2653, %v2009
  %v2686 = vmul.f32 %v2654, %v2010
  %v2687 = vmul.f32 %v2655, %v2011
  %v2688 = vmul.f32 %v2656, %v2012
  %v2689 = vmul.f32 %v2657, %v2013
  %v2690 = vmul.f32 %v2658, %v2014
  %v2691 = vmul.f32 %v2659, %v2015
  %v2692 = vmul.f32 %v2660, %v2016
  %v2693 = vmul.f32 %v2661, %v2017
  %v2694 = vmul.f32 %v2662, %v2018
  %v2695 = vmul.f32 %v2663, %v2019
  %v2696 = vmul.f32 %v2664, %v2020
  %v2697 = vmul.f32 %v2665, %v2021
  %v2698 = vmul.f32 %v2666, %v2022
  %v2699 = vmul.f32 %v2667, %v2023
  %v2700 = vmul.f32 %v2668, %v2024
  %v2701 = vmul.f32 %v2669, %v2025
  %v2702 = vmul.f32 %v2670, %v2026
  %v2703 = vmul.f32 %v2671, %v2027
  %s2704 = scalar_lea.vmem %s3, 32
  %v2705 = vld [vmem:[%s2704] sm:$0xff]
  %v2706 = vld [vmem:[%s2704 + $0x8] sm:$0xff]
  %v2707 = vld [vmem:[%s2704 + $0x10] sm:$0xff]
  %v2708 = vld [vmem:[%s2704 + $0x18] sm:$0xff]
  %v2710 = vsel %vm1638, %v2672, 0
  %v2713 = vsel %vm1638, %v2673, 0
  %v2716 = vsel %vm1638, %v2674, 0
  %v2719 = vsel %vm1638, %v2675, 0
  %v2722 = vsel %vm1638, %v2676, 0
  %v2725 = vsel %vm1638, %v2677, 0
  %v2728 = vsel %vm1638, %v2678, 0
  %v2731 = vsel %vm1638, %v2679, 0
  %v2734 = vsel %vm1638, %v2680, 0
  %v2737 = vsel %vm1638, %v2681, 0
  %v2740 = vsel %vm1638, %v2682, 0
  %v2743 = vsel %vm1638, %v2683, 0
  %v2746 = vsel %vm1638, %v2684, 0
  %v2749 = vsel %vm1638, %v2685, 0
  %v2752 = vsel %vm1638, %v2686, 0
  %v2755 = vsel %vm1638, %v2687, 0
  %v2758 = vsel %vm1638, %v2688, 0
  %v2761 = vsel %vm1638, %v2689, 0
  %v2764 = vsel %vm1638, %v2690, 0
  %v2767 = vsel %vm1638, %v2691, 0
  %v2770 = vsel %vm1638, %v2692, 0
  %v2773 = vsel %vm1638, %v2693, 0
  %v2776 = vsel %vm1638, %v2694, 0
  %v2779 = vsel %vm1638, %v2695, 0
  %v2782 = vsel %vm1638, %v2696, 0
  %v2785 = vsel %vm1638, %v2697, 0
  %v2788 = vsel %vm1638, %v2698, 0
  %v2791 = vsel %vm1638, %v2699, 0
  %v2794 = vsel %vm1638, %v2700, 0
  %v2797 = vsel %vm1638, %v2701, 0
  %v2800 = vsel %vm1638, %v2702, 0
  %v2803 = vsel %vm1638, %v2703, 0
  %2805 = vmatprep.subr.mxu0 0.0
  %2806 = vmatpush1.msra.mxu0 %v2705
  %2807 = vmatprep.subr.mxu0 0.0
  %2808 = vmatpush1.msra.mxu0 %v2706
  %2809 = vmatprep.subr.mxu0 0.0
  %2810 = vmatpush1.msra.mxu0 %v2707
  %2811 = vmatprep.subr.mxu0 0.0
  %2812 = vmatpush1.msra.mxu0 %v2708
  %2813 = vmatprep.subr.mxu0 0.0
  %2814 = vmatpush1.msra.mxu0 0.0
  %2815 = vmatprep.subr.mxu0 0.0
  %2816 = vmatpush1.msra.mxu0 0.0
  %2817 = vmatprep.subr.mxu0 0.0
  %2818 = vmatpush1.msra.mxu0 0.0
  %2819 = vmatprep.subr.mxu0 0.0
  %2820 = vmatpush1.msra.mxu0 0.0
  %2821 = vmatprep.subr.mxu0 0.0
  %2822 = vmatpush1.msra.mxu0 0.0
  %2823 = vmatprep.subr.mxu0 0.0
  %2824 = vmatpush1.msra.mxu0 0.0
  %2825 = vmatprep.subr.mxu0 0.0
  %2826 = vmatpush1.msra.mxu0 0.0
  %2827 = vmatprep.subr.mxu0 0.0
  %2828 = vmatpush1.msra.mxu0 0.0
  %2829 = vmatprep.subr.mxu0 0.0
  %2830 = vmatpush1.msra.mxu0 0.0
  %2831 = vmatprep.subr.mxu0 0.0
  %2832 = vmatpush1.msra.mxu0 0.0
  %2833 = vmatprep.subr.mxu0 0.0
  %2834 = vmatpush1.msra.mxu0 0.0
  %2835 = vmatprep.subr.mxu0 0.0
  %2836 = vmatpush1.msra.mxu0 0.0
  %2837 = vmatprep.subr.mxu0 0.0
  %2838 = vmatpush1.msra.mxu0 0.0
  %2839 = vmatprep.subr.mxu0 0.0
  %2840 = vmatpush1.msra.mxu0 0.0
  %2841 = vmatprep.subr.mxu0 0.0
  %2842 = vmatpush1.msra.mxu0 0.0
  %2843 = vmatprep.subr.mxu0 0.0
  %2844 = vmatpush1.msra.mxu0 0.0
  %2845 = vmatprep.subr.mxu0 0.0
  %2846 = vmatpush1.msra.mxu0 0.0
  %2847 = vmatprep.subr.mxu0 0.0
  %2848 = vmatpush1.msra.mxu0 0.0
  %2849 = vmatprep.subr.mxu0 0.0
  %2850 = vmatpush1.msra.mxu0 0.0
  %2851 = vmatprep.subr.mxu0 0.0
  %2852 = vmatpush1.msra.mxu0 0.0
  %2853 = vmatprep.subr.mxu0 0.0
  %2854 = vmatpush1.msra.mxu0 0.0
  %2855 = vmatprep.subr.mxu0 0.0
  %2856 = vmatpush1.msra.mxu0 0.0
  %2857 = vmatprep.subr.mxu0 0.0
  %2858 = vmatpush1.msra.mxu0 0.0
  %2859 = vmatprep.subr.mxu0 0.0
  %2860 = vmatpush1.msra.mxu0 0.0
  %2861 = vmatprep.subr.mxu0 0.0
  %2862 = vmatpush1.msra.mxu0 0.0
  %2863 = vmatprep.subr.mxu0 0.0
  %2864 = vmatpush1.msra.mxu0 0.0
  %2865 = vmatprep.subr.mxu0 0.0
  %2866 = vmatpush1.msra.mxu0 0.0
  %2867 = vmatprep.subr.mxu0 0.0
  %2868 = vmatpush1.msra.mxu0 0.0
  %2869 = vmatprep.mubr.f32.mxu0 0.0
  %2870 = vmatmul.mubr.f32.gmra.mrb[0].mxu0 %v2710
  %v2871 = vpop.f32.mrb[0].mxu0
  %v2872 = vadd.f32 0.0, %v2871
  %v2873 = vpop.f32.mrb[0].mxu0
  %2874 = vmatprep.mubr.f32.mxu0 0.0
  %2875 = vmatmul.mubr.f32.gmra.mrb[0].mxu0 %v2713
  %v2876 = vpop.f32.mrb[0].mxu0
  %v2877 = vadd.f32 0.0, %v2876
  %v2878 = vpop.f32.mrb[0].mxu0
  %2879 = vmatprep.mubr.f32.mxu0 0.0
  %2880 = vmatmul.mubr.f32.gmra.mrb[0].mxu0 %v2716
  %v2881 = vpop.f32.mrb[0].mxu0
  %v2882 = vadd.f32 0.0, %v2881
  %v2883 = vpop.f32.mrb[0].mxu0
  %2884 = vmatprep.mubr.f32.mxu0 0.0
  %2885 = vmatmul.mubr.f32.gmra.mrb[0].mxu0 %v2719
  %v2886 = vpop.f32.mrb[0].mxu0
  %v2887 = vadd.f32 0.0, %v2886
  %v2888 = vpop.f32.mrb[0].mxu0
  %2889 = vmatprep.mubr.f32.mxu0 0.0
  %2890 = vmatmul.mubr.f32.gmra.mrb[0].mxu0 %v2722
  %v2891 = vpop.f32.mrb[0].mxu0
  %v2892 = vadd.f32 0.0, %v2891
  %v2893 = vpop.f32.mrb[0].mxu0
  %2894 = vmatprep.mubr.f32.mxu0 0.0
  %2895 = vmatmul.mubr.f32.gmra.mrb[0].mxu0 %v2725
  %v2896 = vpop.f32.mrb[0].mxu0
  %v2897 = vadd.f32 0.0, %v2896
  %v2898 = vpop.f32.mrb[0].mxu0
  %2899 = vmatprep.mubr.f32.mxu0 0.0
  %2900 = vmatmul.mubr.f32.gmra.mrb[0].mxu0 %v2728
  %v2901 = vpop.f32.mrb[0].mxu0
  %v2902 = vadd.f32 0.0, %v2901
  %v2903 = vpop.f32.mrb[0].mxu0
  %2904 = vmatprep.mubr.f32.mxu0 0.0
  %2905 = vmatmul.mubr.f32.gmra.mrb[0].mxu0 %v2731
  %v2906 = vpop.f32.mrb[0].mxu0
  %v2907 = vadd.f32 0.0, %v2906
  %v2908 = vpop.f32.mrb[0].mxu0
  %2909 = vmatprep.mubr.f32.mxu0 0.0
  %2910 = vmatmul.mubr.f32.gmra.mrb[0].mxu0 %v2734
  %v2911 = vpop.f32.mrb[0].mxu0
  %v2912 = vadd.f32 0.0, %v2911
  %v2913 = vpop.f32.mrb[0].mxu0
  %2914 = vmatprep.mubr.f32.mxu0 0.0
  %2915 = vmatmul.mubr.f32.gmra.mrb[0].mxu0 %v2737
  %v2916 = vpop.f32.mrb[0].mxu0
  %v2917 = vadd.f32 0.0, %v2916
  %v2918 = vpop.f32.mrb[0].mxu0
  %2919 = vmatprep.mubr.f32.mxu0 0.0
  %2920 = vmatmul.mubr.f32.gmra.mrb[0].mxu0 %v2740
  %v2921 = vpop.f32.mrb[0].mxu0
  %v2922 = vadd.f32 0.0, %v2921
  %v2923 = vpop.f32.mrb[0].mxu0
  %2924 = vmatprep.mubr.f32.mxu0 0.0
  %2925 = vmatmul.mubr.f32.gmra.mrb[0].mxu0 %v2743
  %v2926 = vpop.f32.mrb[0].mxu0
  %v2927 = vadd.f32 0.0, %v2926
  %v2928 = vpop.f32.mrb[0].mxu0
  %2929 = vmatprep.mubr.f32.mxu0 0.0
  %2930 = vmatmul.mubr.f32.gmra.mrb[0].mxu0 %v2746
  %v2931 = vpop.f32.mrb[0].mxu0
  %v2932 = vadd.f32 0.0, %v2931
  %v2933 = vpop.f32.mrb[0].mxu0
  %2934 = vmatprep.mubr.f32.mxu0 0.0
  %2935 = vmatmul.mubr.f32.gmra.mrb[0].mxu0 %v2749
  %v2936 = vpop.f32.mrb[0].mxu0
  %v2937 = vadd.f32 0.0, %v2936
  %v2938 = vpop.f32.mrb[0].mxu0
  %2939 = vmatprep.mubr.f32.mxu0 0.0
  %2940 = vmatmul.mubr.f32.gmra.mrb[0].mxu0 %v2752
  %v2941 = vpop.f32.mrb[0].mxu0
  %v2942 = vadd.f32 0.0, %v2941
  %v2943 = vpop.f32.mrb[0].mxu0
  %2944 = vmatprep.mubr.f32.mxu0 0.0
  %2945 = vmatmul.mubr.f32.gmra.mrb[0].mxu0 %v2755
  %v2946 = vpop.f32.mrb[0].mxu0
  %v2947 = vadd.f32 0.0, %v2946
  %v2948 = vpop.f32.mrb[0].mxu0
  %2949 = vmatprep.mubr.f32.mxu0 0.0
  %2950 = vmatmul.mubr.f32.gmra.mrb[0].mxu0 %v2758
  %v2951 = vpop.f32.mrb[0].mxu0
  %v2952 = vadd.f32 0.0, %v2951
  %v2953 = vpop.f32.mrb[0].mxu0
  %2954 = vmatprep.mubr.f32.mxu0 0.0
  %2955 = vmatmul.mubr.f32.gmra.mrb[0].mxu0 %v2761
  %v2956 = vpop.f32.mrb[0].mxu0
  %v2957 = vadd.f32 0.0, %v2956
  %v2958 = vpop.f32.mrb[0].mxu0
  %2959 = vmatprep.mubr.f32.mxu0 0.0
  %2960 = vmatmul.mubr.f32.gmra.mrb[0].mxu0 %v2764
  %v2961 = vpop.f32.mrb[0].mxu0
  %v2962 = vadd.f32 0.0, %v2961
  %v2963 = vpop.f32.mrb[0].mxu0
  %2964 = vmatprep.mubr.f32.mxu0 0.0
  %2965 = vmatmul.mubr.f32.gmra.mrb[0].mxu0 %v2767
  %v2966 = vpop.f32.mrb[0].mxu0
  %v2967 = vadd.f32 0.0, %v2966
  %v2968 = vpop.f32.mrb[0].mxu0
  %2969 = vmatprep.mubr.f32.mxu0 0.0
  %2970 = vmatmul.mubr.f32.gmra.mrb[0].mxu0 %v2770
  %v2971 = vpop.f32.mrb[0].mxu0
  %v2972 = vadd.f32 0.0, %v2971
  %v2973 = vpop.f32.mrb[0].mxu0
  %2974 = vmatprep.mubr.f32.mxu0 0.0
  %2975 = vmatmul.mubr.f32.gmra.mrb[0].mxu0 %v2773
  %v2976 = vpop.f32.mrb[0].mxu0
  %v2977 = vadd.f32 0.0, %v2976
  %v2978 = vpop.f32.mrb[0].mxu0
  %2979 = vmatprep.mubr.f32.mxu0 0.0
  %2980 = vmatmul.mubr.f32.gmra.mrb[0].mxu0 %v2776
  %v2981 = vpop.f32.mrb[0].mxu0
  %v2982 = vadd.f32 0.0, %v2981
  %v2983 = vpop.f32.mrb[0].mxu0
  %2984 = vmatprep.mubr.f32.mxu0 0.0
  %2985 = vmatmul.mubr.f32.gmra.mrb[0].mxu0 %v2779
  %v2986 = vpop.f32.mrb[0].mxu0
  %v2987 = vadd.f32 0.0, %v2986
  %v2988 = vpop.f32.mrb[0].mxu0
  %2989 = vmatprep.mubr.f32.mxu0 0.0
  %2990 = vmatmul.mubr.f32.gmra.mrb[0].mxu0 %v2782
  %v2991 = vpop.f32.mrb[0].mxu0
  %v2992 = vadd.f32 0.0, %v2991
  %v2993 = vpop.f32.mrb[0].mxu0
  %2994 = vmatprep.mubr.f32.mxu0 0.0
  %2995 = vmatmul.mubr.f32.gmra.mrb[0].mxu0 %v2785
  %v2996 = vpop.f32.mrb[0].mxu0
  %v2997 = vadd.f32 0.0, %v2996
  %v2998 = vpop.f32.mrb[0].mxu0
  %2999 = vmatprep.mubr.f32.mxu0 0.0
  %3000 = vmatmul.mubr.f32.gmra.mrb[0].mxu0 %v2788
  %v3001 = vpop.f32.mrb[0].mxu0
  %v3002 = vadd.f32 0.0, %v3001
  %v3003 = vpop.f32.mrb[0].mxu0
  %3004 = vmatprep.mubr.f32.mxu0 0.0
  %3005 = vmatmul.mubr.f32.gmra.mrb[0].mxu0 %v2791
  %v3006 = vpop.f32.mrb[0].mxu0
  %v3007 = vadd.f32 0.0, %v3006
  %v3008 = vpop.f32.mrb[0].mxu0
  %3009 = vmatprep.mubr.f32.mxu0 0.0
  %3010 = vmatmul.mubr.f32.gmra.mrb[0].mxu0 %v2794
  %v3011 = vpop.f32.mrb[0].mxu0
  %v3012 = vadd.f32 0.0, %v3011
  %v3013 = vpop.f32.mrb[0].mxu0
  %3014 = vmatprep.mubr.f32.mxu0 0.0
  %3015 = vmatmul.mubr.f32.gmra.mrb[0].mxu0 %v2797
  %v3016 = vpop.f32.mrb[0].mxu0
  %v3017 = vadd.f32 0.0, %v3016
  %v3018 = vpop.f32.mrb[0].mxu0
  %3019 = vmatprep.mubr.f32.mxu0 0.0
  %3020 = vmatmul.mubr.f32.gmra.mrb[0].mxu0 %v2800
  %v3021 = vpop.f32.mrb[0].mxu0
  %v3022 = vadd.f32 0.0, %v3021
  %v3023 = vpop.f32.mrb[0].mxu0
  %3024 = vmatprep.mubr.f32.mxu0 0.0
  %3025 = vmatmul.mubr.f32.gmra.mrb[0].mxu0 %v2803
  %v3026 = vpop.f32.mrb[0].mxu0
  %v3027 = vadd.f32 0.0, %v3026
  %v3028 = vpop.f32.mrb[0].mxu0
  %3029 = vdwg.mxu0
  %v3031 = vsel %vm1638, %v2604, 0
  %v3034 = vsel %vm1638, %v2605, 0
  %v3037 = vsel %vm1638, %v2606, 0
  %v3040 = vsel %vm1638, %v2607, 0
  %v3043 = vsel %vm1638, %v2608, 0
  %v3046 = vsel %vm1638, %v2609, 0
  %v3049 = vsel %vm1638, %v2610, 0
  %v3052 = vsel %vm1638, %v2611, 0
  %v3055 = vsel %vm1638, %v2612, 0
  %v3058 = vsel %vm1638, %v2613, 0
  %v3061 = vsel %vm1638, %v2614, 0
  %v3064 = vsel %vm1638, %v2615, 0
  %v3067 = vsel %vm1638, %v2616, 0
  %v3070 = vsel %vm1638, %v2617, 0
  %v3073 = vsel %vm1638, %v2618, 0
  %v3076 = vsel %vm1638, %v2619, 0
  %v3079 = vsel %vm1638, %v2620, 0
  %v3082 = vsel %vm1638, %v2621, 0
  %v3085 = vsel %vm1638, %v2622, 0
  %v3088 = vsel %vm1638, %v2623, 0
  %v3091 = vsel %vm1638, %v2624, 0
  %v3094 = vsel %vm1638, %v2625, 0
  %v3097 = vsel %vm1638, %v2626, 0
  %v3100 = vsel %vm1638, %v2627, 0
  %v3103 = vsel %vm1638, %v2628, 0
  %v3106 = vsel %vm1638, %v2629, 0
  %v3109 = vsel %vm1638, %v2630, 0
  %v3112 = vsel %vm1638, %v2631, 0
  %v3115 = vsel %vm1638, %v2632, 0
  %v3118 = vsel %vm1638, %v2633, 0
  %v3121 = vsel %vm1638, %v2634, 0
  %v3124 = vsel %vm1638, %v2635, 0
  %3126 = vmatprep.subr.mxu0 0.0
  %3127 = vmatpush1.msra.mxu0 %v2636
  %3128 = vmatprep.subr.mxu0 0.0
  %3129 = vmatpush1.msra.mxu0 %v2637
  %3130 = vmatprep.subr.mxu0 0.0
  %3131 = vmatpush1.msra.mxu0 %v2638
  %3132 = vmatprep.subr.mxu0 0.0
  %3133 = vmatpush1.msra.mxu0 %v2639
  %3134 = vmatprep.subr.mxu0 0.0
  %3135 = vmatpush1.msra.mxu0 0.0
  %3136 = vmatprep.subr.mxu0 0.0
  %3137 = vmatpush1.msra.mxu0 0.0
  %3138 = vmatprep.subr.mxu0 0.0
  %3139 = vmatpush1.msra.mxu0 0.0
  %3140 = vmatprep.subr.mxu0 0.0
  %3141 = vmatpush1.msra.mxu0 0.0
  %3142 = vmatprep.subr.mxu0 0.0
  %3143 = vmatpush1.msra.mxu0 0.0
  %3144 = vmatprep.subr.mxu0 0.0
  %3145 = vmatpush1.msra.mxu0 0.0
  %3146 = vmatprep.subr.mxu0 0.0
  %3147 = vmatpush1.msra.mxu0 0.0
  %3148 = vmatprep.subr.mxu0 0.0
  %3149 = vmatpush1.msra.mxu0 0.0
  %3150 = vmatprep.subr.mxu0 0.0
  %3151 = vmatpush1.msra.mxu0 0.0
  %3152 = vmatprep.subr.mxu0 0.0
  %3153 = vmatpush1.msra.mxu0 0.0
  %3154 = vmatprep.subr.mxu0 0.0
  %3155 = vmatpush1.msra.mxu0 0.0
  %3156 = vmatprep.subr.mxu0 0.0
  %3157 = vmatpush1.msra.mxu0 0.0
  %3158 = vmatprep.subr.mxu0 0.0
  %3159 = vmatpush1.msra.mxu0 0.0
  %3160 = vmatprep.subr.mxu0 0.0
  %3161 = vmatpush1.msra.mxu0 0.0
  %3162 = vmatprep.subr.mxu0 0.0
  %3163 = vmatpush1.msra.mxu0 0.0
  %3164 = vmatprep.subr.mxu0 0.0
  %3165 = vmatpush1.msra.mxu0 0.0
  %3166 = vmatprep.subr.mxu0 0.0
  %3167 = vmatpush1.msra.mxu0 0.0
  %3168 = vmatprep.subr.mxu0 0.0
  %3169 = vmatpush1.msra.mxu0 0.0
  %3170 = vmatprep.subr.mxu0 0.0
  %3171 = vmatpush1.msra.mxu0 0.0
  %3172 = vmatprep.subr.mxu0 0.0
  %3173 = vmatpush1.msra.mxu0 0.0
  %3174 = vmatprep.subr.mxu0 0.0
  %3175 = vmatpush1.msra.mxu0 0.0
  %3176 = vmatprep.subr.mxu0 0.0
  %3177 = vmatpush1.msra.mxu0 0.0
  %3178 = vmatprep.subr.mxu0 0.0
  %3179 = vmatpush1.msra.mxu0 0.0
  %3180 = vmatprep.subr.mxu0 0.0
  %3181 = vmatpush1.msra.mxu0 0.0
  %3182 = vmatprep.subr.mxu0 0.0
  %3183 = vmatpush1.msra.mxu0 0.0
  %3184 = vmatprep.subr.mxu0 0.0
  %3185 = vmatpush1.msra.mxu0 0.0
  %3186 = vmatprep.subr.mxu0 0.0
  %3187 = vmatpush1.msra.mxu0 0.0
  %3188 = vmatprep.subr.mxu0 0.0
  %3189 = vmatpush1.msra.mxu0 0.0
  %3190 = vmatprep.mubr.f32.mxu0 0.0
  %3191 = vmatmul.mubr.f32.gmra.mrb[0].mxu0 %v3031
  %v3192 = vpop.f32.mrb[0].mxu0
  %v3193 = vadd.f32 %v2872, %v3192
  %v3194 = vpop.f32.mrb[0].mxu0
  %3195 = vmatprep.mubr.f32.mxu0 0.0
  %3196 = vmatmul.mubr.f32.gmra.mrb[0].mxu0 %v3034
  %v3197 = vpop.f32.mrb[0].mxu0
  %v3198 = vadd.f32 %v2877, %v3197
  %v3199 = vpop.f32.mrb[0].mxu0
  %3200 = vmatprep.mubr.f32.mxu0 0.0
  %3201 = vmatmul.mubr.f32.gmra.mrb[0].mxu0 %v3037
  %v3202 = vpop.f32.mrb[0].mxu0
  %v3203 = vadd.f32 %v2882, %v3202
  %v3204 = vpop.f32.mrb[0].mxu0
  %3205 = vmatprep.mubr.f32.mxu0 0.0
  %3206 = vmatmul.mubr.f32.gmra.mrb[0].mxu0 %v3040
  %v3207 = vpop.f32.mrb[0].mxu0
  %v3208 = vadd.f32 %v2887, %v3207
  %v3209 = vpop.f32.mrb[0].mxu0
  %3210 = vmatprep.mubr.f32.mxu0 0.0
  %3211 = vmatmul.mubr.f32.gmra.mrb[0].mxu0 %v3043
  %v3212 = vpop.f32.mrb[0].mxu0
  %v3213 = vadd.f32 %v2892, %v3212
  %v3214 = vpop.f32.mrb[0].mxu0
  %3215 = vmatprep.mubr.f32.mxu0 0.0
  %3216 = vmatmul.mubr.f32.gmra.mrb[0].mxu0 %v3046
  %v3217 = vpop.f32.mrb[0].mxu0
  %v3218 = vadd.f32 %v2897, %v3217
  %v3219 = vpop.f32.mrb[0].mxu0
  %3220 = vmatprep.mubr.f32.mxu0 0.0
  %3221 = vmatmul.mubr.f32.gmra.mrb[0].mxu0 %v3049
  %v3222 = vpop.f32.mrb[0].mxu0
  %v3223 = vadd.f32 %v2902, %v3222
  %v3224 = vpop.f32.mrb[0].mxu0
  %3225 = vmatprep.mubr.f32.mxu0 0.0
  %3226 = vmatmul.mubr.f32.gmra.mrb[0].mxu0 %v3052
  %v3227 = vpop.f32.mrb[0].mxu0
  %v3228 = vadd.f32 %v2907, %v3227
  %v3229 = vpop.f32.mrb[0].mxu0
  %3230 = vmatprep.mubr.f32.mxu0 0.0
  %3231 = vmatmul.mubr.f32.gmra.mrb[0].mxu0 %v3055
  %v3232 = vpop.f32.mrb[0].mxu0
  %v3233 = vadd.f32 %v2912, %v3232
  %v3234 = vpop.f32.mrb[0].mxu0
  %3235 = vmatprep.mubr.f32.mxu0 0.0
  %3236 = vmatmul.mubr.f32.gmra.mrb[0].mxu0 %v3058
  %v3237 = vpop.f32.mrb[0].mxu0
  %v3238 = vadd.f32 %v2917, %v3237
  %v3239 = vpop.f32.mrb[0].mxu0
  %3240 = vmatprep.mubr.f32.mxu0 0.0
  %3241 = vmatmul.mubr.f32.gmra.mrb[0].mxu0 %v3061
  %v3242 = vpop.f32.mrb[0].mxu0
  %v3243 = vadd.f32 %v2922, %v3242
  %v3244 = vpop.f32.mrb[0].mxu0
  %3245 = vmatprep.mubr.f32.mxu0 0.0
  %3246 = vmatmul.mubr.f32.gmra.mrb[0].mxu0 %v3064
  %v3247 = vpop.f32.mrb[0].mxu0
  %v3248 = vadd.f32 %v2927, %v3247
  %v3249 = vpop.f32.mrb[0].mxu0
  %3250 = vmatprep.mubr.f32.mxu0 0.0
  %3251 = vmatmul.mubr.f32.gmra.mrb[0].mxu0 %v3067
  %v3252 = vpop.f32.mrb[0].mxu0
  %v3253 = vadd.f32 %v2932, %v3252
  %v3254 = vpop.f32.mrb[0].mxu0
  %3255 = vmatprep.mubr.f32.mxu0 0.0
  %3256 = vmatmul.mubr.f32.gmra.mrb[0].mxu0 %v3070
  %v3257 = vpop.f32.mrb[0].mxu0
  %v3258 = vadd.f32 %v2937, %v3257
  %v3259 = vpop.f32.mrb[0].mxu0
  %3260 = vmatprep.mubr.f32.mxu0 0.0
  %3261 = vmatmul.mubr.f32.gmra.mrb[0].mxu0 %v3073
  %v3262 = vpop.f32.mrb[0].mxu0
  %v3263 = vadd.f32 %v2942, %v3262
  %v3264 = vpop.f32.mrb[0].mxu0
  %3265 = vmatprep.mubr.f32.mxu0 0.0
  %3266 = vmatmul.mubr.f32.gmra.mrb[0].mxu0 %v3076
  %v3267 = vpop.f32.mrb[0].mxu0
  %v3268 = vadd.f32 %v2947, %v3267
  %v3269 = vpop.f32.mrb[0].mxu0
  %3270 = vmatprep.mubr.f32.mxu0 0.0
  %3271 = vmatmul.mubr.f32.gmra.mrb[0].mxu0 %v3079
  %v3272 = vpop.f32.mrb[0].mxu0
  %v3273 = vadd.f32 %v2952, %v3272
  %v3274 = vpop.f32.mrb[0].mxu0
  %3275 = vmatprep.mubr.f32.mxu0 0.0
  %3276 = vmatmul.mubr.f32.gmra.mrb[0].mxu0 %v3082
  %v3277 = vpop.f32.mrb[0].mxu0
  %v3278 = vadd.f32 %v2957, %v3277
  %v3279 = vpop.f32.mrb[0].mxu0
  %3280 = vmatprep.mubr.f32.mxu0 0.0
  %3281 = vmatmul.mubr.f32.gmra.mrb[0].mxu0 %v3085
  %v3282 = vpop.f32.mrb[0].mxu0
  %v3283 = vadd.f32 %v2962, %v3282
  %v3284 = vpop.f32.mrb[0].mxu0
  %3285 = vmatprep.mubr.f32.mxu0 0.0
  %3286 = vmatmul.mubr.f32.gmra.mrb[0].mxu0 %v3088
  %v3287 = vpop.f32.mrb[0].mxu0
  %v3288 = vadd.f32 %v2967, %v3287
  %v3289 = vpop.f32.mrb[0].mxu0
  %3290 = vmatprep.mubr.f32.mxu0 0.0
  %3291 = vmatmul.mubr.f32.gmra.mrb[0].mxu0 %v3091
  %v3292 = vpop.f32.mrb[0].mxu0
  %v3293 = vadd.f32 %v2972, %v3292
  %v3294 = vpop.f32.mrb[0].mxu0
  %3295 = vmatprep.mubr.f32.mxu0 0.0
  %3296 = vmatmul.mubr.f32.gmra.mrb[0].mxu0 %v3094
  %v3297 = vpop.f32.mrb[0].mxu0
  %v3298 = vadd.f32 %v2977, %v3297
  %v3299 = vpop.f32.mrb[0].mxu0
  %3300 = vmatprep.mubr.f32.mxu0 0.0
  %3301 = vmatmul.mubr.f32.gmra.mrb[0].mxu0 %v3097
  %v3302 = vpop.f32.mrb[0].mxu0
  %v3303 = vadd.f32 %v2982, %v3302
  %v3304 = vpop.f32.mrb[0].mxu0
  %3305 = vmatprep.mubr.f32.mxu0 0.0
  %3306 = vmatmul.mubr.f32.gmra.mrb[0].mxu0 %v3100
  %v3307 = vpop.f32.mrb[0].mxu0
  %v3308 = vadd.f32 %v2987, %v3307
  %v3309 = vpop.f32.mrb[0].mxu0
  %3310 = vmatprep.mubr.f32.mxu0 0.0
  %3311 = vmatmul.mubr.f32.gmra.mrb[0].mxu0 %v3103
  %v3312 = vpop.f32.mrb[0].mxu0
  %v3313 = vadd.f32 %v2992, %v3312
  %v3314 = vpop.f32.mrb[0].mxu0
  %3315 = vmatprep.mubr.f32.mxu0 0.0
  %3316 = vmatmul.mubr.f32.gmra.mrb[0].mxu0 %v3106
  %v3317 = vpop.f32.mrb[0].mxu0
  %v3318 = vadd.f32 %v2997, %v3317
  %v3319 = vpop.f32.mrb[0].mxu0
  %3320 = vmatprep.mubr.f32.mxu0 0.0
  %3321 = vmatmul.mubr.f32.gmra.mrb[0].mxu0 %v3109
  %v3322 = vpop.f32.mrb[0].mxu0
  %v3323 = vadd.f32 %v3002, %v3322
  %v3324 = vpop.f32.mrb[0].mxu0
  %3325 = vmatprep.mubr.f32.mxu0 0.0
  %3326 = vmatmul.mubr.f32.gmra.mrb[0].mxu0 %v3112
  %v3327 = vpop.f32.mrb[0].mxu0
  %v3328 = vadd.f32 %v3007, %v3327
  %v3329 = vpop.f32.mrb[0].mxu0
  %3330 = vmatprep.mubr.f32.mxu0 0.0
  %3331 = vmatmul.mubr.f32.gmra.mrb[0].mxu0 %v3115
  %v3332 = vpop.f32.mrb[0].mxu0
  %v3333 = vadd.f32 %v3012, %v3332
  %v3334 = vpop.f32.mrb[0].mxu0
  %3335 = vmatprep.mubr.f32.mxu0 0.0
  %3336 = vmatmul.mubr.f32.gmra.mrb[0].mxu0 %v3118
  %v3337 = vpop.f32.mrb[0].mxu0
  %v3338 = vadd.f32 %v3017, %v3337
  %v3339 = vpop.f32.mrb[0].mxu0
  %3340 = vmatprep.mubr.f32.mxu0 0.0
  %3341 = vmatmul.mubr.f32.gmra.mrb[0].mxu0 %v3121
  %v3342 = vpop.f32.mrb[0].mxu0
  %v3343 = vadd.f32 %v3022, %v3342
  %v3344 = vpop.f32.mrb[0].mxu0
  %3345 = vmatprep.mubr.f32.mxu0 0.0
  %3346 = vmatmul.mubr.f32.gmra.mrb[0].mxu0 %v3124
  %v3347 = vpop.f32.mrb[0].mxu0
  %v3348 = vadd.f32 %v3027, %v3347
  %v3349 = vpop.f32.mrb[0].mxu0
  %3350 = vdwg.mxu0
  %v3351 = vld [vmem:[#allocation2 + $0x9] sm:$0xff]
  %v3352 = vld [vmem:[#allocation2 + $0x11] sm:$0xff]
  %v3353 = vld [vmem:[#allocation2 + $0x19] sm:$0xff]
  %v3354 = vld [vmem:[#allocation2 + $0x21] sm:$0xff]
  %v3355 = vld [vmem:[#allocation2 + $0x29] sm:$0xff]
  %v3356 = vld [vmem:[#allocation2 + $0x31] sm:$0xff]
  %v3357 = vld [vmem:[#allocation2 + $0x39] sm:$0xff]
  %v3358 = vld [vmem:[#allocation2 + $0x41] sm:$0xff]
  %v3359 = vld [vmem:[#allocation2 + $0x49] sm:$0xff]
  %v3360 = vld [vmem:[#allocation2 + $0x51] sm:$0xff]
  %v3361 = vld [vmem:[#allocation2 + $0x59] sm:$0xff]
  %v3362 = vld [vmem:[#allocation2 + $0x61] sm:$0xff]
  %v3363 = vld [vmem:[#allocation2 + $0x69] sm:$0xff]
  %v3364 = vld [vmem:[#allocation2 + $0x71] sm:$0xff]
  %v3365 = vld [vmem:[#allocation2 + $0x79] sm:$0xff]
  %v3366 = vld [vmem:[#allocation2 + $0x81] sm:$0xff]
  %v3367 = vld [vmem:[#allocation2 + $0x89] sm:$0xff]
  %v3368 = vld [vmem:[#allocation2 + $0x91] sm:$0xff]
  %v3369 = vld [vmem:[#allocation2 + $0x99] sm:$0xff]
  %v3370 = vld [vmem:[#allocation2 + $0xa1] sm:$0xff]
  %v3371 = vld [vmem:[#allocation2 + $0xa9] sm:$0xff]
  %v3372 = vld [vmem:[#allocation2 + $0xb1] sm:$0xff]
  %v3373 = vld [vmem:[#allocation2 + $0xb9] sm:$0xff]
  %v3374 = vld [vmem:[#allocation2 + $0xc1] sm:$0xff]
  %v3375 = vld [vmem:[#allocation2 + $0xc9] sm:$0xff]
  %v3376 = vld [vmem:[#allocation2 + $0xd1] sm:$0xff]
  %v3377 = vld [vmem:[#allocation2 + $0xd9] sm:$0xff]
  %v3378 = vld [vmem:[#allocation2 + $0xe1] sm:$0xff]
  %v3379 = vld [vmem:[#allocation2 + $0xe9] sm:$0xff]
  %v3380 = vld [vmem:[#allocation2 + $0xf1] sm:$0xff]
  %v3381 = vld [vmem:[#allocation2 + $0xf9] sm:$0xff]
  %v3382 = vld [vmem:[#allocation2 + $0x101] sm:$0xff]
  %v3383 = vmul.f32 %v3351, %v2124
  %v3384 = vmul.f32 %v3352, %v2125
  %v3385 = vmul.f32 %v3353, %v2126
  %v3386 = vmul.f32 %v3354, %v2127
  %v3387 = vmul.f32 %v3355, %v2128
  %v3388 = vmul.f32 %v3356, %v2129
  %v3389 = vmul.f32 %v3357, %v2130
  %v3390 = vmul.f32 %v3358, %v2131
  %v3391 = vmul.f32 %v3359, %v2132
  %v3392 = vmul.f32 %v3360, %v2133
  %v3393 = vmul.f32 %v3361, %v2134
  %v3394 = vmul.f32 %v3362, %v2135
  %v3395 = vmul.f32 %v3363, %v2136
  %v3396 = vmul.f32 %v3364, %v2137
  %v3397 = vmul.f32 %v3365, %v2138
  %v3398 = vmul.f32 %v3366, %v2139
  %v3399 = vmul.f32 %v3367, %v2140
  %v3400 = vmul.f32 %v3368, %v2141
  %v3401 = vmul.f32 %v3369, %v2142
  %v3402 = vmul.f32 %v3370, %v2143
  %v3403 = vmul.f32 %v3371, %v2144
  %v3404 = vmul.f32 %v3372, %v2145
  %v3405 = vmul.f32 %v3373, %v2146
  %v3406 = vmul.f32 %v3374, %v2147
  %v3407 = vmul.f32 %v3375, %v2148
  %v3408 = vmul.f32 %v3376, %v2149
  %v3409 = vmul.f32 %v3377, %v2150
  %v3410 = vmul.f32 %v3378, %v2151
  %v3411 = vmul.f32 %v3379, %v2152
  %v3412 = vmul.f32 %v3380, %v2153
  %v3413 = vmul.f32 %v3381, %v2154
  %v3414 = vmul.f32 %v3382, %v2155
  %s3415 = scalar_lea.vmem %s3, 64
  %v3416 = vld [vmem:[%s3415] sm:$0xff]
  %v3417 = vld [vmem:[%s3415 + $0x8] sm:$0xff]
  %v3418 = vld [vmem:[%s3415 + $0x10] sm:$0xff]
  %v3419 = vld [vmem:[%s3415 + $0x18] sm:$0xff]
  %v3421 = vsel %vm1638, %v3383, 0
  %v3424 = vsel %vm1638, %v3384, 0
  %v3427 = vsel %vm1638, %v3385, 0
  %v3430 = vsel %vm1638, %v3386, 0
  %v3433 = vsel %vm1638, %v3387, 0
  %v3436 = vsel %vm1638, %v3388, 0
  %v3439 = vsel %vm1638, %v3389, 0
  %v3442 = vsel %vm1638, %v3390, 0
  %v3445 = vsel %vm1638, %v3391, 0
  %v3448 = vsel %vm1638, %v3392, 0
  %v3451 = vsel %vm1638, %v3393, 0
  %v3454 = vsel %vm1638, %v3394, 0
  %v3457 = vsel %vm1638, %v3395, 0
  %v3460 = vsel %vm1638, %v3396, 0
  %v3463 = vsel %vm1638, %v3397, 0
  %v3466 = vsel %vm1638, %v3398, 0
  %v3469 = vsel %vm1638, %v3399, 0
  %v3472 = vsel %vm1638, %v3400, 0
  %v3475 = vsel %vm1638, %v3401, 0
  %v3478 = vsel %vm1638, %v3402, 0
  %v3481 = vsel %vm1638, %v3403, 0
  %v3484 = vsel %vm1638, %v3404, 0
  %v3487 = vsel %vm1638, %v3405, 0
  %v3490 = vsel %vm1638, %v3406, 0
  %v3493 = vsel %vm1638, %v3407, 0
  %v3496 = vsel %vm1638, %v3408, 0
  %v3499 = vsel %vm1638, %v3409, 0
  %v3502 = vsel %vm1638, %v3410, 0
  %v3505 = vsel %vm1638, %v3411, 0
  %v3508 = vsel %vm1638, %v3412, 0
  %v3511 = vsel %vm1638, %v3413, 0
  %v3514 = vsel %vm1638, %v3414, 0
  %3516 = vmatprep.subr.mxu0 0.0
  %3517 = vmatpush1.msra.mxu0 %v3416
  %3518 = vmatprep.subr.mxu0 0.0
  %3519 = vmatpush1.msra.mxu0 %v3417
  %3520 = vmatprep.subr.mxu0 0.0
  %3521 = vmatpush1.msra.mxu0 %v3418
  %3522 = vmatprep.subr.mxu0 0.0
  %3523 = vmatpush1.msra.mxu0 %v3419
  %3524 = vmatprep.subr.mxu0 0.0
  %3525 = vmatpush1.msra.mxu0 0.0
  %3526 = vmatprep.subr.mxu0 0.0
  %3527 = vmatpush1.msra.mxu0 0.0
  %3528 = vmatprep.subr.mxu0 0.0
  %3529 = vmatpush1.msra.mxu0 0.0
  %3530 = vmatprep.subr.mxu0 0.0
  %3531 = vmatpush1.msra.mxu0 0.0
  %3532 = vmatprep.subr.mxu0 0.0
  %3533 = vmatpush1.msra.mxu0 0.0
  %3534 = vmatprep.subr.mxu0 0.0
  %3535 = vmatpush1.msra.mxu0 0.0
  %3536 = vmatprep.subr.mxu0 0.0
  %3537 = vmatpush1.msra.mxu0 0.0
  %3538 = vmatprep.subr.mxu0 0.0
  %3539 = vmatpush1.msra.mxu0 0.0
  %3540 = vmatprep.subr.mxu0 0.0
  %3541 = vmatpush1.msra.mxu0 0.0
  %3542 = vmatprep.subr.mxu0 0.0
  %3543 = vmatpush1.msra.mxu0 0.0
  %3544 = vmatprep.subr.mxu0 0.0
  %3545 = vmatpush1.msra.mxu0 0.0
  %3546 = vmatprep.subr.mxu0 0.0
  %3547 = vmatpush1.msra.mxu0 0.0
  %3548 = vmatprep.subr.mxu0 0.0
  %3549 = vmatpush1.msra.mxu0 0.0
  %3550 = vmatprep.subr.mxu0 0.0
  %3551 = vmatpush1.msra.mxu0 0.0
  %3552 = vmatprep.subr.mxu0 0.0
  %3553 = vmatpush1.msra.mxu0 0.0
  %3554 = vmatprep.subr.mxu0 0.0
  %3555 = vmatpush1.msra.mxu0 0.0
  %3556 = vmatprep.subr.mxu0 0.0
  %3557 = vmatpush1.msra.mxu0 0.0
  %3558 = vmatprep.subr.mxu0 0.0
  %3559 = vmatpush1.msra.mxu0 0.0
  %3560 = vmatprep.subr.mxu0 0.0
  %3561 = vmatpush1.msra.mxu0 0.0
  %3562 = vmatprep.subr.mxu0 0.0
  %3563 = vmatpush1.msra.mxu0 0.0
  %3564 = vmatprep.subr.mxu0 0.0
  %3565 = vmatpush1.msra.mxu0 0.0
  %3566 = vmatprep.subr.mxu0 0.0
  %3567 = vmatpush1.msra.mxu0 0.0
  %3568 = vmatprep.subr.mxu0 0.0
  %3569 = vmatpush1.msra.mxu0 0.0
  %3570 = vmatprep.subr.mxu0 0.0
  %3571 = vmatpush1.msra.mxu0 0.0
  %3572 = vmatprep.subr.mxu0 0.0
  %3573 = vmatpush1.msra.mxu0 0.0
  %3574 = vmatprep.subr.mxu0 0.0
  %3575 = vmatpush1.msra.mxu0 0.0
  %3576 = vmatprep.subr.mxu0 0.0
  %3577 = vmatpush1.msra.mxu0 0.0
  %3578 = vmatprep.subr.mxu0 0.0
  %3579 = vmatpush1.msra.mxu0 0.0
  %3580 = vmatprep.mubr.f32.mxu0 0.0
  %3581 = vmatmul.mubr.f32.gmra.mrb[0].mxu0 %v3421
  %v3582 = vpop.f32.mrb[0].mxu0
  %v3583 = vadd.f32 0.0, %v3582
  %v3584 = vpop.f32.mrb[0].mxu0
  %3585 = vmatprep.mubr.f32.mxu0 0.0
  %3586 = vmatmul.mubr.f32.gmra.mrb[0].mxu0 %v3424
  %v3587 = vpop.f32.mrb[0].mxu0
  %v3588 = vadd.f32 0.0, %v3587
  %v3589 = vpop.f32.mrb[0].mxu0
  %3590 = vmatprep.mubr.f32.mxu0 0.0
  %3591 = vmatmul.mubr.f32.gmra.mrb[0].mxu0 %v3427
  %v3592 = vpop.f32.mrb[0].mxu0
  %v3593 = vadd.f32 0.0, %v3592
  %v3594 = vpop.f32.mrb[0].mxu0
  %3595 = vmatprep.mubr.f32.mxu0 0.0
  %3596 = vmatmul.mubr.f32.gmra.mrb[0].mxu0 %v3430
  %v3597 = vpop.f32.mrb[0].mxu0
  %v3598 = vadd.f32 0.0, %v3597
  %v3599 = vpop.f32.mrb[0].mxu0
  %3600 = vmatprep.mubr.f32.mxu0 0.0
  %3601 = vmatmul.mubr.f32.gmra.mrb[0].mxu0 %v3433
  %v3602 = vpop.f32.mrb[0].mxu0
  %v3603 = vadd.f32 0.0, %v3602
  %v3604 = vpop.f32.mrb[0].mxu0
  %3605 = vmatprep.mubr.f32.mxu0 0.0
  %3606 = vmatmul.mubr.f32.gmra.mrb[0].mxu0 %v3436
  %v3607 = vpop.f32.mrb[0].mxu0
  %v3608 = vadd.f32 0.0, %v3607
  %v3609 = vpop.f32.mrb[0].mxu0
  %3610 = vmatprep.mubr.f32.mxu0 0.0
  %3611 = vmatmul.mubr.f32.gmra.mrb[0].mxu0 %v3439
  %v3612 = vpop.f32.mrb[0].mxu0
  %v3613 = vadd.f32 0.0, %v3612
  %v3614 = vpop.f32.mrb[0].mxu0
  %3615 = vmatprep.mubr.f32.mxu0 0.0
  %3616 = vmatmul.mubr.f32.gmra.mrb[0].mxu0 %v3442
  %v3617 = vpop.f32.mrb[0].mxu0
  %v3618 = vadd.f32 0.0, %v3617
  %v3619 = vpop.f32.mrb[0].mxu0
  %3620 = vmatprep.mubr.f32.mxu0 0.0
  %3621 = vmatmul.mubr.f32.gmra.mrb[0].mxu0 %v3445
  %v3622 = vpop.f32.mrb[0].mxu0
  %v3623 = vadd.f32 0.0, %v3622
  %v3624 = vpop.f32.mrb[0].mxu0
  %3625 = vmatprep.mubr.f32.mxu0 0.0
  %3626 = vmatmul.mubr.f32.gmra.mrb[0].mxu0 %v3448
  %v3627 = vpop.f32.mrb[0].mxu0
  %v3628 = vadd.f32 0.0, %v3627
  %v3629 = vpop.f32.mrb[0].mxu0
  %3630 = vmatprep.mubr.f32.mxu0 0.0
  %3631 = vmatmul.mubr.f32.gmra.mrb[0].mxu0 %v3451
  %v3632 = vpop.f32.mrb[0].mxu0
  %v3633 = vadd.f32 0.0, %v3632
  %v3634 = vpop.f32.mrb[0].mxu0
  %3635 = vmatprep.mubr.f32.mxu0 0.0
  %3636 = vmatmul.mubr.f32.gmra.mrb[0].mxu0 %v3454
  %v3637 = vpop.f32.mrb[0].mxu0
  %v3638 = vadd.f32 0.0, %v3637
  %v3639 = vpop.f32.mrb[0].mxu0
  %3640 = vmatprep.mubr.f32.mxu0 0.0
  %3641 = vmatmul.mubr.f32.gmra.mrb[0].mxu0 %v3457
  %v3642 = vpop.f32.mrb[0].mxu0
  %v3643 = vadd.f32 0.0, %v3642
  %v3644 = vpop.f32.mrb[0].mxu0
  %3645 = vmatprep.mubr.f32.mxu0 0.0
  %3646 = vmatmul.mubr.f32.gmra.mrb[0].mxu0 %v3460
  %v3647 = vpop.f32.mrb[0].mxu0
  %v3648 = vadd.f32 0.0, %v3647
  %v3649 = vpop.f32.mrb[0].mxu0
  %3650 = vmatprep.mubr.f32.mxu0 0.0
  %3651 = vmatmul.mubr.f32.gmra.mrb[0].mxu0 %v3463
  %v3652 = vpop.f32.mrb[0].mxu0
  %v3653 = vadd.f32 0.0, %v3652
  %v3654 = vpop.f32.mrb[0].mxu0
  %3655 = vmatprep.mubr.f32.mxu0 0.0
  %3656 = vmatmul.mubr.f32.gmra.mrb[0].mxu0 %v3466
  %v3657 = vpop.f32.mrb[0].mxu0
  %v3658 = vadd.f32 0.0, %v3657
  %v3659 = vpop.f32.mrb[0].mxu0
  %3660 = vmatprep.mubr.f32.mxu0 0.0
  %3661 = vmatmul.mubr.f32.gmra.mrb[0].mxu0 %v3469
  %v3662 = vpop.f32.mrb[0].mxu0
  %v3663 = vadd.f32 0.0, %v3662
  %v3664 = vpop.f32.mrb[0].mxu0
  %3665 = vmatprep.mubr.f32.mxu0 0.0
  %3666 = vmatmul.mubr.f32.gmra.mrb[0].mxu0 %v3472
  %v3667 = vpop.f32.mrb[0].mxu0
  %v3668 = vadd.f32 0.0, %v3667
  %v3669 = vpop.f32.mrb[0].mxu0
  %3670 = vmatprep.mubr.f32.mxu0 0.0
  %3671 = vmatmul.mubr.f32.gmra.mrb[0].mxu0 %v3475
  %v3672 = vpop.f32.mrb[0].mxu0
  %v3673 = vadd.f32 0.0, %v3672
  %v3674 = vpop.f32.mrb[0].mxu0
  %3675 = vmatprep.mubr.f32.mxu0 0.0
  %3676 = vmatmul.mubr.f32.gmra.mrb[0].mxu0 %v3478
  %v3677 = vpop.f32.mrb[0].mxu0
  %v3678 = vadd.f32 0.0, %v3677
  %v3679 = vpop.f32.mrb[0].mxu0
  %3680 = vmatprep.mubr.f32.mxu0 0.0
  %3681 = vmatmul.mubr.f32.gmra.mrb[0].mxu0 %v3481
  %v3682 = vpop.f32.mrb[0].mxu0
  %v3683 = vadd.f32 0.0, %v3682
  %v3684 = vpop.f32.mrb[0].mxu0
  %3685 = vmatprep.mubr.f32.mxu0 0.0
  %3686 = vmatmul.mubr.f32.gmra.mrb[0].mxu0 %v3484
  %v3687 = vpop.f32.mrb[0].mxu0
  %v3688 = vadd.f32 0.0, %v3687
  %v3689 = vpop.f32.mrb[0].mxu0
  %3690 = vmatprep.mubr.f32.mxu0 0.0
  %3691 = vmatmul.mubr.f32.gmra.mrb[0].mxu0 %v3487
  %v3692 = vpop.f32.mrb[0].mxu0
  %v3693 = vadd.f32 0.0, %v3692
  %v3694 = vpop.f32.mrb[0].mxu0
  %3695 = vmatprep.mubr.f32.mxu0 0.0
  %3696 = vmatmul.mubr.f32.gmra.mrb[0].mxu0 %v3490
  %v3697 = vpop.f32.mrb[0].mxu0
  %v3698 = vadd.f32 0.0, %v3697
  %v3699 = vpop.f32.mrb[0].mxu0
  %3700 = vmatprep.mubr.f32.mxu0 0.0
  %3701 = vmatmul.mubr.f32.gmra.mrb[0].mxu0 %v3493
  %v3702 = vpop.f32.mrb[0].mxu0
  %v3703 = vadd.f32 0.0, %v3702
  %v3704 = vpop.f32.mrb[0].mxu0
  %3705 = vmatprep.mubr.f32.mxu0 0.0
  %3706 = vmatmul.mubr.f32.gmra.mrb[0].mxu0 %v3496
  %v3707 = vpop.f32.mrb[0].mxu0
  %v3708 = vadd.f32 0.0, %v3707
  %v3709 = vpop.f32.mrb[0].mxu0
  %3710 = vmatprep.mubr.f32.mxu0 0.0
  %3711 = vmatmul.mubr.f32.gmra.mrb[0].mxu0 %v3499
  %v3712 = vpop.f32.mrb[0].mxu0
  %v3713 = vadd.f32 0.0, %v3712
  %v3714 = vpop.f32.mrb[0].mxu0
  %3715 = vmatprep.mubr.f32.mxu0 0.0
  %3716 = vmatmul.mubr.f32.gmra.mrb[0].mxu0 %v3502
  %v3717 = vpop.f32.mrb[0].mxu0
  %v3718 = vadd.f32 0.0, %v3717
  %v3719 = vpop.f32.mrb[0].mxu0
  %3720 = vmatprep.mubr.f32.mxu0 0.0
  %3721 = vmatmul.mubr.f32.gmra.mrb[0].mxu0 %v3505
  %v3722 = vpop.f32.mrb[0].mxu0
  %v3723 = vadd.f32 0.0, %v3722
  %v3724 = vpop.f32.mrb[0].mxu0
  %3725 = vmatprep.mubr.f32.mxu0 0.0
  %3726 = vmatmul.mubr.f32.gmra.mrb[0].mxu0 %v3508
  %v3727 = vpop.f32.mrb[0].mxu0
  %v3728 = vadd.f32 0.0, %v3727
  %v3729 = vpop.f32.mrb[0].mxu0
  %3730 = vmatprep.mubr.f32.mxu0 0.0
  %3731 = vmatmul.mubr.f32.gmra.mrb[0].mxu0 %v3511
  %v3732 = vpop.f32.mrb[0].mxu0
  %v3733 = vadd.f32 0.0, %v3732
  %v3734 = vpop.f32.mrb[0].mxu0
  %3735 = vmatprep.mubr.f32.mxu0 0.0
  %3736 = vmatmul.mubr.f32.gmra.mrb[0].mxu0 %v3514
  %v3737 = vpop.f32.mrb[0].mxu0
  %v3738 = vadd.f32 0.0, %v3737
  %v3739 = vpop.f32.mrb[0].mxu0
  %3740 = vdwg.mxu0
  %v3741 = vadd.f32 %v3193, %v3583
  %v3742 = vadd.f32 %v3198, %v3588
  %v3743 = vadd.f32 %v3203, %v3593
  %v3744 = vadd.f32 %v3208, %v3598
  %v3745 = vadd.f32 %v3213, %v3603
  %v3746 = vadd.f32 %v3218, %v3608
  %v3747 = vadd.f32 %v3223, %v3613
  %v3748 = vadd.f32 %v3228, %v3618
  %v3749 = vadd.f32 %v3233, %v3623
  %v3750 = vadd.f32 %v3238, %v3628
  %v3751 = vadd.f32 %v3243, %v3633
  %v3752 = vadd.f32 %v3248, %v3638
  %v3753 = vadd.f32 %v3253, %v3643
  %v3754 = vadd.f32 %v3258, %v3648
  %v3755 = vadd.f32 %v3263, %v3653
  %v3756 = vadd.f32 %v3268, %v3658
  %v3757 = vadd.f32 %v3273, %v3663
  %v3758 = vadd.f32 %v3278, %v3668
  %v3759 = vadd.f32 %v3283, %v3673
  %v3760 = vadd.f32 %v3288, %v3678
  %v3761 = vadd.f32 %v3293, %v3683
  %v3762 = vadd.f32 %v3298, %v3688
  %v3763 = vadd.f32 %v3303, %v3693
  %v3764 = vadd.f32 %v3308, %v3698
  %v3765 = vadd.f32 %v3313, %v3703
  %v3766 = vadd.f32 %v3318, %v3708
  %v3767 = vadd.f32 %v3323, %v3713
  %v3768 = vadd.f32 %v3328, %v3718
  %v3769 = vadd.f32 %v3333, %v3723
  %v3770 = vadd.f32 %v3338, %v3728
  %v3771 = vadd.f32 %v3343, %v3733
  %v3772 = vadd.f32 %v3348, %v3738
  %v3773 = vld [vmem:[#allocation2 + $0xf] sm:$0xff]
  %v3774 = vld [vmem:[#allocation2 + $0x17] sm:$0xff]
  %v3775 = vld [vmem:[#allocation2 + $0x1f] sm:$0xff]
  %v3776 = vld [vmem:[#allocation2 + $0x27] sm:$0xff]
  %v3777 = vld [vmem:[#allocation2 + $0x2f] sm:$0xff]
  %v3778 = vld [vmem:[#allocation2 + $0x37] sm:$0xff]
  %v3779 = vld [vmem:[#allocation2 + $0x3f] sm:$0xff]
  %v3780 = vld [vmem:[#allocation2 + $0x47] sm:$0xff]
  %v3781 = vld [vmem:[#allocation2 + $0x4f] sm:$0xff]
  %v3782 = vld [vmem:[#allocation2 + $0x57] sm:$0xff]
  %v3783 = vld [vmem:[#allocation2 + $0x5f] sm:$0xff]
  %v3784 = vld [vmem:[#allocation2 + $0x67] sm:$0xff]
  %v3785 = vld [vmem:[#allocation2 + $0x6f] sm:$0xff]
  %v3786 = vld [vmem:[#allocation2 + $0x77] sm:$0xff]
  %v3787 = vld [vmem:[#allocation2 + $0x7f] sm:$0xff]
  %v3788 = vld [vmem:[#allocation2 + $0x87] sm:$0xff]
  %v3789 = vld [vmem:[#allocation2 + $0x8f] sm:$0xff]
  %v3790 = vld [vmem:[#allocation2 + $0x97] sm:$0xff]
  %v3791 = vld [vmem:[#allocation2 + $0x9f] sm:$0xff]
  %v3792 = vld [vmem:[#allocation2 + $0xa7] sm:$0xff]
  %v3793 = vld [vmem:[#allocation2 + $0xaf] sm:$0xff]
  %v3794 = vld [vmem:[#allocation2 + $0xb7] sm:$0xff]
  %v3795 = vld [vmem:[#allocation2 + $0xbf] sm:$0xff]
  %v3796 = vld [vmem:[#allocation2 + $0xc7] sm:$0xff]
  %v3797 = vld [vmem:[#allocation2 + $0xcf] sm:$0xff]
  %v3798 = vld [vmem:[#allocation2 + $0xd7] sm:$0xff]
  %v3799 = vld [vmem:[#allocation2 + $0xdf] sm:$0xff]
  %v3800 = vld [vmem:[#allocation2 + $0xe7] sm:$0xff]
  %v3801 = vld [vmem:[#allocation2 + $0xef] sm:$0xff]
  %v3802 = vld [vmem:[#allocation2 + $0xf7] sm:$0xff]
  %v3803 = vld [vmem:[#allocation2 + $0xff] sm:$0xff]
  %v3804 = vld [vmem:[#allocation2 + $0x107] sm:$0xff]
  %v3805 = vmul.f32 %v3773, %v2188
  %v3806 = vmul.f32 %v3774, %v2189
  %v3807 = vmul.f32 %v3775, %v2190
  %v3808 = vmul.f32 %v3776, %v2191
  %v3809 = vmul.f32 %v3777, %v2192
  %v3810 = vmul.f32 %v3778, %v2193
  %v3811 = vmul.f32 %v3779, %v2194
  %v3812 = vmul.f32 %v3780, %v2195
  %v3813 = vmul.f32 %v3781, %v2196
  %v3814 = vmul.f32 %v3782, %v2197
  %v3815 = vmul.f32 %v3783, %v2198
  %v3816 = vmul.f32 %v3784, %v2199
  %v3817 = vmul.f32 %v3785, %v2200
  %v3818 = vmul.f32 %v3786, %v2201
  %v3819 = vmul.f32 %v3787, %v2202
  %v3820 = vmul.f32 %v3788, %v2203
  %v3821 = vmul.f32 %v3789, %v2204
  %v3822 = vmul.f32 %v3790, %v2205
  %v3823 = vmul.f32 %v3791, %v2206
  %v3824 = vmul.f32 %v3792, %v2207
  %v3825 = vmul.f32 %v3793, %v2208
  %v3826 = vmul.f32 %v3794, %v2209
  %v3827 = vmul.f32 %v3795, %v2210
  %v3828 = vmul.f32 %v3796, %v2211
  %v3829 = vmul.f32 %v3797, %v2212
  %v3830 = vmul.f32 %v3798, %v2213
  %v3831 = vmul.f32 %v3799, %v2214
  %v3832 = vmul.f32 %v3800, %v2215
  %v3833 = vmul.f32 %v3801, %v2216
  %v3834 = vmul.f32 %v3802, %v2217
  %v3835 = vmul.f32 %v3803, %v2218
  %v3836 = vmul.f32 %v3804, %v2219
  %s3837 = scalar_lea.vmem %s3, 96
  %v3838 = vld [vmem:[%s3837] sm:$0xff]
  %v3839 = vld [vmem:[%s3837 + $0x8] sm:$0xff]
  %v3840 = vld [vmem:[%s3837 + $0x10] sm:$0xff]
  %v3841 = vld [vmem:[%s3837 + $0x18] sm:$0xff]
  %v3843 = vsel %vm1638, %v3805, 0
  %v3846 = vsel %vm1638, %v3806, 0
  %v3849 = vsel %vm1638, %v3807, 0
  %v3852 = vsel %vm1638, %v3808, 0
  %v3855 = vsel %vm1638, %v3809, 0
  %v3858 = vsel %vm1638, %v3810, 0
  %v3861 = vsel %vm1638, %v3811, 0
  %v3864 = vsel %vm1638, %v3812, 0
  %v3867 = vsel %vm1638, %v3813, 0
  %v3870 = vsel %vm1638, %v3814, 0
  %v3873 = vsel %vm1638, %v3815, 0
  %v3876 = vsel %vm1638, %v3816, 0
  %v3879 = vsel %vm1638, %v3817, 0
  %v3882 = vsel %vm1638, %v3818, 0
  %v3885 = vsel %vm1638, %v3819, 0
  %v3888 = vsel %vm1638, %v3820, 0
  %v3891 = vsel %vm1638, %v3821, 0
  %v3894 = vsel %vm1638, %v3822, 0
  %v3897 = vsel %vm1638, %v3823, 0
  %v3900 = vsel %vm1638, %v3824, 0
  %v3903 = vsel %vm1638, %v3825, 0
  %v3906 = vsel %vm1638, %v3826, 0
  %v3909 = vsel %vm1638, %v3827, 0
  %v3912 = vsel %vm1638, %v3828, 0
  %v3915 = vsel %vm1638, %v3829, 0
  %v3918 = vsel %vm1638, %v3830, 0
  %v3921 = vsel %vm1638, %v3831, 0
  %v3924 = vsel %vm1638, %v3832, 0
  %v3927 = vsel %vm1638, %v3833, 0
  %v3930 = vsel %vm1638, %v3834, 0
  %v3933 = vsel %vm1638, %v3835, 0
  %v3936 = vsel %vm1638, %v3836, 0
  %3938 = vmatprep.subr.mxu0 0.0
  %3939 = vmatpush1.msra.mxu0 %v3838
  %3940 = vmatprep.subr.mxu0 0.0
  %3941 = vmatpush1.msra.mxu0 %v3839
  %3942 = vmatprep.subr.mxu0 0.0
  %3943 = vmatpush1.msra.mxu0 %v3840
  %3944 = vmatprep.subr.mxu0 0.0
  %3945 = vmatpush1.msra.mxu0 %v3841
  %3946 = vmatprep.subr.mxu0 0.0
  %3947 = vmatpush1.msra.mxu0 0.0
  %3948 = vmatprep.subr.mxu0 0.0
  %3949 = vmatpush1.msra.mxu0 0.0
  %3950 = vmatprep.subr.mxu0 0.0
  %3951 = vmatpush1.msra.mxu0 0.0
  %3952 = vmatprep.subr.mxu0 0.0
  %3953 = vmatpush1.msra.mxu0 0.0
  %3954 = vmatprep.subr.mxu0 0.0
  %3955 = vmatpush1.msra.mxu0 0.0
  %3956 = vmatprep.subr.mxu0 0.0
  %3957 = vmatpush1.msra.mxu0 0.0
  %3958 = vmatprep.subr.mxu0 0.0
  %3959 = vmatpush1.msra.mxu0 0.0
  %3960 = vmatprep.subr.mxu0 0.0
  %3961 = vmatpush1.msra.mxu0 0.0
  %3962 = vmatprep.subr.mxu0 0.0
  %3963 = vmatpush1.msra.mxu0 0.0
  %3964 = vmatprep.subr.mxu0 0.0
  %3965 = vmatpush1.msra.mxu0 0.0
  %3966 = vmatprep.subr.mxu0 0.0
  %3967 = vmatpush1.msra.mxu0 0.0
  %3968 = vmatprep.subr.mxu0 0.0
  %3969 = vmatpush1.msra.mxu0 0.0
  %3970 = vmatprep.subr.mxu0 0.0
  %3971 = vmatpush1.msra.mxu0 0.0
  %3972 = vmatprep.subr.mxu0 0.0
  %3973 = vmatpush1.msra.mxu0 0.0
  %3974 = vmatprep.subr.mxu0 0.0
  %3975 = vmatpush1.msra.mxu0 0.0
  %3976 = vmatprep.subr.mxu0 0.0
  %3977 = vmatpush1.msra.mxu0 0.0
  %3978 = vmatprep.subr.mxu0 0.0
  %3979 = vmatpush1.msra.mxu0 0.0
  %3980 = vmatprep.subr.mxu0 0.0
  %3981 = vmatpush1.msra.mxu0 0.0
  %3982 = vmatprep.subr.mxu0 0.0
  %3983 = vmatpush1.msra.mxu0 0.0
  %3984 = vmatprep.subr.mxu0 0.0
  %3985 = vmatpush1.msra.mxu0 0.0
  %3986 = vmatprep.subr.mxu0 0.0
  %3987 = vmatpush1.msra.mxu0 0.0
  %3988 = vmatprep.subr.mxu0 0.0
  %3989 = vmatpush1.msra.mxu0 0.0
  %3990 = vmatprep.subr.mxu0 0.0
  %3991 = vmatpush1.msra.mxu0 0.0
  %3992 = vmatprep.subr.mxu0 0.0
  %3993 = vmatpush1.msra.mxu0 0.0
  %3994 = vmatprep.subr.mxu0 0.0
  %3995 = vmatpush1.msra.mxu0 0.0
  %3996 = vmatprep.subr.mxu0 0.0
  %3997 = vmatpush1.msra.mxu0 0.0
  %3998 = vmatprep.subr.mxu0 0.0
  %3999 = vmatpush1.msra.mxu0 0.0
  %4000 = vmatprep.subr.mxu0 0.0
  %4001 = vmatpush1.msra.mxu0 0.0
  %4002 = vmatprep.mubr.f32.mxu0 0.0
  %4003 = vmatmul.mubr.f32.gmra.mrb[0].mxu0 %v3843
  %v4004 = vpop.f32.mrb[0].mxu0
  %v4005 = vadd.f32 0.0, %v4004
  %v4006 = vpop.f32.mrb[0].mxu0
  %4007 = vmatprep.mubr.f32.mxu0 0.0
  %4008 = vmatmul.mubr.f32.gmra.mrb[0].mxu0 %v3846
  %v4009 = vpop.f32.mrb[0].mxu0
  %v4010 = vadd.f32 0.0, %v4009
  %v4011 = vpop.f32.mrb[0].mxu0
  %4012 = vmatprep.mubr.f32.mxu0 0.0
  %4013 = vmatmul.mubr.f32.gmra.mrb[0].mxu0 %v3849
  %v4014 = vpop.f32.mrb[0].mxu0
  %v4015 = vadd.f32 0.0, %v4014
  %v4016 = vpop.f32.mrb[0].mxu0
  %4017 = vmatprep.mubr.f32.mxu0 0.0
  %4018 = vmatmul.mubr.f32.gmra.mrb[0].mxu0 %v3852
  %v4019 = vpop.f32.mrb[0].mxu0
  %v4020 = vadd.f32 0.0, %v4019
  %v4021 = vpop.f32.mrb[0].mxu0
  %4022 = vmatprep.mubr.f32.mxu0 0.0
  %4023 = vmatmul.mubr.f32.gmra.mrb[0].mxu0 %v3855
  %v4024 = vpop.f32.mrb[0].mxu0
  %v4025 = vadd.f32 0.0, %v4024
  %v4026 = vpop.f32.mrb[0].mxu0
  %4027 = vmatprep.mubr.f32.mxu0 0.0
  %4028 = vmatmul.mubr.f32.gmra.mrb[0].mxu0 %v3858
  %v4029 = vpop.f32.mrb[0].mxu0
  %v4030 = vadd.f32 0.0, %v4029
  %v4031 = vpop.f32.mrb[0].mxu0
  %4032 = vmatprep.mubr.f32.mxu0 0.0
  %4033 = vmatmul.mubr.f32.gmra.mrb[0].mxu0 %v3861
  %v4034 = vpop.f32.mrb[0].mxu0
  %v4035 = vadd.f32 0.0, %v4034
  %v4036 = vpop.f32.mrb[0].mxu0
  %4037 = vmatprep.mubr.f32.mxu0 0.0
  %4038 = vmatmul.mubr.f32.gmra.mrb[0].mxu0 %v3864
  %v4039 = vpop.f32.mrb[0].mxu0
  %v4040 = vadd.f32 0.0, %v4039
  %v4041 = vpop.f32.mrb[0].mxu0
  %4042 = vmatprep.mubr.f32.mxu0 0.0
  %4043 = vmatmul.mubr.f32.gmra.mrb[0].mxu0 %v3867
  %v4044 = vpop.f32.mrb[0].mxu0
  %v4045 = vadd.f32 0.0, %v4044
  %v4046 = vpop.f32.mrb[0].mxu0
  %4047 = vmatprep.mubr.f32.mxu0 0.0
  %4048 = vmatmul.mubr.f32.gmra.mrb[0].mxu0 %v3870
  %v4049 = vpop.f32.mrb[0].mxu0
  %v4050 = vadd.f32 0.0, %v4049
  %v4051 = vpop.f32.mrb[0].mxu0
  %4052 = vmatprep.mubr.f32.mxu0 0.0
  %4053 = vmatmul.mubr.f32.gmra.mrb[0].mxu0 %v3873
  %v4054 = vpop.f32.mrb[0].mxu0
  %v4055 = vadd.f32 0.0, %v4054
  %v4056 = vpop.f32.mrb[0].mxu0
  %4057 = vmatprep.mubr.f32.mxu0 0.0
  %4058 = vmatmul.mubr.f32.gmra.mrb[0].mxu0 %v3876
  %v4059 = vpop.f32.mrb[0].mxu0
  %v4060 = vadd.f32 0.0, %v4059
  %v4061 = vpop.f32.mrb[0].mxu0
  %4062 = vmatprep.mubr.f32.mxu0 0.0
  %4063 = vmatmul.mubr.f32.gmra.mrb[0].mxu0 %v3879
  %v4064 = vpop.f32.mrb[0].mxu0
  %v4065 = vadd.f32 0.0, %v4064
  %v4066 = vpop.f32.mrb[0].mxu0
  %4067 = vmatprep.mubr.f32.mxu0 0.0
  %4068 = vmatmul.mubr.f32.gmra.mrb[0].mxu0 %v3882
  %v4069 = vpop.f32.mrb[0].mxu0
  %v4070 = vadd.f32 0.0, %v4069
  %v4071 = vpop.f32.mrb[0].mxu0
  %4072 = vmatprep.mubr.f32.mxu0 0.0
  %4073 = vmatmul.mubr.f32.gmra.mrb[0].mxu0 %v3885
  %v4074 = vpop.f32.mrb[0].mxu0
  %v4075 = vadd.f32 0.0, %v4074
  %v4076 = vpop.f32.mrb[0].mxu0
  %4077 = vmatprep.mubr.f32.mxu0 0.0
  %4078 = vmatmul.mubr.f32.gmra.mrb[0].mxu0 %v3888
  %v4079 = vpop.f32.mrb[0].mxu0
  %v4080 = vadd.f32 0.0, %v4079
  %v4081 = vpop.f32.mrb[0].mxu0
  %4082 = vmatprep.mubr.f32.mxu0 0.0
  %4083 = vmatmul.mubr.f32.gmra.mrb[0].mxu0 %v3891
  %v4084 = vpop.f32.mrb[0].mxu0
  %v4085 = vadd.f32 0.0, %v4084
  %v4086 = vpop.f32.mrb[0].mxu0
  %4087 = vmatprep.mubr.f32.mxu0 0.0
  %4088 = vmatmul.mubr.f32.gmra.mrb[0].mxu0 %v3894
  %v4089 = vpop.f32.mrb[0].mxu0
  %v4090 = vadd.f32 0.0, %v4089
  %v4091 = vpop.f32.mrb[0].mxu0
  %4092 = vmatprep.mubr.f32.mxu0 0.0
  %4093 = vmatmul.mubr.f32.gmra.mrb[0].mxu0 %v3897
  %v4094 = vpop.f32.mrb[0].mxu0
  %v4095 = vadd.f32 0.0, %v4094
  %v4096 = vpop.f32.mrb[0].mxu0
  %4097 = vmatprep.mubr.f32.mxu0 0.0
  %4098 = vmatmul.mubr.f32.gmra.mrb[0].mxu0 %v3900
  %v4099 = vpop.f32.mrb[0].mxu0
  %v4100 = vadd.f32 0.0, %v4099
  %v4101 = vpop.f32.mrb[0].mxu0
  %4102 = vmatprep.mubr.f32.mxu0 0.0
  %4103 = vmatmul.mubr.f32.gmra.mrb[0].mxu0 %v3903
  %v4104 = vpop.f32.mrb[0].mxu0
  %v4105 = vadd.f32 0.0, %v4104
  %v4106 = vpop.f32.mrb[0].mxu0
  %4107 = vmatprep.mubr.f32.mxu0 0.0
  %4108 = vmatmul.mubr.f32.gmra.mrb[0].mxu0 %v3906
  %v4109 = vpop.f32.mrb[0].mxu0
  %v4110 = vadd.f32 0.0, %v4109
  %v4111 = vpop.f32.mrb[0].mxu0
  %4112 = vmatprep.mubr.f32.mxu0 0.0
  %4113 = vmatmul.mubr.f32.gmra.mrb[0].mxu0 %v3909
  %v4114 = vpop.f32.mrb[0].mxu0
  %v4115 = vadd.f32 0.0, %v4114
  %v4116 = vpop.f32.mrb[0].mxu0
  %4117 = vmatprep.mubr.f32.mxu0 0.0
  %4118 = vmatmul.mubr.f32.gmra.mrb[0].mxu0 %v3912
  %v4119 = vpop.f32.mrb[0].mxu0
  %v4120 = vadd.f32 0.0, %v4119
  %v4121 = vpop.f32.mrb[0].mxu0
  %4122 = vmatprep.mubr.f32.mxu0 0.0
  %4123 = vmatmul.mubr.f32.gmra.mrb[0].mxu0 %v3915
  %v4124 = vpop.f32.mrb[0].mxu0
  %v4125 = vadd.f32 0.0, %v4124
  %v4126 = vpop.f32.mrb[0].mxu0
  %4127 = vmatprep.mubr.f32.mxu0 0.0
  %4128 = vmatmul.mubr.f32.gmra.mrb[0].mxu0 %v3918
  %v4129 = vpop.f32.mrb[0].mxu0
  %v4130 = vadd.f32 0.0, %v4129
  %v4131 = vpop.f32.mrb[0].mxu0
  %4132 = vmatprep.mubr.f32.mxu0 0.0
  %4133 = vmatmul.mubr.f32.gmra.mrb[0].mxu0 %v3921
  %v4134 = vpop.f32.mrb[0].mxu0
  %v4135 = vadd.f32 0.0, %v4134
  %v4136 = vpop.f32.mrb[0].mxu0
  %4137 = vmatprep.mubr.f32.mxu0 0.0
  %4138 = vmatmul.mubr.f32.gmra.mrb[0].mxu0 %v3924
  %v4139 = vpop.f32.mrb[0].mxu0
  %v4140 = vadd.f32 0.0, %v4139
  %v4141 = vpop.f32.mrb[0].mxu0
  %4142 = vmatprep.mubr.f32.mxu0 0.0
  %4143 = vmatmul.mubr.f32.gmra.mrb[0].mxu0 %v3927
  %v4144 = vpop.f32.mrb[0].mxu0
  %v4145 = vadd.f32 0.0, %v4144
  %v4146 = vpop.f32.mrb[0].mxu0
  %4147 = vmatprep.mubr.f32.mxu0 0.0
  %4148 = vmatmul.mubr.f32.gmra.mrb[0].mxu0 %v3930
  %v4149 = vpop.f32.mrb[0].mxu0
  %v4150 = vadd.f32 0.0, %v4149
  %v4151 = vpop.f32.mrb[0].mxu0
  %4152 = vmatprep.mubr.f32.mxu0 0.0
  %4153 = vmatmul.mubr.f32.gmra.mrb[0].mxu0 %v3933
  %v4154 = vpop.f32.mrb[0].mxu0
  %v4155 = vadd.f32 0.0, %v4154
  %v4156 = vpop.f32.mrb[0].mxu0
  %4157 = vmatprep.mubr.f32.mxu0 0.0
  %4158 = vmatmul.mubr.f32.gmra.mrb[0].mxu0 %v3936
  %v4159 = vpop.f32.mrb[0].mxu0
  %v4160 = vadd.f32 0.0, %v4159
  %v4161 = vpop.f32.mrb[0].mxu0
  %4162 = vdwg.mxu0
  %v4163 = vadd.f32 %v3741, %v4005
  %v4164 = vadd.f32 %v3742, %v4010
  %v4165 = vadd.f32 %v3743, %v4015
  %v4166 = vadd.f32 %v3744, %v4020
  %v4167 = vadd.f32 %v3745, %v4025
  %v4168 = vadd.f32 %v3746, %v4030
  %v4169 = vadd.f32 %v3747, %v4035
  %v4170 = vadd.f32 %v3748, %v4040
  %v4171 = vadd.f32 %v3749, %v4045
  %v4172 = vadd.f32 %v3750, %v4050
  %v4173 = vadd.f32 %v3751, %v4055
  %v4174 = vadd.f32 %v3752, %v4060
  %v4175 = vadd.f32 %v3753, %v4065
  %v4176 = vadd.f32 %v3754, %v4070
  %v4177 = vadd.f32 %v3755, %v4075
  %v4178 = vadd.f32 %v3756, %v4080
  %v4179 = vadd.f32 %v3757, %v4085
  %v4180 = vadd.f32 %v3758, %v4090
  %v4181 = vadd.f32 %v3759, %v4095
  %v4182 = vadd.f32 %v3760, %v4100
  %v4183 = vadd.f32 %v3761, %v4105
  %v4184 = vadd.f32 %v3762, %v4110
  %v4185 = vadd.f32 %v3763, %v4115
  %v4186 = vadd.f32 %v3764, %v4120
  %v4187 = vadd.f32 %v3765, %v4125
  %v4188 = vadd.f32 %v3766, %v4130
  %v4189 = vadd.f32 %v3767, %v4135
  %v4190 = vadd.f32 %v3768, %v4140
  %v4191 = vadd.f32 %v3769, %v4145
  %v4192 = vadd.f32 %v3770, %v4150
  %v4193 = vadd.f32 %v3771, %v4155
  %v4194 = vadd.f32 %v3772, %v4160
  %v4195 = vld [vmem:[#allocation2 + $0x10] sm:$0xff]
  %v4196 = vld [vmem:[#allocation2 + $0x18] sm:$0xff]
  %v4197 = vld [vmem:[#allocation2 + $0x20] sm:$0xff]
  %v4198 = vld [vmem:[#allocation2 + $0x28] sm:$0xff]
  %v4199 = vld [vmem:[#allocation2 + $0x30] sm:$0xff]
  %v4200 = vld [vmem:[#allocation2 + $0x38] sm:$0xff]
  %v4201 = vld [vmem:[#allocation2 + $0x40] sm:$0xff]
  %v4202 = vld [vmem:[#allocation2 + $0x48] sm:$0xff]
  %v4203 = vld [vmem:[#allocation2 + $0x50] sm:$0xff]
  %v4204 = vld [vmem:[#allocation2 + $0x58] sm:$0xff]
  %v4205 = vld [vmem:[#allocation2 + $0x60] sm:$0xff]
  %v4206 = vld [vmem:[#allocation2 + $0x68] sm:$0xff]
  %v4207 = vld [vmem:[#allocation2 + $0x70] sm:$0xff]
  %v4208 = vld [vmem:[#allocation2 + $0x78] sm:$0xff]
  %v4209 = vld [vmem:[#allocation2 + $0x80] sm:$0xff]
  %v4210 = vld [vmem:[#allocation2 + $0x88] sm:$0xff]
  %v4211 = vld [vmem:[#allocation2 + $0x90] sm:$0xff]
  %v4212 = vld [vmem:[#allocation2 + $0x98] sm:$0xff]
  %v4213 = vld [vmem:[#allocation2 + $0xa0] sm:$0xff]
  %v4214 = vld [vmem:[#allocation2 + $0xa8] sm:$0xff]
  %v4215 = vld [vmem:[#allocation2 + $0xb0] sm:$0xff]
  %v4216 = vld [vmem:[#allocation2 + $0xb8] sm:$0xff]
  %v4217 = vld [vmem:[#allocation2 + $0xc0] sm:$0xff]
  %v4218 = vld [vmem:[#allocation2 + $0xc8] sm:$0xff]
  %v4219 = vld [vmem:[#allocation2 + $0xd0] sm:$0xff]
  %v4220 = vld [vmem:[#allocation2 + $0xd8] sm:$0xff]
  %v4221 = vld [vmem:[#allocation2 + $0xe0] sm:$0xff]
  %v4222 = vld [vmem:[#allocation2 + $0xe8] sm:$0xff]
  %v4223 = vld [vmem:[#allocation2 + $0xf0] sm:$0xff]
  %v4224 = vld [vmem:[#allocation2 + $0xf8] sm:$0xff]
  %v4225 = vld [vmem:[#allocation2 + $0x100] sm:$0xff]
  %v4226 = vld [vmem:[#allocation2 + $0x108] sm:$0xff]
  %s4227 = scalar_lea.vmem %s3, 128
  %v4228 = vld [vmem:[%s4227] sm:$0xff]
  %v4229 = vld [vmem:[%s4227 + $0x8] sm:$0xff]
  %v4230 = vld [vmem:[%s4227 + $0x10] sm:$0xff]
  %v4231 = vld [vmem:[%s4227 + $0x18] sm:$0xff]
  %v4233 = vsel %vm1638, %v4195, 0
  %v4236 = vsel %vm1638, %v4196, 0
  %v4239 = vsel %vm1638, %v4197, 0
  %v4242 = vsel %vm1638, %v4198, 0
  %v4245 = vsel %vm1638, %v4199, 0
  %v4248 = vsel %vm1638, %v4200, 0
  %v4251 = vsel %vm1638, %v4201, 0
  %v4254 = vsel %vm1638, %v4202, 0
  %v4257 = vsel %vm1638, %v4203, 0
  %v4260 = vsel %vm1638, %v4204, 0
  %v4263 = vsel %vm1638, %v4205, 0
  %v4266 = vsel %vm1638, %v4206, 0
  %v4269 = vsel %vm1638, %v4207, 0
  %v4272 = vsel %vm1638, %v4208, 0
  %v4275 = vsel %vm1638, %v4209, 0
  %v4278 = vsel %vm1638, %v4210, 0
  %v4281 = vsel %vm1638, %v4211, 0
  %v4284 = vsel %vm1638, %v4212, 0
  %v4287 = vsel %vm1638, %v4213, 0
  %v4290 = vsel %vm1638, %v4214, 0
  %v4293 = vsel %vm1638, %v4215, 0
  %v4296 = vsel %vm1638, %v4216, 0
  %v4299 = vsel %vm1638, %v4217, 0
  %v4302 = vsel %vm1638, %v4218, 0
  %v4305 = vsel %vm1638, %v4219, 0
  %v4308 = vsel %vm1638, %v4220, 0
  %v4311 = vsel %vm1638, %v4221, 0
  %v4314 = vsel %vm1638, %v4222, 0
  %v4317 = vsel %vm1638, %v4223, 0
  %v4320 = vsel %vm1638, %v4224, 0
  %v4323 = vsel %vm1638, %v4225, 0
  %v4326 = vsel %vm1638, %v4226, 0
  %4328 = vmatprep.subr.mxu0 0.0
  %4329 = vmatpush1.msra.mxu0 %v4228
  %4330 = vmatprep.subr.mxu0 0.0
  %4331 = vmatpush1.msra.mxu0 %v4229
  %4332 = vmatprep.subr.mxu0 0.0
  %4333 = vmatpush1.msra.mxu0 %v4230
  %4334 = vmatprep.subr.mxu0 0.0
  %4335 = vmatpush1.msra.mxu0 %v4231
  %4336 = vmatprep.subr.mxu0 0.0
  %4337 = vmatpush1.msra.mxu0 0.0
  %4338 = vmatprep.subr.mxu0 0.0
  %4339 = vmatpush1.msra.mxu0 0.0
  %4340 = vmatprep.subr.mxu0 0.0
  %4341 = vmatpush1.msra.mxu0 0.0
  %4342 = vmatprep.subr.mxu0 0.0
  %4343 = vmatpush1.msra.mxu0 0.0
  %4344 = vmatprep.subr.mxu0 0.0
  %4345 = vmatpush1.msra.mxu0 0.0
  %4346 = vmatprep.subr.mxu0 0.0
  %4347 = vmatpush1.msra.mxu0 0.0
  %4348 = vmatprep.subr.mxu0 0.0
  %4349 = vmatpush1.msra.mxu0 0.0
  %4350 = vmatprep.subr.mxu0 0.0
  %4351 = vmatpush1.msra.mxu0 0.0
  %4352 = vmatprep.subr.mxu0 0.0
  %4353 = vmatpush1.msra.mxu0 0.0
  %4354 = vmatprep.subr.mxu0 0.0
  %4355 = vmatpush1.msra.mxu0 0.0
  %4356 = vmatprep.subr.mxu0 0.0
  %4357 = vmatpush1.msra.mxu0 0.0
  %4358 = vmatprep.subr.mxu0 0.0
  %4359 = vmatpush1.msra.mxu0 0.0
  %4360 = vmatprep.subr.mxu0 0.0
  %4361 = vmatpush1.msra.mxu0 0.0
  %4362 = vmatprep.subr.mxu0 0.0
  %4363 = vmatpush1.msra.mxu0 0.0
  %4364 = vmatprep.subr.mxu0 0.0
  %4365 = vmatpush1.msra.mxu0 0.0
  %4366 = vmatprep.subr.mxu0 0.0
  %4367 = vmatpush1.msra.mxu0 0.0
  %4368 = vmatprep.subr.mxu0 0.0
  %4369 = vmatpush1.msra.mxu0 0.0
  %4370 = vmatprep.subr.mxu0 0.0
  %4371 = vmatpush1.msra.mxu0 0.0
  %4372 = vmatprep.subr.mxu0 0.0
  %4373 = vmatpush1.msra.mxu0 0.0
  %4374 = vmatprep.subr.mxu0 0.0
  %4375 = vmatpush1.msra.mxu0 0.0
  %4376 = vmatprep.subr.mxu0 0.0
  %4377 = vmatpush1.msra.mxu0 0.0
  %4378 = vmatprep.subr.mxu0 0.0
  %4379 = vmatpush1.msra.mxu0 0.0
  %4380 = vmatprep.subr.mxu0 0.0
  %4381 = vmatpush1.msra.mxu0 0.0
  %4382 = vmatprep.subr.mxu0 0.0
  %4383 = vmatpush1.msra.mxu0 0.0
  %4384 = vmatprep.subr.mxu0 0.0
  %4385 = vmatpush1.msra.mxu0 0.0
  %4386 = vmatprep.subr.mxu0 0.0
  %4387 = vmatpush1.msra.mxu0 0.0
  %4388 = vmatprep.subr.mxu0 0.0
  %4389 = vmatpush1.msra.mxu0 0.0
  %4390 = vmatprep.subr.mxu0 0.0
  %4391 = vmatpush1.msra.mxu0 0.0
  %4392 = vmatprep.mubr.f32.mxu0 0.0
  %4393 = vmatmul.mubr.f32.gmra.mrb[0].mxu0 %v4233
  %v4394 = vpop.f32.mrb[0].mxu0
  %v4395 = vadd.f32 0.0, %v4394
  %v4396 = vpop.f32.mrb[0].mxu0
  %4397 = vmatprep.mubr.f32.mxu0 0.0
  %4398 = vmatmul.mubr.f32.gmra.mrb[0].mxu0 %v4236
  %v4399 = vpop.f32.mrb[0].mxu0
  %v4400 = vadd.f32 0.0, %v4399
  %v4401 = vpop.f32.mrb[0].mxu0
  %4402 = vmatprep.mubr.f32.mxu0 0.0
  %4403 = vmatmul.mubr.f32.gmra.mrb[0].mxu0 %v4239
  %v4404 = vpop.f32.mrb[0].mxu0
  %v4405 = vadd.f32 0.0, %v4404
  %v4406 = vpop.f32.mrb[0].mxu0
  %4407 = vmatprep.mubr.f32.mxu0 0.0
  %4408 = vmatmul.mubr.f32.gmra.mrb[0].mxu0 %v4242
  %v4409 = vpop.f32.mrb[0].mxu0
  %v4410 = vadd.f32 0.0, %v4409
  %v4411 = vpop.f32.mrb[0].mxu0
  %4412 = vmatprep.mubr.f32.mxu0 0.0
  %4413 = vmatmul.mubr.f32.gmra.mrb[0].mxu0 %v4245
  %v4414 = vpop.f32.mrb[0].mxu0
  %v4415 = vadd.f32 0.0, %v4414
  %v4416 = vpop.f32.mrb[0].mxu0
  %4417 = vmatprep.mubr.f32.mxu0 0.0
  %4418 = vmatmul.mubr.f32.gmra.mrb[0].mxu0 %v4248
  %v4419 = vpop.f32.mrb[0].mxu0
  %v4420 = vadd.f32 0.0, %v4419
  %v4421 = vpop.f32.mrb[0].mxu0
  %4422 = vmatprep.mubr.f32.mxu0 0.0
  %4423 = vmatmul.mubr.f32.gmra.mrb[0].mxu0 %v4251
  %v4424 = vpop.f32.mrb[0].mxu0
  %v4425 = vadd.f32 0.0, %v4424
  %v4426 = vpop.f32.mrb[0].mxu0
  %4427 = vmatprep.mubr.f32.mxu0 0.0
  %4428 = vmatmul.mubr.f32.gmra.mrb[0].mxu0 %v4254
  %v4429 = vpop.f32.mrb[0].mxu0
  %v4430 = vadd.f32 0.0, %v4429
  %v4431 = vpop.f32.mrb[0].mxu0
  %4432 = vmatprep.mubr.f32.mxu0 0.0
  %4433 = vmatmul.mubr.f32.gmra.mrb[0].mxu0 %v4257
  %v4434 = vpop.f32.mrb[0].mxu0
  %v4435 = vadd.f32 0.0, %v4434
  %v4436 = vpop.f32.mrb[0].mxu0
  %4437 = vmatprep.mubr.f32.mxu0 0.0
  %4438 = vmatmul.mubr.f32.gmra.mrb[0].mxu0 %v4260
  %v4439 = vpop.f32.mrb[0].mxu0
  %v4440 = vadd.f32 0.0, %v4439
  %v4441 = vpop.f32.mrb[0].mxu0
  %4442 = vmatprep.mubr.f32.mxu0 0.0
  %4443 = vmatmul.mubr.f32.gmra.mrb[0].mxu0 %v4263
  %v4444 = vpop.f32.mrb[0].mxu0
  %v4445 = vadd.f32 0.0, %v4444
  %v4446 = vpop.f32.mrb[0].mxu0
  %4447 = vmatprep.mubr.f32.mxu0 0.0
  %4448 = vmatmul.mubr.f32.gmra.mrb[0].mxu0 %v4266
  %v4449 = vpop.f32.mrb[0].mxu0
  %v4450 = vadd.f32 0.0, %v4449
  %v4451 = vpop.f32.mrb[0].mxu0
  %4452 = vmatprep.mubr.f32.mxu0 0.0
  %4453 = vmatmul.mubr.f32.gmra.mrb[0].mxu0 %v4269
  %v4454 = vpop.f32.mrb[0].mxu0
  %v4455 = vadd.f32 0.0, %v4454
  %v4456 = vpop.f32.mrb[0].mxu0
  %4457 = vmatprep.mubr.f32.mxu0 0.0
  %4458 = vmatmul.mubr.f32.gmra.mrb[0].mxu0 %v4272
  %v4459 = vpop.f32.mrb[0].mxu0
  %v4460 = vadd.f32 0.0, %v4459
  %v4461 = vpop.f32.mrb[0].mxu0
  %4462 = vmatprep.mubr.f32.mxu0 0.0
  %4463 = vmatmul.mubr.f32.gmra.mrb[0].mxu0 %v4275
  %v4464 = vpop.f32.mrb[0].mxu0
  %v4465 = vadd.f32 0.0, %v4464
  %v4466 = vpop.f32.mrb[0].mxu0
  %4467 = vmatprep.mubr.f32.mxu0 0.0
  %4468 = vmatmul.mubr.f32.gmra.mrb[0].mxu0 %v4278
  %v4469 = vpop.f32.mrb[0].mxu0
  %v4470 = vadd.f32 0.0, %v4469
  %v4471 = vpop.f32.mrb[0].mxu0
  %4472 = vmatprep.mubr.f32.mxu0 0.0
  %4473 = vmatmul.mubr.f32.gmra.mrb[0].mxu0 %v4281
  %v4474 = vpop.f32.mrb[0].mxu0
  %v4475 = vadd.f32 0.0, %v4474
  %v4476 = vpop.f32.mrb[0].mxu0
  %4477 = vmatprep.mubr.f32.mxu0 0.0
  %4478 = vmatmul.mubr.f32.gmra.mrb[0].mxu0 %v4284
  %v4479 = vpop.f32.mrb[0].mxu0
  %v4480 = vadd.f32 0.0, %v4479
  %v4481 = vpop.f32.mrb[0].mxu0
  %4482 = vmatprep.mubr.f32.mxu0 0.0
  %4483 = vmatmul.mubr.f32.gmra.mrb[0].mxu0 %v4287
  %v4484 = vpop.f32.mrb[0].mxu0
  %v4485 = vadd.f32 0.0, %v4484
  %v4486 = vpop.f32.mrb[0].mxu0
  %4487 = vmatprep.mubr.f32.mxu0 0.0
  %4488 = vmatmul.mubr.f32.gmra.mrb[0].mxu0 %v4290
  %v4489 = vpop.f32.mrb[0].mxu0
  %v4490 = vadd.f32 0.0, %v4489
  %v4491 = vpop.f32.mrb[0].mxu0
  %4492 = vmatprep.mubr.f32.mxu0 0.0
  %4493 = vmatmul.mubr.f32.gmra.mrb[0].mxu0 %v4293
  %v4494 = vpop.f32.mrb[0].mxu0
  %v4495 = vadd.f32 0.0, %v4494
  %v4496 = vpop.f32.mrb[0].mxu0
  %4497 = vmatprep.mubr.f32.mxu0 0.0
  %4498 = vmatmul.mubr.f32.gmra.mrb[0].mxu0 %v4296
  %v4499 = vpop.f32.mrb[0].mxu0
  %v4500 = vadd.f32 0.0, %v4499
  %v4501 = vpop.f32.mrb[0].mxu0
  %4502 = vmatprep.mubr.f32.mxu0 0.0
  %4503 = vmatmul.mubr.f32.gmra.mrb[0].mxu0 %v4299
  %v4504 = vpop.f32.mrb[0].mxu0
  %v4505 = vadd.f32 0.0, %v4504
  %v4506 = vpop.f32.mrb[0].mxu0
  %4507 = vmatprep.mubr.f32.mxu0 0.0
  %4508 = vmatmul.mubr.f32.gmra.mrb[0].mxu0 %v4302
  %v4509 = vpop.f32.mrb[0].mxu0
  %v4510 = vadd.f32 0.0, %v4509
  %v4511 = vpop.f32.mrb[0].mxu0
  %4512 = vmatprep.mubr.f32.mxu0 0.0
  %4513 = vmatmul.mubr.f32.gmra.mrb[0].mxu0 %v4305
  %v4514 = vpop.f32.mrb[0].mxu0
  %v4515 = vadd.f32 0.0, %v4514
  %v4516 = vpop.f32.mrb[0].mxu0
  %4517 = vmatprep.mubr.f32.mxu0 0.0
  %4518 = vmatmul.mubr.f32.gmra.mrb[0].mxu0 %v4308
  %v4519 = vpop.f32.mrb[0].mxu0
  %v4520 = vadd.f32 0.0, %v4519
  %v4521 = vpop.f32.mrb[0].mxu0
  %4522 = vmatprep.mubr.f32.mxu0 0.0
  %4523 = vmatmul.mubr.f32.gmra.mrb[0].mxu0 %v4311
  %v4524 = vpop.f32.mrb[0].mxu0
  %v4525 = vadd.f32 0.0, %v4524
  %v4526 = vpop.f32.mrb[0].mxu0
  %4527 = vmatprep.mubr.f32.mxu0 0.0
  %4528 = vmatmul.mubr.f32.gmra.mrb[0].mxu0 %v4314
  %v4529 = vpop.f32.mrb[0].mxu0
  %v4530 = vadd.f32 0.0, %v4529
  %v4531 = vpop.f32.mrb[0].mxu0
  %4532 = vmatprep.mubr.f32.mxu0 0.0
  %4533 = vmatmul.mubr.f32.gmra.mrb[0].mxu0 %v4317
  %v4534 = vpop.f32.mrb[0].mxu0
  %v4535 = vadd.f32 0.0, %v4534
  %v4536 = vpop.f32.mrb[0].mxu0
  %4537 = vmatprep.mubr.f32.mxu0 0.0
  %4538 = vmatmul.mubr.f32.gmra.mrb[0].mxu0 %v4320
  %v4539 = vpop.f32.mrb[0].mxu0
  %v4540 = vadd.f32 0.0, %v4539
  %v4541 = vpop.f32.mrb[0].mxu0
  %4542 = vmatprep.mubr.f32.mxu0 0.0
  %4543 = vmatmul.mubr.f32.gmra.mrb[0].mxu0 %v4323
  %v4544 = vpop.f32.mrb[0].mxu0
  %v4545 = vadd.f32 0.0, %v4544
  %v4546 = vpop.f32.mrb[0].mxu0
  %4547 = vmatprep.mubr.f32.mxu0 0.0
  %4548 = vmatmul.mubr.f32.gmra.mrb[0].mxu0 %v4326
  %v4549 = vpop.f32.mrb[0].mxu0
  %v4550 = vadd.f32 0.0, %v4549
  %v4551 = vpop.f32.mrb[0].mxu0
  %4552 = vdwg.mxu0
  %v4553 = vadd.f32 %v4163, %v4395
  %v4554 = vadd.f32 %v4164, %v4400
  %v4555 = vadd.f32 %v4165, %v4405
  %v4556 = vadd.f32 %v4166, %v4410
  %v4557 = vadd.f32 %v4167, %v4415
  %v4558 = vadd.f32 %v4168, %v4420
  %v4559 = vadd.f32 %v4169, %v4425
  %v4560 = vadd.f32 %v4170, %v4430
  %v4561 = vadd.f32 %v4171, %v4435
  %v4562 = vadd.f32 %v4172, %v4440
  %v4563 = vadd.f32 %v4173, %v4445
  %v4564 = vadd.f32 %v4174, %v4450
  %v4565 = vadd.f32 %v4175, %v4455
  %v4566 = vadd.f32 %v4176, %v4460
  %v4567 = vadd.f32 %v4177, %v4465
  %v4568 = vadd.f32 %v4178, %v4470
  %v4569 = vadd.f32 %v4179, %v4475
  %v4570 = vadd.f32 %v4180, %v4480
  %v4571 = vadd.f32 %v4181, %v4485
  %v4572 = vadd.f32 %v4182, %v4490
  %v4573 = vadd.f32 %v4183, %v4495
  %v4574 = vadd.f32 %v4184, %v4500
  %v4575 = vadd.f32 %v4185, %v4505
  %v4576 = vadd.f32 %v4186, %v4510
  %v4577 = vadd.f32 %v4187, %v4515
  %v4578 = vadd.f32 %v4188, %v4520
  %v4579 = vadd.f32 %v4189, %v4525
  %v4580 = vadd.f32 %v4190, %v4530
  %v4581 = vadd.f32 %v4191, %v4535
  %v4582 = vadd.f32 %v4192, %v4540
  %v4583 = vadd.f32 %v4193, %v4545
  %v4584 = vadd.f32 %v4194, %v4550
  %v4585 = vld [vmem:[#allocation2 + $0x11] sm:$0xff]
  %v4586 = vld [vmem:[#allocation2 + $0x19] sm:$0xff]
  %v4587 = vld [vmem:[#allocation2 + $0x21] sm:$0xff]
  %v4588 = vld [vmem:[#allocation2 + $0x29] sm:$0xff]
  %v4589 = vld [vmem:[#allocation2 + $0x31] sm:$0xff]
  %v4590 = vld [vmem:[#allocation2 + $0x39] sm:$0xff]
  %v4591 = vld [vmem:[#allocation2 + $0x41] sm:$0xff]
  %v4592 = vld [vmem:[#allocation2 + $0x49] sm:$0xff]
  %v4593 = vld [vmem:[#allocation2 + $0x51] sm:$0xff]
  %v4594 = vld [vmem:[#allocation2 + $0x59] sm:$0xff]
  %v4595 = vld [vmem:[#allocation2 + $0x61] sm:$0xff]
  %v4596 = vld [vmem:[#allocation2 + $0x69] sm:$0xff]
  %v4597 = vld [vmem:[#allocation2 + $0x71] sm:$0xff]
  %v4598 = vld [vmem:[#allocation2 + $0x79] sm:$0xff]
  %v4599 = vld [vmem:[#allocation2 + $0x81] sm:$0xff]
  %v4600 = vld [vmem:[#allocation2 + $0x89] sm:$0xff]
  %v4601 = vld [vmem:[#allocation2 + $0x91] sm:$0xff]
  %v4602 = vld [vmem:[#allocation2 + $0x99] sm:$0xff]
  %v4603 = vld [vmem:[#allocation2 + $0xa1] sm:$0xff]
  %v4604 = vld [vmem:[#allocation2 + $0xa9] sm:$0xff]
  %v4605 = vld [vmem:[#allocation2 + $0xb1] sm:$0xff]
  %v4606 = vld [vmem:[#allocation2 + $0xb9] sm:$0xff]
  %v4607 = vld [vmem:[#allocation2 + $0xc1] sm:$0xff]
  %v4608 = vld [vmem:[#allocation2 + $0xc9] sm:$0xff]
  %v4609 = vld [vmem:[#allocation2 + $0xd1] sm:$0xff]
  %v4610 = vld [vmem:[#allocation2 + $0xd9] sm:$0xff]
  %v4611 = vld [vmem:[#allocation2 + $0xe1] sm:$0xff]
  %v4612 = vld [vmem:[#allocation2 + $0xe9] sm:$0xff]
  %v4613 = vld [vmem:[#allocation2 + $0xf1] sm:$0xff]
  %v4614 = vld [vmem:[#allocation2 + $0xf9] sm:$0xff]
  %v4615 = vld [vmem:[#allocation2 + $0x101] sm:$0xff]
  %v4616 = vld [vmem:[#allocation2 + $0x109] sm:$0xff]
  %v4617 = vmul.f32 %v4585, %v2252
  %v4618 = vmul.f32 %v4586, %v2253
  %v4619 = vmul.f32 %v4587, %v2254
  %v4620 = vmul.f32 %v4588, %v2255
  %v4621 = vmul.f32 %v4589, %v2256
  %v4622 = vmul.f32 %v4590, %v2257
  %v4623 = vmul.f32 %v4591, %v2258
  %v4624 = vmul.f32 %v4592, %v2259
  %v4625 = vmul.f32 %v4593, %v2260
  %v4626 = vmul.f32 %v4594, %v2261
  %v4627 = vmul.f32 %v4595, %v2262
  %v4628 = vmul.f32 %v4596, %v2263
  %v4629 = vmul.f32 %v4597, %v2264
  %v4630 = vmul.f32 %v4598, %v2265
  %v4631 = vmul.f32 %v4599, %v2266
  %v4632 = vmul.f32 %v4600, %v2267
  %v4633 = vmul.f32 %v4601, %v2268
  %v4634 = vmul.f32 %v4602, %v2269
  %v4635 = vmul.f32 %v4603, %v2270
  %v4636 = vmul.f32 %v4604, %v2271
  %v4637 = vmul.f32 %v4605, %v2272
  %v4638 = vmul.f32 %v4606, %v2273
  %v4639 = vmul.f32 %v4607, %v2274
  %v4640 = vmul.f32 %v4608, %v2275
  %v4641 = vmul.f32 %v4609, %v2276
  %v4642 = vmul.f32 %v4610, %v2277
  %v4643 = vmul.f32 %v4611, %v2278
  %v4644 = vmul.f32 %v4612, %v2279
  %v4645 = vmul.f32 %v4613, %v2280
  %v4646 = vmul.f32 %v4614, %v2281
  %v4647 = vmul.f32 %v4615, %v2282
  %v4648 = vmul.f32 %v4616, %v2283
  %s4649 = scalar_lea.vmem %s3, 160
  %v4650 = vld [vmem:[%s4649] sm:$0xff]
  %v4651 = vld [vmem:[%s4649 + $0x8] sm:$0xff]
  %v4652 = vld [vmem:[%s4649 + $0x10] sm:$0xff]
  %v4653 = vld [vmem:[%s4649 + $0x18] sm:$0xff]
  %v4655 = vsel %vm1638, %v4617, 0
  %v4658 = vsel %vm1638, %v4618, 0
  %v4661 = vsel %vm1638, %v4619, 0
  %v4664 = vsel %vm1638, %v4620, 0
  %v4667 = vsel %vm1638, %v4621, 0
  %v4670 = vsel %vm1638, %v4622, 0
  %v4673 = vsel %vm1638, %v4623, 0
  %v4676 = vsel %vm1638, %v4624, 0
  %v4679 = vsel %vm1638, %v4625, 0
  %v4682 = vsel %vm1638, %v4626, 0
  %v4685 = vsel %vm1638, %v4627, 0
  %v4688 = vsel %vm1638, %v4628, 0
  %v4691 = vsel %vm1638, %v4629, 0
  %v4694 = vsel %vm1638, %v4630, 0
  %v4697 = vsel %vm1638, %v4631, 0
  %v4700 = vsel %vm1638, %v4632, 0
  %v4703 = vsel %vm1638, %v4633, 0
  %v4706 = vsel %vm1638, %v4634, 0
  %v4709 = vsel %vm1638, %v4635, 0
  %v4712 = vsel %vm1638, %v4636, 0
  %v4715 = vsel %vm1638, %v4637, 0
  %v4718 = vsel %vm1638, %v4638, 0
  %v4721 = vsel %vm1638, %v4639, 0
  %v4724 = vsel %vm1638, %v4640, 0
  %v4727 = vsel %vm1638, %v4641, 0
  %v4730 = vsel %vm1638, %v4642, 0
  %v4733 = vsel %vm1638, %v4643, 0
  %v4736 = vsel %vm1638, %v4644, 0
  %v4739 = vsel %vm1638, %v4645, 0
  %v4742 = vsel %vm1638, %v4646, 0
  %v4745 = vsel %vm1638, %v4647, 0
  %v4748 = vsel %vm1638, %v4648, 0
  %4750 = vmatprep.subr.mxu0 0.0
  %4751 = vmatpush1.msra.mxu0 %v4650
  %4752 = vmatprep.subr.mxu0 0.0
  %4753 = vmatpush1.msra.mxu0 %v4651
  %4754 = vmatprep.subr.mxu0 0.0
  %4755 = vmatpush1.msra.mxu0 %v4652
  %4756 = vmatprep.subr.mxu0 0.0
  %4757 = vmatpush1.msra.mxu0 %v4653
  %4758 = vmatprep.subr.mxu0 0.0
  %4759 = vmatpush1.msra.mxu0 0.0
  %4760 = vmatprep.subr.mxu0 0.0
  %4761 = vmatpush1.msra.mxu0 0.0
  %4762 = vmatprep.subr.mxu0 0.0
  %4763 = vmatpush1.msra.mxu0 0.0
  %4764 = vmatprep.subr.mxu0 0.0
  %4765 = vmatpush1.msra.mxu0 0.0
  %4766 = vmatprep.subr.mxu0 0.0
  %4767 = vmatpush1.msra.mxu0 0.0
  %4768 = vmatprep.subr.mxu0 0.0
  %4769 = vmatpush1.msra.mxu0 0.0
  %4770 = vmatprep.subr.mxu0 0.0
  %4771 = vmatpush1.msra.mxu0 0.0
  %4772 = vmatprep.subr.mxu0 0.0
  %4773 = vmatpush1.msra.mxu0 0.0
  %4774 = vmatprep.subr.mxu0 0.0
  %4775 = vmatpush1.msra.mxu0 0.0
  %4776 = vmatprep.subr.mxu0 0.0
  %4777 = vmatpush1.msra.mxu0 0.0
  %4778 = vmatprep.subr.mxu0 0.0
  %4779 = vmatpush1.msra.mxu0 0.0
  %4780 = vmatprep.subr.mxu0 0.0
  %4781 = vmatpush1.msra.mxu0 0.0
  %4782 = vmatprep.subr.mxu0 0.0
  %4783 = vmatpush1.msra.mxu0 0.0
  %4784 = vmatprep.subr.mxu0 0.0
  %4785 = vmatpush1.msra.mxu0 0.0
  %4786 = vmatprep.subr.mxu0 0.0
  %4787 = vmatpush1.msra.mxu0 0.0
  %4788 = vmatprep.subr.mxu0 0.0
  %4789 = vmatpush1.msra.mxu0 0.0
  %4790 = vmatprep.subr.mxu0 0.0
  %4791 = vmatpush1.msra.mxu0 0.0
  %4792 = vmatprep.subr.mxu0 0.0
  %4793 = vmatpush1.msra.mxu0 0.0
  %4794 = vmatprep.subr.mxu0 0.0
  %4795 = vmatpush1.msra.mxu0 0.0
  %4796 = vmatprep.subr.mxu0 0.0
  %4797 = vmatpush1.msra.mxu0 0.0
  %4798 = vmatprep.subr.mxu0 0.0
  %4799 = vmatpush1.msra.mxu0 0.0
  %4800 = vmatprep.subr.mxu0 0.0
  %4801 = vmatpush1.msra.mxu0 0.0
  %4802 = vmatprep.subr.mxu0 0.0
  %4803 = vmatpush1.msra.mxu0 0.0
  %4804 = vmatprep.subr.mxu0 0.0
  %4805 = vmatpush1.msra.mxu0 0.0
  %4806 = vmatprep.subr.mxu0 0.0
  %4807 = vmatpush1.msra.mxu0 0.0
  %4808 = vmatprep.subr.mxu0 0.0
  %4809 = vmatpush1.msra.mxu0 0.0
  %4810 = vmatprep.subr.mxu0 0.0
  %4811 = vmatpush1.msra.mxu0 0.0
  %4812 = vmatprep.subr.mxu0 0.0
  %4813 = vmatpush1.msra.mxu0 0.0
  %4814 = vmatprep.mubr.f32.mxu0 0.0
  %4815 = vmatmul.mubr.f32.gmra.mrb[0].mxu0 %v4655
  %v4816 = vpop.f32.mrb[0].mxu0
  %v4817 = vadd.f32 0.0, %v4816
  %v4818 = vpop.f32.mrb[0].mxu0
  %4819 = vmatprep.mubr.f32.mxu0 0.0
  %4820 = vmatmul.mubr.f32.gmra.mrb[0].mxu0 %v4658
  %v4821 = vpop.f32.mrb[0].mxu0
  %v4822 = vadd.f32 0.0, %v4821
  %v4823 = vpop.f32.mrb[0].mxu0
  %4824 = vmatprep.mubr.f32.mxu0 0.0
  %4825 = vmatmul.mubr.f32.gmra.mrb[0].mxu0 %v4661
  %v4826 = vpop.f32.mrb[0].mxu0
  %v4827 = vadd.f32 0.0, %v4826
  %v4828 = vpop.f32.mrb[0].mxu0
  %4829 = vmatprep.mubr.f32.mxu0 0.0
  %4830 = vmatmul.mubr.f32.gmra.mrb[0].mxu0 %v4664
  %v4831 = vpop.f32.mrb[0].mxu0
  %v4832 = vadd.f32 0.0, %v4831
  %v4833 = vpop.f32.mrb[0].mxu0
  %4834 = vmatprep.mubr.f32.mxu0 0.0
  %4835 = vmatmul.mubr.f32.gmra.mrb[0].mxu0 %v4667
  %v4836 = vpop.f32.mrb[0].mxu0
  %v4837 = vadd.f32 0.0, %v4836
  %v4838 = vpop.f32.mrb[0].mxu0
  %4839 = vmatprep.mubr.f32.mxu0 0.0
  %4840 = vmatmul.mubr.f32.gmra.mrb[0].mxu0 %v4670
  %v4841 = vpop.f32.mrb[0].mxu0
  %v4842 = vadd.f32 0.0, %v4841
  %v4843 = vpop.f32.mrb[0].mxu0
  %4844 = vmatprep.mubr.f32.mxu0 0.0
  %4845 = vmatmul.mubr.f32.gmra.mrb[0].mxu0 %v4673
  %v4846 = vpop.f32.mrb[0].mxu0
  %v4847 = vadd.f32 0.0, %v4846
  %v4848 = vpop.f32.mrb[0].mxu0
  %4849 = vmatprep.mubr.f32.mxu0 0.0
  %4850 = vmatmul.mubr.f32.gmra.mrb[0].mxu0 %v4676
  %v4851 = vpop.f32.mrb[0].mxu0
  %v4852 = vadd.f32 0.0, %v4851
  %v4853 = vpop.f32.mrb[0].mxu0
  %4854 = vmatprep.mubr.f32.mxu0 0.0
  %4855 = vmatmul.mubr.f32.gmra.mrb[0].mxu0 %v4679
  %v4856 = vpop.f32.mrb[0].mxu0
  %v4857 = vadd.f32 0.0, %v4856
  %v4858 = vpop.f32.mrb[0].mxu0
  %4859 = vmatprep.mubr.f32.mxu0 0.0
  %4860 = vmatmul.mubr.f32.gmra.mrb[0].mxu0 %v4682
  %v4861 = vpop.f32.mrb[0].mxu0
  %v4862 = vadd.f32 0.0, %v4861
  %v4863 = vpop.f32.mrb[0].mxu0
  %4864 = vmatprep.mubr.f32.mxu0 0.0
  %4865 = vmatmul.mubr.f32.gmra.mrb[0].mxu0 %v4685
  %v4866 = vpop.f32.mrb[0].mxu0
  %v4867 = vadd.f32 0.0, %v4866
  %v4868 = vpop.f32.mrb[0].mxu0
  %4869 = vmatprep.mubr.f32.mxu0 0.0
  %4870 = vmatmul.mubr.f32.gmra.mrb[0].mxu0 %v4688
  %v4871 = vpop.f32.mrb[0].mxu0
  %v4872 = vadd.f32 0.0, %v4871
  %v4873 = vpop.f32.mrb[0].mxu0
  %4874 = vmatprep.mubr.f32.mxu0 0.0
  %4875 = vmatmul.mubr.f32.gmra.mrb[0].mxu0 %v4691
  %v4876 = vpop.f32.mrb[0].mxu0
  %v4877 = vadd.f32 0.0, %v4876
  %v4878 = vpop.f32.mrb[0].mxu0
  %4879 = vmatprep.mubr.f32.mxu0 0.0
  %4880 = vmatmul.mubr.f32.gmra.mrb[0].mxu0 %v4694
  %v4881 = vpop.f32.mrb[0].mxu0
  %v4882 = vadd.f32 0.0, %v4881
  %v4883 = vpop.f32.mrb[0].mxu0
  %4884 = vmatprep.mubr.f32.mxu0 0.0
  %4885 = vmatmul.mubr.f32.gmra.mrb[0].mxu0 %v4697
  %v4886 = vpop.f32.mrb[0].mxu0
  %v4887 = vadd.f32 0.0, %v4886
  %v4888 = vpop.f32.mrb[0].mxu0
  %4889 = vmatprep.mubr.f32.mxu0 0.0
  %4890 = vmatmul.mubr.f32.gmra.mrb[0].mxu0 %v4700
  %v4891 = vpop.f32.mrb[0].mxu0
  %v4892 = vadd.f32 0.0, %v4891
  %v4893 = vpop.f32.mrb[0].mxu0
  %4894 = vmatprep.mubr.f32.mxu0 0.0
  %4895 = vmatmul.mubr.f32.gmra.mrb[0].mxu0 %v4703
  %v4896 = vpop.f32.mrb[0].mxu0
  %v4897 = vadd.f32 0.0, %v4896
  %v4898 = vpop.f32.mrb[0].mxu0
  %4899 = vmatprep.mubr.f32.mxu0 0.0
  %4900 = vmatmul.mubr.f32.gmra.mrb[0].mxu0 %v4706
  %v4901 = vpop.f32.mrb[0].mxu0
  %v4902 = vadd.f32 0.0, %v4901
  %v4903 = vpop.f32.mrb[0].mxu0
  %4904 = vmatprep.mubr.f32.mxu0 0.0
  %4905 = vmatmul.mubr.f32.gmra.mrb[0].mxu0 %v4709
  %v4906 = vpop.f32.mrb[0].mxu0
  %v4907 = vadd.f32 0.0, %v4906
  %v4908 = vpop.f32.mrb[0].mxu0
  %4909 = vmatprep.mubr.f32.mxu0 0.0
  %4910 = vmatmul.mubr.f32.gmra.mrb[0].mxu0 %v4712
  %v4911 = vpop.f32.mrb[0].mxu0
  %v4912 = vadd.f32 0.0, %v4911
  %v4913 = vpop.f32.mrb[0].mxu0
  %4914 = vmatprep.mubr.f32.mxu0 0.0
  %4915 = vmatmul.mubr.f32.gmra.mrb[0].mxu0 %v4715
  %v4916 = vpop.f32.mrb[0].mxu0
  %v4917 = vadd.f32 0.0, %v4916
  %v4918 = vpop.f32.mrb[0].mxu0
  %4919 = vmatprep.mubr.f32.mxu0 0.0
  %4920 = vmatmul.mubr.f32.gmra.mrb[0].mxu0 %v4718
  %v4921 = vpop.f32.mrb[0].mxu0
  %v4922 = vadd.f32 0.0, %v4921
  %v4923 = vpop.f32.mrb[0].mxu0
  %4924 = vmatprep.mubr.f32.mxu0 0.0
  %4925 = vmatmul.mubr.f32.gmra.mrb[0].mxu0 %v4721
  %v4926 = vpop.f32.mrb[0].mxu0
  %v4927 = vadd.f32 0.0, %v4926
  %v4928 = vpop.f32.mrb[0].mxu0
  %4929 = vmatprep.mubr.f32.mxu0 0.0
  %4930 = vmatmul.mubr.f32.gmra.mrb[0].mxu0 %v4724
  %v4931 = vpop.f32.mrb[0].mxu0
  %v4932 = vadd.f32 0.0, %v4931
  %v4933 = vpop.f32.mrb[0].mxu0
  %4934 = vmatprep.mubr.f32.mxu0 0.0
  %4935 = vmatmul.mubr.f32.gmra.mrb[0].mxu0 %v4727
  %v4936 = vpop.f32.mrb[0].mxu0
  %v4937 = vadd.f32 0.0, %v4936
  %v4938 = vpop.f32.mrb[0].mxu0
  %4939 = vmatprep.mubr.f32.mxu0 0.0
  %4940 = vmatmul.mubr.f32.gmra.mrb[0].mxu0 %v4730
  %v4941 = vpop.f32.mrb[0].mxu0
  %v4942 = vadd.f32 0.0, %v4941
  %v4943 = vpop.f32.mrb[0].mxu0
  %4944 = vmatprep.mubr.f32.mxu0 0.0
  %4945 = vmatmul.mubr.f32.gmra.mrb[0].mxu0 %v4733
  %v4946 = vpop.f32.mrb[0].mxu0
  %v4947 = vadd.f32 0.0, %v4946
  %v4948 = vpop.f32.mrb[0].mxu0
  %4949 = vmatprep.mubr.f32.mxu0 0.0
  %4950 = vmatmul.mubr.f32.gmra.mrb[0].mxu0 %v4736
  %v4951 = vpop.f32.mrb[0].mxu0
  %v4952 = vadd.f32 0.0, %v4951
  %v4953 = vpop.f32.mrb[0].mxu0
  %4954 = vmatprep.mubr.f32.mxu0 0.0
  %4955 = vmatmul.mubr.f32.gmra.mrb[0].mxu0 %v4739
  %v4956 = vpop.f32.mrb[0].mxu0
  %v4957 = vadd.f32 0.0, %v4956
  %v4958 = vpop.f32.mrb[0].mxu0
  %4959 = vmatprep.mubr.f32.mxu0 0.0
  %4960 = vmatmul.mubr.f32.gmra.mrb[0].mxu0 %v4742
  %v4961 = vpop.f32.mrb[0].mxu0
  %v4962 = vadd.f32 0.0, %v4961
  %v4963 = vpop.f32.mrb[0].mxu0
  %4964 = vmatprep.mubr.f32.mxu0 0.0
  %4965 = vmatmul.mubr.f32.gmra.mrb[0].mxu0 %v4745
  %v4966 = vpop.f32.mrb[0].mxu0
  %v4967 = vadd.f32 0.0, %v4966
  %v4968 = vpop.f32.mrb[0].mxu0
  %4969 = vmatprep.mubr.f32.mxu0 0.0
  %4970 = vmatmul.mubr.f32.gmra.mrb[0].mxu0 %v4748
  %v4971 = vpop.f32.mrb[0].mxu0
  %v4972 = vadd.f32 0.0, %v4971
  %v4973 = vpop.f32.mrb[0].mxu0
  %4974 = vdwg.mxu0
  %v4975 = vadd.f32 %v4553, %v4817
  %v4976 = vadd.f32 %v4554, %v4822
  %v4977 = vadd.f32 %v4555, %v4827
  %v4978 = vadd.f32 %v4556, %v4832
  %v4979 = vadd.f32 %v4557, %v4837
  %v4980 = vadd.f32 %v4558, %v4842
  %v4981 = vadd.f32 %v4559, %v4847
  %v4982 = vadd.f32 %v4560, %v4852
  %v4983 = vadd.f32 %v4561, %v4857
  %v4984 = vadd.f32 %v4562, %v4862
  %v4985 = vadd.f32 %v4563, %v4867
  %v4986 = vadd.f32 %v4564, %v4872
  %v4987 = vadd.f32 %v4565, %v4877
  %v4988 = vadd.f32 %v4566, %v4882
  %v4989 = vadd.f32 %v4567, %v4887
  %v4990 = vadd.f32 %v4568, %v4892
  %v4991 = vadd.f32 %v4569, %v4897
  %v4992 = vadd.f32 %v4570, %v4902
  %v4993 = vadd.f32 %v4571, %v4907
  %v4994 = vadd.f32 %v4572, %v4912
  %v4995 = vadd.f32 %v4573, %v4917
  %v4996 = vadd.f32 %v4574, %v4922
  %v4997 = vadd.f32 %v4575, %v4927
  %v4998 = vadd.f32 %v4576, %v4932
  %v4999 = vadd.f32 %v4577, %v4937
  %v5000 = vadd.f32 %v4578, %v4942
  %v5001 = vadd.f32 %v4579, %v4947
  %v5002 = vadd.f32 %v4580, %v4952
  %v5003 = vadd.f32 %v4581, %v4957
  %v5004 = vadd.f32 %v4582, %v4962
  %v5005 = vadd.f32 %v4583, %v4967
  %v5006 = vadd.f32 %v4584, %v4972
  %v5007 = vld [vmem:[#allocation2 + $0x17] sm:$0xff]
  %v5008 = vld [vmem:[#allocation2 + $0x1f] sm:$0xff]
  %v5009 = vld [vmem:[#allocation2 + $0x27] sm:$0xff]
  %v5010 = vld [vmem:[#allocation2 + $0x2f] sm:$0xff]
  %v5011 = vld [vmem:[#allocation2 + $0x37] sm:$0xff]
  %v5012 = vld [vmem:[#allocation2 + $0x3f] sm:$0xff]
  %v5013 = vld [vmem:[#allocation2 + $0x47] sm:$0xff]
  %v5014 = vld [vmem:[#allocation2 + $0x4f] sm:$0xff]
  %v5015 = vld [vmem:[#allocation2 + $0x57] sm:$0xff]
  %v5016 = vld [vmem:[#allocation2 + $0x5f] sm:$0xff]
  %v5017 = vld [vmem:[#allocation2 + $0x67] sm:$0xff]
  %v5018 = vld [vmem:[#allocation2 + $0x6f] sm:$0xff]
  %v5019 = vld [vmem:[#allocation2 + $0x77] sm:$0xff]
  %v5020 = vld [vmem:[#allocation2 + $0x7f] sm:$0xff]
  %v5021 = vld [vmem:[#allocation2 + $0x87] sm:$0xff]
  %v5022 = vld [vmem:[#allocation2 + $0x8f] sm:$0xff]
  %v5023 = vld [vmem:[#allocation2 + $0x97] sm:$0xff]
  %v5024 = vld [vmem:[#allocation2 + $0x9f] sm:$0xff]
  %v5025 = vld [vmem:[#allocation2 + $0xa7] sm:$0xff]
  %v5026 = vld [vmem:[#allocation2 + $0xaf] sm:$0xff]
  %v5027 = vld [vmem:[#allocation2 + $0xb7] sm:$0xff]
  %v5028 = vld [vmem:[#allocation2 + $0xbf] sm:$0xff]
  %v5029 = vld [vmem:[#allocation2 + $0xc7] sm:$0xff]
  %v5030 = vld [vmem:[#allocation2 + $0xcf] sm:$0xff]
  %v5031 = vld [vmem:[#allocation2 + $0xd7] sm:$0xff]
  %v5032 = vld [vmem:[#allocation2 + $0xdf] sm:$0xff]
  %v5033 = vld [vmem:[#allocation2 + $0xe7] sm:$0xff]
  %v5034 = vld [vmem:[#allocation2 + $0xef] sm:$0xff]
  %v5035 = vld [vmem:[#allocation2 + $0xf7] sm:$0xff]
  %v5036 = vld [vmem:[#allocation2 + $0xff] sm:$0xff]
  %v5037 = vld [vmem:[#allocation2 + $0x107] sm:$0xff]
  %v5038 = vld [vmem:[#allocation2 + $0x10f] sm:$0xff]
  %v5039 = vmul.f32 %v5007, %v2380
  %v5040 = vmul.f32 %v5008, %v2381
  %v5041 = vmul.f32 %v5009, %v2382
  %v5042 = vmul.f32 %v5010, %v2383
  %v5043 = vmul.f32 %v5011, %v2384
  %v5044 = vmul.f32 %v5012, %v2385
  %v5045 = vmul.f32 %v5013, %v2386
  %v5046 = vmul.f32 %v5014, %v2387
  %v5047 = vmul.f32 %v5015, %v2388
  %v5048 = vmul.f32 %v5016, %v2389
  %v5049 = vmul.f32 %v5017, %v2390
  %v5050 = vmul.f32 %v5018, %v2391
  %v5051 = vmul.f32 %v5019, %v2392
  %v5052 = vmul.f32 %v5020, %v2393
  %v5053 = vmul.f32 %v5021, %v2394
  %v5054 = vmul.f32 %v5022, %v2395
  %v5055 = vmul.f32 %v5023, %v2396
  %v5056 = vmul.f32 %v5024, %v2397
  %v5057 = vmul.f32 %v5025, %v2398
  %v5058 = vmul.f32 %v5026, %v2399
  %v5059 = vmul.f32 %v5027, %v2400
  %v5060 = vmul.f32 %v5028, %v2401
  %v5061 = vmul.f32 %v5029, %v2402
  %v5062 = vmul.f32 %v5030, %v2403
  %v5063 = vmul.f32 %v5031, %v2404
  %v5064 = vmul.f32 %v5032, %v2405
  %v5065 = vmul.f32 %v5033, %v2406
  %v5066 = vmul.f32 %v5034, %v2407
  %v5067 = vmul.f32 %v5035, %v2408
  %v5068 = vmul.f32 %v5036, %v2409
  %v5069 = vmul.f32 %v5037, %v2410
  %v5070 = vmul.f32 %v5038, %v2411
  %s5071 = scalar_lea.vmem %s3, 192
  %v5072 = vld [vmem:[%s5071] sm:$0xff]
  %v5073 = vld [vmem:[%s5071 + $0x8] sm:$0xff]
  %v5074 = vld [vmem:[%s5071 + $0x10] sm:$0xff]
  %v5075 = vld [vmem:[%s5071 + $0x18] sm:$0xff]
  %v5077 = vsel %vm1638, %v5039, 0
  %v5080 = vsel %vm1638, %v5040, 0
  %v5083 = vsel %vm1638, %v5041, 0
  %v5086 = vsel %vm1638, %v5042, 0
  %v5089 = vsel %vm1638, %v5043, 0
  %v5092 = vsel %vm1638, %v5044, 0
  %v5095 = vsel %vm1638, %v5045, 0
  %v5098 = vsel %vm1638, %v5046, 0
  %v5101 = vsel %vm1638, %v5047, 0
  %v5104 = vsel %vm1638, %v5048, 0
  %v5107 = vsel %vm1638, %v5049, 0
  %v5110 = vsel %vm1638, %v5050, 0
  %v5113 = vsel %vm1638, %v5051, 0
  %v5116 = vsel %vm1638, %v5052, 0
  %v5119 = vsel %vm1638, %v5053, 0
  %v5122 = vsel %vm1638, %v5054, 0
  %v5125 = vsel %vm1638, %v5055, 0
  %v5128 = vsel %vm1638, %v5056, 0
  %v5131 = vsel %vm1638, %v5057, 0
  %v5134 = vsel %vm1638, %v5058, 0
  %v5137 = vsel %vm1638, %v5059, 0
  %v5140 = vsel %vm1638, %v5060, 0
  %v5143 = vsel %vm1638, %v5061, 0
  %v5146 = vsel %vm1638, %v5062, 0
  %v5149 = vsel %vm1638, %v5063, 0
  %v5152 = vsel %vm1638, %v5064, 0
  %v5155 = vsel %vm1638, %v5065, 0
  %v5158 = vsel %vm1638, %v5066, 0
  %v5161 = vsel %vm1638, %v5067, 0
  %v5164 = vsel %vm1638, %v5068, 0
  %v5167 = vsel %vm1638, %v5069, 0
  %v5170 = vsel %vm1638, %v5070, 0
  %5172 = vmatprep.subr.mxu0 0.0
  %5173 = vmatpush1.msra.mxu0 %v5072
  %5174 = vmatprep.subr.mxu0 0.0
  %5175 = vmatpush1.msra.mxu0 %v5073
  %5176 = vmatprep.subr.mxu0 0.0
  %5177 = vmatpush1.msra.mxu0 %v5074
  %5178 = vmatprep.subr.mxu0 0.0
  %5179 = vmatpush1.msra.mxu0 %v5075
  %5180 = vmatprep.subr.mxu0 0.0
  %5181 = vmatpush1.msra.mxu0 0.0
  %5182 = vmatprep.subr.mxu0 0.0
  %5183 = vmatpush1.msra.mxu0 0.0
  %5184 = vmatprep.subr.mxu0 0.0
  %5185 = vmatpush1.msra.mxu0 0.0
  %5186 = vmatprep.subr.mxu0 0.0
  %5187 = vmatpush1.msra.mxu0 0.0
  %5188 = vmatprep.subr.mxu0 0.0
  %5189 = vmatpush1.msra.mxu0 0.0
  %5190 = vmatprep.subr.mxu0 0.0
  %5191 = vmatpush1.msra.mxu0 0.0
  %5192 = vmatprep.subr.mxu0 0.0
  %5193 = vmatpush1.msra.mxu0 0.0
  %5194 = vmatprep.subr.mxu0 0.0
  %5195 = vmatpush1.msra.mxu0 0.0
  %5196 = vmatprep.subr.mxu0 0.0
  %5197 = vmatpush1.msra.mxu0 0.0
  %5198 = vmatprep.subr.mxu0 0.0
  %5199 = vmatpush1.msra.mxu0 0.0
  %5200 = vmatprep.subr.mxu0 0.0
  %5201 = vmatpush1.msra.mxu0 0.0
  %5202 = vmatprep.subr.mxu0 0.0
  %5203 = vmatpush1.msra.mxu0 0.0
  %5204 = vmatprep.subr.mxu0 0.0
  %5205 = vmatpush1.msra.mxu0 0.0
  %5206 = vmatprep.subr.mxu0 0.0
  %5207 = vmatpush1.msra.mxu0 0.0
  %5208 = vmatprep.subr.mxu0 0.0
  %5209 = vmatpush1.msra.mxu0 0.0
  %5210 = vmatprep.subr.mxu0 0.0
  %5211 = vmatpush1.msra.mxu0 0.0
  %5212 = vmatprep.subr.mxu0 0.0
  %5213 = vmatpush1.msra.mxu0 0.0
  %5214 = vmatprep.subr.mxu0 0.0
  %5215 = vmatpush1.msra.mxu0 0.0
  %5216 = vmatprep.subr.mxu0 0.0
  %5217 = vmatpush1.msra.mxu0 0.0
  %5218 = vmatprep.subr.mxu0 0.0
  %5219 = vmatpush1.msra.mxu0 0.0
  %5220 = vmatprep.subr.mxu0 0.0
  %5221 = vmatpush1.msra.mxu0 0.0
  %5222 = vmatprep.subr.mxu0 0.0
  %5223 = vmatpush1.msra.mxu0 0.0
  %5224 = vmatprep.subr.mxu0 0.0
  %5225 = vmatpush1.msra.mxu0 0.0
  %5226 = vmatprep.subr.mxu0 0.0
  %5227 = vmatpush1.msra.mxu0 0.0
  %5228 = vmatprep.subr.mxu0 0.0
  %5229 = vmatpush1.msra.mxu0 0.0
  %5230 = vmatprep.subr.mxu0 0.0
  %5231 = vmatpush1.msra.mxu0 0.0
  %5232 = vmatprep.subr.mxu0 0.0
  %5233 = vmatpush1.msra.mxu0 0.0
  %5234 = vmatprep.subr.mxu0 0.0
  %5235 = vmatpush1.msra.mxu0 0.0
  %5236 = vmatprep.mubr.f32.mxu0 0.0
  %5237 = vmatmul.mubr.f32.gmra.mrb[0].mxu0 %v5077
  %v5238 = vpop.f32.mrb[0].mxu0
  %v5239 = vadd.f32 0.0, %v5238
  %v5240 = vpop.f32.mrb[0].mxu0
  %5241 = vmatprep.mubr.f32.mxu0 0.0
  %5242 = vmatmul.mubr.f32.gmra.mrb[0].mxu0 %v5080
  %v5243 = vpop.f32.mrb[0].mxu0
  %v5244 = vadd.f32 0.0, %v5243
  %v5245 = vpop.f32.mrb[0].mxu0
  %5246 = vmatprep.mubr.f32.mxu0 0.0
  %5247 = vmatmul.mubr.f32.gmra.mrb[0].mxu0 %v5083
  %v5248 = vpop.f32.mrb[0].mxu0
  %v5249 = vadd.f32 0.0, %v5248
  %v5250 = vpop.f32.mrb[0].mxu0
  %5251 = vmatprep.mubr.f32.mxu0 0.0
  %5252 = vmatmul.mubr.f32.gmra.mrb[0].mxu0 %v5086
  %v5253 = vpop.f32.mrb[0].mxu0
  %v5254 = vadd.f32 0.0, %v5253
  %v5255 = vpop.f32.mrb[0].mxu0
  %5256 = vmatprep.mubr.f32.mxu0 0.0
  %5257 = vmatmul.mubr.f32.gmra.mrb[0].mxu0 %v5089
  %v5258 = vpop.f32.mrb[0].mxu0
  %v5259 = vadd.f32 0.0, %v5258
  %v5260 = vpop.f32.mrb[0].mxu0
  %5261 = vmatprep.mubr.f32.mxu0 0.0
  %5262 = vmatmul.mubr.f32.gmra.mrb[0].mxu0 %v5092
  %v5263 = vpop.f32.mrb[0].mxu0
  %v5264 = vadd.f32 0.0, %v5263
  %v5265 = vpop.f32.mrb[0].mxu0
  %5266 = vmatprep.mubr.f32.mxu0 0.0
  %5267 = vmatmul.mubr.f32.gmra.mrb[0].mxu0 %v5095
  %v5268 = vpop.f32.mrb[0].mxu0
  %v5269 = vadd.f32 0.0, %v5268
  %v5270 = vpop.f32.mrb[0].mxu0
  %5271 = vmatprep.mubr.f32.mxu0 0.0
  %5272 = vmatmul.mubr.f32.gmra.mrb[0].mxu0 %v5098
  %v5273 = vpop.f32.mrb[0].mxu0
  %v5274 = vadd.f32 0.0, %v5273
  %v5275 = vpop.f32.mrb[0].mxu0
  %5276 = vmatprep.mubr.f32.mxu0 0.0
  %5277 = vmatmul.mubr.f32.gmra.mrb[0].mxu0 %v5101
  %v5278 = vpop.f32.mrb[0].mxu0
  %v5279 = vadd.f32 0.0, %v5278
  %v5280 = vpop.f32.mrb[0].mxu0
  %5281 = vmatprep.mubr.f32.mxu0 0.0
  %5282 = vmatmul.mubr.f32.gmra.mrb[0].mxu0 %v5104
  %v5283 = vpop.f32.mrb[0].mxu0
  %v5284 = vadd.f32 0.0, %v5283
  %v5285 = vpop.f32.mrb[0].mxu0
  %5286 = vmatprep.mubr.f32.mxu0 0.0
  %5287 = vmatmul.mubr.f32.gmra.mrb[0].mxu0 %v5107
  %v5288 = vpop.f32.mrb[0].mxu0
  %v5289 = vadd.f32 0.0, %v5288
  %v5290 = vpop.f32.mrb[0].mxu0
  %5291 = vmatprep.mubr.f32.mxu0 0.0
  %5292 = vmatmul.mubr.f32.gmra.mrb[0].mxu0 %v5110
  %v5293 = vpop.f32.mrb[0].mxu0
  %v5294 = vadd.f32 0.0, %v5293
  %v5295 = vpop.f32.mrb[0].mxu0
  %5296 = vmatprep.mubr.f32.mxu0 0.0
  %5297 = vmatmul.mubr.f32.gmra.mrb[0].mxu0 %v5113
  %v5298 = vpop.f32.mrb[0].mxu0
  %v5299 = vadd.f32 0.0, %v5298
  %v5300 = vpop.f32.mrb[0].mxu0
  %5301 = vmatprep.mubr.f32.mxu0 0.0
  %5302 = vmatmul.mubr.f32.gmra.mrb[0].mxu0 %v5116
  %v5303 = vpop.f32.mrb[0].mxu0
  %v5304 = vadd.f32 0.0, %v5303
  %v5305 = vpop.f32.mrb[0].mxu0
  %5306 = vmatprep.mubr.f32.mxu0 0.0
  %5307 = vmatmul.mubr.f32.gmra.mrb[0].mxu0 %v5119
  %v5308 = vpop.f32.mrb[0].mxu0
  %v5309 = vadd.f32 0.0, %v5308
  %v5310 = vpop.f32.mrb[0].mxu0
  %5311 = vmatprep.mubr.f32.mxu0 0.0
  %5312 = vmatmul.mubr.f32.gmra.mrb[0].mxu0 %v5122
  %v5313 = vpop.f32.mrb[0].mxu0
  %v5314 = vadd.f32 0.0, %v5313
  %v5315 = vpop.f32.mrb[0].mxu0
  %5316 = vmatprep.mubr.f32.mxu0 0.0
  %5317 = vmatmul.mubr.f32.gmra.mrb[0].mxu0 %v5125
  %v5318 = vpop.f32.mrb[0].mxu0
  %v5319 = vadd.f32 0.0, %v5318
  %v5320 = vpop.f32.mrb[0].mxu0
  %5321 = vmatprep.mubr.f32.mxu0 0.0
  %5322 = vmatmul.mubr.f32.gmra.mrb[0].mxu0 %v5128
  %v5323 = vpop.f32.mrb[0].mxu0
  %v5324 = vadd.f32 0.0, %v5323
  %v5325 = vpop.f32.mrb[0].mxu0
  %5326 = vmatprep.mubr.f32.mxu0 0.0
  %5327 = vmatmul.mubr.f32.gmra.mrb[0].mxu0 %v5131
  %v5328 = vpop.f32.mrb[0].mxu0
  %v5329 = vadd.f32 0.0, %v5328
  %v5330 = vpop.f32.mrb[0].mxu0
  %5331 = vmatprep.mubr.f32.mxu0 0.0
  %5332 = vmatmul.mubr.f32.gmra.mrb[0].mxu0 %v5134
  %v5333 = vpop.f32.mrb[0].mxu0
  %v5334 = vadd.f32 0.0, %v5333
  %v5335 = vpop.f32.mrb[0].mxu0
  %5336 = vmatprep.mubr.f32.mxu0 0.0
  %5337 = vmatmul.mubr.f32.gmra.mrb[0].mxu0 %v5137
  %v5338 = vpop.f32.mrb[0].mxu0
  %v5339 = vadd.f32 0.0, %v5338
  %v5340 = vpop.f32.mrb[0].mxu0
  %5341 = vmatprep.mubr.f32.mxu0 0.0
  %5342 = vmatmul.mubr.f32.gmra.mrb[0].mxu0 %v5140
  %v5343 = vpop.f32.mrb[0].mxu0
  %v5344 = vadd.f32 0.0, %v5343
  %v5345 = vpop.f32.mrb[0].mxu0
  %5346 = vmatprep.mubr.f32.mxu0 0.0
  %5347 = vmatmul.mubr.f32.gmra.mrb[0].mxu0 %v5143
  %v5348 = vpop.f32.mrb[0].mxu0
  %v5349 = vadd.f32 0.0, %v5348
  %v5350 = vpop.f32.mrb[0].mxu0
  %5351 = vmatprep.mubr.f32.mxu0 0.0
  %5352 = vmatmul.mubr.f32.gmra.mrb[0].mxu0 %v5146
  %v5353 = vpop.f32.mrb[0].mxu0
  %v5354 = vadd.f32 0.0, %v5353
  %v5355 = vpop.f32.mrb[0].mxu0
  %5356 = vmatprep.mubr.f32.mxu0 0.0
  %5357 = vmatmul.mubr.f32.gmra.mrb[0].mxu0 %v5149
  %v5358 = vpop.f32.mrb[0].mxu0
  %v5359 = vadd.f32 0.0, %v5358
  %v5360 = vpop.f32.mrb[0].mxu0
  %5361 = vmatprep.mubr.f32.mxu0 0.0
  %5362 = vmatmul.mubr.f32.gmra.mrb[0].mxu0 %v5152
  %v5363 = vpop.f32.mrb[0].mxu0
  %v5364 = vadd.f32 0.0, %v5363
  %v5365 = vpop.f32.mrb[0].mxu0
  %5366 = vmatprep.mubr.f32.mxu0 0.0
  %5367 = vmatmul.mubr.f32.gmra.mrb[0].mxu0 %v5155
  %v5368 = vpop.f32.mrb[0].mxu0
  %v5369 = vadd.f32 0.0, %v5368
  %v5370 = vpop.f32.mrb[0].mxu0
  %5371 = vmatprep.mubr.f32.mxu0 0.0
  %5372 = vmatmul.mubr.f32.gmra.mrb[0].mxu0 %v5158
  %v5373 = vpop.f32.mrb[0].mxu0
  %v5374 = vadd.f32 0.0, %v5373
  %v5375 = vpop.f32.mrb[0].mxu0
  %5376 = vmatprep.mubr.f32.mxu0 0.0
  %5377 = vmatmul.mubr.f32.gmra.mrb[0].mxu0 %v5161
  %v5378 = vpop.f32.mrb[0].mxu0
  %v5379 = vadd.f32 0.0, %v5378
  %v5380 = vpop.f32.mrb[0].mxu0
  %5381 = vmatprep.mubr.f32.mxu0 0.0
  %5382 = vmatmul.mubr.f32.gmra.mrb[0].mxu0 %v5164
  %v5383 = vpop.f32.mrb[0].mxu0
  %v5384 = vadd.f32 0.0, %v5383
  %v5385 = vpop.f32.mrb[0].mxu0
  %5386 = vmatprep.mubr.f32.mxu0 0.0
  %5387 = vmatmul.mubr.f32.gmra.mrb[0].mxu0 %v5167
  %v5388 = vpop.f32.mrb[0].mxu0
  %v5389 = vadd.f32 0.0, %v5388
  %v5390 = vpop.f32.mrb[0].mxu0
  %5391 = vmatprep.mubr.f32.mxu0 0.0
  %5392 = vmatmul.mubr.f32.gmra.mrb[0].mxu0 %v5170
  %v5393 = vpop.f32.mrb[0].mxu0
  %v5394 = vadd.f32 0.0, %v5393
  %v5395 = vpop.f32.mrb[0].mxu0
  %5396 = vdwg.mxu0
  %v5397 = vadd.f32 %v4975, %v5239
  %v5398 = vadd.f32 %v4976, %v5244
  %v5399 = vadd.f32 %v4977, %v5249
  %v5400 = vadd.f32 %v4978, %v5254
  %v5401 = vadd.f32 %v4979, %v5259
  %v5402 = vadd.f32 %v4980, %v5264
  %v5403 = vadd.f32 %v4981, %v5269
  %v5404 = vadd.f32 %v4982, %v5274
  %v5405 = vadd.f32 %v4983, %v5279
  %v5406 = vadd.f32 %v4984, %v5284
  %v5407 = vadd.f32 %v4985, %v5289
  %v5408 = vadd.f32 %v4986, %v5294
  %v5409 = vadd.f32 %v4987, %v5299
  %v5410 = vadd.f32 %v4988, %v5304
  %v5411 = vadd.f32 %v4989, %v5309
  %v5412 = vadd.f32 %v4990, %v5314
  %v5413 = vadd.f32 %v4991, %v5319
  %v5414 = vadd.f32 %v4992, %v5324
  %v5415 = vadd.f32 %v4993, %v5329
  %v5416 = vadd.f32 %v4994, %v5334
  %v5417 = vadd.f32 %v4995, %v5339
  %v5418 = vadd.f32 %v4996, %v5344
  %v5419 = vadd.f32 %v4997, %v5349
  %v5420 = vadd.f32 %v4998, %v5354
  %v5421 = vadd.f32 %v4999, %v5359
  %v5422 = vadd.f32 %v5000, %v5364
  %v5423 = vadd.f32 %v5001, %v5369
  %v5424 = vadd.f32 %v5002, %v5374
  %v5425 = vadd.f32 %v5003, %v5379
  %v5426 = vadd.f32 %v5004, %v5384
  %v5427 = vadd.f32 %v5005, %v5389
  %v5428 = vadd.f32 %v5006, %v5394
  %v5429 = vld [vmem:[#allocation2 + $0x18] sm:$0xff]
  %v5430 = vld [vmem:[#allocation2 + $0x20] sm:$0xff]
  %v5431 = vld [vmem:[#allocation2 + $0x28] sm:$0xff]
  %v5432 = vld [vmem:[#allocation2 + $0x30] sm:$0xff]
  %v5433 = vld [vmem:[#allocation2 + $0x38] sm:$0xff]
  %v5434 = vld [vmem:[#allocation2 + $0x40] sm:$0xff]
  %v5435 = vld [vmem:[#allocation2 + $0x48] sm:$0xff]
  %v5436 = vld [vmem:[#allocation2 + $0x50] sm:$0xff]
  %v5437 = vld [vmem:[#allocation2 + $0x58] sm:$0xff]
  %v5438 = vld [vmem:[#allocation2 + $0x60] sm:$0xff]
  %v5439 = vld [vmem:[#allocation2 + $0x68] sm:$0xff]
  %v5440 = vld [vmem:[#allocation2 + $0x70] sm:$0xff]
  %v5441 = vld [vmem:[#allocation2 + $0x78] sm:$0xff]
  %v5442 = vld [vmem:[#allocation2 + $0x80] sm:$0xff]
  %v5443 = vld [vmem:[#allocation2 + $0x88] sm:$0xff]
  %v5444 = vld [vmem:[#allocation2 + $0x90] sm:$0xff]
  %v5445 = vld [vmem:[#allocation2 + $0x98] sm:$0xff]
  %v5446 = vld [vmem:[#allocation2 + $0xa0] sm:$0xff]
  %v5447 = vld [vmem:[#allocation2 + $0xa8] sm:$0xff]
  %v5448 = vld [vmem:[#allocation2 + $0xb0] sm:$0xff]
  %v5449 = vld [vmem:[#allocation2 + $0xb8] sm:$0xff]
  %v5450 = vld [vmem:[#allocation2 + $0xc0] sm:$0xff]
  %v5451 = vld [vmem:[#allocation2 + $0xc8] sm:$0xff]
  %v5452 = vld [vmem:[#allocation2 + $0xd0] sm:$0xff]
  %v5453 = vld [vmem:[#allocation2 + $0xd8] sm:$0xff]
  %v5454 = vld [vmem:[#allocation2 + $0xe0] sm:$0xff]
  %v5455 = vld [vmem:[#allocation2 + $0xe8] sm:$0xff]
  %v5456 = vld [vmem:[#allocation2 + $0xf0] sm:$0xff]
  %v5457 = vld [vmem:[#allocation2 + $0xf8] sm:$0xff]
  %v5458 = vld [vmem:[#allocation2 + $0x100] sm:$0xff]
  %v5459 = vld [vmem:[#allocation2 + $0x108] sm:$0xff]
  %v5460 = vld [vmem:[#allocation2 + $0x110] sm:$0xff]
  %v5461 = vmul.f32 %v5429, %v2444
  %v5462 = vmul.f32 %v5430, %v2445
  %v5463 = vmul.f32 %v5431, %v2446
  %v5464 = vmul.f32 %v5432, %v2447
  %v5465 = vmul.f32 %v5433, %v2448
  %v5466 = vmul.f32 %v5434, %v2449
  %v5467 = vmul.f32 %v5435, %v2450
  %v5468 = vmul.f32 %v5436, %v2451
  %v5469 = vmul.f32 %v5437, %v2452
  %v5470 = vmul.f32 %v5438, %v2453
  %v5471 = vmul.f32 %v5439, %v2454
  %v5472 = vmul.f32 %v5440, %v2455
  %v5473 = vmul.f32 %v5441, %v2456
  %v5474 = vmul.f32 %v5442, %v2457
  %v5475 = vmul.f32 %v5443, %v2458
  %v5476 = vmul.f32 %v5444, %v2459
  %v5477 = vmul.f32 %v5445, %v2460
  %v5478 = vmul.f32 %v5446, %v2461
  %v5479 = vmul.f32 %v5447, %v2462
  %v5480 = vmul.f32 %v5448, %v2463
  %v5481 = vmul.f32 %v5449, %v2464
  %v5482 = vmul.f32 %v5450, %v2465
  %v5483 = vmul.f32 %v5451, %v2466
  %v5484 = vmul.f32 %v5452, %v2467
  %v5485 = vmul.f32 %v5453, %v2468
  %v5486 = vmul.f32 %v5454, %v2469
  %v5487 = vmul.f32 %v5455, %v2470
  %v5488 = vmul.f32 %v5456, %v2471
  %v5489 = vmul.f32 %v5457, %v2472
  %v5490 = vmul.f32 %v5458, %v2473
  %v5491 = vmul.f32 %v5459, %v2474
  %v5492 = vmul.f32 %v5460, %v2475
  %s5493 = scalar_lea.vmem %s3, 224
  %v5494 = vld [vmem:[%s5493] sm:$0xff]
  %v5495 = vld [vmem:[%s5493 + $0x8] sm:$0xff]
  %v5496 = vld [vmem:[%s5493 + $0x10] sm:$0xff]
  %v5497 = vld [vmem:[%s5493 + $0x18] sm:$0xff]
  %v5499 = vsel %vm1638, %v5461, 0
  %v5502 = vsel %vm1638, %v5462, 0
  %v5505 = vsel %vm1638, %v5463, 0
  %v5508 = vsel %vm1638, %v5464, 0
  %v5511 = vsel %vm1638, %v5465, 0
  %v5514 = vsel %vm1638, %v5466, 0
  %v5517 = vsel %vm1638, %v5467, 0
  %v5520 = vsel %vm1638, %v5468, 0
  %v5523 = vsel %vm1638, %v5469, 0
  %v5526 = vsel %vm1638, %v5470, 0
  %v5529 = vsel %vm1638, %v5471, 0
  %v5532 = vsel %vm1638, %v5472, 0
  %v5535 = vsel %vm1638, %v5473, 0
  %v5538 = vsel %vm1638, %v5474, 0
  %v5541 = vsel %vm1638, %v5475, 0
  %v5544 = vsel %vm1638, %v5476, 0
  %v5547 = vsel %vm1638, %v5477, 0
  %v5550 = vsel %vm1638, %v5478, 0
  %v5553 = vsel %vm1638, %v5479, 0
  %v5556 = vsel %vm1638, %v5480, 0
  %v5559 = vsel %vm1638, %v5481, 0
  %v5562 = vsel %vm1638, %v5482, 0
  %v5565 = vsel %vm1638, %v5483, 0
  %v5568 = vsel %vm1638, %v5484, 0
  %v5571 = vsel %vm1638, %v5485, 0
  %v5574 = vsel %vm1638, %v5486, 0
  %v5577 = vsel %vm1638, %v5487, 0
  %v5580 = vsel %vm1638, %v5488, 0
  %v5583 = vsel %vm1638, %v5489, 0
  %v5586 = vsel %vm1638, %v5490, 0
  %v5589 = vsel %vm1638, %v5491, 0
  %v5592 = vsel %vm1638, %v5492, 0
  %5594 = vmatprep.subr.mxu0 0.0
  %5595 = vmatpush1.msra.mxu0 %v5494
  %5596 = vmatprep.subr.mxu0 0.0
  %5597 = vmatpush1.msra.mxu0 %v5495
  %5598 = vmatprep.subr.mxu0 0.0
  %5599 = vmatpush1.msra.mxu0 %v5496
  %5600 = vmatprep.subr.mxu0 0.0
  %5601 = vmatpush1.msra.mxu0 %v5497
  %5602 = vmatprep.subr.mxu0 0.0
  %5603 = vmatpush1.msra.mxu0 0.0
  %5604 = vmatprep.subr.mxu0 0.0
  %5605 = vmatpush1.msra.mxu0 0.0
  %5606 = vmatprep.subr.mxu0 0.0
  %5607 = vmatpush1.msra.mxu0 0.0
  %5608 = vmatprep.subr.mxu0 0.0
  %5609 = vmatpush1.msra.mxu0 0.0
  %5610 = vmatprep.subr.mxu0 0.0
  %5611 = vmatpush1.msra.mxu0 0.0
  %5612 = vmatprep.subr.mxu0 0.0
  %5613 = vmatpush1.msra.mxu0 0.0
  %5614 = vmatprep.subr.mxu0 0.0
  %5615 = vmatpush1.msra.mxu0 0.0
  %5616 = vmatprep.subr.mxu0 0.0
  %5617 = vmatpush1.msra.mxu0 0.0
  %5618 = vmatprep.subr.mxu0 0.0
  %5619 = vmatpush1.msra.mxu0 0.0
  %5620 = vmatprep.subr.mxu0 0.0
  %5621 = vmatpush1.msra.mxu0 0.0
  %5622 = vmatprep.subr.mxu0 0.0
  %5623 = vmatpush1.msra.mxu0 0.0
  %5624 = vmatprep.subr.mxu0 0.0
  %5625 = vmatpush1.msra.mxu0 0.0
  %5626 = vmatprep.subr.mxu0 0.0
  %5627 = vmatpush1.msra.mxu0 0.0
  %5628 = vmatprep.subr.mxu0 0.0
  %5629 = vmatpush1.msra.mxu0 0.0
  %5630 = vmatprep.subr.mxu0 0.0
  %5631 = vmatpush1.msra.mxu0 0.0
  %5632 = vmatprep.subr.mxu0 0.0
  %5633 = vmatpush1.msra.mxu0 0.0
  %5634 = vmatprep.subr.mxu0 0.0
  %5635 = vmatpush1.msra.mxu0 0.0
  %5636 = vmatprep.subr.mxu0 0.0
  %5637 = vmatpush1.msra.mxu0 0.0
  %5638 = vmatprep.subr.mxu0 0.0
  %5639 = vmatpush1.msra.mxu0 0.0
  %5640 = vmatprep.subr.mxu0 0.0
  %5641 = vmatpush1.msra.mxu0 0.0
  %5642 = vmatprep.subr.mxu0 0.0
  %5643 = vmatpush1.msra.mxu0 0.0
  %5644 = vmatprep.subr.mxu0 0.0
  %5645 = vmatpush1.msra.mxu0 0.0
  %5646 = vmatprep.subr.mxu0 0.0
  %5647 = vmatpush1.msra.mxu0 0.0
  %5648 = vmatprep.subr.mxu0 0.0
  %5649 = vmatpush1.msra.mxu0 0.0
  %5650 = vmatprep.subr.mxu0 0.0
  %5651 = vmatpush1.msra.mxu0 0.0
  %5652 = vmatprep.subr.mxu0 0.0
  %5653 = vmatpush1.msra.mxu0 0.0
  %5654 = vmatprep.subr.mxu0 0.0
  %5655 = vmatpush1.msra.mxu0 0.0
  %5656 = vmatprep.subr.mxu0 0.0
  %5657 = vmatpush1.msra.mxu0 0.0
  %5658 = vmatprep.mubr.f32.mxu0 0.0
  %5659 = vmatmul.mubr.f32.gmra.mrb[0].mxu0 %v5499
  %v5660 = vpop.f32.mrb[0].mxu0
  %v5661 = vadd.f32 0.0, %v5660
  %v5662 = vpop.f32.mrb[0].mxu0
  %5663 = vmatprep.mubr.f32.mxu0 0.0
  %5664 = vmatmul.mubr.f32.gmra.mrb[0].mxu0 %v5502
  %v5665 = vpop.f32.mrb[0].mxu0
  %v5666 = vadd.f32 0.0, %v5665
  %v5667 = vpop.f32.mrb[0].mxu0
  %5668 = vmatprep.mubr.f32.mxu0 0.0
  %5669 = vmatmul.mubr.f32.gmra.mrb[0].mxu0 %v5505
  %v5670 = vpop.f32.mrb[0].mxu0
  %v5671 = vadd.f32 0.0, %v5670
  %v5672 = vpop.f32.mrb[0].mxu0
  %5673 = vmatprep.mubr.f32.mxu0 0.0
  %5674 = vmatmul.mubr.f32.gmra.mrb[0].mxu0 %v5508
  %v5675 = vpop.f32.mrb[0].mxu0
  %v5676 = vadd.f32 0.0, %v5675
  %v5677 = vpop.f32.mrb[0].mxu0
  %5678 = vmatprep.mubr.f32.mxu0 0.0
  %5679 = vmatmul.mubr.f32.gmra.mrb[0].mxu0 %v5511
  %v5680 = vpop.f32.mrb[0].mxu0
  %v5681 = vadd.f32 0.0, %v5680
  %v5682 = vpop.f32.mrb[0].mxu0
  %5683 = vmatprep.mubr.f32.mxu0 0.0
  %5684 = vmatmul.mubr.f32.gmra.mrb[0].mxu0 %v5514
  %v5685 = vpop.f32.mrb[0].mxu0
  %v5686 = vadd.f32 0.0, %v5685
  %v5687 = vpop.f32.mrb[0].mxu0
  %5688 = vmatprep.mubr.f32.mxu0 0.0
  %5689 = vmatmul.mubr.f32.gmra.mrb[0].mxu0 %v5517
  %v5690 = vpop.f32.mrb[0].mxu0
  %v5691 = vadd.f32 0.0, %v5690
  %v5692 = vpop.f32.mrb[0].mxu0
  %5693 = vmatprep.mubr.f32.mxu0 0.0
  %5694 = vmatmul.mubr.f32.gmra.mrb[0].mxu0 %v5520
  %v5695 = vpop.f32.mrb[0].mxu0
  %v5696 = vadd.f32 0.0, %v5695
  %v5697 = vpop.f32.mrb[0].mxu0
  %5698 = vmatprep.mubr.f32.mxu0 0.0
  %5699 = vmatmul.mubr.f32.gmra.mrb[0].mxu0 %v5523
  %v5700 = vpop.f32.mrb[0].mxu0
  %v5701 = vadd.f32 0.0, %v5700
  %v5702 = vpop.f32.mrb[0].mxu0
  %5703 = vmatprep.mubr.f32.mxu0 0.0
  %5704 = vmatmul.mubr.f32.gmra.mrb[0].mxu0 %v5526
  %v5705 = vpop.f32.mrb[0].mxu0
  %v5706 = vadd.f32 0.0, %v5705
  %v5707 = vpop.f32.mrb[0].mxu0
  %5708 = vmatprep.mubr.f32.mxu0 0.0
  %5709 = vmatmul.mubr.f32.gmra.mrb[0].mxu0 %v5529
  %v5710 = vpop.f32.mrb[0].mxu0
  %v5711 = vadd.f32 0.0, %v5710
  %v5712 = vpop.f32.mrb[0].mxu0
  %5713 = vmatprep.mubr.f32.mxu0 0.0
  %5714 = vmatmul.mubr.f32.gmra.mrb[0].mxu0 %v5532
  %v5715 = vpop.f32.mrb[0].mxu0
  %v5716 = vadd.f32 0.0, %v5715
  %v5717 = vpop.f32.mrb[0].mxu0
  %5718 = vmatprep.mubr.f32.mxu0 0.0
  %5719 = vmatmul.mubr.f32.gmra.mrb[0].mxu0 %v5535
  %v5720 = vpop.f32.mrb[0].mxu0
  %v5721 = vadd.f32 0.0, %v5720
  %v5722 = vpop.f32.mrb[0].mxu0
  %5723 = vmatprep.mubr.f32.mxu0 0.0
  %5724 = vmatmul.mubr.f32.gmra.mrb[0].mxu0 %v5538
  %v5725 = vpop.f32.mrb[0].mxu0
  %v5726 = vadd.f32 0.0, %v5725
  %v5727 = vpop.f32.mrb[0].mxu0
  %5728 = vmatprep.mubr.f32.mxu0 0.0
  %5729 = vmatmul.mubr.f32.gmra.mrb[0].mxu0 %v5541
  %v5730 = vpop.f32.mrb[0].mxu0
  %v5731 = vadd.f32 0.0, %v5730
  %v5732 = vpop.f32.mrb[0].mxu0
  %5733 = vmatprep.mubr.f32.mxu0 0.0
  %5734 = vmatmul.mubr.f32.gmra.mrb[0].mxu0 %v5544
  %v5735 = vpop.f32.mrb[0].mxu0
  %v5736 = vadd.f32 0.0, %v5735
  %v5737 = vpop.f32.mrb[0].mxu0
  %5738 = vmatprep.mubr.f32.mxu0 0.0
  %5739 = vmatmul.mubr.f32.gmra.mrb[0].mxu0 %v5547
  %v5740 = vpop.f32.mrb[0].mxu0
  %v5741 = vadd.f32 0.0, %v5740
  %v5742 = vpop.f32.mrb[0].mxu0
  %5743 = vmatprep.mubr.f32.mxu0 0.0
  %5744 = vmatmul.mubr.f32.gmra.mrb[0].mxu0 %v5550
  %v5745 = vpop.f32.mrb[0].mxu0
  %v5746 = vadd.f32 0.0, %v5745
  %v5747 = vpop.f32.mrb[0].mxu0
  %5748 = vmatprep.mubr.f32.mxu0 0.0
  %5749 = vmatmul.mubr.f32.gmra.mrb[0].mxu0 %v5553
  %v5750 = vpop.f32.mrb[0].mxu0
  %v5751 = vadd.f32 0.0, %v5750
  %v5752 = vpop.f32.mrb[0].mxu0
  %5753 = vmatprep.mubr.f32.mxu0 0.0
  %5754 = vmatmul.mubr.f32.gmra.mrb[0].mxu0 %v5556
  %v5755 = vpop.f32.mrb[0].mxu0
  %v5756 = vadd.f32 0.0, %v5755
  %v5757 = vpop.f32.mrb[0].mxu0
  %5758 = vmatprep.mubr.f32.mxu0 0.0
  %5759 = vmatmul.mubr.f32.gmra.mrb[0].mxu0 %v5559
  %v5760 = vpop.f32.mrb[0].mxu0
  %v5761 = vadd.f32 0.0, %v5760
  %v5762 = vpop.f32.mrb[0].mxu0
  %5763 = vmatprep.mubr.f32.mxu0 0.0
  %5764 = vmatmul.mubr.f32.gmra.mrb[0].mxu0 %v5562
  %v5765 = vpop.f32.mrb[0].mxu0
  %v5766 = vadd.f32 0.0, %v5765
  %v5767 = vpop.f32.mrb[0].mxu0
  %5768 = vmatprep.mubr.f32.mxu0 0.0
  %5769 = vmatmul.mubr.f32.gmra.mrb[0].mxu0 %v5565
  %v5770 = vpop.f32.mrb[0].mxu0
  %v5771 = vadd.f32 0.0, %v5770
  %v5772 = vpop.f32.mrb[0].mxu0
  %5773 = vmatprep.mubr.f32.mxu0 0.0
  %5774 = vmatmul.mubr.f32.gmra.mrb[0].mxu0 %v5568
  %v5775 = vpop.f32.mrb[0].mxu0
  %v5776 = vadd.f32 0.0, %v5775
  %v5777 = vpop.f32.mrb[0].mxu0
  %5778 = vmatprep.mubr.f32.mxu0 0.0
  %5779 = vmatmul.mubr.f32.gmra.mrb[0].mxu0 %v5571
  %v5780 = vpop.f32.mrb[0].mxu0
  %v5781 = vadd.f32 0.0, %v5780
  %v5782 = vpop.f32.mrb[0].mxu0
  %5783 = vmatprep.mubr.f32.mxu0 0.0
  %5784 = vmatmul.mubr.f32.gmra.mrb[0].mxu0 %v5574
  %v5785 = vpop.f32.mrb[0].mxu0
  %v5786 = vadd.f32 0.0, %v5785
  %v5787 = vpop.f32.mrb[0].mxu0
  %5788 = vmatprep.mubr.f32.mxu0 0.0
  %5789 = vmatmul.mubr.f32.gmra.mrb[0].mxu0 %v5577
  %v5790 = vpop.f32.mrb[0].mxu0
  %v5791 = vadd.f32 0.0, %v5790
  %v5792 = vpop.f32.mrb[0].mxu0
  %5793 = vmatprep.mubr.f32.mxu0 0.0
  %5794 = vmatmul.mubr.f32.gmra.mrb[0].mxu0 %v5580
  %v5795 = vpop.f32.mrb[0].mxu0
  %v5796 = vadd.f32 0.0, %v5795
  %v5797 = vpop.f32.mrb[0].mxu0
  %5798 = vmatprep.mubr.f32.mxu0 0.0
  %5799 = vmatmul.mubr.f32.gmra.mrb[0].mxu0 %v5583
  %v5800 = vpop.f32.mrb[0].mxu0
  %v5801 = vadd.f32 0.0, %v5800
  %v5802 = vpop.f32.mrb[0].mxu0
  %5803 = vmatprep.mubr.f32.mxu0 0.0
  %5804 = vmatmul.mubr.f32.gmra.mrb[0].mxu0 %v5586
  %v5805 = vpop.f32.mrb[0].mxu0
  %v5806 = vadd.f32 0.0, %v5805
  %v5807 = vpop.f32.mrb[0].mxu0
  %5808 = vmatprep.mubr.f32.mxu0 0.0
  %5809 = vmatmul.mubr.f32.gmra.mrb[0].mxu0 %v5589
  %v5810 = vpop.f32.mrb[0].mxu0
  %v5811 = vadd.f32 0.0, %v5810
  %v5812 = vpop.f32.mrb[0].mxu0
  %5813 = vmatprep.mubr.f32.mxu0 0.0
  %5814 = vmatmul.mubr.f32.gmra.mrb[0].mxu0 %v5592
  %v5815 = vpop.f32.mrb[0].mxu0
  %v5816 = vadd.f32 0.0, %v5815
  %v5817 = vpop.f32.mrb[0].mxu0
  %5818 = vdwg.mxu0
  %v5819 = vadd.f32 %v5397, %v5661
  %v5820 = vadd.f32 %v5398, %v5666
  %v5821 = vadd.f32 %v5399, %v5671
  %v5822 = vadd.f32 %v5400, %v5676
  %v5823 = vadd.f32 %v5401, %v5681
  %v5824 = vadd.f32 %v5402, %v5686
  %v5825 = vadd.f32 %v5403, %v5691
  %v5826 = vadd.f32 %v5404, %v5696
  %v5827 = vadd.f32 %v5405, %v5701
  %v5828 = vadd.f32 %v5406, %v5706
  %v5829 = vadd.f32 %v5407, %v5711
  %v5830 = vadd.f32 %v5408, %v5716
  %v5831 = vadd.f32 %v5409, %v5721
  %v5832 = vadd.f32 %v5410, %v5726
  %v5833 = vadd.f32 %v5411, %v5731
  %v5834 = vadd.f32 %v5412, %v5736
  %v5835 = vadd.f32 %v5413, %v5741
  %v5836 = vadd.f32 %v5414, %v5746
  %v5837 = vadd.f32 %v5415, %v5751
  %v5838 = vadd.f32 %v5416, %v5756
  %v5839 = vadd.f32 %v5417, %v5761
  %v5840 = vadd.f32 %v5418, %v5766
  %v5841 = vadd.f32 %v5419, %v5771
  %v5842 = vadd.f32 %v5420, %v5776
  %v5843 = vadd.f32 %v5421, %v5781
  %v5844 = vadd.f32 %v5422, %v5786
  %v5845 = vadd.f32 %v5423, %v5791
  %v5846 = vadd.f32 %v5424, %v5796
  %v5847 = vadd.f32 %v5425, %v5801
  %v5848 = vadd.f32 %v5426, %v5806
  %v5849 = vadd.f32 %v5427, %v5811
  %v5850 = vadd.f32 %v5428, %v5816
  %v5851 = vld [vmem:[#allocation2 + $0x19] sm:$0xff]
  %v5852 = vld [vmem:[#allocation2 + $0x21] sm:$0xff]
  %v5853 = vld [vmem:[#allocation2 + $0x29] sm:$0xff]
  %v5854 = vld [vmem:[#allocation2 + $0x31] sm:$0xff]
  %v5855 = vld [vmem:[#allocation2 + $0x39] sm:$0xff]
  %v5856 = vld [vmem:[#allocation2 + $0x41] sm:$0xff]
  %v5857 = vld [vmem:[#allocation2 + $0x49] sm:$0xff]
  %v5858 = vld [vmem:[#allocation2 + $0x51] sm:$0xff]
  %v5859 = vld [vmem:[#allocation2 + $0x59] sm:$0xff]
  %v5860 = vld [vmem:[#allocation2 + $0x61] sm:$0xff]
  %v5861 = vld [vmem:[#allocation2 + $0x69] sm:$0xff]
  %v5862 = vld [vmem:[#allocation2 + $0x71] sm:$0xff]
  %v5863 = vld [vmem:[#allocation2 + $0x79] sm:$0xff]
  %v5864 = vld [vmem:[#allocation2 + $0x81] sm:$0xff]
  %v5865 = vld [vmem:[#allocation2 + $0x89] sm:$0xff]
  %v5866 = vld [vmem:[#allocation2 + $0x91] sm:$0xff]
  %v5867 = vld [vmem:[#allocation2 + $0x99] sm:$0xff]
  %v5868 = vld [vmem:[#allocation2 + $0xa1] sm:$0xff]
  %v5869 = vld [vmem:[#allocation2 + $0xa9] sm:$0xff]
  %v5870 = vld [vmem:[#allocation2 + $0xb1] sm:$0xff]
  %v5871 = vld [vmem:[#allocation2 + $0xb9] sm:$0xff]
  %v5872 = vld [vmem:[#allocation2 + $0xc1] sm:$0xff]
  %v5873 = vld [vmem:[#allocation2 + $0xc9] sm:$0xff]
  %v5874 = vld [vmem:[#allocation2 + $0xd1] sm:$0xff]
  %v5875 = vld [vmem:[#allocation2 + $0xd9] sm:$0xff]
  %v5876 = vld [vmem:[#allocation2 + $0xe1] sm:$0xff]
  %v5877 = vld [vmem:[#allocation2 + $0xe9] sm:$0xff]
  %v5878 = vld [vmem:[#allocation2 + $0xf1] sm:$0xff]
  %v5879 = vld [vmem:[#allocation2 + $0xf9] sm:$0xff]
  %v5880 = vld [vmem:[#allocation2 + $0x101] sm:$0xff]
  %v5881 = vld [vmem:[#allocation2 + $0x109] sm:$0xff]
  %v5882 = vld [vmem:[#allocation2 + $0x111] sm:$0xff]
  %v5883 = vmul.f32 %v5851, %v2540
  %v5884 = vmul.f32 %v5852, %v2541
  %v5885 = vmul.f32 %v5853, %v2542
  %v5886 = vmul.f32 %v5854, %v2543
  %v5887 = vmul.f32 %v5855, %v2544
  %v5888 = vmul.f32 %v5856, %v2545
  %v5889 = vmul.f32 %v5857, %v2546
  %v5890 = vmul.f32 %v5858, %v2547
  %v5891 = vmul.f32 %v5859, %v2548
  %v5892 = vmul.f32 %v5860, %v2549
  %v5893 = vmul.f32 %v5861, %v2550
  %v5894 = vmul.f32 %v5862, %v2551
  %v5895 = vmul.f32 %v5863, %v2552
  %v5896 = vmul.f32 %v5864, %v2553
  %v5897 = vmul.f32 %v5865, %v2554
  %v5898 = vmul.f32 %v5866, %v2555
  %v5899 = vmul.f32 %v5867, %v2556
  %v5900 = vmul.f32 %v5868, %v2557
  %v5901 = vmul.f32 %v5869, %v2558
  %v5902 = vmul.f32 %v5870, %v2559
  %v5903 = vmul.f32 %v5871, %v2560
  %v5904 = vmul.f32 %v5872, %v2561
  %v5905 = vmul.f32 %v5873, %v2562
  %v5906 = vmul.f32 %v5874, %v2563
  %v5907 = vmul.f32 %v5875, %v2564
  %v5908 = vmul.f32 %v5876, %v2565
  %v5909 = vmul.f32 %v5877, %v2566
  %v5910 = vmul.f32 %v5878, %v2567
  %v5911 = vmul.f32 %v5879, %v2568
  %v5912 = vmul.f32 %v5880, %v2569
  %v5913 = vmul.f32 %v5881, %v2570
  %v5914 = vmul.f32 %v5882, %v2571
  %s5915 = scalar_lea.vmem %s3, 256
  %v5916 = vld [vmem:[%s5915] sm:$0xff]
  %v5917 = vld [vmem:[%s5915 + $0x8] sm:$0xff]
  %v5918 = vld [vmem:[%s5915 + $0x10] sm:$0xff]
  %v5919 = vld [vmem:[%s5915 + $0x18] sm:$0xff]
  %v5921 = vsel %vm1638, %v5883, 0
  %v5924 = vsel %vm1638, %v5884, 0
  %v5927 = vsel %vm1638, %v5885, 0
  %v5930 = vsel %vm1638, %v5886, 0
  %v5933 = vsel %vm1638, %v5887, 0
  %v5936 = vsel %vm1638, %v5888, 0
  %v5939 = vsel %vm1638, %v5889, 0
  %v5942 = vsel %vm1638, %v5890, 0
  %v5945 = vsel %vm1638, %v5891, 0
  %v5948 = vsel %vm1638, %v5892, 0
  %v5951 = vsel %vm1638, %v5893, 0
  %v5954 = vsel %vm1638, %v5894, 0
  %v5957 = vsel %vm1638, %v5895, 0
  %v5960 = vsel %vm1638, %v5896, 0
  %v5963 = vsel %vm1638, %v5897, 0
  %v5966 = vsel %vm1638, %v5898, 0
  %v5969 = vsel %vm1638, %v5899, 0
  %v5972 = vsel %vm1638, %v5900, 0
  %v5975 = vsel %vm1638, %v5901, 0
  %v5978 = vsel %vm1638, %v5902, 0
  %v5981 = vsel %vm1638, %v5903, 0
  %v5984 = vsel %vm1638, %v5904, 0
  %v5987 = vsel %vm1638, %v5905, 0
  %v5990 = vsel %vm1638, %v5906, 0
  %v5993 = vsel %vm1638, %v5907, 0
  %v5996 = vsel %vm1638, %v5908, 0
  %v5999 = vsel %vm1638, %v5909, 0
  %v6002 = vsel %vm1638, %v5910, 0
  %v6005 = vsel %vm1638, %v5911, 0
  %v6008 = vsel %vm1638, %v5912, 0
  %v6011 = vsel %vm1638, %v5913, 0
  %v6014 = vsel %vm1638, %v5914, 0
  %6016 = vmatprep.subr.mxu0 0.0
  %6017 = vmatpush1.msra.mxu0 %v5916
  %6018 = vmatprep.subr.mxu0 0.0
  %6019 = vmatpush1.msra.mxu0 %v5917
  %6020 = vmatprep.subr.mxu0 0.0
  %6021 = vmatpush1.msra.mxu0 %v5918
  %6022 = vmatprep.subr.mxu0 0.0
  %6023 = vmatpush1.msra.mxu0 %v5919
  %6024 = vmatprep.subr.mxu0 0.0
  %6025 = vmatpush1.msra.mxu0 0.0
  %6026 = vmatprep.subr.mxu0 0.0
  %6027 = vmatpush1.msra.mxu0 0.0
  %6028 = vmatprep.subr.mxu0 0.0
  %6029 = vmatpush1.msra.mxu0 0.0
  %6030 = vmatprep.subr.mxu0 0.0
  %6031 = vmatpush1.msra.mxu0 0.0
  %6032 = vmatprep.subr.mxu0 0.0
  %6033 = vmatpush1.msra.mxu0 0.0
  %6034 = vmatprep.subr.mxu0 0.0
  %6035 = vmatpush1.msra.mxu0 0.0
  %6036 = vmatprep.subr.mxu0 0.0
  %6037 = vmatpush1.msra.mxu0 0.0
  %6038 = vmatprep.subr.mxu0 0.0
  %6039 = vmatpush1.msra.mxu0 0.0
  %6040 = vmatprep.subr.mxu0 0.0
  %6041 = vmatpush1.msra.mxu0 0.0
  %6042 = vmatprep.subr.mxu0 0.0
  %6043 = vmatpush1.msra.mxu0 0.0
  %6044 = vmatprep.subr.mxu0 0.0
  %6045 = vmatpush1.msra.mxu0 0.0
  %6046 = vmatprep.subr.mxu0 0.0
  %6047 = vmatpush1.msra.mxu0 0.0
  %6048 = vmatprep.subr.mxu0 0.0
  %6049 = vmatpush1.msra.mxu0 0.0
  %6050 = vmatprep.subr.mxu0 0.0
  %6051 = vmatpush1.msra.mxu0 0.0
  %6052 = vmatprep.subr.mxu0 0.0
  %6053 = vmatpush1.msra.mxu0 0.0
  %6054 = vmatprep.subr.mxu0 0.0
  %6055 = vmatpush1.msra.mxu0 0.0
  %6056 = vmatprep.subr.mxu0 0.0
  %6057 = vmatpush1.msra.mxu0 0.0
  %6058 = vmatprep.subr.mxu0 0.0
  %6059 = vmatpush1.msra.mxu0 0.0
  %6060 = vmatprep.subr.mxu0 0.0
  %6061 = vmatpush1.msra.mxu0 0.0
  %6062 = vmatprep.subr.mxu0 0.0
  %6063 = vmatpush1.msra.mxu0 0.0
  %6064 = vmatprep.subr.mxu0 0.0
  %6065 = vmatpush1.msra.mxu0 0.0
  %6066 = vmatprep.subr.mxu0 0.0
  %6067 = vmatpush1.msra.mxu0 0.0
  %6068 = vmatprep.subr.mxu0 0.0
  %6069 = vmatpush1.msra.mxu0 0.0
  %6070 = vmatprep.subr.mxu0 0.0
  %6071 = vmatpush1.msra.mxu0 0.0
  %6072 = vmatprep.subr.mxu0 0.0
  %6073 = vmatpush1.msra.mxu0 0.0
  %6074 = vmatprep.subr.mxu0 0.0
  %6075 = vmatpush1.msra.mxu0 0.0
  %6076 = vmatprep.subr.mxu0 0.0
  %6077 = vmatpush1.msra.mxu0 0.0
  %6078 = vmatprep.subr.mxu0 0.0
  %6079 = vmatpush1.msra.mxu0 0.0
  %6080 = vmatprep.mubr.f32.mxu0 0.0
  %6081 = vmatmul.mubr.f32.gmra.mrb[0].mxu0 %v5921
  %v6082 = vpop.f32.mrb[0].mxu0
  %v6083 = vadd.f32 0.0, %v6082
  %v6084 = vpop.f32.mrb[0].mxu0
  %6085 = vmatprep.mubr.f32.mxu0 0.0
  %6086 = vmatmul.mubr.f32.gmra.mrb[0].mxu0 %v5924
  %v6087 = vpop.f32.mrb[0].mxu0
  %v6088 = vadd.f32 0.0, %v6087
  %v6089 = vpop.f32.mrb[0].mxu0
  %6090 = vmatprep.mubr.f32.mxu0 0.0
  %6091 = vmatmul.mubr.f32.gmra.mrb[0].mxu0 %v5927
  %v6092 = vpop.f32.mrb[0].mxu0
  %v6093 = vadd.f32 0.0, %v6092
  %v6094 = vpop.f32.mrb[0].mxu0
  %6095 = vmatprep.mubr.f32.mxu0 0.0
  %6096 = vmatmul.mubr.f32.gmra.mrb[0].mxu0 %v5930
  %v6097 = vpop.f32.mrb[0].mxu0
  %v6098 = vadd.f32 0.0, %v6097
  %v6099 = vpop.f32.mrb[0].mxu0
  %6100 = vmatprep.mubr.f32.mxu0 0.0
  %6101 = vmatmul.mubr.f32.gmra.mrb[0].mxu0 %v5933
  %v6102 = vpop.f32.mrb[0].mxu0
  %v6103 = vadd.f32 0.0, %v6102
  %v6104 = vpop.f32.mrb[0].mxu0
  %6105 = vmatprep.mubr.f32.mxu0 0.0
  %6106 = vmatmul.mubr.f32.gmra.mrb[0].mxu0 %v5936
  %v6107 = vpop.f32.mrb[0].mxu0
  %v6108 = vadd.f32 0.0, %v6107
  %v6109 = vpop.f32.mrb[0].mxu0
  %6110 = vmatprep.mubr.f32.mxu0 0.0
  %6111 = vmatmul.mubr.f32.gmra.mrb[0].mxu0 %v5939
  %v6112 = vpop.f32.mrb[0].mxu0
  %v6113 = vadd.f32 0.0, %v6112
  %v6114 = vpop.f32.mrb[0].mxu0
  %6115 = vmatprep.mubr.f32.mxu0 0.0
  %6116 = vmatmul.mubr.f32.gmra.mrb[0].mxu0 %v5942
  %v6117 = vpop.f32.mrb[0].mxu0
  %v6118 = vadd.f32 0.0, %v6117
  %v6119 = vpop.f32.mrb[0].mxu0
  %6120 = vmatprep.mubr.f32.mxu0 0.0
  %6121 = vmatmul.mubr.f32.gmra.mrb[0].mxu0 %v5945
  %v6122 = vpop.f32.mrb[0].mxu0
  %v6123 = vadd.f32 0.0, %v6122
  %v6124 = vpop.f32.mrb[0].mxu0
  %6125 = vmatprep.mubr.f32.mxu0 0.0
  %6126 = vmatmul.mubr.f32.gmra.mrb[0].mxu0 %v5948
  %v6127 = vpop.f32.mrb[0].mxu0
  %v6128 = vadd.f32 0.0, %v6127
  %v6129 = vpop.f32.mrb[0].mxu0
  %6130 = vmatprep.mubr.f32.mxu0 0.0
  %6131 = vmatmul.mubr.f32.gmra.mrb[0].mxu0 %v5951
  %v6132 = vpop.f32.mrb[0].mxu0
  %v6133 = vadd.f32 0.0, %v6132
  %v6134 = vpop.f32.mrb[0].mxu0
  %6135 = vmatprep.mubr.f32.mxu0 0.0
  %6136 = vmatmul.mubr.f32.gmra.mrb[0].mxu0 %v5954
  %v6137 = vpop.f32.mrb[0].mxu0
  %v6138 = vadd.f32 0.0, %v6137
  %v6139 = vpop.f32.mrb[0].mxu0
  %6140 = vmatprep.mubr.f32.mxu0 0.0
  %6141 = vmatmul.mubr.f32.gmra.mrb[0].mxu0 %v5957
  %v6142 = vpop.f32.mrb[0].mxu0
  %v6143 = vadd.f32 0.0, %v6142
  %v6144 = vpop.f32.mrb[0].mxu0
  %6145 = vmatprep.mubr.f32.mxu0 0.0
  %6146 = vmatmul.mubr.f32.gmra.mrb[0].mxu0 %v5960
  %v6147 = vpop.f32.mrb[0].mxu0
  %v6148 = vadd.f32 0.0, %v6147
  %v6149 = vpop.f32.mrb[0].mxu0
  %6150 = vmatprep.mubr.f32.mxu0 0.0
  %6151 = vmatmul.mubr.f32.gmra.mrb[0].mxu0 %v5963
  %v6152 = vpop.f32.mrb[0].mxu0
  %v6153 = vadd.f32 0.0, %v6152
  %v6154 = vpop.f32.mrb[0].mxu0
  %6155 = vmatprep.mubr.f32.mxu0 0.0
  %6156 = vmatmul.mubr.f32.gmra.mrb[0].mxu0 %v5966
  %v6157 = vpop.f32.mrb[0].mxu0
  %v6158 = vadd.f32 0.0, %v6157
  %v6159 = vpop.f32.mrb[0].mxu0
  %6160 = vmatprep.mubr.f32.mxu0 0.0
  %6161 = vmatmul.mubr.f32.gmra.mrb[0].mxu0 %v5969
  %v6162 = vpop.f32.mrb[0].mxu0
  %v6163 = vadd.f32 0.0, %v6162
  %v6164 = vpop.f32.mrb[0].mxu0
  %6165 = vmatprep.mubr.f32.mxu0 0.0
  %6166 = vmatmul.mubr.f32.gmra.mrb[0].mxu0 %v5972
  %v6167 = vpop.f32.mrb[0].mxu0
  %v6168 = vadd.f32 0.0, %v6167
  %v6169 = vpop.f32.mrb[0].mxu0
  %6170 = vmatprep.mubr.f32.mxu0 0.0
  %6171 = vmatmul.mubr.f32.gmra.mrb[0].mxu0 %v5975
  %v6172 = vpop.f32.mrb[0].mxu0
  %v6173 = vadd.f32 0.0, %v6172
  %v6174 = vpop.f32.mrb[0].mxu0
  %6175 = vmatprep.mubr.f32.mxu0 0.0
  %6176 = vmatmul.mubr.f32.gmra.mrb[0].mxu0 %v5978
  %v6177 = vpop.f32.mrb[0].mxu0
  %v6178 = vadd.f32 0.0, %v6177
  %v6179 = vpop.f32.mrb[0].mxu0
  %6180 = vmatprep.mubr.f32.mxu0 0.0
  %6181 = vmatmul.mubr.f32.gmra.mrb[0].mxu0 %v5981
  %v6182 = vpop.f32.mrb[0].mxu0
  %v6183 = vadd.f32 0.0, %v6182
  %v6184 = vpop.f32.mrb[0].mxu0
  %6185 = vmatprep.mubr.f32.mxu0 0.0
  %6186 = vmatmul.mubr.f32.gmra.mrb[0].mxu0 %v5984
  %v6187 = vpop.f32.mrb[0].mxu0
  %v6188 = vadd.f32 0.0, %v6187
  %v6189 = vpop.f32.mrb[0].mxu0
  %6190 = vmatprep.mubr.f32.mxu0 0.0
  %6191 = vmatmul.mubr.f32.gmra.mrb[0].mxu0 %v5987
  %v6192 = vpop.f32.mrb[0].mxu0
  %v6193 = vadd.f32 0.0, %v6192
  %v6194 = vpop.f32.mrb[0].mxu0
  %6195 = vmatprep.mubr.f32.mxu0 0.0
  %6196 = vmatmul.mubr.f32.gmra.mrb[0].mxu0 %v5990
  %v6197 = vpop.f32.mrb[0].mxu0
  %v6198 = vadd.f32 0.0, %v6197
  %v6199 = vpop.f32.mrb[0].mxu0
  %6200 = vmatprep.mubr.f32.mxu0 0.0
  %6201 = vmatmul.mubr.f32.gmra.mrb[0].mxu0 %v5993
  %v6202 = vpop.f32.mrb[0].mxu0
  %v6203 = vadd.f32 0.0, %v6202
  %v6204 = vpop.f32.mrb[0].mxu0
  %6205 = vmatprep.mubr.f32.mxu0 0.0
  %6206 = vmatmul.mubr.f32.gmra.mrb[0].mxu0 %v5996
  %v6207 = vpop.f32.mrb[0].mxu0
  %v6208 = vadd.f32 0.0, %v6207
  %v6209 = vpop.f32.mrb[0].mxu0
  %6210 = vmatprep.mubr.f32.mxu0 0.0
  %6211 = vmatmul.mubr.f32.gmra.mrb[0].mxu0 %v5999
  %v6212 = vpop.f32.mrb[0].mxu0
  %v6213 = vadd.f32 0.0, %v6212
  %v6214 = vpop.f32.mrb[0].mxu0
  %6215 = vmatprep.mubr.f32.mxu0 0.0
  %6216 = vmatmul.mubr.f32.gmra.mrb[0].mxu0 %v6002
  %v6217 = vpop.f32.mrb[0].mxu0
  %v6218 = vadd.f32 0.0, %v6217
  %v6219 = vpop.f32.mrb[0].mxu0
  %6220 = vmatprep.mubr.f32.mxu0 0.0
  %6221 = vmatmul.mubr.f32.gmra.mrb[0].mxu0 %v6005
  %v6222 = vpop.f32.mrb[0].mxu0
  %v6223 = vadd.f32 0.0, %v6222
  %v6224 = vpop.f32.mrb[0].mxu0
  %6225 = vmatprep.mubr.f32.mxu0 0.0
  %6226 = vmatmul.mubr.f32.gmra.mrb[0].mxu0 %v6008
  %v6227 = vpop.f32.mrb[0].mxu0
  %v6228 = vadd.f32 0.0, %v6227
  %v6229 = vpop.f32.mrb[0].mxu0
  %6230 = vmatprep.mubr.f32.mxu0 0.0
  %6231 = vmatmul.mubr.f32.gmra.mrb[0].mxu0 %v6011
  %v6232 = vpop.f32.mrb[0].mxu0
  %v6233 = vadd.f32 0.0, %v6232
  %v6234 = vpop.f32.mrb[0].mxu0
  %6235 = vmatprep.mubr.f32.mxu0 0.0
  %6236 = vmatmul.mubr.f32.gmra.mrb[0].mxu0 %v6014
  %v6237 = vpop.f32.mrb[0].mxu0
  %v6238 = vadd.f32 0.0, %v6237
  %v6239 = vpop.f32.mrb[0].mxu0
  %6240 = vdwg.mxu0
  %v6241 = vadd.f32 %v5819, %v6083
  %v6242 = vadd.f32 %v5820, %v6088
  %v6243 = vadd.f32 %v5821, %v6093
  %v6244 = vadd.f32 %v5822, %v6098
  %v6245 = vadd.f32 %v5823, %v6103
  %v6246 = vadd.f32 %v5824, %v6108
  %v6247 = vadd.f32 %v5825, %v6113
  %v6248 = vadd.f32 %v5826, %v6118
  %v6249 = vadd.f32 %v5827, %v6123
  %v6250 = vadd.f32 %v5828, %v6128
  %v6251 = vadd.f32 %v5829, %v6133
  %v6252 = vadd.f32 %v5830, %v6138
  %v6253 = vadd.f32 %v5831, %v6143
  %v6254 = vadd.f32 %v5832, %v6148
  %v6255 = vadd.f32 %v5833, %v6153
  %v6256 = vadd.f32 %v5834, %v6158
  %v6257 = vadd.f32 %v5835, %v6163
  %v6258 = vadd.f32 %v5836, %v6168
  %v6259 = vadd.f32 %v5837, %v6173
  %v6260 = vadd.f32 %v5838, %v6178
  %v6261 = vadd.f32 %v5839, %v6183
  %v6262 = vadd.f32 %v5840, %v6188
  %v6263 = vadd.f32 %v5841, %v6193
  %v6264 = vadd.f32 %v5842, %v6198
  %v6265 = vadd.f32 %v5843, %v6203
  %v6266 = vadd.f32 %v5844, %v6208
  %v6267 = vadd.f32 %v5845, %v6213
  %v6268 = vadd.f32 %v5846, %v6218
  %v6269 = vadd.f32 %v5847, %v6223
  %v6270 = vadd.f32 %v5848, %v6228
  %v6271 = vadd.f32 %v5849, %v6233
  %v6272 = vadd.f32 %v5850, %v6238
  %v6273 = vld [vmem:[%s4] sm:$0x1]
  %v6275 = vlaneseq
  %v6276 = vshrl.u32 %v6275, 7
  %v6277 = vsub.s32 0, %v6276
  %v6278 = vrot.slane %v6273, %v6277
  %v6280 = vadd.f32 %v6241, %v6278
  %v6281 = vadd.f32 %v6242, %v6278
  %v6282 = vadd.f32 %v6243, %v6278
  %v6283 = vadd.f32 %v6244, %v6278
  %v6284 = vadd.f32 %v6245, %v6278
  %v6285 = vadd.f32 %v6246, %v6278
  %v6286 = vadd.f32 %v6247, %v6278
  %v6287 = vadd.f32 %v6248, %v6278
  %v6288 = vadd.f32 %v6249, %v6278
  %v6289 = vadd.f32 %v6250, %v6278
  %v6290 = vadd.f32 %v6251, %v6278
  %v6291 = vadd.f32 %v6252, %v6278
  %v6292 = vadd.f32 %v6253, %v6278
  %v6293 = vadd.f32 %v6254, %v6278
  %v6294 = vadd.f32 %v6255, %v6278
  %v6295 = vadd.f32 %v6256, %v6278
  %v6296 = vadd.f32 %v6257, %v6278
  %v6297 = vadd.f32 %v6258, %v6278
  %v6298 = vadd.f32 %v6259, %v6278
  %v6299 = vadd.f32 %v6260, %v6278
  %v6300 = vadd.f32 %v6261, %v6278
  %v6301 = vadd.f32 %v6262, %v6278
  %v6302 = vadd.f32 %v6263, %v6278
  %v6303 = vadd.f32 %v6264, %v6278
  %v6304 = vadd.f32 %v6265, %v6278
  %v6305 = vadd.f32 %v6266, %v6278
  %v6306 = vadd.f32 %v6267, %v6278
  %v6307 = vadd.f32 %v6268, %v6278
  %v6308 = vadd.f32 %v6269, %v6278
  %v6309 = vadd.f32 %v6270, %v6278
  %v6310 = vadd.f32 %v6271, %v6278
  %v6311 = vadd.f32 %v6272, %v6278
  %v6312 = vmax.f32 %v6280, 0.0
  %v6313 = vmax.f32 %v6281, 0.0
  %v6314 = vmax.f32 %v6282, 0.0
  %v6315 = vmax.f32 %v6283, 0.0
  %v6316 = vmax.f32 %v6284, 0.0
  %v6317 = vmax.f32 %v6285, 0.0
  %v6318 = vmax.f32 %v6286, 0.0
  %v6319 = vmax.f32 %v6287, 0.0
  %v6320 = vmax.f32 %v6288, 0.0
  %v6321 = vmax.f32 %v6289, 0.0
  %v6322 = vmax.f32 %v6290, 0.0
  %v6323 = vmax.f32 %v6291, 0.0
  %v6324 = vmax.f32 %v6292, 0.0
  %v6325 = vmax.f32 %v6293, 0.0
  %v6326 = vmax.f32 %v6294, 0.0
  %v6327 = vmax.f32 %v6295, 0.0
  %v6328 = vmax.f32 %v6296, 0.0
  %v6329 = vmax.f32 %v6297, 0.0
  %v6330 = vmax.f32 %v6298, 0.0
  %v6331 = vmax.f32 %v6299, 0.0
  %v6332 = vmax.f32 %v6300, 0.0
  %v6333 = vmax.f32 %v6301, 0.0
  %v6334 = vmax.f32 %v6302, 0.0
  %v6335 = vmax.f32 %v6303, 0.0
  %v6336 = vmax.f32 %v6304, 0.0
  %v6337 = vmax.f32 %v6305, 0.0
  %v6338 = vmax.f32 %v6306, 0.0
  %v6339 = vmax.f32 %v6307, 0.0
  %v6340 = vmax.f32 %v6308, 0.0
  %v6341 = vmax.f32 %v6309, 0.0
  %v6342 = vmax.f32 %v6310, 0.0
  %v6343 = vmax.f32 %v6311, 0.0
  %vm6344 = vcmask 523264
  %6345 = vst.msk [vmem:[#allocation3] sm:$0xff] %vm6344, %v6312
  %6346 = vst.msk [vmem:[#allocation3 + $0x8] sm:$0xff] %vm6344, %v6313
  %6347 = vst.msk [vmem:[#allocation3 + $0x10] sm:$0xff] %vm6344, %v6314
  %6348 = vst.msk [vmem:[#allocation3 + $0x18] sm:$0xff] %vm6344, %v6315
  %6349 = vst.msk [vmem:[#allocation3 + $0x20] sm:$0xff] %vm6344, %v6316
  %6350 = vst.msk [vmem:[#allocation3 + $0x28] sm:$0xff] %vm6344, %v6317
  %6351 = vst.msk [vmem:[#allocation3 + $0x30] sm:$0xff] %vm6344, %v6318
  %6352 = vst.msk [vmem:[#allocation3 + $0x38] sm:$0xff] %vm6344, %v6319
  %6353 = vst.msk [vmem:[#allocation3 + $0x40] sm:$0xff] %vm6344, %v6320
  %6354 = vst.msk [vmem:[#allocation3 + $0x48] sm:$0xff] %vm6344, %v6321
  %6355 = vst.msk [vmem:[#allocation3 + $0x50] sm:$0xff] %vm6344, %v6322
  %6356 = vst.msk [vmem:[#allocation3 + $0x58] sm:$0xff] %vm6344, %v6323
  %6357 = vst.msk [vmem:[#allocation3 + $0x60] sm:$0xff] %vm6344, %v6324
  %6358 = vst.msk [vmem:[#allocation3 + $0x68] sm:$0xff] %vm6344, %v6325
  %6359 = vst.msk [vmem:[#allocation3 + $0x70] sm:$0xff] %vm6344, %v6326
  %6360 = vst.msk [vmem:[#allocation3 + $0x78] sm:$0xff] %vm6344, %v6327
  %6361 = vst.msk [vmem:[#allocation3 + $0x80] sm:$0xff] %vm6344, %v6328
  %6362 = vst.msk [vmem:[#allocation3 + $0x88] sm:$0xff] %vm6344, %v6329
  %6363 = vst.msk [vmem:[#allocation3 + $0x90] sm:$0xff] %vm6344, %v6330
  %6364 = vst.msk [vmem:[#allocation3 + $0x98] sm:$0xff] %vm6344, %v6331
  %6365 = vst.msk [vmem:[#allocation3 + $0xa0] sm:$0xff] %vm6344, %v6332
  %6366 = vst.msk [vmem:[#allocation3 + $0xa8] sm:$0xff] %vm6344, %v6333
  %6367 = vst.msk [vmem:[#allocation3 + $0xb0] sm:$0xff] %vm6344, %v6334
  %6368 = vst.msk [vmem:[#allocation3 + $0xb8] sm:$0xff] %vm6344, %v6335
  %6369 = vst.msk [vmem:[#allocation3 + $0xc0] sm:$0xff] %vm6344, %v6336
  %6370 = vst.msk [vmem:[#allocation3 + $0xc8] sm:$0xff] %vm6344, %v6337
  %6371 = vst.msk [vmem:[#allocation3 + $0xd0] sm:$0xff] %vm6344, %v6338
  %6372 = vst.msk [vmem:[#allocation3 + $0xd8] sm:$0xff] %vm6344, %v6339
  %6373 = vst.msk [vmem:[#allocation3 + $0xe0] sm:$0xff] %vm6344, %v6340
  %6374 = vst.msk [vmem:[#allocation3 + $0xe8] sm:$0xff] %vm6344, %v6341
  %6375 = vst.msk [vmem:[#allocation3 + $0xf0] sm:$0xff] %vm6344, %v6342
  %6376 = vst.msk [vmem:[#allocation3 + $0xf8] sm:$0xff] %vm6344, %v6343
  %6377 = vst.msk [vmem:[#allocation3 + $0x100] sm:$0xff] %vm6344, 0.0
  %6378 = vst.msk [vmem:[#allocation3 + $0x108] sm:$0xff] %vm6344, 0.0
  %v6379 = vld [vmem:[#allocation3] sm:$0xff]
  %v6380 = vld [vmem:[#allocation3 + $0x8] sm:$0xff]
  %v6381 = vld [vmem:[#allocation3 + $0x10] sm:$0xff]
  %v6382 = vld [vmem:[#allocation3 + $0x18] sm:$0xff]
  %v6383 = vld [vmem:[#allocation3 + $0x20] sm:$0xff]
  %v6384 = vld [vmem:[#allocation3 + $0x28] sm:$0xff]
  %v6385 = vld [vmem:[#allocation3 + $0x30] sm:$0xff]
  %v6386 = vld [vmem:[#allocation3 + $0x38] sm:$0xff]
  %v6387 = vld [vmem:[#allocation3 + $0x40] sm:$0xff]
  %v6388 = vld [vmem:[#allocation3 + $0x48] sm:$0xff]
  %v6389 = vld [vmem:[#allocation3 + $0x50] sm:$0xff]
  %v6390 = vld [vmem:[#allocation3 + $0x58] sm:$0xff]
  %v6391 = vld [vmem:[#allocation3 + $0x60] sm:$0xff]
  %v6392 = vld [vmem:[#allocation3 + $0x68] sm:$0xff]
  %v6393 = vld [vmem:[#allocation3 + $0x70] sm:$0xff]
  %v6394 = vld [vmem:[#allocation3 + $0x78] sm:$0xff]
  %v6395 = vld [vmem:[#allocation3 + $0x80] sm:$0xff]
  %v6396 = vld [vmem:[#allocation3 + $0x88] sm:$0xff]
  %v6397 = vld [vmem:[#allocation3 + $0x90] sm:$0xff]
  %v6398 = vld [vmem:[#allocation3 + $0x98] sm:$0xff]
  %v6399 = vld [vmem:[#allocation3 + $0xa0] sm:$0xff]
  %v6400 = vld [vmem:[#allocation3 + $0xa8] sm:$0xff]
  %v6401 = vld [vmem:[#allocation3 + $0xb0] sm:$0xff]
  %v6402 = vld [vmem:[#allocation3 + $0xb8] sm:$0xff]
  %v6403 = vld [vmem:[#allocation3 + $0xc0] sm:$0xff]
  %v6404 = vld [vmem:[#allocation3 + $0xc8] sm:$0xff]
  %v6405 = vld [vmem:[#allocation3 + $0xd0] sm:$0xff]
  %v6406 = vld [vmem:[#allocation3 + $0xd8] sm:$0xff]
  %v6407 = vld [vmem:[#allocation3 + $0xe0] sm:$0xff]
  %v6408 = vld [vmem:[#allocation3 + $0xe8] sm:$0xff]
  %v6409 = vld [vmem:[#allocation3 + $0xf0] sm:$0xff]
  %v6410 = vld [vmem:[#allocation3 + $0xf8] sm:$0xff]
  %v6411 = vld [vmem:[#allocation3 + $0x1] sm:$0xff]
  %v6412 = vld [vmem:[#allocation3 + $0x9] sm:$0xff]
  %v6413 = vld [vmem:[#allocation3 + $0x11] sm:$0xff]
  %v6414 = vld [vmem:[#allocation3 + $0x19] sm:$0xff]
  %v6415 = vld [vmem:[#allocation3 + $0x21] sm:$0xff]
  %v6416 = vld [vmem:[#allocation3 + $0x29] sm:$0xff]
  %v6417 = vld [vmem:[#allocation3 + $0x31] sm:$0xff]
  %v6418 = vld [vmem:[#allocation3 + $0x39] sm:$0xff]
  %v6419 = vld [vmem:[#allocation3 + $0x41] sm:$0xff]
  %v6420 = vld [vmem:[#allocation3 + $0x49] sm:$0xff]
  %v6421 = vld [vmem:[#allocation3 + $0x51] sm:$0xff]
  %v6422 = vld [vmem:[#allocation3 + $0x59] sm:$0xff]
  %v6423 = vld [vmem:[#allocation3 + $0x61] sm:$0xff]
  %v6424 = vld [vmem:[#allocation3 + $0x69] sm:$0xff]
  %v6425 = vld [vmem:[#allocation3 + $0x71] sm:$0xff]
  %v6426 = vld [vmem:[#allocation3 + $0x79] sm:$0xff]
  %v6427 = vld [vmem:[#allocation3 + $0x81] sm:$0xff]
  %v6428 = vld [vmem:[#allocation3 + $0x89] sm:$0xff]
  %v6429 = vld [vmem:[#allocation3 + $0x91] sm:$0xff]
  %v6430 = vld [vmem:[#allocation3 + $0x99] sm:$0xff]
  %v6431 = vld [vmem:[#allocation3 + $0xa1] sm:$0xff]
  %v6432 = vld [vmem:[#allocation3 + $0xa9] sm:$0xff]
  %v6433 = vld [vmem:[#allocation3 + $0xb1] sm:$0xff]
  %v6434 = vld [vmem:[#allocation3 + $0xb9] sm:$0xff]
  %v6435 = vld [vmem:[#allocation3 + $0xc1] sm:$0xff]
  %v6436 = vld [vmem:[#allocation3 + $0xc9] sm:$0xff]
  %v6437 = vld [vmem:[#allocation3 + $0xd1] sm:$0xff]
  %v6438 = vld [vmem:[#allocation3 + $0xd9] sm:$0xff]
  %v6439 = vld [vmem:[#allocation3 + $0xe1] sm:$0xff]
  %v6440 = vld [vmem:[#allocation3 + $0xe9] sm:$0xff]
  %v6441 = vld [vmem:[#allocation3 + $0xf1] sm:$0xff]
  %v6442 = vld [vmem:[#allocation3 + $0xf9] sm:$0xff]
  %v6443 = vmax.f32 %v6379, %v6411
  %v6444 = vmax.f32 %v6380, %v6412
  %v6445 = vmax.f32 %v6381, %v6413
  %v6446 = vmax.f32 %v6382, %v6414
  %v6447 = vmax.f32 %v6383, %v6415
  %v6448 = vmax.f32 %v6384, %v6416
  %v6449 = vmax.f32 %v6385, %v6417
  %v6450 = vmax.f32 %v6386, %v6418
  %v6451 = vmax.f32 %v6387, %v6419
  %v6452 = vmax.f32 %v6388, %v6420
  %v6453 = vmax.f32 %v6389, %v6421
  %v6454 = vmax.f32 %v6390, %v6422
  %v6455 = vmax.f32 %v6391, %v6423
  %v6456 = vmax.f32 %v6392, %v6424
  %v6457 = vmax.f32 %v6393, %v6425
  %v6458 = vmax.f32 %v6394, %v6426
  %v6459 = vmax.f32 %v6395, %v6427
  %v6460 = vmax.f32 %v6396, %v6428
  %v6461 = vmax.f32 %v6397, %v6429
  %v6462 = vmax.f32 %v6398, %v6430
  %v6463 = vmax.f32 %v6399, %v6431
  %v6464 = vmax.f32 %v6400, %v6432
  %v6465 = vmax.f32 %v6401, %v6433
  %v6466 = vmax.f32 %v6402, %v6434
  %v6467 = vmax.f32 %v6403, %v6435
  %v6468 = vmax.f32 %v6404, %v6436
  %v6469 = vmax.f32 %v6405, %v6437
  %v6470 = vmax.f32 %v6406, %v6438
  %v6471 = vmax.f32 %v6407, %v6439
  %v6472 = vmax.f32 %v6408, %v6440
  %v6473 = vmax.f32 %v6409, %v6441
  %v6474 = vmax.f32 %v6410, %v6442
  %v6475 = vld [vmem:[#allocation3 + $0x100] sm:$0xff]
  %v6476 = vld [vmem:[#allocation3 + $0x101] sm:$0xff]
  %v6477 = vmax.f32 %v6475, %v6476
  %v6478 = vmax.f32 %v6443, %v6444
  %v6479 = vmax.f32 %v6444, %v6445
  %v6480 = vmax.f32 %v6445, %v6446
  %v6481 = vmax.f32 %v6446, %v6447
  %v6482 = vmax.f32 %v6447, %v6448
  %v6483 = vmax.f32 %v6448, %v6449
  %v6484 = vmax.f32 %v6449, %v6450
  %v6485 = vmax.f32 %v6450, %v6451
  %v6486 = vmax.f32 %v6451, %v6452
  %v6487 = vmax.f32 %v6452, %v6453
  %v6488 = vmax.f32 %v6453, %v6454
  %v6489 = vmax.f32 %v6454, %v6455
  %v6490 = vmax.f32 %v6455, %v6456
  %v6491 = vmax.f32 %v6456, %v6457
  %v6492 = vmax.f32 %v6457, %v6458
  %v6493 = vmax.f32 %v6458, %v6459
  %v6494 = vmax.f32 %v6459, %v6460
  %v6495 = vmax.f32 %v6460, %v6461
  %v6496 = vmax.f32 %v6461, %v6462
  %v6497 = vmax.f32 %v6462, %v6463
  %v6498 = vmax.f32 %v6463, %v6464
  %v6499 = vmax.f32 %v6464, %v6465
  %v6500 = vmax.f32 %v6465, %v6466
  %v6501 = vmax.f32 %v6466, %v6467
  %v6502 = vmax.f32 %v6467, %v6468
  %v6503 = vmax.f32 %v6468, %v6469
  %v6504 = vmax.f32 %v6469, %v6470
  %v6505 = vmax.f32 %v6470, %v6471
  %v6506 = vmax.f32 %v6471, %v6472
  %v6507 = vmax.f32 %v6472, %v6473
  %v6508 = vmax.f32 %v6473, %v6474
  %v6509 = vmax.f32 %v6474, %v6477
  %v6510 = vld [vmem:[%s9] sm:$0xff]
  %v6511 = vld [vmem:[%s9 + $0x8] sm:$0xff]
  %v6512 = vld [vmem:[%s9 + $0x10] sm:$0xff]
  %v6513 = vld [vmem:[%s9 + $0x18] sm:$0xff]
  %v6514 = vld [vmem:[%s9 + $0x20] sm:$0xff]
  %v6515 = vld [vmem:[%s9 + $0x28] sm:$0xff]
  %v6516 = vld [vmem:[%s9 + $0x30] sm:$0xff]
  %v6517 = vld [vmem:[%s9 + $0x38] sm:$0xff]
  %v6518 = vld [vmem:[%s9 + $0x40] sm:$0xff]
  %v6519 = vld [vmem:[%s9 + $0x48] sm:$0xff]
  %v6520 = vld [vmem:[%s9 + $0x50] sm:$0xff]
  %v6521 = vld [vmem:[%s9 + $0x58] sm:$0xff]
  %v6522 = vld [vmem:[%s9 + $0x60] sm:$0xff]
  %v6523 = vld [vmem:[%s9 + $0x68] sm:$0xff]
  %v6524 = vld [vmem:[%s9 + $0x70] sm:$0xff]
  %v6525 = vld [vmem:[%s9 + $0x78] sm:$0xff]
  %6526 = vmatprep.subr.mxu0 0.0
  %6527 = vmatpush1.msra.mxu0 %v6478
  %6528 = vmatprep.subr.mxu0 0.0
  %6529 = vmatpush1.msra.mxu0 %v6479
  %6530 = vmatprep.subr.mxu0 0.0
  %6531 = vmatpush1.msra.mxu0 %v6480
  %6532 = vmatprep.subr.mxu0 0.0
  %6533 = vmatpush1.msra.mxu0 %v6481
  %6534 = vmatprep.subr.mxu0 0.0
  %6535 = vmatpush1.msra.mxu0 %v6482
  %6536 = vmatprep.subr.mxu0 0.0
  %6537 = vmatpush1.msra.mxu0 %v6483
  %6538 = vmatprep.subr.mxu0 0.0
  %6539 = vmatpush1.msra.mxu0 %v6484
  %6540 = vmatprep.subr.mxu0 0.0
  %6541 = vmatpush1.msra.mxu0 %v6485
  %6542 = vmatprep.subr.mxu0 0.0
  %6543 = vmatpush1.msra.mxu0 %v6486
  %6544 = vmatprep.subr.mxu0 0.0
  %6545 = vmatpush1.msra.mxu0 %v6487
  %6546 = vmatprep.subr.mxu0 0.0
  %6547 = vmatpush1.msra.mxu0 %v6488
  %6548 = vmatprep.subr.mxu0 0.0
  %6549 = vmatpush1.msra.mxu0 %v6489
  %6550 = vmatprep.subr.mxu0 0.0
  %6551 = vmatpush1.msra.mxu0 %v6490
  %6552 = vmatprep.subr.mxu0 0.0
  %6553 = vmatpush1.msra.mxu0 %v6491
  %6554 = vmatprep.subr.mxu0 0.0
  %6555 = vmatpush1.msra.mxu0 %v6492
  %6556 = vmatprep.subr.mxu0 0.0
  %6557 = vmatpush1.msra.mxu0 %v6493
  %6558 = vmatprep.subr.mxu0 0.0
  %6559 = vmatpush1.msra.mxu0 %v6494
  %6560 = vmatprep.subr.mxu0 0.0
  %6561 = vmatpush1.msra.mxu0 %v6495
  %6562 = vmatprep.subr.mxu0 0.0
  %6563 = vmatpush1.msra.mxu0 %v6496
  %6564 = vmatprep.subr.mxu0 0.0
  %6565 = vmatpush1.msra.mxu0 %v6497
  %6566 = vmatprep.subr.mxu0 0.0
  %6567 = vmatpush1.msra.mxu0 %v6498
  %6568 = vmatprep.subr.mxu0 0.0
  %6569 = vmatpush1.msra.mxu0 %v6499
  %6570 = vmatprep.subr.mxu0 0.0
  %6571 = vmatpush1.msra.mxu0 %v6500
  %6572 = vmatprep.subr.mxu0 0.0
  %6573 = vmatpush1.msra.mxu0 %v6501
  %6574 = vmatprep.subr.mxu0 0.0
  %6575 = vmatpush1.msra.mxu0 %v6502
  %6576 = vmatprep.subr.mxu0 0.0
  %6577 = vmatpush1.msra.mxu0 %v6503
  %6578 = vmatprep.subr.mxu0 0.0
  %6579 = vmatpush1.msra.mxu0 %v6504
  %6580 = vmatprep.subr.mxu0 0.0
  %6581 = vmatpush1.msra.mxu0 %v6505
  %6582 = vmatprep.subr.mxu0 0.0
  %6583 = vmatpush1.msra.mxu0 %v6506
  %6584 = vmatprep.subr.mxu0 0.0
  %6585 = vmatpush1.msra.mxu0 %v6507
  %6586 = vmatprep.subr.mxu0 0.0
  %6587 = vmatpush1.msra.mxu0 %v6508
  %6588 = vmatprep.subr.mxu0 0.0
  %6589 = vmatpush1.msra.mxu0 %v6509
  %6590 = vmatprep.mubr.f32.mxu0 %v6511
  %6591 = vmatmul.mubr.f32.gmra.mrb[0].mxu0 %v6510
  %v6592 = vpop.f32.mrb[0].mxu0
  %v6593 = vadd.f32 0.0, %v6592
  %v6594 = vpop.f32.mrb[0].mxu0
  %6595 = vmatprep.mubr.f32.mxu0 %v6513
  %6596 = vmatmul.mubr.f32.gmra.mrb[0].mxu0 %v6512
  %v6597 = vpop.f32.mrb[0].mxu0
  %v6598 = vadd.f32 0.0, %v6597
  %v6599 = vpop.f32.mrb[0].mxu0
  %6600 = vmatprep.mubr.f32.mxu0 %v6515
  %6601 = vmatmul.mubr.f32.gmra.mrb[0].mxu0 %v6514
  %v6602 = vpop.f32.mrb[0].mxu0
  %v6603 = vadd.f32 0.0, %v6602
  %v6604 = vpop.f32.mrb[0].mxu0
  %6605 = vmatprep.mubr.f32.mxu0 %v6517
  %6606 = vmatmul.mubr.f32.gmra.mrb[0].mxu0 %v6516
  %v6607 = vpop.f32.mrb[0].mxu0
  %v6608 = vadd.f32 0.0, %v6607
  %v6609 = vpop.f32.mrb[0].mxu0
  %6610 = vmatprep.mubr.f32.mxu0 %v6519
  %6611 = vmatmul.mubr.f32.gmra.mrb[0].mxu0 %v6518
  %v6612 = vpop.f32.mrb[0].mxu0
  %v6613 = vadd.f32 0.0, %v6612
  %v6614 = vpop.f32.mrb[0].mxu0
  %6615 = vmatprep.mubr.f32.mxu0 %v6521
  %6616 = vmatmul.mubr.f32.gmra.mrb[0].mxu0 %v6520
  %v6617 = vpop.f32.mrb[0].mxu0
  %v6618 = vadd.f32 0.0, %v6617
  %v6619 = vpop.f32.mrb[0].mxu0
  %6620 = vmatprep.mubr.f32.mxu0 %v6523
  %6621 = vmatmul.mubr.f32.gmra.mrb[0].mxu0 %v6522
  %v6622 = vpop.f32.mrb[0].mxu0
  %v6623 = vadd.f32 0.0, %v6622
  %v6624 = vpop.f32.mrb[0].mxu0
  %6625 = vmatprep.mubr.f32.mxu0 %v6525
  %6626 = vmatmul.mubr.f32.gmra.mrb[0].mxu0 %v6524
  %v6627 = vpop.f32.mrb[0].mxu0
  %v6628 = vadd.f32 0.0, %v6627
  %v6629 = vpop.f32.mrb[0].mxu0
  %6630 = vdwg.mxu0
  %6631 = vst.msk [vmem:[#allocation4] sm:$0xff] %vm6344, 0.0
  %6632 = vst.msk [vmem:[#allocation4 + $0x8] sm:$0xff] %vm6344, %v6593
  %6633 = vst.msk [vmem:[#allocation4 + $0x10] sm:$0xff] %vm6344, %v6598
  %6634 = vst.msk [vmem:[#allocation4 + $0x18] sm:$0xff] %vm6344, %v6603
  %6635 = vst.msk [vmem:[#allocation4 + $0x20] sm:$0xff] %vm6344, %v6608
  %6636 = vst.msk [vmem:[#allocation4 + $0x28] sm:$0xff] %vm6344, %v6613
  %6637 = vst.msk [vmem:[#allocation4 + $0x30] sm:$0xff] %vm6344, %v6618
  %6638 = vst.msk [vmem:[#allocation4 + $0x38] sm:$0xff] %vm6344, %v6623
  %6639 = vst.msk [vmem:[#allocation4 + $0x40] sm:$0xff] %vm6344, %v6628
  %6640 = vst.msk [vmem:[#allocation4 + $0x48] sm:$0xff] %vm6344, 0.0
  %v6641 = vand.u32 %v1676, 3
  %v6642 = vand.u32 %v1677, 3
  %v6643 = vand.u32 %v1678, 3
  %v6644 = vand.u32 %v1679, 3
  %v6645 = vand.u32 %v1680, 3
  %v6646 = vand.u32 %v1681, 3
  %v6647 = vand.u32 %v1682, 3
  %v6648 = vand.u32 %v1683, 3
  %v6649 = vshra.s32 %v1676, 2
  %v6650 = vshra.s32 %v1677, 2
  %v6651 = vshra.s32 %v1678, 2
  %v6652 = vshra.s32 %v1679, 2
  %v6653 = vshra.s32 %v1680, 2
  %v6654 = vshra.s32 %v1681, 2
  %v6655 = vshra.s32 %v1682, 2
  %v6656 = vshra.s32 %v1683, 2
  %v6657 = vand.u32 %v6649, 3
  %v6658 = vand.u32 %v6650, 3
  %v6659 = vand.u32 %v6651, 3
  %v6660 = vand.u32 %v6652, 3
  %v6661 = vand.u32 %v6653, 3
  %v6662 = vand.u32 %v6654, 3
  %v6663 = vand.u32 %v6655, 3
  %v6664 = vand.u32 %v6656, 3
  %vm6665 = vcmp.ge.s32.totalorder %v6657, 1
  %vm6666 = vcmp.ge.s32.totalorder %v6658, 1
  %vm6667 = vcmp.ge.s32.totalorder %v6659, 1
  %vm6668 = vcmp.ge.s32.totalorder %v6660, 1
  %vm6669 = vcmp.ge.s32.totalorder %v6661, 1
  %vm6670 = vcmp.ge.s32.totalorder %v6662, 1
  %vm6671 = vcmp.ge.s32.totalorder %v6663, 1
  %vm6672 = vcmp.ge.s32.totalorder %v6664, 1
  %vm6673 = vcmp.ge.s32.totalorder %v6641, 1
  %vm6674 = vcmp.ge.s32.totalorder %v6642, 1
  %vm6675 = vcmp.ge.s32.totalorder %v6643, 1
  %vm6676 = vcmp.ge.s32.totalorder %v6644, 1
  %vm6677 = vcmp.ge.s32.totalorder %v6645, 1
  %vm6678 = vcmp.ge.s32.totalorder %v6646, 1
  %vm6679 = vcmp.ge.s32.totalorder %v6647, 1
  %vm6680 = vcmp.ge.s32.totalorder %v6648, 1
  %vm6681 = vmand %vm6665, %vm6673
  %vm6682 = vmand %vm6666, %vm6674
  %vm6683 = vmand %vm6667, %vm6675
  %vm6684 = vmand %vm6668, %vm6676
  %vm6685 = vmand %vm6669, %vm6677
  %vm6686 = vmand %vm6670, %vm6678
  %vm6687 = vmand %vm6671, %vm6679
  %vm6688 = vmand %vm6672, %vm6680
  %v6689 = vsel %vm6681, 1, 0
  %v6690 = vsel %vm6682, 1, 0
  %v6691 = vsel %vm6683, 1, 0
  %v6692 = vsel %vm6684, 1, 0
  %v6693 = vsel %vm6685, 1, 0
  %v6694 = vsel %vm6686, 1, 0
  %v6695 = vsel %vm6687, 1, 0
  %v6696 = vsel %vm6688, 1, 0
  %v6697 = vcvt.s32.f32 %v6689
  %v6698 = vcvt.s32.f32 %v6690
  %v6699 = vcvt.s32.f32 %v6691
  %v6700 = vcvt.s32.f32 %v6692
  %v6701 = vcvt.s32.f32 %v6693
  %v6702 = vcvt.s32.f32 %v6694
  %v6703 = vcvt.s32.f32 %v6695
  %v6704 = vcvt.s32.f32 %v6696
  %v6705 = vsel %vm6665, 1, 0
  %v6706 = vsel %vm6666, 1, 0
  %v6707 = vsel %vm6667, 1, 0
  %v6708 = vsel %vm6668, 1, 0
  %v6709 = vsel %vm6669, 1, 0
  %v6710 = vsel %vm6670, 1, 0
  %v6711 = vsel %vm6671, 1, 0
  %v6712 = vsel %vm6672, 1, 0
  %v6713 = vcvt.s32.f32 %v6705
  %v6714 = vcvt.s32.f32 %v6706
  %v6715 = vcvt.s32.f32 %v6707
  %v6716 = vcvt.s32.f32 %v6708
  %v6717 = vcvt.s32.f32 %v6709
  %v6718 = vcvt.s32.f32 %v6710
  %v6719 = vcvt.s32.f32 %v6711
  %v6720 = vcvt.s32.f32 %v6712
  %vm6721 = vcmp.le.s32.totalorder %v6641, 2
  %vm6722 = vcmp.le.s32.totalorder %v6642, 2
  %vm6723 = vcmp.le.s32.totalorder %v6643, 2
  %vm6724 = vcmp.le.s32.totalorder %v6644, 2
  %vm6725 = vcmp.le.s32.totalorder %v6645, 2
  %vm6726 = vcmp.le.s32.totalorder %v6646, 2
  %vm6727 = vcmp.le.s32.totalorder %v6647, 2
  %vm6728 = vcmp.le.s32.totalorder %v6648, 2
  %vm6729 = vmand %vm6665, %vm6721
  %vm6730 = vmand %vm6666, %vm6722
  %vm6731 = vmand %vm6667, %vm6723
  %vm6732 = vmand %vm6668, %vm6724
  %vm6733 = vmand %vm6669, %vm6725
  %vm6734 = vmand %vm6670, %vm6726
  %vm6735 = vmand %vm6671, %vm6727
  %vm6736 = vmand %vm6672, %vm6728
  %v6737 = vsel %vm6729, 1, 0
  %v6738 = vsel %vm6730, 1, 0
  %v6739 = vsel %vm6731, 1, 0
  %v6740 = vsel %vm6732, 1, 0
  %v6741 = vsel %vm6733, 1, 0
  %v6742 = vsel %vm6734, 1, 0
  %v6743 = vsel %vm6735, 1, 0
  %v6744 = vsel %vm6736, 1, 0
  %v6745 = vcvt.s32.f32 %v6737
  %v6746 = vcvt.s32.f32 %v6738
  %v6747 = vcvt.s32.f32 %v6739
  %v6748 = vcvt.s32.f32 %v6740
  %v6749 = vcvt.s32.f32 %v6741
  %v6750 = vcvt.s32.f32 %v6742
  %v6751 = vcvt.s32.f32 %v6743
  %v6752 = vcvt.s32.f32 %v6744
  %v6753 = vsel %vm6673, 1, 0
  %v6754 = vsel %vm6674, 1, 0
  %v6755 = vsel %vm6675, 1, 0
  %v6756 = vsel %vm6676, 1, 0
  %v6757 = vsel %vm6677, 1, 0
  %v6758 = vsel %vm6678, 1, 0
  %v6759 = vsel %vm6679, 1, 0
  %v6760 = vsel %vm6680, 1, 0
  %v6761 = vcvt.s32.f32 %v6753
  %v6762 = vcvt.s32.f32 %v6754
  %v6763 = vcvt.s32.f32 %v6755
  %v6764 = vcvt.s32.f32 %v6756
  %v6765 = vcvt.s32.f32 %v6757
  %v6766 = vcvt.s32.f32 %v6758
  %v6767 = vcvt.s32.f32 %v6759
  %v6768 = vcvt.s32.f32 %v6760
  %v6769 = vsel %vm6721, 1, 0
  %v6770 = vsel %vm6722, 1, 0
  %v6771 = vsel %vm6723, 1, 0
  %v6772 = vsel %vm6724, 1, 0
  %v6773 = vsel %vm6725, 1, 0
  %v6774 = vsel %vm6726, 1, 0
  %v6775 = vsel %vm6727, 1, 0
  %v6776 = vsel %vm6728, 1, 0
  %v6777 = vcvt.s32.f32 %v6769
  %v6778 = vcvt.s32.f32 %v6770
  %v6779 = vcvt.s32.f32 %v6771
  %v6780 = vcvt.s32.f32 %v6772
  %v6781 = vcvt.s32.f32 %v6773
  %v6782 = vcvt.s32.f32 %v6774
  %v6783 = vcvt.s32.f32 %v6775
  %v6784 = vcvt.s32.f32 %v6776
  %vm6785 = vcmp.le.s32.totalorder %v6657, 2
  %vm6786 = vcmp.le.s32.totalorder %v6658, 2
  %vm6787 = vcmp.le.s32.totalorder %v6659, 2
  %vm6788 = vcmp.le.s32.totalorder %v6660, 2
  %vm6789 = vcmp.le.s32.totalorder %v6661, 2
  %vm6790 = vcmp.le.s32.totalorder %v6662, 2
  %vm6791 = vcmp.le.s32.totalorder %v6663, 2
  %vm6792 = vcmp.le.s32.totalorder %v6664, 2
  %vm6793 = vmand %vm6785, %vm6673
  %vm6794 = vmand %vm6786, %vm6674
  %vm6795 = vmand %vm6787, %vm6675
  %vm6796 = vmand %vm6788, %vm6676
  %vm6797 = vmand %vm6789, %vm6677
  %vm6798 = vmand %vm6790, %vm6678
  %vm6799 = vmand %vm6791, %vm6679
  %vm6800 = vmand %vm6792, %vm6680
  %v6801 = vsel %vm6793, 1, 0
  %v6802 = vsel %vm6794, 1, 0
  %v6803 = vsel %vm6795, 1, 0
  %v6804 = vsel %vm6796, 1, 0
  %v6805 = vsel %vm6797, 1, 0
  %v6806 = vsel %vm6798, 1, 0
  %v6807 = vsel %vm6799, 1, 0
  %v6808 = vsel %vm6800, 1, 0
  %v6809 = vcvt.s32.f32 %v6801
  %v6810 = vcvt.s32.f32 %v6802
  %v6811 = vcvt.s32.f32 %v6803
  %v6812 = vcvt.s32.f32 %v6804
  %v6813 = vcvt.s32.f32 %v6805
  %v6814 = vcvt.s32.f32 %v6806
  %v6815 = vcvt.s32.f32 %v6807
  %v6816 = vcvt.s32.f32 %v6808
  %v6817 = vsel %vm6785, 1, 0
  %v6818 = vsel %vm6786, 1, 0
  %v6819 = vsel %vm6787, 1, 0
  %v6820 = vsel %vm6788, 1, 0
  %v6821 = vsel %vm6789, 1, 0
  %v6822 = vsel %vm6790, 1, 0
  %v6823 = vsel %vm6791, 1, 0
  %v6824 = vsel %vm6792, 1, 0
  %v6825 = vcvt.s32.f32 %v6817
  %v6826 = vcvt.s32.f32 %v6818
  %v6827 = vcvt.s32.f32 %v6819
  %v6828 = vcvt.s32.f32 %v6820
  %v6829 = vcvt.s32.f32 %v6821
  %v6830 = vcvt.s32.f32 %v6822
  %v6831 = vcvt.s32.f32 %v6823
  %v6832 = vcvt.s32.f32 %v6824
  %vm6833 = vmand %vm6785, %vm6721
  %vm6834 = vmand %vm6786, %vm6722
  %vm6835 = vmand %vm6787, %vm6723
  %vm6836 = vmand %vm6788, %vm6724
  %vm6837 = vmand %vm6789, %vm6725
  %vm6838 = vmand %vm6790, %vm6726
  %vm6839 = vmand %vm6791, %vm6727
  %vm6840 = vmand %vm6792, %vm6728
  %v6841 = vsel %vm6833, 1, 0
  %v6842 = vsel %vm6834, 1, 0
  %v6843 = vsel %vm6835, 1, 0
  %v6844 = vsel %vm6836, 1, 0
  %v6845 = vsel %vm6837, 1, 0
  %v6846 = vsel %vm6838, 1, 0
  %v6847 = vsel %vm6839, 1, 0
  %v6848 = vsel %vm6840, 1, 0
  %v6849 = vcvt.s32.f32 %v6841
  %v6850 = vcvt.s32.f32 %v6842
  %v6851 = vcvt.s32.f32 %v6843
  %v6852 = vcvt.s32.f32 %v6844
  %v6853 = vcvt.s32.f32 %v6845
  %v6854 = vcvt.s32.f32 %v6846
  %v6855 = vcvt.s32.f32 %v6847
  %v6856 = vcvt.s32.f32 %v6848
  %v6857 = vld [vmem:[#allocation4 + $0x3] sm:$0xff]
  %v6858 = vld [vmem:[#allocation4 + $0xb] sm:$0xff]
  %v6859 = vld [vmem:[#allocation4 + $0x13] sm:$0xff]
  %v6860 = vld [vmem:[#allocation4 + $0x1b] sm:$0xff]
  %v6861 = vld [vmem:[#allocation4 + $0x23] sm:$0xff]
  %v6862 = vld [vmem:[#allocation4 + $0x2b] sm:$0xff]
  %v6863 = vld [vmem:[#allocation4 + $0x33] sm:$0xff]
  %v6864 = vld [vmem:[#allocation4 + $0x3b] sm:$0xff]
  %v6865 = vmul.f32 %v6857, %v6697
  %v6866 = vmul.f32 %v6858, %v6698
  %v6867 = vmul.f32 %v6859, %v6699
  %v6868 = vmul.f32 %v6860, %v6700
  %v6869 = vmul.f32 %v6861, %v6701
  %v6870 = vmul.f32 %v6862, %v6702
  %v6871 = vmul.f32 %v6863, %v6703
  %v6872 = vmul.f32 %v6864, %v6704
  %v6873 = vld [vmem:[%s5] sm:$0xff]
  %v6874 = vld [vmem:[%s5 + $0x8] sm:$0xff]
  %v6875 = vld [vmem:[%s5 + $0x10] sm:$0xff]
  %v6876 = vld [vmem:[%s5 + $0x18] sm:$0xff]
  %v6877 = vld [vmem:[%s5 + $0x20] sm:$0xff]
  %v6878 = vld [vmem:[%s5 + $0x28] sm:$0xff]
  %v6879 = vld [vmem:[%s5 + $0x30] sm:$0xff]
  %v6880 = vld [vmem:[%s5 + $0x38] sm:$0xff]
  %v6881 = vld [vmem:[#allocation4 + $0x4] sm:$0xff]
  %v6882 = vld [vmem:[#allocation4 + $0xc] sm:$0xff]
  %v6883 = vld [vmem:[#allocation4 + $0x14] sm:$0xff]
  %v6884 = vld [vmem:[#allocation4 + $0x1c] sm:$0xff]
  %v6885 = vld [vmem:[#allocation4 + $0x24] sm:$0xff]
  %v6886 = vld [vmem:[#allocation4 + $0x2c] sm:$0xff]
  %v6887 = vld [vmem:[#allocation4 + $0x34] sm:$0xff]
  %v6888 = vld [vmem:[#allocation4 + $0x3c] sm:$0xff]
  %v6889 = vmul.f32 %v6881, %v6713
  %v6890 = vmul.f32 %v6882, %v6714
  %v6891 = vmul.f32 %v6883, %v6715
  %v6892 = vmul.f32 %v6884, %v6716
  %v6893 = vmul.f32 %v6885, %v6717
  %v6894 = vmul.f32 %v6886, %v6718
  %v6895 = vmul.f32 %v6887, %v6719
  %v6896 = vmul.f32 %v6888, %v6720
  %s6897 = scalar_lea.vmem %s5, 64
  %v6898 = vld [vmem:[%s6897] sm:$0xff]
  %v6899 = vld [vmem:[%s6897 + $0x8] sm:$0xff]
  %v6900 = vld [vmem:[%s6897 + $0x10] sm:$0xff]
  %v6901 = vld [vmem:[%s6897 + $0x18] sm:$0xff]
  %v6902 = vld [vmem:[%s6897 + $0x20] sm:$0xff]
  %v6903 = vld [vmem:[%s6897 + $0x28] sm:$0xff]
  %v6904 = vld [vmem:[%s6897 + $0x30] sm:$0xff]
  %v6905 = vld [vmem:[%s6897 + $0x38] sm:$0xff]
  %v6907 = vsel %vm6344, %v6889, 0
  %v6910 = vsel %vm6344, %v6890, 0
  %v6913 = vsel %vm6344, %v6891, 0
  %v6916 = vsel %vm6344, %v6892, 0
  %v6919 = vsel %vm6344, %v6893, 0
  %v6922 = vsel %vm6344, %v6894, 0
  %v6925 = vsel %vm6344, %v6895, 0
  %v6928 = vsel %vm6344, %v6896, 0
  %6930 = vmatprep.subr.mxu0 0.0
  %6931 = vmatpush1.msra.mxu0 %v6898
  %6932 = vmatprep.subr.mxu0 0.0
  %6933 = vmatpush1.msra.mxu0 %v6899
  %6934 = vmatprep.subr.mxu0 0.0
  %6935 = vmatpush1.msra.mxu0 %v6900
  %6936 = vmatprep.subr.mxu0 0.0
  %6937 = vmatpush1.msra.mxu0 %v6901
  %6938 = vmatprep.subr.mxu0 0.0
  %6939 = vmatpush1.msra.mxu0 %v6902
  %6940 = vmatprep.subr.mxu0 0.0
  %6941 = vmatpush1.msra.mxu0 %v6903
  %6942 = vmatprep.subr.mxu0 0.0
  %6943 = vmatpush1.msra.mxu0 %v6904
  %6944 = vmatprep.subr.mxu0 0.0
  %6945 = vmatpush1.msra.mxu0 %v6905
  %6946 = vmatprep.subr.mxu0 0.0
  %6947 = vmatpush1.msra.mxu0 0.0
  %6948 = vmatprep.subr.mxu0 0.0
  %6949 = vmatpush1.msra.mxu0 0.0
  %6950 = vmatprep.subr.mxu0 0.0
  %6951 = vmatpush1.msra.mxu0 0.0
  %6952 = vmatprep.subr.mxu0 0.0
  %6953 = vmatpush1.msra.mxu0 0.0
  %6954 = vmatprep.subr.mxu0 0.0
  %6955 = vmatpush1.msra.mxu0 0.0
  %6956 = vmatprep.subr.mxu0 0.0
  %6957 = vmatpush1.msra.mxu0 0.0
  %6958 = vmatprep.subr.mxu0 0.0
  %6959 = vmatpush1.msra.mxu0 0.0
  %6960 = vmatprep.subr.mxu0 0.0
  %6961 = vmatpush1.msra.mxu0 0.0
  %6962 = vmatprep.subr.mxu0 0.0
  %6963 = vmatpush1.msra.mxu0 0.0
  %6964 = vmatprep.subr.mxu0 0.0
  %6965 = vmatpush1.msra.mxu0 0.0
  %6966 = vmatprep.subr.mxu0 0.0
  %6967 = vmatpush1.msra.mxu0 0.0
  %6968 = vmatprep.subr.mxu0 0.0
  %6969 = vmatpush1.msra.mxu0 0.0
  %6970 = vmatprep.subr.mxu0 0.0
  %6971 = vmatpush1.msra.mxu0 0.0
  %6972 = vmatprep.subr.mxu0 0.0
  %6973 = vmatpush1.msra.mxu0 0.0
  %6974 = vmatprep.subr.mxu0 0.0
  %6975 = vmatpush1.msra.mxu0 0.0
  %6976 = vmatprep.subr.mxu0 0.0
  %6977 = vmatpush1.msra.mxu0 0.0
  %6978 = vmatprep.subr.mxu0 0.0
  %6979 = vmatpush1.msra.mxu0 0.0
  %6980 = vmatprep.subr.mxu0 0.0
  %6981 = vmatpush1.msra.mxu0 0.0
  %6982 = vmatprep.subr.mxu0 0.0
  %6983 = vmatpush1.msra.mxu0 0.0
  %6984 = vmatprep.subr.mxu0 0.0
  %6985 = vmatpush1.msra.mxu0 0.0
  %6986 = vmatprep.subr.mxu0 0.0
  %6987 = vmatpush1.msra.mxu0 0.0
  %6988 = vmatprep.subr.mxu0 0.0
  %6989 = vmatpush1.msra.mxu0 0.0
  %6990 = vmatprep.subr.mxu0 0.0
  %6991 = vmatpush1.msra.mxu0 0.0
  %6992 = vmatprep.subr.mxu0 0.0
  %6993 = vmatpush1.msra.mxu0 0.0
  %6994 = vmatprep.mubr.f32.mxu0 0.0
  %6995 = vmatmul.mubr.f32.gmra.mrb[0].mxu0 %v6907
  %v6996 = vpop.f32.mrb[0].mxu0
  %v6997 = vadd.f32 0.0, %v6996
  %v6998 = vpop.f32.mrb[0].mxu0
  %6999 = vmatprep.mubr.f32.mxu0 0.0
  %7000 = vmatmul.mubr.f32.gmra.mrb[0].mxu0 %v6910
  %v7001 = vpop.f32.mrb[0].mxu0
  %v7002 = vadd.f32 0.0, %v7001
  %v7003 = vpop.f32.mrb[0].mxu0
  %7004 = vmatprep.mubr.f32.mxu0 0.0
  %7005 = vmatmul.mubr.f32.gmra.mrb[0].mxu0 %v6913
  %v7006 = vpop.f32.mrb[0].mxu0
  %v7007 = vadd.f32 0.0, %v7006
  %v7008 = vpop.f32.mrb[0].mxu0
  %7009 = vmatprep.mubr.f32.mxu0 0.0
  %7010 = vmatmul.mubr.f32.gmra.mrb[0].mxu0 %v6916
  %v7011 = vpop.f32.mrb[0].mxu0
  %v7012 = vadd.f32 0.0, %v7011
  %v7013 = vpop.f32.mrb[0].mxu0
  %7014 = vmatprep.mubr.f32.mxu0 0.0
  %7015 = vmatmul.mubr.f32.gmra.mrb[0].mxu0 %v6919
  %v7016 = vpop.f32.mrb[0].mxu0
  %v7017 = vadd.f32 0.0, %v7016
  %v7018 = vpop.f32.mrb[0].mxu0
  %7019 = vmatprep.mubr.f32.mxu0 0.0
  %7020 = vmatmul.mubr.f32.gmra.mrb[0].mxu0 %v6922
  %v7021 = vpop.f32.mrb[0].mxu0
  %v7022 = vadd.f32 0.0, %v7021
  %v7023 = vpop.f32.mrb[0].mxu0
  %7024 = vmatprep.mubr.f32.mxu0 0.0
  %7025 = vmatmul.mubr.f32.gmra.mrb[0].mxu0 %v6925
  %v7026 = vpop.f32.mrb[0].mxu0
  %v7027 = vadd.f32 0.0, %v7026
  %v7028 = vpop.f32.mrb[0].mxu0
  %7029 = vmatprep.mubr.f32.mxu0 0.0
  %7030 = vmatmul.mubr.f32.gmra.mrb[0].mxu0 %v6928
  %v7031 = vpop.f32.mrb[0].mxu0
  %v7032 = vadd.f32 0.0, %v7031
  %v7033 = vpop.f32.mrb[0].mxu0
  %7034 = vdwg.mxu0
  %v7036 = vsel %vm6344, %v6865, 0
  %v7039 = vsel %vm6344, %v6866, 0
  %v7042 = vsel %vm6344, %v6867, 0
  %v7045 = vsel %vm6344, %v6868, 0
  %v7048 = vsel %vm6344, %v6869, 0
  %v7051 = vsel %vm6344, %v6870, 0
  %v7054 = vsel %vm6344, %v6871, 0
  %v7057 = vsel %vm6344, %v6872, 0
  %7059 = vmatprep.subr.mxu0 0.0
  %7060 = vmatpush1.msra.mxu0 %v6873
  %7061 = vmatprep.subr.mxu0 0.0
  %7062 = vmatpush1.msra.mxu0 %v6874
  %7063 = vmatprep.subr.mxu0 0.0
  %7064 = vmatpush1.msra.mxu0 %v6875
  %7065 = vmatprep.subr.mxu0 0.0
  %7066 = vmatpush1.msra.mxu0 %v6876
  %7067 = vmatprep.subr.mxu0 0.0
  %7068 = vmatpush1.msra.mxu0 %v6877
  %7069 = vmatprep.subr.mxu0 0.0
  %7070 = vmatpush1.msra.mxu0 %v6878
  %7071 = vmatprep.subr.mxu0 0.0
  %7072 = vmatpush1.msra.mxu0 %v6879
  %7073 = vmatprep.subr.mxu0 0.0
  %7074 = vmatpush1.msra.mxu0 %v6880
  %7075 = vmatprep.subr.mxu0 0.0
  %7076 = vmatpush1.msra.mxu0 0.0
  %7077 = vmatprep.subr.mxu0 0.0
  %7078 = vmatpush1.msra.mxu0 0.0
  %7079 = vmatprep.subr.mxu0 0.0
  %7080 = vmatpush1.msra.mxu0 0.0
  %7081 = vmatprep.subr.mxu0 0.0
  %7082 = vmatpush1.msra.mxu0 0.0
  %7083 = vmatprep.subr.mxu0 0.0
  %7084 = vmatpush1.msra.mxu0 0.0
  %7085 = vmatprep.subr.mxu0 0.0
  %7086 = vmatpush1.msra.mxu0 0.0
  %7087 = vmatprep.subr.mxu0 0.0
  %7088 = vmatpush1.msra.mxu0 0.0
  %7089 = vmatprep.subr.mxu0 0.0
  %7090 = vmatpush1.msra.mxu0 0.0
  %7091 = vmatprep.subr.mxu0 0.0
  %7092 = vmatpush1.msra.mxu0 0.0
  %7093 = vmatprep.subr.mxu0 0.0
  %7094 = vmatpush1.msra.mxu0 0.0
  %7095 = vmatprep.subr.mxu0 0.0
  %7096 = vmatpush1.msra.mxu0 0.0
  %7097 = vmatprep.subr.mxu0 0.0
  %7098 = vmatpush1.msra.mxu0 0.0
  %7099 = vmatprep.subr.mxu0 0.0
  %7100 = vmatpush1.msra.mxu0 0.0
  %7101 = vmatprep.subr.mxu0 0.0
  %7102 = vmatpush1.msra.mxu0 0.0
  %7103 = vmatprep.subr.mxu0 0.0
  %7104 = vmatpush1.msra.mxu0 0.0
  %7105 = vmatprep.subr.mxu0 0.0
  %7106 = vmatpush1.msra.mxu0 0.0
  %7107 = vmatprep.subr.mxu0 0.0
  %7108 = vmatpush1.msra.mxu0 0.0
  %7109 = vmatprep.subr.mxu0 0.0
  %7110 = vmatpush1.msra.mxu0 0.0
  %7111 = vmatprep.subr.mxu0 0.0
  %7112 = vmatpush1.msra.mxu0 0.0
  %7113 = vmatprep.subr.mxu0 0.0
  %7114 = vmatpush1.msra.mxu0 0.0
  %7115 = vmatprep.subr.mxu0 0.0
  %7116 = vmatpush1.msra.mxu0 0.0
  %7117 = vmatprep.subr.mxu0 0.0
  %7118 = vmatpush1.msra.mxu0 0.0
  %7119 = vmatprep.subr.mxu0 0.0
  %7120 = vmatpush1.msra.mxu0 0.0
  %7121 = vmatprep.subr.mxu0 0.0
  %7122 = vmatpush1.msra.mxu0 0.0
  %7123 = vmatprep.mubr.f32.mxu0 0.0
  %7124 = vmatmul.mubr.f32.gmra.mrb[0].mxu0 %v7036
  %v7125 = vpop.f32.mrb[0].mxu0
  %v7126 = vadd.f32 %v6997, %v7125
  %v7127 = vpop.f32.mrb[0].mxu0
  %7128 = vmatprep.mubr.f32.mxu0 0.0
  %7129 = vmatmul.mubr.f32.gmra.mrb[0].mxu0 %v7039
  %v7130 = vpop.f32.mrb[0].mxu0
  %v7131 = vadd.f32 %v7002, %v7130
  %v7132 = vpop.f32.mrb[0].mxu0
  %7133 = vmatprep.mubr.f32.mxu0 0.0
  %7134 = vmatmul.mubr.f32.gmra.mrb[0].mxu0 %v7042
  %v7135 = vpop.f32.mrb[0].mxu0
  %v7136 = vadd.f32 %v7007, %v7135
  %v7137 = vpop.f32.mrb[0].mxu0
  %7138 = vmatprep.mubr.f32.mxu0 0.0
  %7139 = vmatmul.mubr.f32.gmra.mrb[0].mxu0 %v7045
  %v7140 = vpop.f32.mrb[0].mxu0
  %v7141 = vadd.f32 %v7012, %v7140
  %v7142 = vpop.f32.mrb[0].mxu0
  %7143 = vmatprep.mubr.f32.mxu0 0.0
  %7144 = vmatmul.mubr.f32.gmra.mrb[0].mxu0 %v7048
  %v7145 = vpop.f32.mrb[0].mxu0
  %v7146 = vadd.f32 %v7017, %v7145
  %v7147 = vpop.f32.mrb[0].mxu0
  %7148 = vmatprep.mubr.f32.mxu0 0.0
  %7149 = vmatmul.mubr.f32.gmra.mrb[0].mxu0 %v7051
  %v7150 = vpop.f32.mrb[0].mxu0
  %v7151 = vadd.f32 %v7022, %v7150
  %v7152 = vpop.f32.mrb[0].mxu0
  %7153 = vmatprep.mubr.f32.mxu0 0.0
  %7154 = vmatmul.mubr.f32.gmra.mrb[0].mxu0 %v7054
  %v7155 = vpop.f32.mrb[0].mxu0
  %v7156 = vadd.f32 %v7027, %v7155
  %v7157 = vpop.f32.mrb[0].mxu0
  %7158 = vmatprep.mubr.f32.mxu0 0.0
  %7159 = vmatmul.mubr.f32.gmra.mrb[0].mxu0 %v7057
  %v7160 = vpop.f32.mrb[0].mxu0
  %v7161 = vadd.f32 %v7032, %v7160
  %v7162 = vpop.f32.mrb[0].mxu0
  %7163 = vdwg.mxu0
  %v7164 = vld [vmem:[#allocation4 + $0x5] sm:$0xff]
  %v7165 = vld [vmem:[#allocation4 + $0xd] sm:$0xff]
  %v7166 = vld [vmem:[#allocation4 + $0x15] sm:$0xff]
  %v7167 = vld [vmem:[#allocation4 + $0x1d] sm:$0xff]
  %v7168 = vld [vmem:[#allocation4 + $0x25] sm:$0xff]
  %v7169 = vld [vmem:[#allocation4 + $0x2d] sm:$0xff]
  %v7170 = vld [vmem:[#allocation4 + $0x35] sm:$0xff]
  %v7171 = vld [vmem:[#allocation4 + $0x3d] sm:$0xff]
  %v7172 = vmul.f32 %v7164, %v6745
  %v7173 = vmul.f32 %v7165, %v6746
  %v7174 = vmul.f32 %v7166, %v6747
  %v7175 = vmul.f32 %v7167, %v6748
  %v7176 = vmul.f32 %v7168, %v6749
  %v7177 = vmul.f32 %v7169, %v6750
  %v7178 = vmul.f32 %v7170, %v6751
  %v7179 = vmul.f32 %v7171, %v6752
  %s7180 = scalar_lea.vmem %s5, 128
  %v7181 = vld [vmem:[%s7180] sm:$0xff]
  %v7182 = vld [vmem:[%s7180 + $0x8] sm:$0xff]
  %v7183 = vld [vmem:[%s7180 + $0x10] sm:$0xff]
  %v7184 = vld [vmem:[%s7180 + $0x18] sm:$0xff]
  %v7185 = vld [vmem:[%s7180 + $0x20] sm:$0xff]
  %v7186 = vld [vmem:[%s7180 + $0x28] sm:$0xff]
  %v7187 = vld [vmem:[%s7180 + $0x30] sm:$0xff]
  %v7188 = vld [vmem:[%s7180 + $0x38] sm:$0xff]
  %v7190 = vsel %vm6344, %v7172, 0
  %v7193 = vsel %vm6344, %v7173, 0
  %v7196 = vsel %vm6344, %v7174, 0
  %v7199 = vsel %vm6344, %v7175, 0
  %v7202 = vsel %vm6344, %v7176, 0
  %v7205 = vsel %vm6344, %v7177, 0
  %v7208 = vsel %vm6344, %v7178, 0
  %v7211 = vsel %vm6344, %v7179, 0
  %7213 = vmatprep.subr.mxu0 0.0
  %7214 = vmatpush1.msra.mxu0 %v7181
  %7215 = vmatprep.subr.mxu0 0.0
  %7216 = vmatpush1.msra.mxu0 %v7182
  %7217 = vmatprep.subr.mxu0 0.0
  %7218 = vmatpush1.msra.mxu0 %v7183
  %7219 = vmatprep.subr.mxu0 0.0
  %7220 = vmatpush1.msra.mxu0 %v7184
  %7221 = vmatprep.subr.mxu0 0.0
  %7222 = vmatpush1.msra.mxu0 %v7185
  %7223 = vmatprep.subr.mxu0 0.0
  %7224 = vmatpush1.msra.mxu0 %v7186
  %7225 = vmatprep.subr.mxu0 0.0
  %7226 = vmatpush1.msra.mxu0 %v7187
  %7227 = vmatprep.subr.mxu0 0.0
  %7228 = vmatpush1.msra.mxu0 %v7188
  %7229 = vmatprep.subr.mxu0 0.0
  %7230 = vmatpush1.msra.mxu0 0.0
  %7231 = vmatprep.subr.mxu0 0.0
  %7232 = vmatpush1.msra.mxu0 0.0
  %7233 = vmatprep.subr.mxu0 0.0
  %7234 = vmatpush1.msra.mxu0 0.0
  %7235 = vmatprep.subr.mxu0 0.0
  %7236 = vmatpush1.msra.mxu0 0.0
  %7237 = vmatprep.subr.mxu0 0.0
  %7238 = vmatpush1.msra.mxu0 0.0
  %7239 = vmatprep.subr.mxu0 0.0
  %7240 = vmatpush1.msra.mxu0 0.0
  %7241 = vmatprep.subr.mxu0 0.0
  %7242 = vmatpush1.msra.mxu0 0.0
  %7243 = vmatprep.subr.mxu0 0.0
  %7244 = vmatpush1.msra.mxu0 0.0
  %7245 = vmatprep.subr.mxu0 0.0
  %7246 = vmatpush1.msra.mxu0 0.0
  %7247 = vmatprep.subr.mxu0 0.0
  %7248 = vmatpush1.msra.mxu0 0.0
  %7249 = vmatprep.subr.mxu0 0.0
  %7250 = vmatpush1.msra.mxu0 0.0
  %7251 = vmatprep.subr.mxu0 0.0
  %7252 = vmatpush1.msra.mxu0 0.0
  %7253 = vmatprep.subr.mxu0 0.0
  %7254 = vmatpush1.msra.mxu0 0.0
  %7255 = vmatprep.subr.mxu0 0.0
  %7256 = vmatpush1.msra.mxu0 0.0
  %7257 = vmatprep.subr.mxu0 0.0
  %7258 = vmatpush1.msra.mxu0 0.0
  %7259 = vmatprep.subr.mxu0 0.0
  %7260 = vmatpush1.msra.mxu0 0.0
  %7261 = vmatprep.subr.mxu0 0.0
  %7262 = vmatpush1.msra.mxu0 0.0
  %7263 = vmatprep.subr.mxu0 0.0
  %7264 = vmatpush1.msra.mxu0 0.0
  %7265 = vmatprep.subr.mxu0 0.0
  %7266 = vmatpush1.msra.mxu0 0.0
  %7267 = vmatprep.subr.mxu0 0.0
  %7268 = vmatpush1.msra.mxu0 0.0
  %7269 = vmatprep.subr.mxu0 0.0
  %7270 = vmatpush1.msra.mxu0 0.0
  %7271 = vmatprep.subr.mxu0 0.0
  %7272 = vmatpush1.msra.mxu0 0.0
  %7273 = vmatprep.subr.mxu0 0.0
  %7274 = vmatpush1.msra.mxu0 0.0
  %7275 = vmatprep.subr.mxu0 0.0
  %7276 = vmatpush1.msra.mxu0 0.0
  %7277 = vmatprep.mubr.f32.mxu0 0.0
  %7278 = vmatmul.mubr.f32.gmra.mrb[0].mxu0 %v7190
  %v7279 = vpop.f32.mrb[0].mxu0
  %v7280 = vadd.f32 0.0, %v7279
  %v7281 = vpop.f32.mrb[0].mxu0
  %7282 = vmatprep.mubr.f32.mxu0 0.0
  %7283 = vmatmul.mubr.f32.gmra.mrb[0].mxu0 %v7193
  %v7284 = vpop.f32.mrb[0].mxu0
  %v7285 = vadd.f32 0.0, %v7284
  %v7286 = vpop.f32.mrb[0].mxu0
  %7287 = vmatprep.mubr.f32.mxu0 0.0
  %7288 = vmatmul.mubr.f32.gmra.mrb[0].mxu0 %v7196
  %v7289 = vpop.f32.mrb[0].mxu0
  %v7290 = vadd.f32 0.0, %v7289
  %v7291 = vpop.f32.mrb[0].mxu0
  %7292 = vmatprep.mubr.f32.mxu0 0.0
  %7293 = vmatmul.mubr.f32.gmra.mrb[0].mxu0 %v7199
  %v7294 = vpop.f32.mrb[0].mxu0
  %v7295 = vadd.f32 0.0, %v7294
  %v7296 = vpop.f32.mrb[0].mxu0
  %7297 = vmatprep.mubr.f32.mxu0 0.0
  %7298 = vmatmul.mubr.f32.gmra.mrb[0].mxu0 %v7202
  %v7299 = vpop.f32.mrb[0].mxu0
  %v7300 = vadd.f32 0.0, %v7299
  %v7301 = vpop.f32.mrb[0].mxu0
  %7302 = vmatprep.mubr.f32.mxu0 0.0
  %7303 = vmatmul.mubr.f32.gmra.mrb[0].mxu0 %v7205
  %v7304 = vpop.f32.mrb[0].mxu0
  %v7305 = vadd.f32 0.0, %v7304
  %v7306 = vpop.f32.mrb[0].mxu0
  %7307 = vmatprep.mubr.f32.mxu0 0.0
  %7308 = vmatmul.mubr.f32.gmra.mrb[0].mxu0 %v7208
  %v7309 = vpop.f32.mrb[0].mxu0
  %v7310 = vadd.f32 0.0, %v7309
  %v7311 = vpop.f32.mrb[0].mxu0
  %7312 = vmatprep.mubr.f32.mxu0 0.0
  %7313 = vmatmul.mubr.f32.gmra.mrb[0].mxu0 %v7211
  %v7314 = vpop.f32.mrb[0].mxu0
  %v7315 = vadd.f32 0.0, %v7314
  %v7316 = vpop.f32.mrb[0].mxu0
  %7317 = vdwg.mxu0
  %v7318 = vadd.f32 %v7126, %v7280
  %v7319 = vadd.f32 %v7131, %v7285
  %v7320 = vadd.f32 %v7136, %v7290
  %v7321 = vadd.f32 %v7141, %v7295
  %v7322 = vadd.f32 %v7146, %v7300
  %v7323 = vadd.f32 %v7151, %v7305
  %v7324 = vadd.f32 %v7156, %v7310
  %v7325 = vadd.f32 %v7161, %v7315
  %v7326 = vld [vmem:[#allocation4 + $0x7] sm:$0xff]
  %v7327 = vld [vmem:[#allocation4 + $0xf] sm:$0xff]
  %v7328 = vld [vmem:[#allocation4 + $0x17] sm:$0xff]
  %v7329 = vld [vmem:[#allocation4 + $0x1f] sm:$0xff]
  %v7330 = vld [vmem:[#allocation4 + $0x27] sm:$0xff]
  %v7331 = vld [vmem:[#allocation4 + $0x2f] sm:$0xff]
  %v7332 = vld [vmem:[#allocation4 + $0x37] sm:$0xff]
  %v7333 = vld [vmem:[#allocation4 + $0x3f] sm:$0xff]
  %v7334 = vmul.f32 %v7326, %v6761
  %v7335 = vmul.f32 %v7327, %v6762
  %v7336 = vmul.f32 %v7328, %v6763
  %v7337 = vmul.f32 %v7329, %v6764
  %v7338 = vmul.f32 %v7330, %v6765
  %v7339 = vmul.f32 %v7331, %v6766
  %v7340 = vmul.f32 %v7332, %v6767
  %v7341 = vmul.f32 %v7333, %v6768
  %s7342 = scalar_lea.vmem %s5, 192
  %v7343 = vld [vmem:[%s7342] sm:$0xff]
  %v7344 = vld [vmem:[%s7342 + $0x8] sm:$0xff]
  %v7345 = vld [vmem:[%s7342 + $0x10] sm:$0xff]
  %v7346 = vld [vmem:[%s7342 + $0x18] sm:$0xff]
  %v7347 = vld [vmem:[%s7342 + $0x20] sm:$0xff]
  %v7348 = vld [vmem:[%s7342 + $0x28] sm:$0xff]
  %v7349 = vld [vmem:[%s7342 + $0x30] sm:$0xff]
  %v7350 = vld [vmem:[%s7342 + $0x38] sm:$0xff]
  %v7352 = vsel %vm6344, %v7334, 0
  %v7355 = vsel %vm6344, %v7335, 0
  %v7358 = vsel %vm6344, %v7336, 0
  %v7361 = vsel %vm6344, %v7337, 0
  %v7364 = vsel %vm6344, %v7338, 0
  %v7367 = vsel %vm6344, %v7339, 0
  %v7370 = vsel %vm6344, %v7340, 0
  %v7373 = vsel %vm6344, %v7341, 0
  %7375 = vmatprep.subr.mxu0 0.0
  %7376 = vmatpush1.msra.mxu0 %v7343
  %7377 = vmatprep.subr.mxu0 0.0
  %7378 = vmatpush1.msra.mxu0 %v7344
  %7379 = vmatprep.subr.mxu0 0.0
  %7380 = vmatpush1.msra.mxu0 %v7345
  %7381 = vmatprep.subr.mxu0 0.0
  %7382 = vmatpush1.msra.mxu0 %v7346
  %7383 = vmatprep.subr.mxu0 0.0
  %7384 = vmatpush1.msra.mxu0 %v7347
  %7385 = vmatprep.subr.mxu0 0.0
  %7386 = vmatpush1.msra.mxu0 %v7348
  %7387 = vmatprep.subr.mxu0 0.0
  %7388 = vmatpush1.msra.mxu0 %v7349
  %7389 = vmatprep.subr.mxu0 0.0
  %7390 = vmatpush1.msra.mxu0 %v7350
  %7391 = vmatprep.subr.mxu0 0.0
  %7392 = vmatpush1.msra.mxu0 0.0
  %7393 = vmatprep.subr.mxu0 0.0
  %7394 = vmatpush1.msra.mxu0 0.0
  %7395 = vmatprep.subr.mxu0 0.0
  %7396 = vmatpush1.msra.mxu0 0.0
  %7397 = vmatprep.subr.mxu0 0.0
  %7398 = vmatpush1.msra.mxu0 0.0
  %7399 = vmatprep.subr.mxu0 0.0
  %7400 = vmatpush1.msra.mxu0 0.0
  %7401 = vmatprep.subr.mxu0 0.0
  %7402 = vmatpush1.msra.mxu0 0.0
  %7403 = vmatprep.subr.mxu0 0.0
  %7404 = vmatpush1.msra.mxu0 0.0
  %7405 = vmatprep.subr.mxu0 0.0
  %7406 = vmatpush1.msra.mxu0 0.0
  %7407 = vmatprep.subr.mxu0 0.0
  %7408 = vmatpush1.msra.mxu0 0.0
  %7409 = vmatprep.subr.mxu0 0.0
  %7410 = vmatpush1.msra.mxu0 0.0
  %7411 = vmatprep.subr.mxu0 0.0
  %7412 = vmatpush1.msra.mxu0 0.0
  %7413 = vmatprep.subr.mxu0 0.0
  %7414 = vmatpush1.msra.mxu0 0.0
  %7415 = vmatprep.subr.mxu0 0.0
  %7416 = vmatpush1.msra.mxu0 0.0
  %7417 = vmatprep.subr.mxu0 0.0
  %7418 = vmatpush1.msra.mxu0 0.0
  %7419 = vmatprep.subr.mxu0 0.0
  %7420 = vmatpush1.msra.mxu0 0.0
  %7421 = vmatprep.subr.mxu0 0.0
  %7422 = vmatpush1.msra.mxu0 0.0
  %7423 = vmatprep.subr.mxu0 0.0
  %7424 = vmatpush1.msra.mxu0 0.0
  %7425 = vmatprep.subr.mxu0 0.0
  %7426 = vmatpush1.msra.mxu0 0.0
  %7427 = vmatprep.subr.mxu0 0.0
  %7428 = vmatpush1.msra.mxu0 0.0
  %7429 = vmatprep.subr.mxu0 0.0
  %7430 = vmatpush1.msra.mxu0 0.0
  %7431 = vmatprep.subr.mxu0 0.0
  %7432 = vmatpush1.msra.mxu0 0.0
  %7433 = vmatprep.subr.mxu0 0.0
  %7434 = vmatpush1.msra.mxu0 0.0
  %7435 = vmatprep.subr.mxu0 0.0
  %7436 = vmatpush1.msra.mxu0 0.0
  %7437 = vmatprep.subr.mxu0 0.0
  %7438 = vmatpush1.msra.mxu0 0.0
  %7439 = vmatprep.mubr.f32.mxu0 0.0
  %7440 = vmatmul.mubr.f32.gmra.mrb[0].mxu0 %v7352
  %v7441 = vpop.f32.mrb[0].mxu0
  %v7442 = vadd.f32 0.0, %v7441
  %v7443 = vpop.f32.mrb[0].mxu0
  %7444 = vmatprep.mubr.f32.mxu0 0.0
  %7445 = vmatmul.mubr.f32.gmra.mrb[0].mxu0 %v7355
  %v7446 = vpop.f32.mrb[0].mxu0
  %v7447 = vadd.f32 0.0, %v7446
  %v7448 = vpop.f32.mrb[0].mxu0
  %7449 = vmatprep.mubr.f32.mxu0 0.0
  %7450 = vmatmul.mubr.f32.gmra.mrb[0].mxu0 %v7358
  %v7451 = vpop.f32.mrb[0].mxu0
  %v7452 = vadd.f32 0.0, %v7451
  %v7453 = vpop.f32.mrb[0].mxu0
  %7454 = vmatprep.mubr.f32.mxu0 0.0
  %7455 = vmatmul.mubr.f32.gmra.mrb[0].mxu0 %v7361
  %v7456 = vpop.f32.mrb[0].mxu0
  %v7457 = vadd.f32 0.0, %v7456
  %v7458 = vpop.f32.mrb[0].mxu0
  %7459 = vmatprep.mubr.f32.mxu0 0.0
  %7460 = vmatmul.mubr.f32.gmra.mrb[0].mxu0 %v7364
  %v7461 = vpop.f32.mrb[0].mxu0
  %v7462 = vadd.f32 0.0, %v7461
  %v7463 = vpop.f32.mrb[0].mxu0
  %7464 = vmatprep.mubr.f32.mxu0 0.0
  %7465 = vmatmul.mubr.f32.gmra.mrb[0].mxu0 %v7367
  %v7466 = vpop.f32.mrb[0].mxu0
  %v7467 = vadd.f32 0.0, %v7466
  %v7468 = vpop.f32.mrb[0].mxu0
  %7469 = vmatprep.mubr.f32.mxu0 0.0
  %7470 = vmatmul.mubr.f32.gmra.mrb[0].mxu0 %v7370
  %v7471 = vpop.f32.mrb[0].mxu0
  %v7472 = vadd.f32 0.0, %v7471
  %v7473 = vpop.f32.mrb[0].mxu0
  %7474 = vmatprep.mubr.f32.mxu0 0.0
  %7475 = vmatmul.mubr.f32.gmra.mrb[0].mxu0 %v7373
  %v7476 = vpop.f32.mrb[0].mxu0
  %v7477 = vadd.f32 0.0, %v7476
  %v7478 = vpop.f32.mrb[0].mxu0
  %7479 = vdwg.mxu0
  %v7480 = vadd.f32 %v7318, %v7442
  %v7481 = vadd.f32 %v7319, %v7447
  %v7482 = vadd.f32 %v7320, %v7452
  %v7483 = vadd.f32 %v7321, %v7457
  %v7484 = vadd.f32 %v7322, %v7462
  %v7485 = vadd.f32 %v7323, %v7467
  %v7486 = vadd.f32 %v7324, %v7472
  %v7487 = vadd.f32 %v7325, %v7477
  %v7488 = vld [vmem:[#allocation4 + $0x8] sm:$0xff]
  %v7489 = vld [vmem:[#allocation4 + $0x10] sm:$0xff]
  %v7490 = vld [vmem:[#allocation4 + $0x18] sm:$0xff]
  %v7491 = vld [vmem:[#allocation4 + $0x20] sm:$0xff]
  %v7492 = vld [vmem:[#allocation4 + $0x28] sm:$0xff]
  %v7493 = vld [vmem:[#allocation4 + $0x30] sm:$0xff]
  %v7494 = vld [vmem:[#allocation4 + $0x38] sm:$0xff]
  %v7495 = vld [vmem:[#allocation4 + $0x40] sm:$0xff]
  %s7496 = scalar_lea.vmem %s5, 256
  %v7497 = vld [vmem:[%s7496] sm:$0xff]
  %v7498 = vld [vmem:[%s7496 + $0x8] sm:$0xff]
  %v7499 = vld [vmem:[%s7496 + $0x10] sm:$0xff]
  %v7500 = vld [vmem:[%s7496 + $0x18] sm:$0xff]
  %v7501 = vld [vmem:[%s7496 + $0x20] sm:$0xff]
  %v7502 = vld [vmem:[%s7496 + $0x28] sm:$0xff]
  %v7503 = vld [vmem:[%s7496 + $0x30] sm:$0xff]
  %v7504 = vld [vmem:[%s7496 + $0x38] sm:$0xff]
  %v7506 = vsel %vm6344, %v7488, 0
  %v7509 = vsel %vm6344, %v7489, 0
  %v7512 = vsel %vm6344, %v7490, 0
  %v7515 = vsel %vm6344, %v7491, 0
  %v7518 = vsel %vm6344, %v7492, 0
  %v7521 = vsel %vm6344, %v7493, 0
  %v7524 = vsel %vm6344, %v7494, 0
  %v7527 = vsel %vm6344, %v7495, 0
  %7529 = vmatprep.subr.mxu0 0.0
  %7530 = vmatpush1.msra.mxu0 %v7497
  %7531 = vmatprep.subr.mxu0 0.0
  %7532 = vmatpush1.msra.mxu0 %v7498
  %7533 = vmatprep.subr.mxu0 0.0
  %7534 = vmatpush1.msra.mxu0 %v7499
  %7535 = vmatprep.subr.mxu0 0.0
  %7536 = vmatpush1.msra.mxu0 %v7500
  %7537 = vmatprep.subr.mxu0 0.0
  %7538 = vmatpush1.msra.mxu0 %v7501
  %7539 = vmatprep.subr.mxu0 0.0
  %7540 = vmatpush1.msra.mxu0 %v7502
  %7541 = vmatprep.subr.mxu0 0.0
  %7542 = vmatpush1.msra.mxu0 %v7503
  %7543 = vmatprep.subr.mxu0 0.0
  %7544 = vmatpush1.msra.mxu0 %v7504
  %7545 = vmatprep.subr.mxu0 0.0
  %7546 = vmatpush1.msra.mxu0 0.0
  %7547 = vmatprep.subr.mxu0 0.0
  %7548 = vmatpush1.msra.mxu0 0.0
  %7549 = vmatprep.subr.mxu0 0.0
  %7550 = vmatpush1.msra.mxu0 0.0
  %7551 = vmatprep.subr.mxu0 0.0
  %7552 = vmatpush1.msra.mxu0 0.0
  %7553 = vmatprep.subr.mxu0 0.0
  %7554 = vmatpush1.msra.mxu0 0.0
  %7555 = vmatprep.subr.mxu0 0.0
  %7556 = vmatpush1.msra.mxu0 0.0
  %7557 = vmatprep.subr.mxu0 0.0
  %7558 = vmatpush1.msra.mxu0 0.0
  %7559 = vmatprep.subr.mxu0 0.0
  %7560 = vmatpush1.msra.mxu0 0.0
  %7561 = vmatprep.subr.mxu0 0.0
  %7562 = vmatpush1.msra.mxu0 0.0
  %7563 = vmatprep.subr.mxu0 0.0
  %7564 = vmatpush1.msra.mxu0 0.0
  %7565 = vmatprep.subr.mxu0 0.0
  %7566 = vmatpush1.msra.mxu0 0.0
  %7567 = vmatprep.subr.mxu0 0.0
  %7568 = vmatpush1.msra.mxu0 0.0
  %7569 = vmatprep.subr.mxu0 0.0
  %7570 = vmatpush1.msra.mxu0 0.0
  %7571 = vmatprep.subr.mxu0 0.0
  %7572 = vmatpush1.msra.mxu0 0.0
  %7573 = vmatprep.subr.mxu0 0.0
  %7574 = vmatpush1.msra.mxu0 0.0
  %7575 = vmatprep.subr.mxu0 0.0
  %7576 = vmatpush1.msra.mxu0 0.0
  %7577 = vmatprep.subr.mxu0 0.0
  %7578 = vmatpush1.msra.mxu0 0.0
  %7579 = vmatprep.subr.mxu0 0.0
  %7580 = vmatpush1.msra.mxu0 0.0
  %7581 = vmatprep.subr.mxu0 0.0
  %7582 = vmatpush1.msra.mxu0 0.0
  %7583 = vmatprep.subr.mxu0 0.0
  %7584 = vmatpush1.msra.mxu0 0.0
  %7585 = vmatprep.subr.mxu0 0.0
  %7586 = vmatpush1.msra.mxu0 0.0
  %7587 = vmatprep.subr.mxu0 0.0
  %7588 = vmatpush1.msra.mxu0 0.0
  %7589 = vmatprep.subr.mxu0 0.0
  %7590 = vmatpush1.msra.mxu0 0.0
  %7591 = vmatprep.subr.mxu0 0.0
  %7592 = vmatpush1.msra.mxu0 0.0
  %7593 = vmatprep.mubr.f32.mxu0 0.0
  %7594 = vmatmul.mubr.f32.gmra.mrb[0].mxu0 %v7506
  %v7595 = vpop.f32.mrb[0].mxu0
  %v7596 = vadd.f32 0.0, %v7595
  %v7597 = vpop.f32.mrb[0].mxu0
  %7598 = vmatprep.mubr.f32.mxu0 0.0
  %7599 = vmatmul.mubr.f32.gmra.mrb[0].mxu0 %v7509
  %v7600 = vpop.f32.mrb[0].mxu0
  %v7601 = vadd.f32 0.0, %v7600
  %v7602 = vpop.f32.mrb[0].mxu0
  %7603 = vmatprep.mubr.f32.mxu0 0.0
  %7604 = vmatmul.mubr.f32.gmra.mrb[0].mxu0 %v7512
  %v7605 = vpop.f32.mrb[0].mxu0
  %v7606 = vadd.f32 0.0, %v7605
  %v7607 = vpop.f32.mrb[0].mxu0
  %7608 = vmatprep.mubr.f32.mxu0 0.0
  %7609 = vmatmul.mubr.f32.gmra.mrb[0].mxu0 %v7515
  %v7610 = vpop.f32.mrb[0].mxu0
  %v7611 = vadd.f32 0.0, %v7610
  %v7612 = vpop.f32.mrb[0].mxu0
  %7613 = vmatprep.mubr.f32.mxu0 0.0
  %7614 = vmatmul.mubr.f32.gmra.mrb[0].mxu0 %v7518
  %v7615 = vpop.f32.mrb[0].mxu0
  %v7616 = vadd.f32 0.0, %v7615
  %v7617 = vpop.f32.mrb[0].mxu0
  %7618 = vmatprep.mubr.f32.mxu0 0.0
  %7619 = vmatmul.mubr.f32.gmra.mrb[0].mxu0 %v7521
  %v7620 = vpop.f32.mrb[0].mxu0
  %v7621 = vadd.f32 0.0, %v7620
  %v7622 = vpop.f32.mrb[0].mxu0
  %7623 = vmatprep.mubr.f32.mxu0 0.0
  %7624 = vmatmul.mubr.f32.gmra.mrb[0].mxu0 %v7524
  %v7625 = vpop.f32.mrb[0].mxu0
  %v7626 = vadd.f32 0.0, %v7625
  %v7627 = vpop.f32.mrb[0].mxu0
  %7628 = vmatprep.mubr.f32.mxu0 0.0
  %7629 = vmatmul.mubr.f32.gmra.mrb[0].mxu0 %v7527
  %v7630 = vpop.f32.mrb[0].mxu0
  %v7631 = vadd.f32 0.0, %v7630
  %v7632 = vpop.f32.mrb[0].mxu0
  %7633 = vdwg.mxu0
  %v7634 = vadd.f32 %v7480, %v7596
  %v7635 = vadd.f32 %v7481, %v7601
  %v7636 = vadd.f32 %v7482, %v7606
  %v7637 = vadd.f32 %v7483, %v7611
  %v7638 = vadd.f32 %v7484, %v7616
  %v7639 = vadd.f32 %v7485, %v7621
  %v7640 = vadd.f32 %v7486, %v7626
  %v7641 = vadd.f32 %v7487, %v7631
  %v7642 = vld [vmem:[#allocation4 + $0x9] sm:$0xff]
  %v7643 = vld [vmem:[#allocation4 + $0x11] sm:$0xff]
  %v7644 = vld [vmem:[#allocation4 + $0x19] sm:$0xff]
  %v7645 = vld [vmem:[#allocation4 + $0x21] sm:$0xff]
  %v7646 = vld [vmem:[#allocation4 + $0x29] sm:$0xff]
  %v7647 = vld [vmem:[#allocation4 + $0x31] sm:$0xff]
  %v7648 = vld [vmem:[#allocation4 + $0x39] sm:$0xff]
  %v7649 = vld [vmem:[#allocation4 + $0x41] sm:$0xff]
  %v7650 = vmul.f32 %v7642, %v6777
  %v7651 = vmul.f32 %v7643, %v6778
  %v7652 = vmul.f32 %v7644, %v6779
  %v7653 = vmul.f32 %v7645, %v6780
  %v7654 = vmul.f32 %v7646, %v6781
  %v7655 = vmul.f32 %v7647, %v6782
  %v7656 = vmul.f32 %v7648, %v6783
  %v7657 = vmul.f32 %v7649, %v6784
  %s7658 = scalar_lea.vmem %s5, 320
  %v7659 = vld [vmem:[%s7658] sm:$0xff]
  %v7660 = vld [vmem:[%s7658 + $0x8] sm:$0xff]
  %v7661 = vld [vmem:[%s7658 + $0x10] sm:$0xff]
  %v7662 = vld [vmem:[%s7658 + $0x18] sm:$0xff]
  %v7663 = vld [vmem:[%s7658 + $0x20] sm:$0xff]
  %v7664 = vld [vmem:[%s7658 + $0x28] sm:$0xff]
  %v7665 = vld [vmem:[%s7658 + $0x30] sm:$0xff]
  %v7666 = vld [vmem:[%s7658 + $0x38] sm:$0xff]
  %v7668 = vsel %vm6344, %v7650, 0
  %v7671 = vsel %vm6344, %v7651, 0
  %v7674 = vsel %vm6344, %v7652, 0
  %v7677 = vsel %vm6344, %v7653, 0
  %v7680 = vsel %vm6344, %v7654, 0
  %v7683 = vsel %vm6344, %v7655, 0
  %v7686 = vsel %vm6344, %v7656, 0
  %v7689 = vsel %vm6344, %v7657, 0
  %7691 = vmatprep.subr.mxu0 0.0
  %7692 = vmatpush1.msra.mxu0 %v7659
  %7693 = vmatprep.subr.mxu0 0.0
  %7694 = vmatpush1.msra.mxu0 %v7660
  %7695 = vmatprep.subr.mxu0 0.0
  %7696 = vmatpush1.msra.mxu0 %v7661
  %7697 = vmatprep.subr.mxu0 0.0
  %7698 = vmatpush1.msra.mxu0 %v7662
  %7699 = vmatprep.subr.mxu0 0.0
  %7700 = vmatpush1.msra.mxu0 %v7663
  %7701 = vmatprep.subr.mxu0 0.0
  %7702 = vmatpush1.msra.mxu0 %v7664
  %7703 = vmatprep.subr.mxu0 0.0
  %7704 = vmatpush1.msra.mxu0 %v7665
  %7705 = vmatprep.subr.mxu0 0.0
  %7706 = vmatpush1.msra.mxu0 %v7666
  %7707 = vmatprep.subr.mxu0 0.0
  %7708 = vmatpush1.msra.mxu0 0.0
  %7709 = vmatprep.subr.mxu0 0.0
  %7710 = vmatpush1.msra.mxu0 0.0
  %7711 = vmatprep.subr.mxu0 0.0
  %7712 = vmatpush1.msra.mxu0 0.0
  %7713 = vmatprep.subr.mxu0 0.0
  %7714 = vmatpush1.msra.mxu0 0.0
  %7715 = vmatprep.subr.mxu0 0.0
  %7716 = vmatpush1.msra.mxu0 0.0
  %7717 = vmatprep.subr.mxu0 0.0
  %7718 = vmatpush1.msra.mxu0 0.0
  %7719 = vmatprep.subr.mxu0 0.0
  %7720 = vmatpush1.msra.mxu0 0.0
  %7721 = vmatprep.subr.mxu0 0.0
  %7722 = vmatpush1.msra.mxu0 0.0
  %7723 = vmatprep.subr.mxu0 0.0
  %7724 = vmatpush1.msra.mxu0 0.0
  %7725 = vmatprep.subr.mxu0 0.0
  %7726 = vmatpush1.msra.mxu0 0.0
  %7727 = vmatprep.subr.mxu0 0.0
  %7728 = vmatpush1.msra.mxu0 0.0
  %7729 = vmatprep.subr.mxu0 0.0
  %7730 = vmatpush1.msra.mxu0 0.0
  %7731 = vmatprep.subr.mxu0 0.0
  %7732 = vmatpush1.msra.mxu0 0.0
  %7733 = vmatprep.subr.mxu0 0.0
  %7734 = vmatpush1.msra.mxu0 0.0
  %7735 = vmatprep.subr.mxu0 0.0
  %7736 = vmatpush1.msra.mxu0 0.0
  %7737 = vmatprep.subr.mxu0 0.0
  %7738 = vmatpush1.msra.mxu0 0.0
  %7739 = vmatprep.subr.mxu0 0.0
  %7740 = vmatpush1.msra.mxu0 0.0
  %7741 = vmatprep.subr.mxu0 0.0
  %7742 = vmatpush1.msra.mxu0 0.0
  %7743 = vmatprep.subr.mxu0 0.0
  %7744 = vmatpush1.msra.mxu0 0.0
  %7745 = vmatprep.subr.mxu0 0.0
  %7746 = vmatpush1.msra.mxu0 0.0
  %7747 = vmatprep.subr.mxu0 0.0
  %7748 = vmatpush1.msra.mxu0 0.0
  %7749 = vmatprep.subr.mxu0 0.0
  %7750 = vmatpush1.msra.mxu0 0.0
  %7751 = vmatprep.subr.mxu0 0.0
  %7752 = vmatpush1.msra.mxu0 0.0
  %7753 = vmatprep.subr.mxu0 0.0
  %7754 = vmatpush1.msra.mxu0 0.0
  %7755 = vmatprep.mubr.f32.mxu0 0.0
  %7756 = vmatmul.mubr.f32.gmra.mrb[0].mxu0 %v7668
  %v7757 = vpop.f32.mrb[0].mxu0
  %v7758 = vadd.f32 0.0, %v7757
  %v7759 = vpop.f32.mrb[0].mxu0
  %7760 = vmatprep.mubr.f32.mxu0 0.0
  %7761 = vmatmul.mubr.f32.gmra.mrb[0].mxu0 %v7671
  %v7762 = vpop.f32.mrb[0].mxu0
  %v7763 = vadd.f32 0.0, %v7762
  %v7764 = vpop.f32.mrb[0].mxu0
  %7765 = vmatprep.mubr.f32.mxu0 0.0
  %7766 = vmatmul.mubr.f32.gmra.mrb[0].mxu0 %v7674
  %v7767 = vpop.f32.mrb[0].mxu0
  %v7768 = vadd.f32 0.0, %v7767
  %v7769 = vpop.f32.mrb[0].mxu0
  %7770 = vmatprep.mubr.f32.mxu0 0.0
  %7771 = vmatmul.mubr.f32.gmra.mrb[0].mxu0 %v7677
  %v7772 = vpop.f32.mrb[0].mxu0
  %v7773 = vadd.f32 0.0, %v7772
  %v7774 = vpop.f32.mrb[0].mxu0
  %7775 = vmatprep.mubr.f32.mxu0 0.0
  %7776 = vmatmul.mubr.f32.gmra.mrb[0].mxu0 %v7680
  %v7777 = vpop.f32.mrb[0].mxu0
  %v7778 = vadd.f32 0.0, %v7777
  %v7779 = vpop.f32.mrb[0].mxu0
  %7780 = vmatprep.mubr.f32.mxu0 0.0
  %7781 = vmatmul.mubr.f32.gmra.mrb[0].mxu0 %v7683
  %v7782 = vpop.f32.mrb[0].mxu0
  %v7783 = vadd.f32 0.0, %v7782
  %v7784 = vpop.f32.mrb[0].mxu0
  %7785 = vmatprep.mubr.f32.mxu0 0.0
  %7786 = vmatmul.mubr.f32.gmra.mrb[0].mxu0 %v7686
  %v7787 = vpop.f32.mrb[0].mxu0
  %v7788 = vadd.f32 0.0, %v7787
  %v7789 = vpop.f32.mrb[0].mxu0
  %7790 = vmatprep.mubr.f32.mxu0 0.0
  %7791 = vmatmul.mubr.f32.gmra.mrb[0].mxu0 %v7689
  %v7792 = vpop.f32.mrb[0].mxu0
  %v7793 = vadd.f32 0.0, %v7792
  %v7794 = vpop.f32.mrb[0].mxu0
  %7795 = vdwg.mxu0
  %v7796 = vadd.f32 %v7634, %v7758
  %v7797 = vadd.f32 %v7635, %v7763
  %v7798 = vadd.f32 %v7636, %v7768
  %v7799 = vadd.f32 %v7637, %v7773
  %v7800 = vadd.f32 %v7638, %v7778
  %v7801 = vadd.f32 %v7639, %v7783
  %v7802 = vadd.f32 %v7640, %v7788
  %v7803 = vadd.f32 %v7641, %v7793
  %v7804 = vld [vmem:[#allocation4 + $0xb] sm:$0xff]
  %v7805 = vld [vmem:[#allocation4 + $0x13] sm:$0xff]
  %v7806 = vld [vmem:[#allocation4 + $0x1b] sm:$0xff]
  %v7807 = vld [vmem:[#allocation4 + $0x23] sm:$0xff]
  %v7808 = vld [vmem:[#allocation4 + $0x2b] sm:$0xff]
  %v7809 = vld [vmem:[#allocation4 + $0x33] sm:$0xff]
  %v7810 = vld [vmem:[#allocation4 + $0x3b] sm:$0xff]
  %v7811 = vld [vmem:[#allocation4 + $0x43] sm:$0xff]
  %v7812 = vmul.f32 %v7804, %v6809
  %v7813 = vmul.f32 %v7805, %v6810
  %v7814 = vmul.f32 %v7806, %v6811
  %v7815 = vmul.f32 %v7807, %v6812
  %v7816 = vmul.f32 %v7808, %v6813
  %v7817 = vmul.f32 %v7809, %v6814
  %v7818 = vmul.f32 %v7810, %v6815
  %v7819 = vmul.f32 %v7811, %v6816
  %s7820 = scalar_lea.vmem %s5, 384
  %v7821 = vld [vmem:[%s7820] sm:$0xff]
  %v7822 = vld [vmem:[%s7820 + $0x8] sm:$0xff]
  %v7823 = vld [vmem:[%s7820 + $0x10] sm:$0xff]
  %v7824 = vld [vmem:[%s7820 + $0x18] sm:$0xff]
  %v7825 = vld [vmem:[%s7820 + $0x20] sm:$0xff]
  %v7826 = vld [vmem:[%s7820 + $0x28] sm:$0xff]
  %v7827 = vld [vmem:[%s7820 + $0x30] sm:$0xff]
  %v7828 = vld [vmem:[%s7820 + $0x38] sm:$0xff]
  %v7830 = vsel %vm6344, %v7812, 0
  %v7833 = vsel %vm6344, %v7813, 0
  %v7836 = vsel %vm6344, %v7814, 0
  %v7839 = vsel %vm6344, %v7815, 0
  %v7842 = vsel %vm6344, %v7816, 0
  %v7845 = vsel %vm6344, %v7817, 0
  %v7848 = vsel %vm6344, %v7818, 0
  %v7851 = vsel %vm6344, %v7819, 0
  %7853 = vmatprep.subr.mxu0 0.0
  %7854 = vmatpush1.msra.mxu0 %v7821
  %7855 = vmatprep.subr.mxu0 0.0
  %7856 = vmatpush1.msra.mxu0 %v7822
  %7857 = vmatprep.subr.mxu0 0.0
  %7858 = vmatpush1.msra.mxu0 %v7823
  %7859 = vmatprep.subr.mxu0 0.0
  %7860 = vmatpush1.msra.mxu0 %v7824
  %7861 = vmatprep.subr.mxu0 0.0
  %7862 = vmatpush1.msra.mxu0 %v7825
  %7863 = vmatprep.subr.mxu0 0.0
  %7864 = vmatpush1.msra.mxu0 %v7826
  %7865 = vmatprep.subr.mxu0 0.0
  %7866 = vmatpush1.msra.mxu0 %v7827
  %7867 = vmatprep.subr.mxu0 0.0
  %7868 = vmatpush1.msra.mxu0 %v7828
  %7869 = vmatprep.subr.mxu0 0.0
  %7870 = vmatpush1.msra.mxu0 0.0
  %7871 = vmatprep.subr.mxu0 0.0
  %7872 = vmatpush1.msra.mxu0 0.0
  %7873 = vmatprep.subr.mxu0 0.0
  %7874 = vmatpush1.msra.mxu0 0.0
  %7875 = vmatprep.subr.mxu0 0.0
  %7876 = vmatpush1.msra.mxu0 0.0
  %7877 = vmatprep.subr.mxu0 0.0
  %7878 = vmatpush1.msra.mxu0 0.0
  %7879 = vmatprep.subr.mxu0 0.0
  %7880 = vmatpush1.msra.mxu0 0.0
  %7881 = vmatprep.subr.mxu0 0.0
  %7882 = vmatpush1.msra.mxu0 0.0
  %7883 = vmatprep.subr.mxu0 0.0
  %7884 = vmatpush1.msra.mxu0 0.0
  %7885 = vmatprep.subr.mxu0 0.0
  %7886 = vmatpush1.msra.mxu0 0.0
  %7887 = vmatprep.subr.mxu0 0.0
  %7888 = vmatpush1.msra.mxu0 0.0
  %7889 = vmatprep.subr.mxu0 0.0
  %7890 = vmatpush1.msra.mxu0 0.0
  %7891 = vmatprep.subr.mxu0 0.0
  %7892 = vmatpush1.msra.mxu0 0.0
  %7893 = vmatprep.subr.mxu0 0.0
  %7894 = vmatpush1.msra.mxu0 0.0
  %7895 = vmatprep.subr.mxu0 0.0
  %7896 = vmatpush1.msra.mxu0 0.0
  %7897 = vmatprep.subr.mxu0 0.0
  %7898 = vmatpush1.msra.mxu0 0.0
  %7899 = vmatprep.subr.mxu0 0.0
  %7900 = vmatpush1.msra.mxu0 0.0
  %7901 = vmatprep.subr.mxu0 0.0
  %7902 = vmatpush1.msra.mxu0 0.0
  %7903 = vmatprep.subr.mxu0 0.0
  %7904 = vmatpush1.msra.mxu0 0.0
  %7905 = vmatprep.subr.mxu0 0.0
  %7906 = vmatpush1.msra.mxu0 0.0
  %7907 = vmatprep.subr.mxu0 0.0
  %7908 = vmatpush1.msra.mxu0 0.0
  %7909 = vmatprep.subr.mxu0 0.0
  %7910 = vmatpush1.msra.mxu0 0.0
  %7911 = vmatprep.subr.mxu0 0.0
  %7912 = vmatpush1.msra.mxu0 0.0
  %7913 = vmatprep.subr.mxu0 0.0
  %7914 = vmatpush1.msra.mxu0 0.0
  %7915 = vmatprep.subr.mxu0 0.0
  %7916 = vmatpush1.msra.mxu0 0.0
  %7917 = vmatprep.mubr.f32.mxu0 0.0
  %7918 = vmatmul.mubr.f32.gmra.mrb[0].mxu0 %v7830
  %v7919 = vpop.f32.mrb[0].mxu0
  %v7920 = vadd.f32 0.0, %v7919
  %v7921 = vpop.f32.mrb[0].mxu0
  %7922 = vmatprep.mubr.f32.mxu0 0.0
  %7923 = vmatmul.mubr.f32.gmra.mrb[0].mxu0 %v7833
  %v7924 = vpop.f32.mrb[0].mxu0
  %v7925 = vadd.f32 0.0, %v7924
  %v7926 = vpop.f32.mrb[0].mxu0
  %7927 = vmatprep.mubr.f32.mxu0 0.0
  %7928 = vmatmul.mubr.f32.gmra.mrb[0].mxu0 %v7836
  %v7929 = vpop.f32.mrb[0].mxu0
  %v7930 = vadd.f32 0.0, %v7929
  %v7931 = vpop.f32.mrb[0].mxu0
  %7932 = vmatprep.mubr.f32.mxu0 0.0
  %7933 = vmatmul.mubr.f32.gmra.mrb[0].mxu0 %v7839
  %v7934 = vpop.f32.mrb[0].mxu0
  %v7935 = vadd.f32 0.0, %v7934
  %v7936 = vpop.f32.mrb[0].mxu0
  %7937 = vmatprep.mubr.f32.mxu0 0.0
  %7938 = vmatmul.mubr.f32.gmra.mrb[0].mxu0 %v7842
  %v7939 = vpop.f32.mrb[0].mxu0
  %v7940 = vadd.f32 0.0, %v7939
  %v7941 = vpop.f32.mrb[0].mxu0
  %7942 = vmatprep.mubr.f32.mxu0 0.0
  %7943 = vmatmul.mubr.f32.gmra.mrb[0].mxu0 %v7845
  %v7944 = vpop.f32.mrb[0].mxu0
  %v7945 = vadd.f32 0.0, %v7944
  %v7946 = vpop.f32.mrb[0].mxu0
  %7947 = vmatprep.mubr.f32.mxu0 0.0
  %7948 = vmatmul.mubr.f32.gmra.mrb[0].mxu0 %v7848
  %v7949 = vpop.f32.mrb[0].mxu0
  %v7950 = vadd.f32 0.0, %v7949
  %v7951 = vpop.f32.mrb[0].mxu0
  %7952 = vmatprep.mubr.f32.mxu0 0.0
  %7953 = vmatmul.mubr.f32.gmra.mrb[0].mxu0 %v7851
  %v7954 = vpop.f32.mrb[0].mxu0
  %v7955 = vadd.f32 0.0, %v7954
  %v7956 = vpop.f32.mrb[0].mxu0
  %7957 = vdwg.mxu0
  %v7958 = vadd.f32 %v7796, %v7920
  %v7959 = vadd.f32 %v7797, %v7925
  %v7960 = vadd.f32 %v7798, %v7930
  %v7961 = vadd.f32 %v7799, %v7935
  %v7962 = vadd.f32 %v7800, %v7940
  %v7963 = vadd.f32 %v7801, %v7945
  %v7964 = vadd.f32 %v7802, %v7950
  %v7965 = vadd.f32 %v7803, %v7955
  %v7966 = vld [vmem:[#allocation4 + $0xc] sm:$0xff]
  %v7967 = vld [vmem:[#allocation4 + $0x14] sm:$0xff]
  %v7968 = vld [vmem:[#allocation4 + $0x1c] sm:$0xff]
  %v7969 = vld [vmem:[#allocation4 + $0x24] sm:$0xff]
  %v7970 = vld [vmem:[#allocation4 + $0x2c] sm:$0xff]
  %v7971 = vld [vmem:[#allocation4 + $0x34] sm:$0xff]
  %v7972 = vld [vmem:[#allocation4 + $0x3c] sm:$0xff]
  %v7973 = vld [vmem:[#allocation4 + $0x44] sm:$0xff]
  %v7974 = vmul.f32 %v7966, %v6825
  %v7975 = vmul.f32 %v7967, %v6826
  %v7976 = vmul.f32 %v7968, %v6827
  %v7977 = vmul.f32 %v7969, %v6828
  %v7978 = vmul.f32 %v7970, %v6829
  %v7979 = vmul.f32 %v7971, %v6830
  %v7980 = vmul.f32 %v7972, %v6831
  %v7981 = vmul.f32 %v7973, %v6832
  %s7982 = scalar_lea.vmem %s5, 448
  %v7983 = vld [vmem:[%s7982] sm:$0xff]
  %v7984 = vld [vmem:[%s7982 + $0x8] sm:$0xff]
  %v7985 = vld [vmem:[%s7982 + $0x10] sm:$0xff]
  %v7986 = vld [vmem:[%s7982 + $0x18] sm:$0xff]
  %v7987 = vld [vmem:[%s7982 + $0x20] sm:$0xff]
  %v7988 = vld [vmem:[%s7982 + $0x28] sm:$0xff]
  %v7989 = vld [vmem:[%s7982 + $0x30] sm:$0xff]
  %v7990 = vld [vmem:[%s7982 + $0x38] sm:$0xff]
  %v7992 = vsel %vm6344, %v7974, 0
  %v7995 = vsel %vm6344, %v7975, 0
  %v7998 = vsel %vm6344, %v7976, 0
  %v8001 = vsel %vm6344, %v7977, 0
  %v8004 = vsel %vm6344, %v7978, 0
  %v8007 = vsel %vm6344, %v7979, 0
  %v8010 = vsel %vm6344, %v7980, 0
  %v8013 = vsel %vm6344, %v7981, 0
  %8015 = vmatprep.subr.mxu0 0.0
  %8016 = vmatpush1.msra.mxu0 %v7983
  %8017 = vmatprep.subr.mxu0 0.0
  %8018 = vmatpush1.msra.mxu0 %v7984
  %8019 = vmatprep.subr.mxu0 0.0
  %8020 = vmatpush1.msra.mxu0 %v7985
  %8021 = vmatprep.subr.mxu0 0.0
  %8022 = vmatpush1.msra.mxu0 %v7986
  %8023 = vmatprep.subr.mxu0 0.0
  %8024 = vmatpush1.msra.mxu0 %v7987
  %8025 = vmatprep.subr.mxu0 0.0
  %8026 = vmatpush1.msra.mxu0 %v7988
  %8027 = vmatprep.subr.mxu0 0.0
  %8028 = vmatpush1.msra.mxu0 %v7989
  %8029 = vmatprep.subr.mxu0 0.0
  %8030 = vmatpush1.msra.mxu0 %v7990
  %8031 = vmatprep.subr.mxu0 0.0
  %8032 = vmatpush1.msra.mxu0 0.0
  %8033 = vmatprep.subr.mxu0 0.0
  %8034 = vmatpush1.msra.mxu0 0.0
  %8035 = vmatprep.subr.mxu0 0.0
  %8036 = vmatpush1.msra.mxu0 0.0
  %8037 = vmatprep.subr.mxu0 0.0
  %8038 = vmatpush1.msra.mxu0 0.0
  %8039 = vmatprep.subr.mxu0 0.0
  %8040 = vmatpush1.msra.mxu0 0.0
  %8041 = vmatprep.subr.mxu0 0.0
  %8042 = vmatpush1.msra.mxu0 0.0
  %8043 = vmatprep.subr.mxu0 0.0
  %8044 = vmatpush1.msra.mxu0 0.0
  %8045 = vmatprep.subr.mxu0 0.0
  %8046 = vmatpush1.msra.mxu0 0.0
  %8047 = vmatprep.subr.mxu0 0.0
  %8048 = vmatpush1.msra.mxu0 0.0
  %8049 = vmatprep.subr.mxu0 0.0
  %8050 = vmatpush1.msra.mxu0 0.0
  %8051 = vmatprep.subr.mxu0 0.0
  %8052 = vmatpush1.msra.mxu0 0.0
  %8053 = vmatprep.subr.mxu0 0.0
  %8054 = vmatpush1.msra.mxu0 0.0
  %8055 = vmatprep.subr.mxu0 0.0
  %8056 = vmatpush1.msra.mxu0 0.0
  %8057 = vmatprep.subr.mxu0 0.0
  %8058 = vmatpush1.msra.mxu0 0.0
  %8059 = vmatprep.subr.mxu0 0.0
  %8060 = vmatpush1.msra.mxu0 0.0
  %8061 = vmatprep.subr.mxu0 0.0
  %8062 = vmatpush1.msra.mxu0 0.0
  %8063 = vmatprep.subr.mxu0 0.0
  %8064 = vmatpush1.msra.mxu0 0.0
  %8065 = vmatprep.subr.mxu0 0.0
  %8066 = vmatpush1.msra.mxu0 0.0
  %8067 = vmatprep.subr.mxu0 0.0
  %8068 = vmatpush1.msra.mxu0 0.0
  %8069 = vmatprep.subr.mxu0 0.0
  %8070 = vmatpush1.msra.mxu0 0.0
  %8071 = vmatprep.subr.mxu0 0.0
  %8072 = vmatpush1.msra.mxu0 0.0
  %8073 = vmatprep.subr.mxu0 0.0
  %8074 = vmatpush1.msra.mxu0 0.0
  %8075 = vmatprep.subr.mxu0 0.0
  %8076 = vmatpush1.msra.mxu0 0.0
  %8077 = vmatprep.subr.mxu0 0.0
  %8078 = vmatpush1.msra.mxu0 0.0
  %8079 = vmatprep.mubr.f32.mxu0 0.0
  %8080 = vmatmul.mubr.f32.gmra.mrb[0].mxu0 %v7992
  %v8081 = vpop.f32.mrb[0].mxu0
  %v8082 = vadd.f32 0.0, %v8081
  %v8083 = vpop.f32.mrb[0].mxu0
  %8084 = vmatprep.mubr.f32.mxu0 0.0
  %8085 = vmatmul.mubr.f32.gmra.mrb[0].mxu0 %v7995
  %v8086 = vpop.f32.mrb[0].mxu0
  %v8087 = vadd.f32 0.0, %v8086
  %v8088 = vpop.f32.mrb[0].mxu0
  %8089 = vmatprep.mubr.f32.mxu0 0.0
  %8090 = vmatmul.mubr.f32.gmra.mrb[0].mxu0 %v7998
  %v8091 = vpop.f32.mrb[0].mxu0
  %v8092 = vadd.f32 0.0, %v8091
  %v8093 = vpop.f32.mrb[0].mxu0
  %8094 = vmatprep.mubr.f32.mxu0 0.0
  %8095 = vmatmul.mubr.f32.gmra.mrb[0].mxu0 %v8001
  %v8096 = vpop.f32.mrb[0].mxu0
  %v8097 = vadd.f32 0.0, %v8096
  %v8098 = vpop.f32.mrb[0].mxu0
  %8099 = vmatprep.mubr.f32.mxu0 0.0
  %8100 = vmatmul.mubr.f32.gmra.mrb[0].mxu0 %v8004
  %v8101 = vpop.f32.mrb[0].mxu0
  %v8102 = vadd.f32 0.0, %v8101
  %v8103 = vpop.f32.mrb[0].mxu0
  %8104 = vmatprep.mubr.f32.mxu0 0.0
  %8105 = vmatmul.mubr.f32.gmra.mrb[0].mxu0 %v8007
  %v8106 = vpop.f32.mrb[0].mxu0
  %v8107 = vadd.f32 0.0, %v8106
  %v8108 = vpop.f32.mrb[0].mxu0
  %8109 = vmatprep.mubr.f32.mxu0 0.0
  %8110 = vmatmul.mubr.f32.gmra.mrb[0].mxu0 %v8010
  %v8111 = vpop.f32.mrb[0].mxu0
  %v8112 = vadd.f32 0.0, %v8111
  %v8113 = vpop.f32.mrb[0].mxu0
  %8114 = vmatprep.mubr.f32.mxu0 0.0
  %8115 = vmatmul.mubr.f32.gmra.mrb[0].mxu0 %v8013
  %v8116 = vpop.f32.mrb[0].mxu0
  %v8117 = vadd.f32 0.0, %v8116
  %v8118 = vpop.f32.mrb[0].mxu0
  %8119 = vdwg.mxu0
  %v8120 = vadd.f32 %v7958, %v8082
  %v8121 = vadd.f32 %v7959, %v8087
  %v8122 = vadd.f32 %v7960, %v8092
  %v8123 = vadd.f32 %v7961, %v8097
  %v8124 = vadd.f32 %v7962, %v8102
  %v8125 = vadd.f32 %v7963, %v8107
  %v8126 = vadd.f32 %v7964, %v8112
  %v8127 = vadd.f32 %v7965, %v8117
  %v8128 = vld [vmem:[#allocation4 + $0xd] sm:$0xff]
  %v8129 = vld [vmem:[#allocation4 + $0x15] sm:$0xff]
  %v8130 = vld [vmem:[#allocation4 + $0x1d] sm:$0xff]
  %v8131 = vld [vmem:[#allocation4 + $0x25] sm:$0xff]
  %v8132 = vld [vmem:[#allocation4 + $0x2d] sm:$0xff]
  %v8133 = vld [vmem:[#allocation4 + $0x35] sm:$0xff]
  %v8134 = vld [vmem:[#allocation4 + $0x3d] sm:$0xff]
  %v8135 = vld [vmem:[#allocation4 + $0x45] sm:$0xff]
  %v8136 = vmul.f32 %v8128, %v6849
  %v8137 = vmul.f32 %v8129, %v6850
  %v8138 = vmul.f32 %v8130, %v6851
  %v8139 = vmul.f32 %v8131, %v6852
  %v8140 = vmul.f32 %v8132, %v6853
  %v8141 = vmul.f32 %v8133, %v6854
  %v8142 = vmul.f32 %v8134, %v6855
  %v8143 = vmul.f32 %v8135, %v6856
  %s8144 = scalar_lea.vmem %s5, 512
  %v8145 = vld [vmem:[%s8144] sm:$0xff]
  %v8146 = vld [vmem:[%s8144 + $0x8] sm:$0xff]
  %v8147 = vld [vmem:[%s8144 + $0x10] sm:$0xff]
  %v8148 = vld [vmem:[%s8144 + $0x18] sm:$0xff]
  %v8149 = vld [vmem:[%s8144 + $0x20] sm:$0xff]
  %v8150 = vld [vmem:[%s8144 + $0x28] sm:$0xff]
  %v8151 = vld [vmem:[%s8144 + $0x30] sm:$0xff]
  %v8152 = vld [vmem:[%s8144 + $0x38] sm:$0xff]
  %v8154 = vsel %vm6344, %v8136, 0
  %v8157 = vsel %vm6344, %v8137, 0
  %v8160 = vsel %vm6344, %v8138, 0
  %v8163 = vsel %vm6344, %v8139, 0
  %v8166 = vsel %vm6344, %v8140, 0
  %v8169 = vsel %vm6344, %v8141, 0
  %v8172 = vsel %vm6344, %v8142, 0
  %v8175 = vsel %vm6344, %v8143, 0
  %8177 = vmatprep.subr.mxu0 0.0
  %8178 = vmatpush1.msra.mxu0 %v8145
  %8179 = vmatprep.subr.mxu0 0.0
  %8180 = vmatpush1.msra.mxu0 %v8146
  %8181 = vmatprep.subr.mxu0 0.0
  %8182 = vmatpush1.msra.mxu0 %v8147
  %8183 = vmatprep.subr.mxu0 0.0
  %8184 = vmatpush1.msra.mxu0 %v8148
  %8185 = vmatprep.subr.mxu0 0.0
  %8186 = vmatpush1.msra.mxu0 %v8149
  %8187 = vmatprep.subr.mxu0 0.0
  %8188 = vmatpush1.msra.mxu0 %v8150
  %8189 = vmatprep.subr.mxu0 0.0
  %8190 = vmatpush1.msra.mxu0 %v8151
  %8191 = vmatprep.subr.mxu0 0.0
  %8192 = vmatpush1.msra.mxu0 %v8152
  %8193 = vmatprep.subr.mxu0 0.0
  %8194 = vmatpush1.msra.mxu0 0.0
  %8195 = vmatprep.subr.mxu0 0.0
  %8196 = vmatpush1.msra.mxu0 0.0
  %8197 = vmatprep.subr.mxu0 0.0
  %8198 = vmatpush1.msra.mxu0 0.0
  %8199 = vmatprep.subr.mxu0 0.0
  %8200 = vmatpush1.msra.mxu0 0.0
  %8201 = vmatprep.subr.mxu0 0.0
  %8202 = vmatpush1.msra.mxu0 0.0
  %8203 = vmatprep.subr.mxu0 0.0
  %8204 = vmatpush1.msra.mxu0 0.0
  %8205 = vmatprep.subr.mxu0 0.0
  %8206 = vmatpush1.msra.mxu0 0.0
  %8207 = vmatprep.subr.mxu0 0.0
  %8208 = vmatpush1.msra.mxu0 0.0
  %8209 = vmatprep.subr.mxu0 0.0
  %8210 = vmatpush1.msra.mxu0 0.0
  %8211 = vmatprep.subr.mxu0 0.0
  %8212 = vmatpush1.msra.mxu0 0.0
  %8213 = vmatprep.subr.mxu0 0.0
  %8214 = vmatpush1.msra.mxu0 0.0
  %8215 = vmatprep.subr.mxu0 0.0
  %8216 = vmatpush1.msra.mxu0 0.0
  %8217 = vmatprep.subr.mxu0 0.0
  %8218 = vmatpush1.msra.mxu0 0.0
  %8219 = vmatprep.subr.mxu0 0.0
  %8220 = vmatpush1.msra.mxu0 0.0
  %8221 = vmatprep.subr.mxu0 0.0
  %8222 = vmatpush1.msra.mxu0 0.0
  %8223 = vmatprep.subr.mxu0 0.0
  %8224 = vmatpush1.msra.mxu0 0.0
  %8225 = vmatprep.subr.mxu0 0.0
  %8226 = vmatpush1.msra.mxu0 0.0
  %8227 = vmatprep.subr.mxu0 0.0
  %8228 = vmatpush1.msra.mxu0 0.0
  %8229 = vmatprep.subr.mxu0 0.0
  %8230 = vmatpush1.msra.mxu0 0.0
  %8231 = vmatprep.subr.mxu0 0.0
  %8232 = vmatpush1.msra.mxu0 0.0
  %8233 = vmatprep.subr.mxu0 0.0
  %8234 = vmatpush1.msra.mxu0 0.0
  %8235 = vmatprep.subr.mxu0 0.0
  %8236 = vmatpush1.msra.mxu0 0.0
  %8237 = vmatprep.subr.mxu0 0.0
  %8238 = vmatpush1.msra.mxu0 0.0
  %8239 = vmatprep.subr.mxu0 0.0
  %8240 = vmatpush1.msra.mxu0 0.0
  %8241 = vmatprep.mubr.f32.mxu0 0.0
  %8242 = vmatmul.mubr.f32.gmra.mrb[0].mxu0 %v8154
  %v8243 = vpop.f32.mrb[0].mxu0
  %v8244 = vadd.f32 0.0, %v8243
  %v8245 = vpop.f32.mrb[0].mxu0
  %8246 = vmatprep.mubr.f32.mxu0 0.0
  %8247 = vmatmul.mubr.f32.gmra.mrb[0].mxu0 %v8157
  %v8248 = vpop.f32.mrb[0].mxu0
  %v8249 = vadd.f32 0.0, %v8248
  %v8250 = vpop.f32.mrb[0].mxu0
  %8251 = vmatprep.mubr.f32.mxu0 0.0
  %8252 = vmatmul.mubr.f32.gmra.mrb[0].mxu0 %v8160
  %v8253 = vpop.f32.mrb[0].mxu0
  %v8254 = vadd.f32 0.0, %v8253
  %v8255 = vpop.f32.mrb[0].mxu0
  %8256 = vmatprep.mubr.f32.mxu0 0.0
  %8257 = vmatmul.mubr.f32.gmra.mrb[0].mxu0 %v8163
  %v8258 = vpop.f32.mrb[0].mxu0
  %v8259 = vadd.f32 0.0, %v8258
  %v8260 = vpop.f32.mrb[0].mxu0
  %8261 = vmatprep.mubr.f32.mxu0 0.0
  %8262 = vmatmul.mubr.f32.gmra.mrb[0].mxu0 %v8166
  %v8263 = vpop.f32.mrb[0].mxu0
  %v8264 = vadd.f32 0.0, %v8263
  %v8265 = vpop.f32.mrb[0].mxu0
  %8266 = vmatprep.mubr.f32.mxu0 0.0
  %8267 = vmatmul.mubr.f32.gmra.mrb[0].mxu0 %v8169
  %v8268 = vpop.f32.mrb[0].mxu0
  %v8269 = vadd.f32 0.0, %v8268
  %v8270 = vpop.f32.mrb[0].mxu0
  %8271 = vmatprep.mubr.f32.mxu0 0.0
  %8272 = vmatmul.mubr.f32.gmra.mrb[0].mxu0 %v8172
  %v8273 = vpop.f32.mrb[0].mxu0
  %v8274 = vadd.f32 0.0, %v8273
  %v8275 = vpop.f32.mrb[0].mxu0
  %8276 = vmatprep.mubr.f32.mxu0 0.0
  %8277 = vmatmul.mubr.f32.gmra.mrb[0].mxu0 %v8175
  %v8278 = vpop.f32.mrb[0].mxu0
  %v8279 = vadd.f32 0.0, %v8278
  %v8280 = vpop.f32.mrb[0].mxu0
  %8281 = vdwg.mxu0
  %v8282 = vadd.f32 %v8120, %v8244
  %v8283 = vadd.f32 %v8121, %v8249
  %v8284 = vadd.f32 %v8122, %v8254
  %v8285 = vadd.f32 %v8123, %v8259
  %v8286 = vadd.f32 %v8124, %v8264
  %v8287 = vadd.f32 %v8125, %v8269
  %v8288 = vadd.f32 %v8126, %v8274
  %v8289 = vadd.f32 %v8127, %v8279
  %v8290 = vld [vmem:[%s6] sm:$0x1]
  %v8292 = vlaneseq
  %v8293 = vshrl.u32 %v8292, 7
  %v8294 = vsub.s32 0, %v8293
  %v8295 = vrot.slane %v8290, %v8294
  %v8297 = vadd.f32 %v8282, %v8295
  %v8298 = vadd.f32 %v8283, %v8295
  %v8299 = vadd.f32 %v8284, %v8295
  %v8300 = vadd.f32 %v8285, %v8295
  %v8301 = vadd.f32 %v8286, %v8295
  %v8302 = vadd.f32 %v8287, %v8295
  %v8303 = vadd.f32 %v8288, %v8295
  %v8304 = vadd.f32 %v8289, %v8295
  %v8305 = vmax.f32 %v8297, 0.0
  %v8306 = vmax.f32 %v8298, 0.0
  %v8307 = vmax.f32 %v8299, 0.0
  %v8308 = vmax.f32 %v8300, 0.0
  %v8309 = vmax.f32 %v8301, 0.0
  %v8310 = vmax.f32 %v8302, 0.0
  %v8311 = vmax.f32 %v8303, 0.0
  %v8312 = vmax.f32 %v8304, 0.0
  %8313 = vst [vmem:[#allocation5] sm:$0xff] %v8305
  %8314 = vst [vmem:[#allocation5 + $0x8] sm:$0xff] %v8306
  %8315 = vst [vmem:[#allocation5 + $0x10] sm:$0xff] %v8307
  %8316 = vst [vmem:[#allocation5 + $0x18] sm:$0xff] %v8308
  %8317 = vst [vmem:[#allocation5 + $0x20] sm:$0xff] %v8309
  %8318 = vst [vmem:[#allocation5 + $0x28] sm:$0xff] %v8310
  %8319 = vst [vmem:[#allocation5 + $0x30] sm:$0xff] %v8311
  %8320 = vst [vmem:[#allocation5 + $0x38] sm:$0xff] %v8312
  %8321 = vst [vmem:[#allocation5 + $0x40] sm:$0xff] 0.0
  %v8322 = vld [vmem:[#allocation5] sm:$0xff]
  %v8323 = vld [vmem:[#allocation5 + $0x8] sm:$0xff]
  %v8324 = vld [vmem:[#allocation5 + $0x10] sm:$0xff]
  %v8325 = vld [vmem:[#allocation5 + $0x18] sm:$0xff]
  %v8326 = vld [vmem:[#allocation5 + $0x20] sm:$0xff]
  %v8327 = vld [vmem:[#allocation5 + $0x28] sm:$0xff]
  %v8328 = vld [vmem:[#allocation5 + $0x30] sm:$0xff]
  %v8329 = vld [vmem:[#allocation5 + $0x38] sm:$0xff]
  %v8330 = vld [vmem:[#allocation5 + $0x1] sm:$0xff]
  %v8331 = vld [vmem:[#allocation5 + $0x9] sm:$0xff]
  %v8332 = vld [vmem:[#allocation5 + $0x11] sm:$0xff]
  %v8333 = vld [vmem:[#allocation5 + $0x19] sm:$0xff]
  %v8334 = vld [vmem:[#allocation5 + $0x21] sm:$0xff]
  %v8335 = vld [vmem:[#allocation5 + $0x29] sm:$0xff]
  %v8336 = vld [vmem:[#allocation5 + $0x31] sm:$0xff]
  %v8337 = vld [vmem:[#allocation5 + $0x39] sm:$0xff]
  %v8338 = vmax.f32 %v8322, %v8330
  %v8339 = vmax.f32 %v8323, %v8331
  %v8340 = vmax.f32 %v8324, %v8332
  %v8341 = vmax.f32 %v8325, %v8333
  %v8342 = vmax.f32 %v8326, %v8334
  %v8343 = vmax.f32 %v8327, %v8335
  %v8344 = vmax.f32 %v8328, %v8336
  %v8345 = vmax.f32 %v8329, %v8337
  %v8346 = vld [vmem:[#allocation5 + $0x4] sm:$0xff]
  %v8347 = vld [vmem:[#allocation5 + $0xc] sm:$0xff]
  %v8348 = vld [vmem:[#allocation5 + $0x14] sm:$0xff]
  %v8349 = vld [vmem:[#allocation5 + $0x1c] sm:$0xff]
  %v8350 = vld [vmem:[#allocation5 + $0x24] sm:$0xff]
  %v8351 = vld [vmem:[#allocation5 + $0x2c] sm:$0xff]
  %v8352 = vld [vmem:[#allocation5 + $0x34] sm:$0xff]
  %v8353 = vld [vmem:[#allocation5 + $0x3c] sm:$0xff]
  %v8354 = vld [vmem:[#allocation5 + $0x5] sm:$0xff]
  %v8355 = vld [vmem:[#allocation5 + $0xd] sm:$0xff]
  %v8356 = vld [vmem:[#allocation5 + $0x15] sm:$0xff]
  %v8357 = vld [vmem:[#allocation5 + $0x1d] sm:$0xff]
  %v8358 = vld [vmem:[#allocation5 + $0x25] sm:$0xff]
  %v8359 = vld [vmem:[#allocation5 + $0x2d] sm:$0xff]
  %v8360 = vld [vmem:[#allocation5 + $0x35] sm:$0xff]
  %v8361 = vld [vmem:[#allocation5 + $0x3d] sm:$0xff]
  %v8362 = vmax.f32 %v8346, %v8354
  %v8363 = vmax.f32 %v8347, %v8355
  %v8364 = vmax.f32 %v8348, %v8356
  %v8365 = vmax.f32 %v8349, %v8357
  %v8366 = vmax.f32 %v8350, %v8358
  %v8367 = vmax.f32 %v8351, %v8359
  %v8368 = vmax.f32 %v8352, %v8360
  %v8369 = vmax.f32 %v8353, %v8361
  %v8370 = vmax.f32 %v8338, %v8362
  %v8371 = vmax.f32 %v8339, %v8363
  %v8372 = vmax.f32 %v8340, %v8364
  %v8373 = vmax.f32 %v8341, %v8365
  %v8374 = vmax.f32 %v8342, %v8366
  %v8375 = vmax.f32 %v8343, %v8367
  %v8376 = vmax.f32 %v8344, %v8368
  %v8377 = vmax.f32 %v8345, %v8369
  %v8378 = vld [vmem:[%s10] sm:$0xff]
  %v8379 = vld [vmem:[%s10 + $0x8] sm:$0xff]
  %v8381 = vsel %vm6344, %v8378, 0
  %v8384 = vsel %vm6344, %v8379, 0
  %8386 = vmatprep.subr.mxu0 0.0
  %8387 = vmatpush1.msra.mxu0 %v8370
  %8388 = vmatprep.subr.mxu0 0.0
  %8389 = vmatpush1.msra.mxu0 %v8371
  %8390 = vmatprep.subr.mxu0 0.0
  %8391 = vmatpush1.msra.mxu0 %v8372
  %8392 = vmatprep.subr.mxu0 0.0
  %8393 = vmatpush1.msra.mxu0 %v8373
  %8394 = vmatprep.subr.mxu0 0.0
  %8395 = vmatpush1.msra.mxu0 %v8374
  %8396 = vmatprep.subr.mxu0 0.0
  %8397 = vmatpush1.msra.mxu0 %v8375
  %8398 = vmatprep.subr.mxu0 0.0
  %8399 = vmatpush1.msra.mxu0 %v8376
  %8400 = vmatprep.subr.mxu0 0.0
  %8401 = vmatpush1.msra.mxu0 %v8377
  %8402 = vmatprep.subr.mxu0 0.0
  %8403 = vmatpush1.msra.mxu0 0.0
  %8404 = vmatprep.subr.mxu0 0.0
  %8405 = vmatpush1.msra.mxu0 0.0
  %8406 = vmatprep.subr.mxu0 0.0
  %8407 = vmatpush1.msra.mxu0 0.0
  %8408 = vmatprep.subr.mxu0 0.0
  %8409 = vmatpush1.msra.mxu0 0.0
  %8410 = vmatprep.subr.mxu0 0.0
  %8411 = vmatpush1.msra.mxu0 0.0
  %8412 = vmatprep.subr.mxu0 0.0
  %8413 = vmatpush1.msra.mxu0 0.0
  %8414 = vmatprep.subr.mxu0 0.0
  %8415 = vmatpush1.msra.mxu0 0.0
  %8416 = vmatprep.subr.mxu0 0.0
  %8417 = vmatpush1.msra.mxu0 0.0
  %8418 = vmatprep.subr.mxu0 0.0
  %8419 = vmatpush1.msra.mxu0 0.0
  %8420 = vmatprep.subr.mxu0 0.0
  %8421 = vmatpush1.msra.mxu0 0.0
  %8422 = vmatprep.subr.mxu0 0.0
  %8423 = vmatpush1.msra.mxu0 0.0
  %8424 = vmatprep.subr.mxu0 0.0
  %8425 = vmatpush1.msra.mxu0 0.0
  %8426 = vmatprep.subr.mxu0 0.0
  %8427 = vmatpush1.msra.mxu0 0.0
  %8428 = vmatprep.subr.mxu0 0.0
  %8429 = vmatpush1.msra.mxu0 0.0
  %8430 = vmatprep.subr.mxu0 0.0
  %8431 = vmatpush1.msra.mxu0 0.0
  %8432 = vmatprep.subr.mxu0 0.0
  %8433 = vmatpush1.msra.mxu0 0.0
  %8434 = vmatprep.subr.mxu0 0.0
  %8435 = vmatpush1.msra.mxu0 0.0
  %8436 = vmatprep.subr.mxu0 0.0
  %8437 = vmatpush1.msra.mxu0 0.0
  %8438 = vmatprep.subr.mxu0 0.0
  %8439 = vmatpush1.msra.mxu0 0.0
  %8440 = vmatprep.subr.mxu0 0.0
  %8441 = vmatpush1.msra.mxu0 0.0
  %8442 = vmatprep.subr.mxu0 0.0
  %8443 = vmatpush1.msra.mxu0 0.0
  %8444 = vmatprep.subr.mxu0 0.0
  %8445 = vmatpush1.msra.mxu0 0.0
  %8446 = vmatprep.subr.mxu0 0.0
  %8447 = vmatpush1.msra.mxu0 0.0
  %8448 = vmatprep.subr.mxu0 0.0
  %8449 = vmatpush1.msra.mxu0 0.0
  %8450 = vmatprep.mubr.f32.mxu0 0.0
  %8451 = vmatmul.mubr.f32.gmra.mrb[0].mxu0 %v8381
  %v8452 = vpop.f32.mrb[0].mxu0
  %v8453 = vadd.f32 0.0, %v8452
  %v8454 = vpop.f32.mrb[0].mxu0
  %8455 = vmatprep.mubr.f32.mxu0 0.0
  %8456 = vmatmul.mubr.f32.gmra.mrb[0].mxu0 %v8384
  %v8457 = vpop.f32.mrb[0].mxu0
  %v8458 = vadd.f32 0.0, %v8457
  %v8459 = vpop.f32.mrb[0].mxu0
  %8460 = vdwg.mxu0
  %8461 = vst [vmem:[#allocation6] sm:$0xff] 0.0
  %8462 = vst [vmem:[#allocation6 + $0x8] sm:$0xff] %v8453
  %8463 = vst [vmem:[#allocation6 + $0x10] sm:$0xff] %v8458
  %8464 = vst [vmem:[#allocation6 + $0x18] sm:$0xff] 0.0
  %v8465 = vand.u32 %v1676, 1
  %v8466 = vand.u32 %v1677, 1
  %v8467 = vshra.s32 %v1676, 1
  %v8468 = vshra.s32 %v1677, 1
  %v8469 = vand.u32 %v8467, 1
  %v8470 = vand.u32 %v8468, 1
  %vm8471 = vcmp.ge.s32.totalorder %v8469, 1
  %vm8472 = vcmp.ge.s32.totalorder %v8470, 1
  %vm8473 = vcmp.ge.s32.totalorder %v8465, 1
  %vm8474 = vcmp.ge.s32.totalorder %v8466, 1
  %vm8475 = vmand %vm8471, %vm8473
  %vm8476 = vmand %vm8472, %vm8474
  %v8477 = vsel %vm8475, 1, 0
  %v8478 = vsel %vm8476, 1, 0
  %v8479 = vcvt.s32.f32 %v8477
  %v8480 = vcvt.s32.f32 %v8478
  %v8481 = vsel %vm8471, 1, 0
  %v8482 = vsel %vm8472, 1, 0
  %v8483 = vcvt.s32.f32 %v8481
  %v8484 = vcvt.s32.f32 %v8482
  %vm8485 = vcmp.le.s32.totalorder %v8465, 0
  %vm8486 = vcmp.le.s32.totalorder %v8466, 0
  %vm8487 = vmand %vm8471, %vm8485
  %vm8488 = vmand %vm8472, %vm8486
  %v8489 = vsel %vm8487, 1, 0
  %v8490 = vsel %vm8488, 1, 0
  %v8491 = vcvt.s32.f32 %v8489
  %v8492 = vcvt.s32.f32 %v8490
  %v8493 = vsel %vm8473, 1, 0
  %v8494 = vsel %vm8474, 1, 0
  %v8495 = vcvt.s32.f32 %v8493
  %v8496 = vcvt.s32.f32 %v8494
  %v8497 = vsel %vm8485, 1, 0
  %v8498 = vsel %vm8486, 1, 0
  %v8499 = vcvt.s32.f32 %v8497
  %v8500 = vcvt.s32.f32 %v8498
  %vm8501 = vcmp.le.s32.totalorder %v8469, 0
  %vm8502 = vcmp.le.s32.totalorder %v8470, 0
  %vm8503 = vmand %vm8501, %vm8473
  %vm8504 = vmand %vm8502, %vm8474
  %v8505 = vsel %vm8503, 1, 0
  %v8506 = vsel %vm8504, 1, 0
  %v8507 = vcvt.s32.f32 %v8505
  %v8508 = vcvt.s32.f32 %v8506
  %v8509 = vsel %vm8501, 1, 0
  %v8510 = vsel %vm8502, 1, 0
  %v8511 = vcvt.s32.f32 %v8509
  %v8512 = vcvt.s32.f32 %v8510
  %vm8513 = vmand %vm8501, %vm8485
  %vm8514 = vmand %vm8502, %vm8486
  %v8515 = vsel %vm8513, 1, 0
  %v8516 = vsel %vm8514, 1, 0
  %v8517 = vcvt.s32.f32 %v8515
  %v8518 = vcvt.s32.f32 %v8516
  %v8519 = vld [vmem:[#allocation6 + $0x5] sm:$0xff]
  %v8520 = vld [vmem:[#allocation6 + $0xd] sm:$0xff]
  %v8521 = vmul.f32 %v8519, %v8479
  %v8522 = vmul.f32 %v8520, %v8480
  %v8523 = vld [vmem:[%s7] sm:$0xff]
  %v8524 = vld [vmem:[%s7 + $0x8] sm:$0xff]
  %v8525 = vld [vmem:[%s7 + $0x10] sm:$0xff]
  %v8526 = vld [vmem:[%s7 + $0x18] sm:$0xff]
  %v8527 = vld [vmem:[%s7 + $0x20] sm:$0xff]
  %v8528 = vld [vmem:[%s7 + $0x28] sm:$0xff]
  %v8529 = vld [vmem:[%s7 + $0x30] sm:$0xff]
  %v8530 = vld [vmem:[%s7 + $0x38] sm:$0xff]
  %v8531 = vld [vmem:[%s7 + $0x40] sm:$0xff]
  %v8532 = vld [vmem:[%s7 + $0x48] sm:$0xff]
  %v8533 = vld [vmem:[%s7 + $0x50] sm:$0xff]
  %v8534 = vld [vmem:[%s7 + $0x58] sm:$0xff]
  %v8535 = vld [vmem:[%s7 + $0x60] sm:$0xff]
  %v8536 = vld [vmem:[%s7 + $0x68] sm:$0xff]
  %v8537 = vld [vmem:[%s7 + $0x70] sm:$0xff]
  %v8538 = vld [vmem:[%s7 + $0x78] sm:$0xff]
  %v8539 = vld [vmem:[%s7 + $0x80] sm:$0xff]
  %v8540 = vld [vmem:[%s7 + $0x88] sm:$0xff]
  %v8541 = vld [vmem:[%s7 + $0x90] sm:$0xff]
  %v8542 = vld [vmem:[%s7 + $0x98] sm:$0xff]
  %v8543 = vld [vmem:[%s7 + $0xa0] sm:$0xff]
  %v8544 = vld [vmem:[%s7 + $0xa8] sm:$0xff]
  %v8545 = vld [vmem:[%s7 + $0xb0] sm:$0xff]
  %v8546 = vld [vmem:[%s7 + $0xb8] sm:$0xff]
  %v8547 = vld [vmem:[%s7 + $0xc0] sm:$0xff]
  %v8548 = vld [vmem:[%s7 + $0xc8] sm:$0xff]
  %v8549 = vld [vmem:[%s7 + $0xd0] sm:$0xff]
  %v8550 = vld [vmem:[%s7 + $0xd8] sm:$0xff]
  %v8551 = vld [vmem:[%s7 + $0xe0] sm:$0xff]
  %v8552 = vld [vmem:[%s7 + $0xe8] sm:$0xff]
  %v8553 = vld [vmem:[%s7 + $0xf0] sm:$0xff]
  %v8554 = vld [vmem:[%s7 + $0xf8] sm:$0xff]
  %v8555 = vld [vmem:[#allocation6 + $0x6] sm:$0xff]
  %v8556 = vld [vmem:[#allocation6 + $0xe] sm:$0xff]
  %v8557 = vmul.f32 %v8555, %v8483
  %v8558 = vmul.f32 %v8556, %v8484
  %s8559 = scalar_lea.vmem %s7, 256
  %v8560 = vld [vmem:[%s8559] sm:$0xff]
  %v8561 = vld [vmem:[%s8559 + $0x8] sm:$0xff]
  %v8562 = vld [vmem:[%s8559 + $0x10] sm:$0xff]
  %v8563 = vld [vmem:[%s8559 + $0x18] sm:$0xff]
  %v8564 = vld [vmem:[%s8559 + $0x20] sm:$0xff]
  %v8565 = vld [vmem:[%s8559 + $0x28] sm:$0xff]
  %v8566 = vld [vmem:[%s8559 + $0x30] sm:$0xff]
  %v8567 = vld [vmem:[%s8559 + $0x38] sm:$0xff]
  %v8568 = vld [vmem:[%s8559 + $0x40] sm:$0xff]
  %v8569 = vld [vmem:[%s8559 + $0x48] sm:$0xff]
  %v8570 = vld [vmem:[%s8559 + $0x50] sm:$0xff]
  %v8571 = vld [vmem:[%s8559 + $0x58] sm:$0xff]
  %v8572 = vld [vmem:[%s8559 + $0x60] sm:$0xff]
  %v8573 = vld [vmem:[%s8559 + $0x68] sm:$0xff]
  %v8574 = vld [vmem:[%s8559 + $0x70] sm:$0xff]
  %v8575 = vld [vmem:[%s8559 + $0x78] sm:$0xff]
  %v8576 = vld [vmem:[%s8559 + $0x80] sm:$0xff]
  %v8577 = vld [vmem:[%s8559 + $0x88] sm:$0xff]
  %v8578 = vld [vmem:[%s8559 + $0x90] sm:$0xff]
  %v8579 = vld [vmem:[%s8559 + $0x98] sm:$0xff]
  %v8580 = vld [vmem:[%s8559 + $0xa0] sm:$0xff]
  %v8581 = vld [vmem:[%s8559 + $0xa8] sm:$0xff]
  %v8582 = vld [vmem:[%s8559 + $0xb0] sm:$0xff]
  %v8583 = vld [vmem:[%s8559 + $0xb8] sm:$0xff]
  %v8584 = vld [vmem:[%s8559 + $0xc0] sm:$0xff]
  %v8585 = vld [vmem:[%s8559 + $0xc8] sm:$0xff]
  %v8586 = vld [vmem:[%s8559 + $0xd0] sm:$0xff]
  %v8587 = vld [vmem:[%s8559 + $0xd8] sm:$0xff]
  %v8588 = vld [vmem:[%s8559 + $0xe0] sm:$0xff]
  %v8589 = vld [vmem:[%s8559 + $0xe8] sm:$0xff]
  %v8590 = vld [vmem:[%s8559 + $0xf0] sm:$0xff]
  %v8591 = vld [vmem:[%s8559 + $0xf8] sm:$0xff]
  %8592 = vmatprep.subr.mxu0 %v8561
  %8593 = vmatpush1.msra.mxu0 %v8560
  %8594 = vmatprep.subr.mxu0 %v8563
  %8595 = vmatpush1.msra.mxu0 %v8562
  %8596 = vmatprep.subr.mxu0 %v8565
  %8597 = vmatpush1.msra.mxu0 %v8564
  %8598 = vmatprep.subr.mxu0 %v8567
  %8599 = vmatpush1.msra.mxu0 %v8566
  %8600 = vmatprep.subr.mxu0 %v8569
  %8601 = vmatpush1.msra.mxu0 %v8568
  %8602 = vmatprep.subr.mxu0 %v8571
  %8603 = vmatpush1.msra.mxu0 %v8570
  %8604 = vmatprep.subr.mxu0 %v8573
  %8605 = vmatpush1.msra.mxu0 %v8572
  %8606 = vmatprep.subr.mxu0 %v8575
  %8607 = vmatpush1.msra.mxu0 %v8574
  %8608 = vmatprep.subr.mxu0 %v8577
  %8609 = vmatpush1.msra.mxu0 %v8576
  %8610 = vmatprep.subr.mxu0 %v8579
  %8611 = vmatpush1.msra.mxu0 %v8578
  %8612 = vmatprep.subr.mxu0 %v8581
  %8613 = vmatpush1.msra.mxu0 %v8580
  %8614 = vmatprep.subr.mxu0 %v8583
  %8615 = vmatpush1.msra.mxu0 %v8582
  %8616 = vmatprep.subr.mxu0 %v8585
  %8617 = vmatpush1.msra.mxu0 %v8584
  %8618 = vmatprep.subr.mxu0 %v8587
  %8619 = vmatpush1.msra.mxu0 %v8586
  %8620 = vmatprep.subr.mxu0 %v8589
  %8621 = vmatpush1.msra.mxu0 %v8588
  %8622 = vmatprep.subr.mxu0 %v8591
  %8623 = vmatpush1.msra.mxu0 %v8590
  %8624 = vmatprep.subr.mxu0 0.0
  %8625 = vmatpush1.msra.mxu0 0.0
  %8626 = vmatprep.subr.mxu0 0.0
  %8627 = vmatpush1.msra.mxu0 0.0
  %8628 = vmatprep.subr.mxu0 0.0
  %8629 = vmatpush1.msra.mxu0 0.0
  %8630 = vmatprep.subr.mxu0 0.0
  %8631 = vmatpush1.msra.mxu0 0.0
  %8632 = vmatprep.subr.mxu0 0.0
  %8633 = vmatpush1.msra.mxu0 0.0
  %8634 = vmatprep.subr.mxu0 0.0
  %8635 = vmatpush1.msra.mxu0 0.0
  %8636 = vmatprep.subr.mxu0 0.0
  %8637 = vmatpush1.msra.mxu0 0.0
  %8638 = vmatprep.subr.mxu0 0.0
  %8639 = vmatpush1.msra.mxu0 0.0
  %8640 = vmatprep.subr.mxu0 0.0
  %8641 = vmatpush1.msra.mxu0 0.0
  %8642 = vmatprep.subr.mxu0 0.0
  %8643 = vmatpush1.msra.mxu0 0.0
  %8644 = vmatprep.subr.mxu0 0.0
  %8645 = vmatpush1.msra.mxu0 0.0
  %8646 = vmatprep.subr.mxu0 0.0
  %8647 = vmatpush1.msra.mxu0 0.0
  %8648 = vmatprep.subr.mxu0 0.0
  %8649 = vmatpush1.msra.mxu0 0.0
  %8650 = vmatprep.subr.mxu0 0.0
  %8651 = vmatpush1.msra.mxu0 0.0
  %8652 = vmatprep.subr.mxu0 0.0
  %8653 = vmatpush1.msra.mxu0 0.0
  %8654 = vmatprep.subr.mxu0 0.0
  %8655 = vmatpush1.msra.mxu0 0.0
  %8656 = vmatprep.mubr.f32.mxu0 0.0
  %8657 = vmatmul.mubr.f32.gmra.mrb[0].mxu0 %v8557
  %v8658 = vpop.f32.mrb[0].mxu0
  %v8659 = vadd.f32 0.0, %v8658
  %v8660 = vpop.f32.mrb[0].mxu0
  %v8661 = vadd.f32 0.0, %v8660
  %8662 = vmatprep.mubr.f32.mxu0 0.0
  %8663 = vmatmul.mubr.f32.gmra.mrb[0].mxu0 %v8558
  %v8664 = vpop.f32.mrb[0].mxu0
  %v8665 = vadd.f32 0.0, %v8664
  %v8666 = vpop.f32.mrb[0].mxu0
  %v8667 = vadd.f32 0.0, %v8666
  %8668 = vdwg.mxu0
  %8669 = vmatprep.subr.mxu0 %v8524
  %8670 = vmatpush1.msra.mxu0 %v8523
  %8671 = vmatprep.subr.mxu0 %v8526
  %8672 = vmatpush1.msra.mxu0 %v8525
  %8673 = vmatprep.subr.mxu0 %v8528
  %8674 = vmatpush1.msra.mxu0 %v8527
  %8675 = vmatprep.subr.mxu0 %v8530
  %8676 = vmatpush1.msra.mxu0 %v8529
  %8677 = vmatprep.subr.mxu0 %v8532
  %8678 = vmatpush1.msra.mxu0 %v8531
  %8679 = vmatprep.subr.mxu0 %v8534
  %8680 = vmatpush1.msra.mxu0 %v8533
  %8681 = vmatprep.subr.mxu0 %v8536
  %8682 = vmatpush1.msra.mxu0 %v8535
  %8683 = vmatprep.subr.mxu0 %v8538
  %8684 = vmatpush1.msra.mxu0 %v8537
  %8685 = vmatprep.subr.mxu0 %v8540
  %8686 = vmatpush1.msra.mxu0 %v8539
  %8687 = vmatprep.subr.mxu0 %v8542
  %8688 = vmatpush1.msra.mxu0 %v8541
  %8689 = vmatprep.subr.mxu0 %v8544
  %8690 = vmatpush1.msra.mxu0 %v8543
  %8691 = vmatprep.subr.mxu0 %v8546
  %8692 = vmatpush1.msra.mxu0 %v8545
  %8693 = vmatprep.subr.mxu0 %v8548
  %8694 = vmatpush1.msra.mxu0 %v8547
  %8695 = vmatprep.subr.mxu0 %v8550
  %8696 = vmatpush1.msra.mxu0 %v8549
  %8697 = vmatprep.subr.mxu0 %v8552
  %8698 = vmatpush1.msra.mxu0 %v8551
  %8699 = vmatprep.subr.mxu0 %v8554
  %8700 = vmatpush1.msra.mxu0 %v8553
  %8701 = vmatprep.subr.mxu0 0.0
  %8702 = vmatpush1.msra.mxu0 0.0
  %8703 = vmatprep.subr.mxu0 0.0
  %8704 = vmatpush1.msra.mxu0 0.0
  %8705 = vmatprep.subr.mxu0 0.0
  %8706 = vmatpush1.msra.mxu0 0.0
  %8707 = vmatprep.subr.mxu0 0.0
  %8708 = vmatpush1.msra.mxu0 0.0
  %8709 = vmatprep.subr.mxu0 0.0
  %8710 = vmatpush1.msra.mxu0 0.0
  %8711 = vmatprep.subr.mxu0 0.0
  %8712 = vmatpush1.msra.mxu0 0.0
  %8713 = vmatprep.subr.mxu0 0.0
  %8714 = vmatpush1.msra.mxu0 0.0
  %8715 = vmatprep.subr.mxu0 0.0
  %8716 = vmatpush1.msra.mxu0 0.0
  %8717 = vmatprep.subr.mxu0 0.0
  %8718 = vmatpush1.msra.mxu0 0.0
  %8719 = vmatprep.subr.mxu0 0.0
  %8720 = vmatpush1.msra.mxu0 0.0
  %8721 = vmatprep.subr.mxu0 0.0
  %8722 = vmatpush1.msra.mxu0 0.0
  %8723 = vmatprep.subr.mxu0 0.0
  %8724 = vmatpush1.msra.mxu0 0.0
  %8725 = vmatprep.subr.mxu0 0.0
  %8726 = vmatpush1.msra.mxu0 0.0
  %8727 = vmatprep.subr.mxu0 0.0
  %8728 = vmatpush1.msra.mxu0 0.0
  %8729 = vmatprep.subr.mxu0 0.0
  %8730 = vmatpush1.msra.mxu0 0.0
  %8731 = vmatprep.subr.mxu0 0.0
  %8732 = vmatpush1.msra.mxu0 0.0
  %8733 = vmatprep.mubr.f32.mxu0 0.0
  %8734 = vmatmul.mubr.f32.gmra.mrb[0].mxu0 %v8521
  %v8735 = vpop.f32.mrb[0].mxu0
  %v8736 = vadd.f32 %v8659, %v8735
  %v8737 = vpop.f32.mrb[0].mxu0
  %v8738 = vadd.f32 %v8661, %v8737
  %8739 = vmatprep.mubr.f32.mxu0 0.0
  %8740 = vmatmul.mubr.f32.gmra.mrb[0].mxu0 %v8522
  %v8741 = vpop.f32.mrb[0].mxu0
  %v8742 = vadd.f32 %v8665, %v8741
  %v8743 = vpop.f32.mrb[0].mxu0
  %v8744 = vadd.f32 %v8667, %v8743
  %8745 = vdwg.mxu0
  %v8746 = vld [vmem:[#allocation6 + $0x7] sm:$0xff]
  %v8747 = vld [vmem:[#allocation6 + $0xf] sm:$0xff]
  %v8748 = vmul.f32 %v8746, %v8491
  %v8749 = vmul.f32 %v8747, %v8492
  %s8750 = scalar_lea.vmem %s7, 512
  %v8751 = vld [vmem:[%s8750] sm:$0xff]
  %v8752 = vld [vmem:[%s8750 + $0x8] sm:$0xff]
  %v8753 = vld [vmem:[%s8750 + $0x10] sm:$0xff]
  %v8754 = vld [vmem:[%s8750 + $0x18] sm:$0xff]
  %v8755 = vld [vmem:[%s8750 + $0x20] sm:$0xff]
  %v8756 = vld [vmem:[%s8750 + $0x28] sm:$0xff]
  %v8757 = vld [vmem:[%s8750 + $0x30] sm:$0xff]
  %v8758 = vld [vmem:[%s8750 + $0x38] sm:$0xff]
  %v8759 = vld [vmem:[%s8750 + $0x40] sm:$0xff]
  %v8760 = vld [vmem:[%s8750 + $0x48] sm:$0xff]
  %v8761 = vld [vmem:[%s8750 + $0x50] sm:$0xff]
  %v8762 = vld [vmem:[%s8750 + $0x58] sm:$0xff]
  %v8763 = vld [vmem:[%s8750 + $0x60] sm:$0xff]
  %v8764 = vld [vmem:[%s8750 + $0x68] sm:$0xff]
  %v8765 = vld [vmem:[%s8750 + $0x70] sm:$0xff]
  %v8766 = vld [vmem:[%s8750 + $0x78] sm:$0xff]
  %v8767 = vld [vmem:[%s8750 + $0x80] sm:$0xff]
  %v8768 = vld [vmem:[%s8750 + $0x88] sm:$0xff]
  %v8769 = vld [vmem:[%s8750 + $0x90] sm:$0xff]
  %v8770 = vld [vmem:[%s8750 + $0x98] sm:$0xff]
  %v8771 = vld [vmem:[%s8750 + $0xa0] sm:$0xff]
  %v8772 = vld [vmem:[%s8750 + $0xa8] sm:$0xff]
  %v8773 = vld [vmem:[%s8750 + $0xb0] sm:$0xff]
  %v8774 = vld [vmem:[%s8750 + $0xb8] sm:$0xff]
  %v8775 = vld [vmem:[%s8750 + $0xc0] sm:$0xff]
  %v8776 = vld [vmem:[%s8750 + $0xc8] sm:$0xff]
  %v8777 = vld [vmem:[%s8750 + $0xd0] sm:$0xff]
  %v8778 = vld [vmem:[%s8750 + $0xd8] sm:$0xff]
  %v8779 = vld [vmem:[%s8750 + $0xe0] sm:$0xff]
  %v8780 = vld [vmem:[%s8750 + $0xe8] sm:$0xff]
  %v8781 = vld [vmem:[%s8750 + $0xf0] sm:$0xff]
  %v8782 = vld [vmem:[%s8750 + $0xf8] sm:$0xff]
  %8783 = vmatprep.subr.mxu0 %v8752
  %8784 = vmatpush1.msra.mxu0 %v8751
  %8785 = vmatprep.subr.mxu0 %v8754
  %8786 = vmatpush1.msra.mxu0 %v8753
  %8787 = vmatprep.subr.mxu0 %v8756
  %8788 = vmatpush1.msra.mxu0 %v8755
  %8789 = vmatprep.subr.mxu0 %v8758
  %8790 = vmatpush1.msra.mxu0 %v8757
  %8791 = vmatprep.subr.mxu0 %v8760
  %8792 = vmatpush1.msra.mxu0 %v8759
  %8793 = vmatprep.subr.mxu0 %v8762
  %8794 = vmatpush1.msra.mxu0 %v8761
  %8795 = vmatprep.subr.mxu0 %v8764
  %8796 = vmatpush1.msra.mxu0 %v8763
  %8797 = vmatprep.subr.mxu0 %v8766
  %8798 = vmatpush1.msra.mxu0 %v8765
  %8799 = vmatprep.subr.mxu0 %v8768
  %8800 = vmatpush1.msra.mxu0 %v8767
  %8801 = vmatprep.subr.mxu0 %v8770
  %8802 = vmatpush1.msra.mxu0 %v8769
  %8803 = vmatprep.subr.mxu0 %v8772
  %8804 = vmatpush1.msra.mxu0 %v8771
  %8805 = vmatprep.subr.mxu0 %v8774
  %8806 = vmatpush1.msra.mxu0 %v8773
  %8807 = vmatprep.subr.mxu0 %v8776
  %8808 = vmatpush1.msra.mxu0 %v8775
  %8809 = vmatprep.subr.mxu0 %v8778
  %8810 = vmatpush1.msra.mxu0 %v8777
  %8811 = vmatprep.subr.mxu0 %v8780
  %8812 = vmatpush1.msra.mxu0 %v8779
  %8813 = vmatprep.subr.mxu0 %v8782
  %8814 = vmatpush1.msra.mxu0 %v8781
  %8815 = vmatprep.subr.mxu0 0.0
  %8816 = vmatpush1.msra.mxu0 0.0
  %8817 = vmatprep.subr.mxu0 0.0
  %8818 = vmatpush1.msra.mxu0 0.0
  %8819 = vmatprep.subr.mxu0 0.0
  %8820 = vmatpush1.msra.mxu0 0.0
  %8821 = vmatprep.subr.mxu0 0.0
  %8822 = vmatpush1.msra.mxu0 0.0
  %8823 = vmatprep.subr.mxu0 0.0
  %8824 = vmatpush1.msra.mxu0 0.0
  %8825 = vmatprep.subr.mxu0 0.0
  %8826 = vmatpush1.msra.mxu0 0.0
  %8827 = vmatprep.subr.mxu0 0.0
  %8828 = vmatpush1.msra.mxu0 0.0
  %8829 = vmatprep.subr.mxu0 0.0
  %8830 = vmatpush1.msra.mxu0 0.0
  %8831 = vmatprep.subr.mxu0 0.0
  %8832 = vmatpush1.msra.mxu0 0.0
  %8833 = vmatprep.subr.mxu0 0.0
  %8834 = vmatpush1.msra.mxu0 0.0
  %8835 = vmatprep.subr.mxu0 0.0
  %8836 = vmatpush1.msra.mxu0 0.0
  %8837 = vmatprep.subr.mxu0 0.0
  %8838 = vmatpush1.msra.mxu0 0.0
  %8839 = vmatprep.subr.mxu0 0.0
  %8840 = vmatpush1.msra.mxu0 0.0
  %8841 = vmatprep.subr.mxu0 0.0
  %8842 = vmatpush1.msra.mxu0 0.0
  %8843 = vmatprep.subr.mxu0 0.0
  %8844 = vmatpush1.msra.mxu0 0.0
  %8845 = vmatprep.subr.mxu0 0.0
  %8846 = vmatpush1.msra.mxu0 0.0
  %8847 = vmatprep.mubr.f32.mxu0 0.0
  %8848 = vmatmul.mubr.f32.gmra.mrb[0].mxu0 %v8748
  %v8849 = vpop.f32.mrb[0].mxu0
  %v8850 = vadd.f32 0.0, %v8849
  %v8851 = vpop.f32.mrb[0].mxu0
  %v8852 = vadd.f32 0.0, %v8851
  %8853 = vmatprep.mubr.f32.mxu0 0.0
  %8854 = vmatmul.mubr.f32.gmra.mrb[0].mxu0 %v8749
  %v8855 = vpop.f32.mrb[0].mxu0
  %v8856 = vadd.f32 0.0, %v8855
  %v8857 = vpop.f32.mrb[0].mxu0
  %v8858 = vadd.f32 0.0, %v8857
  %8859 = vdwg.mxu0
  %v8860 = vadd.f32 %v8736, %v8850
  %v8861 = vadd.f32 %v8738, %v8852
  %v8862 = vadd.f32 %v8742, %v8856
  %v8863 = vadd.f32 %v8744, %v8858
  %v8864 = vmul.f32 %v8746, %v8495
  %v8865 = vmul.f32 %v8747, %v8496
  %s8866 = scalar_lea.vmem %s7, 768
  %v8867 = vld [vmem:[%s8866] sm:$0xff]
  %v8868 = vld [vmem:[%s8866 + $0x8] sm:$0xff]
  %v8869 = vld [vmem:[%s8866 + $0x10] sm:$0xff]
  %v8870 = vld [vmem:[%s8866 + $0x18] sm:$0xff]
  %v8871 = vld [vmem:[%s8866 + $0x20] sm:$0xff]
  %v8872 = vld [vmem:[%s8866 + $0x28] sm:$0xff]
  %v8873 = vld [vmem:[%s8866 + $0x30] sm:$0xff]
  %v8874 = vld [vmem:[%s8866 + $0x38] sm:$0xff]
  %v8875 = vld [vmem:[%s8866 + $0x40] sm:$0xff]
  %v8876 = vld [vmem:[%s8866 + $0x48] sm:$0xff]
  %v8877 = vld [vmem:[%s8866 + $0x50] sm:$0xff]
  %v8878 = vld [vmem:[%s8866 + $0x58] sm:$0xff]
  %v8879 = vld [vmem:[%s8866 + $0x60] sm:$0xff]
  %v8880 = vld [vmem:[%s8866 + $0x68] sm:$0xff]
  %v8881 = vld [vmem:[%s8866 + $0x70] sm:$0xff]
  %v8882 = vld [vmem:[%s8866 + $0x78] sm:$0xff]
  %v8883 = vld [vmem:[%s8866 + $0x80] sm:$0xff]
  %v8884 = vld [vmem:[%s8866 + $0x88] sm:$0xff]
  %v8885 = vld [vmem:[%s8866 + $0x90] sm:$0xff]
  %v8886 = vld [vmem:[%s8866 + $0x98] sm:$0xff]
  %v8887 = vld [vmem:[%s8866 + $0xa0] sm:$0xff]
  %v8888 = vld [vmem:[%s8866 + $0xa8] sm:$0xff]
  %v8889 = vld [vmem:[%s8866 + $0xb0] sm:$0xff]
  %v8890 = vld [vmem:[%s8866 + $0xb8] sm:$0xff]
  %v8891 = vld [vmem:[%s8866 + $0xc0] sm:$0xff]
  %v8892 = vld [vmem:[%s8866 + $0xc8] sm:$0xff]
  %v8893 = vld [vmem:[%s8866 + $0xd0] sm:$0xff]
  %v8894 = vld [vmem:[%s8866 + $0xd8] sm:$0xff]
  %v8895 = vld [vmem:[%s8866 + $0xe0] sm:$0xff]
  %v8896 = vld [vmem:[%s8866 + $0xe8] sm:$0xff]
  %v8897 = vld [vmem:[%s8866 + $0xf0] sm:$0xff]
  %v8898 = vld [vmem:[%s8866 + $0xf8] sm:$0xff]
  %8899 = vmatprep.subr.mxu0 %v8868
  %8900 = vmatpush1.msra.mxu0 %v8867
  %8901 = vmatprep.subr.mxu0 %v8870
  %8902 = vmatpush1.msra.mxu0 %v8869
  %8903 = vmatprep.subr.mxu0 %v8872
  %8904 = vmatpush1.msra.mxu0 %v8871
  %8905 = vmatprep.subr.mxu0 %v8874
  %8906 = vmatpush1.msra.mxu0 %v8873
  %8907 = vmatprep.subr.mxu0 %v8876
  %8908 = vmatpush1.msra.mxu0 %v8875
  %8909 = vmatprep.subr.mxu0 %v8878
  %8910 = vmatpush1.msra.mxu0 %v8877
  %8911 = vmatprep.subr.mxu0 %v8880
  %8912 = vmatpush1.msra.mxu0 %v8879
  %8913 = vmatprep.subr.mxu0 %v8882
  %8914 = vmatpush1.msra.mxu0 %v8881
  %8915 = vmatprep.subr.mxu0 %v8884
  %8916 = vmatpush1.msra.mxu0 %v8883
  %8917 = vmatprep.subr.mxu0 %v8886
  %8918 = vmatpush1.msra.mxu0 %v8885
  %8919 = vmatprep.subr.mxu0 %v8888
  %8920 = vmatpush1.msra.mxu0 %v8887
  %8921 = vmatprep.subr.mxu0 %v8890
  %8922 = vmatpush1.msra.mxu0 %v8889
  %8923 = vmatprep.subr.mxu0 %v8892
  %8924 = vmatpush1.msra.mxu0 %v8891
  %8925 = vmatprep.subr.mxu0 %v8894
  %8926 = vmatpush1.msra.mxu0 %v8893
  %8927 = vmatprep.subr.mxu0 %v8896
  %8928 = vmatpush1.msra.mxu0 %v8895
  %8929 = vmatprep.subr.mxu0 %v8898
  %8930 = vmatpush1.msra.mxu0 %v8897
  %8931 = vmatprep.subr.mxu0 0.0
  %8932 = vmatpush1.msra.mxu0 0.0
  %8933 = vmatprep.subr.mxu0 0.0
  %8934 = vmatpush1.msra.mxu0 0.0
  %8935 = vmatprep.subr.mxu0 0.0
  %8936 = vmatpush1.msra.mxu0 0.0
  %8937 = vmatprep.subr.mxu0 0.0
  %8938 = vmatpush1.msra.mxu0 0.0
  %8939 = vmatprep.subr.mxu0 0.0
  %8940 = vmatpush1.msra.mxu0 0.0
  %8941 = vmatprep.subr.mxu0 0.0
  %8942 = vmatpush1.msra.mxu0 0.0
  %8943 = vmatprep.subr.mxu0 0.0
  %8944 = vmatpush1.msra.mxu0 0.0
  %8945 = vmatprep.subr.mxu0 0.0
  %8946 = vmatpush1.msra.mxu0 0.0
  %8947 = vmatprep.subr.mxu0 0.0
  %8948 = vmatpush1.msra.mxu0 0.0
  %8949 = vmatprep.subr.mxu0 0.0
  %8950 = vmatpush1.msra.mxu0 0.0
  %8951 = vmatprep.subr.mxu0 0.0
  %8952 = vmatpush1.msra.mxu0 0.0
  %8953 = vmatprep.subr.mxu0 0.0
  %8954 = vmatpush1.msra.mxu0 0.0
  %8955 = vmatprep.subr.mxu0 0.0
  %8956 = vmatpush1.msra.mxu0 0.0
  %8957 = vmatprep.subr.mxu0 0.0
  %8958 = vmatpush1.msra.mxu0 0.0
  %8959 = vmatprep.subr.mxu0 0.0
  %8960 = vmatpush1.msra.mxu0 0.0
  %8961 = vmatprep.subr.mxu0 0.0
  %8962 = vmatpush1.msra.mxu0 0.0
  %8963 = vmatprep.mubr.f32.mxu0 0.0
  %8964 = vmatmul.mubr.f32.gmra.mrb[0].mxu0 %v8864
  %v8965 = vpop.f32.mrb[0].mxu0
  %v8966 = vadd.f32 0.0, %v8965
  %v8967 = vpop.f32.mrb[0].mxu0
  %v8968 = vadd.f32 0.0, %v8967
  %8969 = vmatprep.mubr.f32.mxu0 0.0
  %8970 = vmatmul.mubr.f32.gmra.mrb[0].mxu0 %v8865
  %v8971 = vpop.f32.mrb[0].mxu0
  %v8972 = vadd.f32 0.0, %v8971
  %v8973 = vpop.f32.mrb[0].mxu0
  %v8974 = vadd.f32 0.0, %v8973
  %8975 = vdwg.mxu0
  %v8976 = vadd.f32 %v8860, %v8966
  %v8977 = vadd.f32 %v8861, %v8968
  %v8978 = vadd.f32 %v8862, %v8972
  %v8979 = vadd.f32 %v8863, %v8974
  %v8980 = vld [vmem:[#allocation6 + $0x8] sm:$0xff]
  %v8981 = vld [vmem:[#allocation6 + $0x10] sm:$0xff]
  %s8982 = scalar_lea.vmem %s7, 1024
  %v8983 = vld [vmem:[%s8982] sm:$0xff]
  %v8984 = vld [vmem:[%s8982 + $0x8] sm:$0xff]
  %v8985 = vld [vmem:[%s8982 + $0x10] sm:$0xff]
  %v8986 = vld [vmem:[%s8982 + $0x18] sm:$0xff]
  %v8987 = vld [vmem:[%s8982 + $0x20] sm:$0xff]
  %v8988 = vld [vmem:[%s8982 + $0x28] sm:$0xff]
  %v8989 = vld [vmem:[%s8982 + $0x30] sm:$0xff]
  %v8990 = vld [vmem:[%s8982 + $0x38] sm:$0xff]
  %v8991 = vld [vmem:[%s8982 + $0x40] sm:$0xff]
  %v8992 = vld [vmem:[%s8982 + $0x48] sm:$0xff]
  %v8993 = vld [vmem:[%s8982 + $0x50] sm:$0xff]
  %v8994 = vld [vmem:[%s8982 + $0x58] sm:$0xff]
  %v8995 = vld [vmem:[%s8982 + $0x60] sm:$0xff]
  %v8996 = vld [vmem:[%s8982 + $0x68] sm:$0xff]
  %v8997 = vld [vmem:[%s8982 + $0x70] sm:$0xff]
  %v8998 = vld [vmem:[%s8982 + $0x78] sm:$0xff]
  %v8999 = vld [vmem:[%s8982 + $0x80] sm:$0xff]
  %v9000 = vld [vmem:[%s8982 + $0x88] sm:$0xff]
  %v9001 = vld [vmem:[%s8982 + $0x90] sm:$0xff]
  %v9002 = vld [vmem:[%s8982 + $0x98] sm:$0xff]
  %v9003 = vld [vmem:[%s8982 + $0xa0] sm:$0xff]
  %v9004 = vld [vmem:[%s8982 + $0xa8] sm:$0xff]
  %v9005 = vld [vmem:[%s8982 + $0xb0] sm:$0xff]
  %v9006 = vld [vmem:[%s8982 + $0xb8] sm:$0xff]
  %v9007 = vld [vmem:[%s8982 + $0xc0] sm:$0xff]
  %v9008 = vld [vmem:[%s8982 + $0xc8] sm:$0xff]
  %v9009 = vld [vmem:[%s8982 + $0xd0] sm:$0xff]
  %v9010 = vld [vmem:[%s8982 + $0xd8] sm:$0xff]
  %v9011 = vld [vmem:[%s8982 + $0xe0] sm:$0xff]
  %v9012 = vld [vmem:[%s8982 + $0xe8] sm:$0xff]
  %v9013 = vld [vmem:[%s8982 + $0xf0] sm:$0xff]
  %v9014 = vld [vmem:[%s8982 + $0xf8] sm:$0xff]
  %9015 = vmatprep.subr.mxu0 %v8984
  %9016 = vmatpush1.msra.mxu0 %v8983
  %9017 = vmatprep.subr.mxu0 %v8986
  %9018 = vmatpush1.msra.mxu0 %v8985
  %9019 = vmatprep.subr.mxu0 %v8988
  %9020 = vmatpush1.msra.mxu0 %v8987
  %9021 = vmatprep.subr.mxu0 %v8990
  %9022 = vmatpush1.msra.mxu0 %v8989
  %9023 = vmatprep.subr.mxu0 %v8992
  %9024 = vmatpush1.msra.mxu0 %v8991
  %9025 = vmatprep.subr.mxu0 %v8994
  %9026 = vmatpush1.msra.mxu0 %v8993
  %9027 = vmatprep.subr.mxu0 %v8996
  %9028 = vmatpush1.msra.mxu0 %v8995
  %9029 = vmatprep.subr.mxu0 %v8998
  %9030 = vmatpush1.msra.mxu0 %v8997
  %9031 = vmatprep.subr.mxu0 %v9000
  %9032 = vmatpush1.msra.mxu0 %v8999
  %9033 = vmatprep.subr.mxu0 %v9002
  %9034 = vmatpush1.msra.mxu0 %v9001
  %9035 = vmatprep.subr.mxu0 %v9004
  %9036 = vmatpush1.msra.mxu0 %v9003
  %9037 = vmatprep.subr.mxu0 %v9006
  %9038 = vmatpush1.msra.mxu0 %v9005
  %9039 = vmatprep.subr.mxu0 %v9008
  %9040 = vmatpush1.msra.mxu0 %v9007
  %9041 = vmatprep.subr.mxu0 %v9010
  %9042 = vmatpush1.msra.mxu0 %v9009
  %9043 = vmatprep.subr.mxu0 %v9012
  %9044 = vmatpush1.msra.mxu0 %v9011
  %9045 = vmatprep.subr.mxu0 %v9014
  %9046 = vmatpush1.msra.mxu0 %v9013
  %9047 = vmatprep.subr.mxu0 0.0
  %9048 = vmatpush1.msra.mxu0 0.0
  %9049 = vmatprep.subr.mxu0 0.0
  %9050 = vmatpush1.msra.mxu0 0.0
  %9051 = vmatprep.subr.mxu0 0.0
  %9052 = vmatpush1.msra.mxu0 0.0
  %9053 = vmatprep.subr.mxu0 0.0
  %9054 = vmatpush1.msra.mxu0 0.0
  %9055 = vmatprep.subr.mxu0 0.0
  %9056 = vmatpush1.msra.mxu0 0.0
  %9057 = vmatprep.subr.mxu0 0.0
  %9058 = vmatpush1.msra.mxu0 0.0
  %9059 = vmatprep.subr.mxu0 0.0
  %9060 = vmatpush1.msra.mxu0 0.0
  %9061 = vmatprep.subr.mxu0 0.0
  %9062 = vmatpush1.msra.mxu0 0.0
  %9063 = vmatprep.subr.mxu0 0.0
  %9064 = vmatpush1.msra.mxu0 0.0
  %9065 = vmatprep.subr.mxu0 0.0
  %9066 = vmatpush1.msra.mxu0 0.0
  %9067 = vmatprep.subr.mxu0 0.0
  %9068 = vmatpush1.msra.mxu0 0.0
  %9069 = vmatprep.subr.mxu0 0.0
  %9070 = vmatpush1.msra.mxu0 0.0
  %9071 = vmatprep.subr.mxu0 0.0
  %9072 = vmatpush1.msra.mxu0 0.0
  %9073 = vmatprep.subr.mxu0 0.0
  %9074 = vmatpush1.msra.mxu0 0.0
  %9075 = vmatprep.subr.mxu0 0.0
  %9076 = vmatpush1.msra.mxu0 0.0
  %9077 = vmatprep.subr.mxu0 0.0
  %9078 = vmatpush1.msra.mxu0 0.0
  %9079 = vmatprep.mubr.f32.mxu0 0.0
  %9080 = vmatmul.mubr.f32.gmra.mrb[0].mxu0 %v8980
  %v9081 = vpop.f32.mrb[0].mxu0
  %v9082 = vadd.f32 0.0, %v9081
  %v9083 = vpop.f32.mrb[0].mxu0
  %v9084 = vadd.f32 0.0, %v9083
  %9085 = vmatprep.mubr.f32.mxu0 0.0
  %9086 = vmatmul.mubr.f32.gmra.mrb[0].mxu0 %v8981
  %v9087 = vpop.f32.mrb[0].mxu0
  %v9088 = vadd.f32 0.0, %v9087
  %v9089 = vpop.f32.mrb[0].mxu0
  %v9090 = vadd.f32 0.0, %v9089
  %9091 = vdwg.mxu0
  %v9092 = vadd.f32 %v8976, %v9082
  %v9093 = vadd.f32 %v8977, %v9084
  %v9094 = vadd.f32 %v8978, %v9088
  %v9095 = vadd.f32 %v8979, %v9090
  %v9096 = vld [vmem:[#allocation6 + $0x9] sm:$0xff]
  %v9097 = vld [vmem:[#allocation6 + $0x11] sm:$0xff]
  %v9098 = vmul.f32 %v9096, %v8499
  %v9099 = vmul.f32 %v9097, %v8500
  %s9100 = scalar_lea.vmem %s7, 1280
  %v9101 = vld [vmem:[%s9100] sm:$0xff]
  %v9102 = vld [vmem:[%s9100 + $0x8] sm:$0xff]
  %v9103 = vld [vmem:[%s9100 + $0x10] sm:$0xff]
  %v9104 = vld [vmem:[%s9100 + $0x18] sm:$0xff]
  %v9105 = vld [vmem:[%s9100 + $0x20] sm:$0xff]
  %v9106 = vld [vmem:[%s9100 + $0x28] sm:$0xff]
  %v9107 = vld [vmem:[%s9100 + $0x30] sm:$0xff]
  %v9108 = vld [vmem:[%s9100 + $0x38] sm:$0xff]
  %v9109 = vld [vmem:[%s9100 + $0x40] sm:$0xff]
  %v9110 = vld [vmem:[%s9100 + $0x48] sm:$0xff]
  %v9111 = vld [vmem:[%s9100 + $0x50] sm:$0xff]
  %v9112 = vld [vmem:[%s9100 + $0x58] sm:$0xff]
  %v9113 = vld [vmem:[%s9100 + $0x60] sm:$0xff]
  %v9114 = vld [vmem:[%s9100 + $0x68] sm:$0xff]
  %v9115 = vld [vmem:[%s9100 + $0x70] sm:$0xff]
  %v9116 = vld [vmem:[%s9100 + $0x78] sm:$0xff]
  %v9117 = vld [vmem:[%s9100 + $0x80] sm:$0xff]
  %v9118 = vld [vmem:[%s9100 + $0x88] sm:$0xff]
  %v9119 = vld [vmem:[%s9100 + $0x90] sm:$0xff]
  %v9120 = vld [vmem:[%s9100 + $0x98] sm:$0xff]
  %v9121 = vld [vmem:[%s9100 + $0xa0] sm:$0xff]
  %v9122 = vld [vmem:[%s9100 + $0xa8] sm:$0xff]
  %v9123 = vld [vmem:[%s9100 + $0xb0] sm:$0xff]
  %v9124 = vld [vmem:[%s9100 + $0xb8] sm:$0xff]
  %v9125 = vld [vmem:[%s9100 + $0xc0] sm:$0xff]
  %v9126 = vld [vmem:[%s9100 + $0xc8] sm:$0xff]
  %v9127 = vld [vmem:[%s9100 + $0xd0] sm:$0xff]
  %v9128 = vld [vmem:[%s9100 + $0xd8] sm:$0xff]
  %v9129 = vld [vmem:[%s9100 + $0xe0] sm:$0xff]
  %v9130 = vld [vmem:[%s9100 + $0xe8] sm:$0xff]
  %v9131 = vld [vmem:[%s9100 + $0xf0] sm:$0xff]
  %v9132 = vld [vmem:[%s9100 + $0xf8] sm:$0xff]
  %9133 = vmatprep.subr.mxu0 %v9102
  %9134 = vmatpush1.msra.mxu0 %v9101
  %9135 = vmatprep.subr.mxu0 %v9104
  %9136 = vmatpush1.msra.mxu0 %v9103
  %9137 = vmatprep.subr.mxu0 %v9106
  %9138 = vmatpush1.msra.mxu0 %v9105
  %9139 = vmatprep.subr.mxu0 %v9108
  %9140 = vmatpush1.msra.mxu0 %v9107
  %9141 = vmatprep.subr.mxu0 %v9110
  %9142 = vmatpush1.msra.mxu0 %v9109
  %9143 = vmatprep.subr.mxu0 %v9112
  %9144 = vmatpush1.msra.mxu0 %v9111
  %9145 = vmatprep.subr.mxu0 %v9114
  %9146 = vmatpush1.msra.mxu0 %v9113
  %9147 = vmatprep.subr.mxu0 %v9116
  %9148 = vmatpush1.msra.mxu0 %v9115
  %9149 = vmatprep.subr.mxu0 %v9118
  %9150 = vmatpush1.msra.mxu0 %v9117
  %9151 = vmatprep.subr.mxu0 %v9120
  %9152 = vmatpush1.msra.mxu0 %v9119
  %9153 = vmatprep.subr.mxu0 %v9122
  %9154 = vmatpush1.msra.mxu0 %v9121
  %9155 = vmatprep.subr.mxu0 %v9124
  %9156 = vmatpush1.msra.mxu0 %v9123
  %9157 = vmatprep.subr.mxu0 %v9126
  %9158 = vmatpush1.msra.mxu0 %v9125
  %9159 = vmatprep.subr.mxu0 %v9128
  %9160 = vmatpush1.msra.mxu0 %v9127
  %9161 = vmatprep.subr.mxu0 %v9130
  %9162 = vmatpush1.msra.mxu0 %v9129
  %9163 = vmatprep.subr.mxu0 %v9132
  %9164 = vmatpush1.msra.mxu0 %v9131
  %9165 = vmatprep.subr.mxu0 0.0
  %9166 = vmatpush1.msra.mxu0 0.0
  %9167 = vmatprep.subr.mxu0 0.0
  %9168 = vmatpush1.msra.mxu0 0.0
  %9169 = vmatprep.subr.mxu0 0.0
  %9170 = vmatpush1.msra.mxu0 0.0
  %9171 = vmatprep.subr.mxu0 0.0
  %9172 = vmatpush1.msra.mxu0 0.0
  %9173 = vmatprep.subr.mxu0 0.0
  %9174 = vmatpush1.msra.mxu0 0.0
  %9175 = vmatprep.subr.mxu0 0.0
  %9176 = vmatpush1.msra.mxu0 0.0
  %9177 = vmatprep.subr.mxu0 0.0
  %9178 = vmatpush1.msra.mxu0 0.0
  %9179 = vmatprep.subr.mxu0 0.0
  %9180 = vmatpush1.msra.mxu0 0.0
  %9181 = vmatprep.subr.mxu0 0.0
  %9182 = vmatpush1.msra.mxu0 0.0
  %9183 = vmatprep.subr.mxu0 0.0
  %9184 = vmatpush1.msra.mxu0 0.0
  %9185 = vmatprep.subr.mxu0 0.0
  %9186 = vmatpush1.msra.mxu0 0.0
  %9187 = vmatprep.subr.mxu0 0.0
  %9188 = vmatpush1.msra.mxu0 0.0
  %9189 = vmatprep.subr.mxu0 0.0
  %9190 = vmatpush1.msra.mxu0 0.0
  %9191 = vmatprep.subr.mxu0 0.0
  %9192 = vmatpush1.msra.mxu0 0.0
  %9193 = vmatprep.subr.mxu0 0.0
  %9194 = vmatpush1.msra.mxu0 0.0
  %9195 = vmatprep.subr.mxu0 0.0
  %9196 = vmatpush1.msra.mxu0 0.0
  %9197 = vmatprep.mubr.f32.mxu0 0.0
  %9198 = vmatmul.mubr.f32.gmra.mrb[0].mxu0 %v9098
  %v9199 = vpop.f32.mrb[0].mxu0
  %v9200 = vadd.f32 0.0, %v9199
  %v9201 = vpop.f32.mrb[0].mxu0
  %v9202 = vadd.f32 0.0, %v9201
  %9203 = vmatprep.mubr.f32.mxu0 0.0
  %9204 = vmatmul.mubr.f32.gmra.mrb[0].mxu0 %v9099
  %v9205 = vpop.f32.mrb[0].mxu0
  %v9206 = vadd.f32 0.0, %v9205
  %v9207 = vpop.f32.mrb[0].mxu0
  %v9208 = vadd.f32 0.0, %v9207
  %9209 = vdwg.mxu0
  %v9210 = vadd.f32 %v9092, %v9200
  %v9211 = vadd.f32 %v9093, %v9202
  %v9212 = vadd.f32 %v9094, %v9206
  %v9213 = vadd.f32 %v9095, %v9208
  %v9214 = vmul.f32 %v9096, %v8507
  %v9215 = vmul.f32 %v9097, %v8508
  %s9216 = scalar_lea.vmem %s7, 1536
  %v9217 = vld [vmem:[%s9216] sm:$0xff]
  %v9218 = vld [vmem:[%s9216 + $0x8] sm:$0xff]
  %v9219 = vld [vmem:[%s9216 + $0x10] sm:$0xff]
  %v9220 = vld [vmem:[%s9216 + $0x18] sm:$0xff]
  %v9221 = vld [vmem:[%s9216 + $0x20] sm:$0xff]
  %v9222 = vld [vmem:[%s9216 + $0x28] sm:$0xff]
  %v9223 = vld [vmem:[%s9216 + $0x30] sm:$0xff]
  %v9224 = vld [vmem:[%s9216 + $0x38] sm:$0xff]
  %v9225 = vld [vmem:[%s9216 + $0x40] sm:$0xff]
  %v9226 = vld [vmem:[%s9216 + $0x48] sm:$0xff]
  %v9227 = vld [vmem:[%s9216 + $0x50] sm:$0xff]
  %v9228 = vld [vmem:[%s9216 + $0x58] sm:$0xff]
  %v9229 = vld [vmem:[%s9216 + $0x60] sm:$0xff]
  %v9230 = vld [vmem:[%s9216 + $0x68] sm:$0xff]
  %v9231 = vld [vmem:[%s9216 + $0x70] sm:$0xff]
  %v9232 = vld [vmem:[%s9216 + $0x78] sm:$0xff]
  %v9233 = vld [vmem:[%s9216 + $0x80] sm:$0xff]
  %v9234 = vld [vmem:[%s9216 + $0x88] sm:$0xff]
  %v9235 = vld [vmem:[%s9216 + $0x90] sm:$0xff]
  %v9236 = vld [vmem:[%s9216 + $0x98] sm:$0xff]
  %v9237 = vld [vmem:[%s9216 + $0xa0] sm:$0xff]
  %v9238 = vld [vmem:[%s9216 + $0xa8] sm:$0xff]
  %v9239 = vld [vmem:[%s9216 + $0xb0] sm:$0xff]
  %v9240 = vld [vmem:[%s9216 + $0xb8] sm:$0xff]
  %v9241 = vld [vmem:[%s9216 + $0xc0] sm:$0xff]
  %v9242 = vld [vmem:[%s9216 + $0xc8] sm:$0xff]
  %v9243 = vld [vmem:[%s9216 + $0xd0] sm:$0xff]
  %v9244 = vld [vmem:[%s9216 + $0xd8] sm:$0xff]
  %v9245 = vld [vmem:[%s9216 + $0xe0] sm:$0xff]
  %v9246 = vld [vmem:[%s9216 + $0xe8] sm:$0xff]
  %v9247 = vld [vmem:[%s9216 + $0xf0] sm:$0xff]
  %v9248 = vld [vmem:[%s9216 + $0xf8] sm:$0xff]
  %9249 = vmatprep.subr.mxu0 %v9218
  %9250 = vmatpush1.msra.mxu0 %v9217
  %9251 = vmatprep.subr.mxu0 %v9220
  %9252 = vmatpush1.msra.mxu0 %v9219
  %9253 = vmatprep.subr.mxu0 %v9222
  %9254 = vmatpush1.msra.mxu0 %v9221
  %9255 = vmatprep.subr.mxu0 %v9224
  %9256 = vmatpush1.msra.mxu0 %v9223
  %9257 = vmatprep.subr.mxu0 %v9226
  %9258 = vmatpush1.msra.mxu0 %v9225
  %9259 = vmatprep.subr.mxu0 %v9228
  %9260 = vmatpush1.msra.mxu0 %v9227
  %9261 = vmatprep.subr.mxu0 %v9230
  %9262 = vmatpush1.msra.mxu0 %v9229
  %9263 = vmatprep.subr.mxu0 %v9232
  %9264 = vmatpush1.msra.mxu0 %v9231
  %9265 = vmatprep.subr.mxu0 %v9234
  %9266 = vmatpush1.msra.mxu0 %v9233
  %9267 = vmatprep.subr.mxu0 %v9236
  %9268 = vmatpush1.msra.mxu0 %v9235
  %9269 = vmatprep.subr.mxu0 %v9238
  %9270 = vmatpush1.msra.mxu0 %v9237
  %9271 = vmatprep.subr.mxu0 %v9240
  %9272 = vmatpush1.msra.mxu0 %v9239
  %9273 = vmatprep.subr.mxu0 %v9242
  %9274 = vmatpush1.msra.mxu0 %v9241
  %9275 = vmatprep.subr.mxu0 %v9244
  %9276 = vmatpush1.msra.mxu0 %v9243
  %9277 = vmatprep.subr.mxu0 %v9246
  %9278 = vmatpush1.msra.mxu0 %v9245
  %9279 = vmatprep.subr.mxu0 %v9248
  %9280 = vmatpush1.msra.mxu0 %v9247
  %9281 = vmatprep.subr.mxu0 0.0
  %9282 = vmatpush1.msra.mxu0 0.0
  %9283 = vmatprep.subr.mxu0 0.0
  %9284 = vmatpush1.msra.mxu0 0.0
  %9285 = vmatprep.subr.mxu0 0.0
  %9286 = vmatpush1.msra.mxu0 0.0
  %9287 = vmatprep.subr.mxu0 0.0
  %9288 = vmatpush1.msra.mxu0 0.0
  %9289 = vmatprep.subr.mxu0 0.0
  %9290 = vmatpush1.msra.mxu0 0.0
  %9291 = vmatprep.subr.mxu0 0.0
  %9292 = vmatpush1.msra.mxu0 0.0
  %9293 = vmatprep.subr.mxu0 0.0
  %9294 = vmatpush1.msra.mxu0 0.0
  %9295 = vmatprep.subr.mxu0 0.0
  %9296 = vmatpush1.msra.mxu0 0.0
  %9297 = vmatprep.subr.mxu0 0.0
  %9298 = vmatpush1.msra.mxu0 0.0
  %9299 = vmatprep.subr.mxu0 0.0
  %9300 = vmatpush1.msra.mxu0 0.0
  %9301 = vmatprep.subr.mxu0 0.0
  %9302 = vmatpush1.msra.mxu0 0.0
  %9303 = vmatprep.subr.mxu0 0.0
  %9304 = vmatpush1.msra.mxu0 0.0
  %9305 = vmatprep.subr.mxu0 0.0
  %9306 = vmatpush1.msra.mxu0 0.0
  %9307 = vmatprep.subr.mxu0 0.0
  %9308 = vmatpush1.msra.mxu0 0.0
  %9309 = vmatprep.subr.mxu0 0.0
  %9310 = vmatpush1.msra.mxu0 0.0
  %9311 = vmatprep.subr.mxu0 0.0
  %9312 = vmatpush1.msra.mxu0 0.0
  %9313 = vmatprep.mubr.f32.mxu0 0.0
  %9314 = vmatmul.mubr.f32.gmra.mrb[0].mxu0 %v9214
  %v9315 = vpop.f32.mrb[0].mxu0
  %v9316 = vadd.f32 0.0, %v9315
  %v9317 = vpop.f32.mrb[0].mxu0
  %v9318 = vadd.f32 0.0, %v9317
  %9319 = vmatprep.mubr.f32.mxu0 0.0
  %9320 = vmatmul.mubr.f32.gmra.mrb[0].mxu0 %v9215
  %v9321 = vpop.f32.mrb[0].mxu0
  %v9322 = vadd.f32 0.0, %v9321
  %v9323 = vpop.f32.mrb[0].mxu0
  %v9324 = vadd.f32 0.0, %v9323
  %9325 = vdwg.mxu0
  %v9326 = vadd.f32 %v9210, %v9316
  %v9327 = vadd.f32 %v9211, %v9318
  %v9328 = vadd.f32 %v9212, %v9322
  %v9329 = vadd.f32 %v9213, %v9324
  %v9330 = vld [vmem:[#allocation6 + $0xa] sm:$0xff]
  %v9331 = vld [vmem:[#allocation6 + $0x12] sm:$0xff]
  %v9332 = vmul.f32 %v9330, %v8511
  %v9333 = vmul.f32 %v9331, %v8512
  %s9334 = scalar_lea.vmem %s7, 1792
  %v9335 = vld [vmem:[%s9334] sm:$0xff]
  %v9336 = vld [vmem:[%s9334 + $0x8] sm:$0xff]
  %v9337 = vld [vmem:[%s9334 + $0x10] sm:$0xff]
  %v9338 = vld [vmem:[%s9334 + $0x18] sm:$0xff]
  %v9339 = vld [vmem:[%s9334 + $0x20] sm:$0xff]
  %v9340 = vld [vmem:[%s9334 + $0x28] sm:$0xff]
  %v9341 = vld [vmem:[%s9334 + $0x30] sm:$0xff]
  %v9342 = vld [vmem:[%s9334 + $0x38] sm:$0xff]
  %v9343 = vld [vmem:[%s9334 + $0x40] sm:$0xff]
  %v9344 = vld [vmem:[%s9334 + $0x48] sm:$0xff]
  %v9345 = vld [vmem:[%s9334 + $0x50] sm:$0xff]
  %v9346 = vld [vmem:[%s9334 + $0x58] sm:$0xff]
  %v9347 = vld [vmem:[%s9334 + $0x60] sm:$0xff]
  %v9348 = vld [vmem:[%s9334 + $0x68] sm:$0xff]
  %v9349 = vld [vmem:[%s9334 + $0x70] sm:$0xff]
  %v9350 = vld [vmem:[%s9334 + $0x78] sm:$0xff]
  %v9351 = vld [vmem:[%s9334 + $0x80] sm:$0xff]
  %v9352 = vld [vmem:[%s9334 + $0x88] sm:$0xff]
  %v9353 = vld [vmem:[%s9334 + $0x90] sm:$0xff]
  %v9354 = vld [vmem:[%s9334 + $0x98] sm:$0xff]
  %v9355 = vld [vmem:[%s9334 + $0xa0] sm:$0xff]
  %v9356 = vld [vmem:[%s9334 + $0xa8] sm:$0xff]
  %v9357 = vld [vmem:[%s9334 + $0xb0] sm:$0xff]
  %v9358 = vld [vmem:[%s9334 + $0xb8] sm:$0xff]
  %v9359 = vld [vmem:[%s9334 + $0xc0] sm:$0xff]
  %v9360 = vld [vmem:[%s9334 + $0xc8] sm:$0xff]
  %v9361 = vld [vmem:[%s9334 + $0xd0] sm:$0xff]
  %v9362 = vld [vmem:[%s9334 + $0xd8] sm:$0xff]
  %v9363 = vld [vmem:[%s9334 + $0xe0] sm:$0xff]
  %v9364 = vld [vmem:[%s9334 + $0xe8] sm:$0xff]
  %v9365 = vld [vmem:[%s9334 + $0xf0] sm:$0xff]
  %v9366 = vld [vmem:[%s9334 + $0xf8] sm:$0xff]
  %9367 = vmatprep.subr.mxu0 %v9336
  %9368 = vmatpush1.msra.mxu0 %v9335
  %9369 = vmatprep.subr.mxu0 %v9338
  %9370 = vmatpush1.msra.mxu0 %v9337
  %9371 = vmatprep.subr.mxu0 %v9340
  %9372 = vmatpush1.msra.mxu0 %v9339
  %9373 = vmatprep.subr.mxu0 %v9342
  %9374 = vmatpush1.msra.mxu0 %v9341
  %9375 = vmatprep.subr.mxu0 %v9344
  %9376 = vmatpush1.msra.mxu0 %v9343
  %9377 = vmatprep.subr.mxu0 %v9346
  %9378 = vmatpush1.msra.mxu0 %v9345
  %9379 = vmatprep.subr.mxu0 %v9348
  %9380 = vmatpush1.msra.mxu0 %v9347
  %9381 = vmatprep.subr.mxu0 %v9350
  %9382 = vmatpush1.msra.mxu0 %v9349
  %9383 = vmatprep.subr.mxu0 %v9352
  %9384 = vmatpush1.msra.mxu0 %v9351
  %9385 = vmatprep.subr.mxu0 %v9354
  %9386 = vmatpush1.msra.mxu0 %v9353
  %9387 = vmatprep.subr.mxu0 %v9356
  %9388 = vmatpush1.msra.mxu0 %v9355
  %9389 = vmatprep.subr.mxu0 %v9358
  %9390 = vmatpush1.msra.mxu0 %v9357
  %9391 = vmatprep.subr.mxu0 %v9360
  %9392 = vmatpush1.msra.mxu0 %v9359
  %9393 = vmatprep.subr.mxu0 %v9362
  %9394 = vmatpush1.msra.mxu0 %v9361
  %9395 = vmatprep.subr.mxu0 %v9364
  %9396 = vmatpush1.msra.mxu0 %v9363
  %9397 = vmatprep.subr.mxu0 %v9366
  %9398 = vmatpush1.msra.mxu0 %v9365
  %9399 = vmatprep.subr.mxu0 0.0
  %9400 = vmatpush1.msra.mxu0 0.0
  %9401 = vmatprep.subr.mxu0 0.0
  %9402 = vmatpush1.msra.mxu0 0.0
  %9403 = vmatprep.subr.mxu0 0.0
  %9404 = vmatpush1.msra.mxu0 0.0
  %9405 = vmatprep.subr.mxu0 0.0
  %9406 = vmatpush1.msra.mxu0 0.0
  %9407 = vmatprep.subr.mxu0 0.0
  %9408 = vmatpush1.msra.mxu0 0.0
  %9409 = vmatprep.subr.mxu0 0.0
  %9410 = vmatpush1.msra.mxu0 0.0
  %9411 = vmatprep.subr.mxu0 0.0
  %9412 = vmatpush1.msra.mxu0 0.0
  %9413 = vmatprep.subr.mxu0 0.0
  %9414 = vmatpush1.msra.mxu0 0.0
  %9415 = vmatprep.subr.mxu0 0.0
  %9416 = vmatpush1.msra.mxu0 0.0
  %9417 = vmatprep.subr.mxu0 0.0
  %9418 = vmatpush1.msra.mxu0 0.0
  %9419 = vmatprep.subr.mxu0 0.0
  %9420 = vmatpush1.msra.mxu0 0.0
  %9421 = vmatprep.subr.mxu0 0.0
  %9422 = vmatpush1.msra.mxu0 0.0
  %9423 = vmatprep.subr.mxu0 0.0
  %9424 = vmatpush1.msra.mxu0 0.0
  %9425 = vmatprep.subr.mxu0 0.0
  %9426 = vmatpush1.msra.mxu0 0.0
  %9427 = vmatprep.subr.mxu0 0.0
  %9428 = vmatpush1.msra.mxu0 0.0
  %9429 = vmatprep.subr.mxu0 0.0
  %9430 = vmatpush1.msra.mxu0 0.0
  %9431 = vmatprep.mubr.f32.mxu0 0.0
  %9432 = vmatmul.mubr.f32.gmra.mrb[0].mxu0 %v9332
  %v9433 = vpop.f32.mrb[0].mxu0
  %v9434 = vadd.f32 0.0, %v9433
  %v9435 = vpop.f32.mrb[0].mxu0
  %v9436 = vadd.f32 0.0, %v9435
  %9437 = vmatprep.mubr.f32.mxu0 0.0
  %9438 = vmatmul.mubr.f32.gmra.mrb[0].mxu0 %v9333
  %v9439 = vpop.f32.mrb[0].mxu0
  %v9440 = vadd.f32 0.0, %v9439
  %v9441 = vpop.f32.mrb[0].mxu0
  %v9442 = vadd.f32 0.0, %v9441
  %9443 = vdwg.mxu0
  %v9444 = vadd.f32 %v9326, %v9434
  %v9445 = vadd.f32 %v9327, %v9436
  %v9446 = vadd.f32 %v9328, %v9440
  %v9447 = vadd.f32 %v9329, %v9442
  %v9448 = vld [vmem:[#allocation6 + $0xb] sm:$0xff]
  %v9449 = vld [vmem:[#allocation6 + $0x13] sm:$0xff]
  %v9450 = vmul.f32 %v9448, %v8517
  %v9451 = vmul.f32 %v9449, %v8518
  %s9452 = scalar_lea.vmem %s7, 2048
  %v9453 = vld [vmem:[%s9452] sm:$0xff]
  %v9454 = vld [vmem:[%s9452 + $0x8] sm:$0xff]
  %v9455 = vld [vmem:[%s9452 + $0x10] sm:$0xff]
  %v9456 = vld [vmem:[%s9452 + $0x18] sm:$0xff]
  %v9457 = vld [vmem:[%s9452 + $0x20] sm:$0xff]
  %v9458 = vld [vmem:[%s9452 + $0x28] sm:$0xff]
  %v9459 = vld [vmem:[%s9452 + $0x30] sm:$0xff]
  %v9460 = vld [vmem:[%s9452 + $0x38] sm:$0xff]
  %v9461 = vld [vmem:[%s9452 + $0x40] sm:$0xff]
  %v9462 = vld [vmem:[%s9452 + $0x48] sm:$0xff]
  %v9463 = vld [vmem:[%s9452 + $0x50] sm:$0xff]
  %v9464 = vld [vmem:[%s9452 + $0x58] sm:$0xff]
  %v9465 = vld [vmem:[%s9452 + $0x60] sm:$0xff]
  %v9466 = vld [vmem:[%s9452 + $0x68] sm:$0xff]
  %v9467 = vld [vmem:[%s9452 + $0x70] sm:$0xff]
  %v9468 = vld [vmem:[%s9452 + $0x78] sm:$0xff]
  %v9469 = vld [vmem:[%s9452 + $0x80] sm:$0xff]
  %v9470 = vld [vmem:[%s9452 + $0x88] sm:$0xff]
  %v9471 = vld [vmem:[%s9452 + $0x90] sm:$0xff]
  %v9472 = vld [vmem:[%s9452 + $0x98] sm:$0xff]
  %v9473 = vld [vmem:[%s9452 + $0xa0] sm:$0xff]
  %v9474 = vld [vmem:[%s9452 + $0xa8] sm:$0xff]
  %v9475 = vld [vmem:[%s9452 + $0xb0] sm:$0xff]
  %v9476 = vld [vmem:[%s9452 + $0xb8] sm:$0xff]
  %v9477 = vld [vmem:[%s9452 + $0xc0] sm:$0xff]
  %v9478 = vld [vmem:[%s9452 + $0xc8] sm:$0xff]
  %v9479 = vld [vmem:[%s9452 + $0xd0] sm:$0xff]
  %v9480 = vld [vmem:[%s9452 + $0xd8] sm:$0xff]
  %v9481 = vld [vmem:[%s9452 + $0xe0] sm:$0xff]
  %v9482 = vld [vmem:[%s9452 + $0xe8] sm:$0xff]
  %v9483 = vld [vmem:[%s9452 + $0xf0] sm:$0xff]
  %v9484 = vld [vmem:[%s9452 + $0xf8] sm:$0xff]
  %9485 = vmatprep.subr.mxu0 %v9454
  %9486 = vmatpush1.msra.mxu0 %v9453
  %9487 = vmatprep.subr.mxu0 %v9456
  %9488 = vmatpush1.msra.mxu0 %v9455
  %9489 = vmatprep.subr.mxu0 %v9458
  %9490 = vmatpush1.msra.mxu0 %v9457
  %9491 = vmatprep.subr.mxu0 %v9460
  %9492 = vmatpush1.msra.mxu0 %v9459
  %9493 = vmatprep.subr.mxu0 %v9462
  %9494 = vmatpush1.msra.mxu0 %v9461
  %9495 = vmatprep.subr.mxu0 %v9464
  %9496 = vmatpush1.msra.mxu0 %v9463
  %9497 = vmatprep.subr.mxu0 %v9466
  %9498 = vmatpush1.msra.mxu0 %v9465
  %9499 = vmatprep.subr.mxu0 %v9468
  %9500 = vmatpush1.msra.mxu0 %v9467
  %9501 = vmatprep.subr.mxu0 %v9470
  %9502 = vmatpush1.msra.mxu0 %v9469
  %9503 = vmatprep.subr.mxu0 %v9472
  %9504 = vmatpush1.msra.mxu0 %v9471
  %9505 = vmatprep.subr.mxu0 %v9474
  %9506 = vmatpush1.msra.mxu0 %v9473
  %9507 = vmatprep.subr.mxu0 %v9476
  %9508 = vmatpush1.msra.mxu0 %v9475
  %9509 = vmatprep.subr.mxu0 %v9478
  %9510 = vmatpush1.msra.mxu0 %v9477
  %9511 = vmatprep.subr.mxu0 %v9480
  %9512 = vmatpush1.msra.mxu0 %v9479
  %9513 = vmatprep.subr.mxu0 %v9482
  %9514 = vmatpush1.msra.mxu0 %v9481
  %9515 = vmatprep.subr.mxu0 %v9484
  %9516 = vmatpush1.msra.mxu0 %v9483
  %9517 = vmatprep.subr.mxu0 0.0
  %9518 = vmatpush1.msra.mxu0 0.0
  %9519 = vmatprep.subr.mxu0 0.0
  %9520 = vmatpush1.msra.mxu0 0.0
  %9521 = vmatprep.subr.mxu0 0.0
  %9522 = vmatpush1.msra.mxu0 0.0
  %9523 = vmatprep.subr.mxu0 0.0
  %9524 = vmatpush1.msra.mxu0 0.0
  %9525 = vmatprep.subr.mxu0 0.0
  %9526 = vmatpush1.msra.mxu0 0.0
  %9527 = vmatprep.subr.mxu0 0.0
  %9528 = vmatpush1.msra.mxu0 0.0
  %9529 = vmatprep.subr.mxu0 0.0
  %9530 = vmatpush1.msra.mxu0 0.0
  %9531 = vmatprep.subr.mxu0 0.0
  %9532 = vmatpush1.msra.mxu0 0.0
  %9533 = vmatprep.subr.mxu0 0.0
  %9534 = vmatpush1.msra.mxu0 0.0
  %9535 = vmatprep.subr.mxu0 0.0
  %9536 = vmatpush1.msra.mxu0 0.0
  %9537 = vmatprep.subr.mxu0 0.0
  %9538 = vmatpush1.msra.mxu0 0.0
  %9539 = vmatprep.subr.mxu0 0.0
  %9540 = vmatpush1.msra.mxu0 0.0
  %9541 = vmatprep.subr.mxu0 0.0
  %9542 = vmatpush1.msra.mxu0 0.0
  %9543 = vmatprep.subr.mxu0 0.0
  %9544 = vmatpush1.msra.mxu0 0.0
  %9545 = vmatprep.subr.mxu0 0.0
  %9546 = vmatpush1.msra.mxu0 0.0
  %9547 = vmatprep.subr.mxu0 0.0
  %9548 = vmatpush1.msra.mxu0 0.0
  %9549 = vmatprep.mubr.f32.mxu0 0.0
  %9550 = vmatmul.mubr.f32.gmra.mrb[0].mxu0 %v9450
  %v9551 = vpop.f32.mrb[0].mxu0
  %v9552 = vadd.f32 0.0, %v9551
  %v9553 = vpop.f32.mrb[0].mxu0
  %v9554 = vadd.f32 0.0, %v9553
  %9555 = vmatprep.mubr.f32.mxu0 0.0
  %9556 = vmatmul.mubr.f32.gmra.mrb[0].mxu0 %v9451
  %v9557 = vpop.f32.mrb[0].mxu0
  %v9558 = vadd.f32 0.0, %v9557
  %v9559 = vpop.f32.mrb[0].mxu0
  %v9560 = vadd.f32 0.0, %v9559
  %9561 = vdwg.mxu0
  %v9562 = vadd.f32 %v9444, %v9552
  %v9563 = vadd.f32 %v9445, %v9554
  %v9564 = vadd.f32 %v9446, %v9558
  %v9565 = vadd.f32 %v9447, %v9560
  %v9566 = vld [vmem:[%s8] sm:$0x3]
  %v9568 = vlaneseq
  %v9569 = vshrl.u32 %v9568, 7
  %v9570 = vsub.s32 0, %v9569
  %v9571 = vrot.slane %v9566, %v9570
  %v9572 = vlaneseq
  %v9573 = vshrl.u32 %v9572, 7
  %v9574 = vsub.s32 1, %v9573
  %v9575 = vrot.slane %v9566, %v9574
  %v9578 = vadd.f32 %v9562, %v9571
  %v9579 = vadd.f32 %v9563, %v9575
  %v9580 = vadd.f32 %v9564, %v9571
  %v9581 = vadd.f32 %v9565, %v9575
  %v9582 = vmax.f32 %v9578, 0.0
  %v9583 = vmax.f32 %v9579, 0.0
  %v9584 = vmax.f32 %v9580, 0.0
  %v9585 = vmax.f32 %v9581, 0.0
  %v9586 = vld [vmem:[%s11] sm:$0xf]
  %v9588 = vsel %vm90, %v9586, 0
  %9590 = vmatprep.subr.mxu0 %v9583
  %9591 = vmatpush1.msra.mxu0 %v9582
  %9592 = vmatprep.subr.mxu0 %v9585
  %9593 = vmatpush1.msra.mxu0 %v9584
  %9594 = vmatprep.subr.mxu0 0.0
  %9595 = vmatpush1.msra.mxu0 0.0
  %9596 = vmatprep.subr.mxu0 0.0
  %9597 = vmatpush1.msra.mxu0 0.0
  %9598 = vmatprep.subr.mxu0 0.0
  %9599 = vmatpush1.msra.mxu0 0.0
  %9600 = vmatprep.subr.mxu0 0.0
  %9601 = vmatpush1.msra.mxu0 0.0
  %9602 = vmatprep.subr.mxu0 0.0
  %9603 = vmatpush1.msra.mxu0 0.0
  %9604 = vmatprep.subr.mxu0 0.0
  %9605 = vmatpush1.msra.mxu0 0.0
  %9606 = vmatprep.subr.mxu0 0.0
  %9607 = vmatpush1.msra.mxu0 0.0
  %9608 = vmatprep.subr.mxu0 0.0
  %9609 = vmatpush1.msra.mxu0 0.0
  %9610 = vmatprep.subr.mxu0 0.0
  %9611 = vmatpush1.msra.mxu0 0.0
  %9612 = vmatprep.subr.mxu0 0.0
  %9613 = vmatpush1.msra.mxu0 0.0
  %9614 = vmatprep.subr.mxu0 0.0
  %9615 = vmatpush1.msra.mxu0 0.0
  %9616 = vmatprep.subr.mxu0 0.0
  %9617 = vmatpush1.msra.mxu0 0.0
  %9618 = vmatprep.subr.mxu0 0.0
  %9619 = vmatpush1.msra.mxu0 0.0
  %9620 = vmatprep.subr.mxu0 0.0
  %9621 = vmatpush1.msra.mxu0 0.0
  %9622 = vmatprep.subr.mxu0 0.0
  %9623 = vmatpush1.msra.mxu0 0.0
  %9624 = vmatprep.subr.mxu0 0.0
  %9625 = vmatpush1.msra.mxu0 0.0
  %9626 = vmatprep.subr.mxu0 0.0
  %9627 = vmatpush1.msra.mxu0 0.0
  %9628 = vmatprep.subr.mxu0 0.0
  %9629 = vmatpush1.msra.mxu0 0.0
  %9630 = vmatprep.subr.mxu0 0.0
  %9631 = vmatpush1.msra.mxu0 0.0
  %9632 = vmatprep.subr.mxu0 0.0
  %9633 = vmatpush1.msra.mxu0 0.0
  %9634 = vmatprep.subr.mxu0 0.0
  %9635 = vmatpush1.msra.mxu0 0.0
  %9636 = vmatprep.subr.mxu0 0.0
  %9637 = vmatpush1.msra.mxu0 0.0
  %9638 = vmatprep.subr.mxu0 0.0
  %9639 = vmatpush1.msra.mxu0 0.0
  %9640 = vmatprep.subr.mxu0 0.0
  %9641 = vmatpush1.msra.mxu0 0.0
  %9642 = vmatprep.subr.mxu0 0.0
  %9643 = vmatpush1.msra.mxu0 0.0
  %9644 = vmatprep.subr.mxu0 0.0
  %9645 = vmatpush1.msra.mxu0 0.0
  %9646 = vmatprep.subr.mxu0 0.0
  %9647 = vmatpush1.msra.mxu0 0.0
  %9648 = vmatprep.subr.mxu0 0.0
  %9649 = vmatpush1.msra.mxu0 0.0
  %9650 = vmatprep.subr.mxu0 0.0
  %9651 = vmatpush1.msra.mxu0 0.0
  %9652 = vmatprep.subr.mxu0 0.0
  %9653 = vmatpush1.msra.mxu0 0.0
  %9654 = vmatprep.mubr.f32.mxu0 0.0
  %9655 = vmatmul.mubr.f32.gmra.mrb[0].mxu0 %v9588
  %v9656 = vpop.f32.mrb[0].mxu0
  %v9657 = vadd.f32 0.0, %v9656
  %v9658 = vpop.f32.mrb[0].mxu0
  %v9659 = vadd.f32 0.0, %v9658
  %9660 = vdwg.mxu0
  %v9661 = vld [vmem:[%s12] sm:$0xff]
  %v9662 = vld [vmem:[%s12 + $0x8] sm:$0xff]
  %v9663 = vld [vmem:[%s12 + $0x10] sm:$0xff]
  %v9664 = vld [vmem:[%s12 + $0x18] sm:$0xff]
  %v9665 = vld [vmem:[%s12 + $0x20] sm:$0xff]
  %v9666 = vld [vmem:[%s12 + $0x28] sm:$0xff]
  %v9667 = vld [vmem:[%s12 + $0x30] sm:$0xff]
  %v9668 = vld [vmem:[%s12 + $0x38] sm:$0xff]
  %v9669 = vld [vmem:[%s12 + $0x40] sm:$0xff]
  %v9670 = vld [vmem:[%s12 + $0x48] sm:$0xff]
  %v9671 = vld [vmem:[%s12 + $0x50] sm:$0xff]
  %v9672 = vld [vmem:[%s12 + $0x58] sm:$0xff]
  %v9673 = vld [vmem:[%s12 + $0x60] sm:$0xff]
  %v9674 = vld [vmem:[%s12 + $0x68] sm:$0xff]
  %v9675 = vld [vmem:[%s12 + $0x70] sm:$0xff]
  %v9676 = vld [vmem:[%s12 + $0x78] sm:$0xff]
  %v9677 = vld [vmem:[%s12 + $0x80] sm:$0xff]
  %v9678 = vld [vmem:[%s12 + $0x88] sm:$0xff]
  %v9679 = vld [vmem:[%s12 + $0x90] sm:$0xff]
  %v9680 = vld [vmem:[%s12 + $0x98] sm:$0xff]
  %v9681 = vld [vmem:[%s12 + $0xa0] sm:$0xff]
  %v9682 = vld [vmem:[%s12 + $0xa8] sm:$0xff]
  %v9683 = vld [vmem:[%s12 + $0xb0] sm:$0xff]
  %v9684 = vld [vmem:[%s12 + $0xb8] sm:$0xff]
  %v9685 = vld [vmem:[%s12 + $0xc0] sm:$0xff]
  %v9686 = vld [vmem:[%s12 + $0xc8] sm:$0xff]
  %v9687 = vld [vmem:[%s12 + $0xd0] sm:$0xff]
  %v9688 = vld [vmem:[%s12 + $0xd8] sm:$0xff]
  %v9689 = vld [vmem:[%s12 + $0xe0] sm:$0xff]
  %v9690 = vld [vmem:[%s12 + $0xe8] sm:$0xff]
  %v9691 = vld [vmem:[%s12 + $0xf0] sm:$0xff]
  %v9692 = vld [vmem:[%s12 + $0xf8] sm:$0xff]
  %v9693 = vld [vmem:[%s13] sm:$0x1]
  %v9695 = vlaneseq
  %v9696 = vshrl.u32 %v9695, 7
  %v9697 = vsub.s32 0, %v9696
  %v9698 = vrot.slane %v9693, %v9697
  %9700 = vmatprep.subr.mxu0 0.0
  %9701 = vmatpush1.msra.mxu0 %v9661
  %9702 = vmatprep.subr.mxu0 0.0
  %9703 = vmatpush1.msra.mxu0 %v9662
  %9704 = vmatprep.subr.mxu0 0.0
  %9705 = vmatpush1.msra.mxu0 %v9663
  %9706 = vmatprep.subr.mxu0 0.0
  %9707 = vmatpush1.msra.mxu0 %v9664
  %9708 = vmatprep.subr.mxu0 0.0
  %9709 = vmatpush1.msra.mxu0 %v9665
  %9710 = vmatprep.subr.mxu0 0.0
  %9711 = vmatpush1.msra.mxu0 %v9666
  %9712 = vmatprep.subr.mxu0 0.0
  %9713 = vmatpush1.msra.mxu0 %v9667
  %9714 = vmatprep.subr.mxu0 0.0
  %9715 = vmatpush1.msra.mxu0 %v9668
  %9716 = vmatprep.subr.mxu0 0.0
  %9717 = vmatpush1.msra.mxu0 %v9669
  %9718 = vmatprep.subr.mxu0 0.0
  %9719 = vmatpush1.msra.mxu0 %v9670
  %9720 = vmatprep.subr.mxu0 0.0
  %9721 = vmatpush1.msra.mxu0 %v9671
  %9722 = vmatprep.subr.mxu0 0.0
  %9723 = vmatpush1.msra.mxu0 %v9672
  %9724 = vmatprep.subr.mxu0 0.0
  %9725 = vmatpush1.msra.mxu0 %v9673
  %9726 = vmatprep.subr.mxu0 0.0
  %9727 = vmatpush1.msra.mxu0 %v9674
  %9728 = vmatprep.subr.mxu0 0.0
  %9729 = vmatpush1.msra.mxu0 %v9675
  %9730 = vmatprep.subr.mxu0 0.0
  %9731 = vmatpush1.msra.mxu0 %v9676
  %9732 = vmatprep.subr.mxu0 0.0
  %9733 = vmatpush1.msra.mxu0 %v9677
  %9734 = vmatprep.subr.mxu0 0.0
  %9735 = vmatpush1.msra.mxu0 %v9678
  %9736 = vmatprep.subr.mxu0 0.0
  %9737 = vmatpush1.msra.mxu0 %v9679
  %9738 = vmatprep.subr.mxu0 0.0
  %9739 = vmatpush1.msra.mxu0 %v9680
  %9740 = vmatprep.subr.mxu0 0.0
  %9741 = vmatpush1.msra.mxu0 %v9681
  %9742 = vmatprep.subr.mxu0 0.0
  %9743 = vmatpush1.msra.mxu0 %v9682
  %9744 = vmatprep.subr.mxu0 0.0
  %9745 = vmatpush1.msra.mxu0 %v9683
  %9746 = vmatprep.subr.mxu0 0.0
  %9747 = vmatpush1.msra.mxu0 %v9684
  %9748 = vmatprep.subr.mxu0 0.0
  %9749 = vmatpush1.msra.mxu0 %v9685
  %9750 = vmatprep.subr.mxu0 0.0
  %9751 = vmatpush1.msra.mxu0 %v9686
  %9752 = vmatprep.subr.mxu0 0.0
  %9753 = vmatpush1.msra.mxu0 %v9687
  %9754 = vmatprep.subr.mxu0 0.0
  %9755 = vmatpush1.msra.mxu0 %v9688
  %9756 = vmatprep.subr.mxu0 0.0
  %9757 = vmatpush1.msra.mxu0 %v9689
  %9758 = vmatprep.subr.mxu0 0.0
  %9759 = vmatpush1.msra.mxu0 %v9690
  %9760 = vmatprep.subr.mxu0 0.0
  %9761 = vmatpush1.msra.mxu0 %v9691
  %9762 = vmatprep.subr.mxu0 0.0
  %9763 = vmatpush1.msra.mxu0 %v9692
  %9764 = vmatprep.mubr.f32.mxu0 %v9659
  %9765 = vmatmul.mubr.f32.gmra.mrb[0].mxu0 %v9657
  %v9766 = vpop.f32.mrb[0].mxu0
  %v9767 = vadd.f32 %v9698, %v9766
  %v9768 = vpop.f32.mrb[0].mxu0
  %9769 = vdwg.mxu0
  %vm9770 = vcmask 1043456
  %v9771 = vsel %vm9770, %v9767, 0.0
  %9772 = vadd.xlane.f32.xlu0 %v9771
  %v9773 = vpop.xlane.xlu0 %9772
  %v9774 = vrcp.pop 128.0
  %v9775 = vmul.f32 %v9773, %v9774
  %v9776 = vsub.f32 %v9767, %v9775
  %v9777 = vmul.f32 %v9776, %v9776
  %v9778 = vsel %vm9770, %v9777, 0.0
  %9779 = vadd.xlane.f32.xlu0 %v9778
  %v9780 = vpop.xlane.xlu0 %9779
  %v9781 = vmul.f32 %v9780, %v9774
  %v9782 = vadd.f32 %v9781, 1e-05
  %v9783 = vrsqrt.pop %v9782
  %v9784 = vmul.f32 %v9776, %v9783
  %v9785 = vld [vmem:[%s14] sm:$0x1]
  %v9787 = vlaneseq
  %v9788 = vshrl.u32 %v9787, 7
  %v9789 = vsub.s32 0, %v9788
  %v9790 = vrot.slane %v9785, %v9789
  %v9792 = vmul.f32 %v9784, %v9790
  %v9793 = vld [vmem:[%s15] sm:$0x1]
  %v9795 = vlaneseq
  %v9796 = vshrl.u32 %v9795, 7
  %v9797 = vsub.s32 0, %v9796
  %v9798 = vrot.slane %v9793, %v9797
  %v9800 = vadd.f32 %v9792, %v9798
  %v9801 = vld [vmem:[%s16] sm:$0x3]
  %vm9802 = vcmask 31744
  %v9804 = vsel %vm9802, %v9801, 0
  %v9807 = vsel %vm9770, %v9800, 0
  %9809 = vmatprep.subr.mxu0 0.0
  %9810 = vmatpush1.msra.mxu0 %v9807
  %9811 = vmatprep.subr.mxu0 0.0
  %9812 = vmatpush1.msra.mxu0 0.0
  %9813 = vmatprep.subr.mxu0 0.0
  %9814 = vmatpush1.msra.mxu0 0.0
  %9815 = vmatprep.subr.mxu0 0.0
  %9816 = vmatpush1.msra.mxu0 0.0
  %9817 = vmatprep.subr.mxu0 0.0
  %9818 = vmatpush1.msra.mxu0 0.0
  %9819 = vmatprep.subr.mxu0 0.0
  %9820 = vmatpush1.msra.mxu0 0.0
  %9821 = vmatprep.subr.mxu0 0.0
  %9822 = vmatpush1.msra.mxu0 0.0
  %9823 = vmatprep.subr.mxu0 0.0
  %9824 = vmatpush1.msra.mxu0 0.0
  %9825 = vmatprep.subr.mxu0 0.0
  %9826 = vmatpush1.msra.mxu0 0.0
  %9827 = vmatprep.subr.mxu0 0.0
  %9828 = vmatpush1.msra.mxu0 0.0
  %9829 = vmatprep.subr.mxu0 0.0
  %9830 = vmatpush1.msra.mxu0 0.0
  %9831 = vmatprep.subr.mxu0 0.0
  %9832 = vmatpush1.msra.mxu0 0.0
  %9833 = vmatprep.subr.mxu0 0.0
  %9834 = vmatpush1.msra.mxu0 0.0
  %9835 = vmatprep.subr.mxu0 0.0
  %9836 = vmatpush1.msra.mxu0 0.0
  %9837 = vmatprep.subr.mxu0 0.0
  %9838 = vmatpush1.msra.mxu0 0.0
  %9839 = vmatprep.subr.mxu0 0.0
  %9840 = vmatpush1.msra.mxu0 0.0
  %9841 = vmatprep.subr.mxu0 0.0
  %9842 = vmatpush1.msra.mxu0 0.0
  %9843 = vmatprep.subr.mxu0 0.0
  %9844 = vmatpush1.msra.mxu0 0.0
  %9845 = vmatprep.subr.mxu0 0.0
  %9846 = vmatpush1.msra.mxu0 0.0
  %9847 = vmatprep.subr.mxu0 0.0
  %9848 = vmatpush1.msra.mxu0 0.0
  %9849 = vmatprep.subr.mxu0 0.0
  %9850 = vmatpush1.msra.mxu0 0.0
  %9851 = vmatprep.subr.mxu0 0.0
  %9852 = vmatpush1.msra.mxu0 0.0
  %9853 = vmatprep.subr.mxu0 0.0
  %9854 = vmatpush1.msra.mxu0 0.0
  %9855 = vmatprep.subr.mxu0 0.0
  %9856 = vmatpush1.msra.mxu0 0.0
  %9857 = vmatprep.subr.mxu0 0.0
  %9858 = vmatpush1.msra.mxu0 0.0
  %9859 = vmatprep.subr.mxu0 0.0
  %9860 = vmatpush1.msra.mxu0 0.0
  %9861 = vmatprep.subr.mxu0 0.0
  %9862 = vmatpush1.msra.mxu0 0.0
  %9863 = vmatprep.subr.mxu0 0.0
  %9864 = vmatpush1.msra.mxu0 0.0
  %9865 = vmatprep.subr.mxu0 0.0
  %9866 = vmatpush1.msra.mxu0 0.0
  %9867 = vmatprep.subr.mxu0 0.0
  %9868 = vmatpush1.msra.mxu0 0.0
  %9869 = vmatprep.subr.mxu0 0.0
  %9870 = vmatpush1.msra.mxu0 0.0
  %9871 = vmatprep.subr.mxu0 0.0
  %9872 = vmatpush1.msra.mxu0 0.0
  %9873 = vmatprep.mubr.f32.mxu0 0.0
  %9874 = vmatmul.mubr.f32.gmra.mrb[0].mxu0 %v9804
  %v9875 = vpop.f32.mrb[0].mxu0
  %v9876 = vadd.f32 0.0, %v9875
  %v9877 = vpop.f32.mrb[0].mxu0
  %9878 = vdwg.mxu0
  %v9879 = vmul.f32 %v9876, %v9876
  %vm9880 = vcmask 1041408
  %v9881 = vsel %vm9880, %v9879, 0.0
  %9882 = vadd.xlane.f32.xlu0 %v9881
  %v9883 = vpop.xlane.xlu0 %9882
  %v9884 = vrsqrt.pop %v9883
  %v9885 = vmul.f32 %v9883, %v9884
  %vm9886 = vcmp.eq.f32.partialorder %v9883, inf
  %v9887 = vsel %vm9886, %v9883, %v9885
  %vm9888 = vcmp.eq.f32.partialorder %v9883, 0.0
  %v9889 = vand.u32 %v9883, 2147483648
  %v9890 = vsel %vm9888, %v9889, %v9887
  %9891 = vst [vmem:[%s17] sm:$0x3] %v9890
  // Predicated region
  $region70: #{siamese_forward.1} parent=0 // pred_check
    _
  $region71: #{siamese_forward.1} parent=0 // pred_check_branch
    %9893 = sbr.rel (0) target = $region73
  $region72: #{siamese_forward.1} parent=0 // pred_region
    _
  $region73: #{siamese_forward.1} parent=0 // pred_fallthru
    _
  // Predicated region
  $region74: #{siamese_forward.1} parent=0 // pred_check
    _
  $region75: #{siamese_forward.1} parent=0 // pred_check_branch
    %9895 = sbr.rel (0) target = $region77
  $region76: #{siamese_forward.1} parent=0 // pred_region
    _
  $region77: #{siamese_forward.1} parent=0 // pred_fallthru
    _

</llo_original>
